<compile_context>
chip_gen: v7x
topology: tpu7x:2x2x1
jax: 0.10.0
libtpu: 0.0.40
codegen_flags: <defaults>
</compile_context>

<pallas_src>
import functools

import jax
import jax.numpy as jnp
from jax.experimental import pallas as pl
from jax.experimental.pallas import tpu as pltpu

D_IN, D_H, D_OUT = 1000, 512, 1152
BN_EPS = 1e-5


def _round_up(x, m):
    return (x + m - 1) // m * m


def tag_encoder_kernel(x_ref, w1_ref, b1_ref, w2_ref, b2_ref,
                       w3_ref, b3_ref, w4_ref, z_ref, zd_ref):
    # Fused 3x (Linear + folded-BN + ReLU) followed by a bias-free Linear.
    # bf16 matmul operands, f32 accumulation / bias add / ReLU.
    x = x_ref[...].astype(jnp.bfloat16)          # cast in-kernel; K=1000 (125x8) is fine on the MXU
    h1 = jnp.dot(x, w1_ref[...], preferred_element_type=jnp.float32) + b1_ref[...]
    h1 = jnp.maximum(h1, 0.0).astype(jnp.bfloat16)
    h2 = jnp.dot(h1, w2_ref[...], preferred_element_type=jnp.float32) + b2_ref[...]
    h2 = jnp.maximum(h2, 0.0).astype(jnp.bfloat16)
    z = jnp.maximum(
        jnp.dot(h2, w3_ref[...], preferred_element_type=jnp.float32) + b3_ref[...], 0.0)
    z_ref[...] = z.astype(z_ref.dtype)
    zd_ref[...] = jnp.dot(z.astype(jnp.bfloat16), w4_ref[...],
                          preferred_element_type=jnp.float32).astype(zd_ref.dtype)


def _const_spec(shape):
    # Whole-array block, same block index at every batch-grid step: Pallas only
    # DMAs it once (block index never changes) so the weights stay VMEM-resident.
    return pl.BlockSpec(shape, lambda i: tuple(0 for _ in shape))


def _vmem_limit_bytes():
    # Generation-aware: ~48 MiB on v7x (64 MiB VMEM/TC), ~96 MiB on v5e/v6e.
    try:
        cap = int(pltpu.get_tpu_info().vmem_capacity_bytes)
    except Exception:
        cap = 64 << 20  # conservative fallback (v7x per-core capacity)
    return min(cap * 3 // 4, 96 << 20)


@functools.partial(jax.jit, static_argnames=("tb", "out_dtype"))
def tag_encoder_forward(tags, w1, b1, w2, b2, w3, b3, w4, *,
                        tb=512, out_dtype=jnp.bfloat16):
    """tags: (B, 1000) f32. Weights pre-folded/pre-cast via prepare_params()."""
    tags = tags.astype(jnp.float32)
    B = tags.shape[0]

    if B <= tb:
        # Single grid step, tile = full (unpadded) batch. Block dims equal the
        # full array dims, so any B is legal; no wrapper pad/cast pass at all.
        tb_eff, B_pad = B, B
        x = tags
    else:
        # Balance the tile across ceil(B/tb) steps, round to 16 rows (bf16
        # sublane packing) so batch padding stays small.
        n_steps = pl.cdiv(B, tb)
        tb_eff = _round_up(pl.cdiv(B, n_steps), 16)
        B_pad = n_steps * tb_eff
        x = tags if B_pad == B else jnp.pad(tags, ((0, B_pad - B), (0, 0)))

    grid = (B_pad // tb_eff,)
    z, z_d = pl.pallas_call(
        tag_encoder_kernel,
        out_shape=(
            jax.ShapeDtypeStruct((B_pad, D_OUT), out_dtype),
            jax.ShapeDtypeStruct((B_pad, D_OUT), out_dtype),
        ),
        grid_spec=pltpu.PrefetchScalarGridSpec(
            num_scalar_prefetch=0,
            grid=grid,
            in_specs=[
                pl.BlockSpec((tb_eff, D_IN), lambda i: (i, 0)),  # raw f32 tags tile
                _const_spec((D_IN, D_H)),                        # W1 (BN-folded, bf16)
                _const_spec((1, D_H)),                           # b1 (BN-folded, f32)
                _const_spec((D_H, D_H)),                         # W2
                _const_spec((1, D_H)),                           # b2
                _const_spec((D_H, D_OUT)),                       # W3
                _const_spec((1, D_OUT)),                         # b3
                _const_spec((D_OUT, D_OUT)),                     # W4 (no bias)
            ],
            out_specs=[
                pl.BlockSpec((tb_eff, D_OUT), lambda i: (i, 0)),
                pl.BlockSpec((tb_eff, D_OUT), lambda i: (i, 0)),
            ],
        ),
        compiler_params=pltpu.CompilerParams(
            dimension_semantics=("parallel",),
            vmem_limit_bytes=_vmem_limit_bytes(),
        ),
    )(x, w1, b1, w2, b2, w3, b3, w4)

    if B_pad != B:
        z, z_d = z[:B], z_d[:B]
    return z, z_d


def fold_bn(w, b, gamma, beta, mean, var, eps=BN_EPS):
    """Fold BatchNorm1d(running stats) into the preceding Linear (w:(K,N), b:(N,))."""
    scale = gamma / jnp.sqrt(var + eps)             # (N,)
    w_f = w * scale[None, :]
    b_f = b * scale + (beta - mean * scale)
    return w_f, b_f.reshape(1, -1)


def prepare_params(p):
    """One-time (outside jit) BN folding + bf16 weight cast; returns device arrays."""
    w1f, b1f = fold_bn(p["w1"], p["b1"], p["g1"], p["bt1"], p["m1"], p["v1"])
    w2f, b2f = fold_bn(p["w2"], p["b2"], p["g2"], p["bt2"], p["m2"], p["v2"])
    w3f, b3f = fold_bn(p["w3"], p["b3"], p["g3"], p["bt3"], p["m3"], p["v3"])
    prepared = (w1f.astype(jnp.bfloat16), b1f.astype(jnp.float32),
                w2f.astype(jnp.bfloat16), b2f.astype(jnp.float32),
                w3f.astype(jnp.bfloat16), b3f.astype(jnp.float32),
                p["w4"].astype(jnp.bfloat16))
    return jax.device_put(prepared)


def init_params(key):
    ks = jax.random.split(key, 20)
    p = {}
    # Linear layers (stored as (in, out)); deterministic small-scale init.
    p["w1"] = jax.random.normal(ks[0], (D_IN, D_H), jnp.float32) * 0.02
    p["b1"] = jax.random.normal(ks[1], (D_H,), jnp.float32) * 0.02
    p["w2"] = jax.random.normal(ks[2], (D_H, D_H), jnp.float32) * 0.02
    p["b2"] = jax.random.normal(ks[3], (D_H,), jnp.float32) * 0.02
    p["w3"] = jax.random.normal(ks[4], (D_H, D_OUT), jnp.float32) * 0.02
    p["b3"] = jax.random.normal(ks[5], (D_OUT,), jnp.float32) * 0.02
    p["w4"] = jax.random.normal(ks[6], (D_OUT, D_OUT), jnp.float32) * 0.02
    # BatchNorm1d params + running stats (nontrivial, deterministic, distinct keys).
    for i, n in zip(range(3), (D_H, D_H, D_OUT)):
        p[f"g{i+1}"] = 1.0 + 0.1 * jax.random.normal(ks[7 + 4 * i], (n,), jnp.float32)
        p[f"bt{i+1}"] = 0.1 * jax.random.normal(ks[8 + 4 * i], (n,), jnp.float32)
        p[f"m{i+1}"] = 0.05 * jax.random.normal(ks[9 + 4 * i], (n,), jnp.float32)
        p[f"v{i+1}"] = 1.0 + 0.1 * jax.random.uniform(ks[10 + 4 * i], (n,), jnp.float32)
    return p


def reference_forward(tags, p):
    """Pure-f32 reference matching the PyTorch module in eval mode."""
    def bn(y, g, bt, m, v):
        return (y - m) / jnp.sqrt(v + BN_EPS) * g + bt
    h1 = jnp.maximum(bn(tags @ p["w1"] + p["b1"], p["g1"], p["bt1"], p["m1"], p["v1"]), 0.0)
    h2 = jnp.maximum(bn(h1 @ p["w2"] + p["b2"], p["g2"], p["bt2"], p["m2"], p["v2"]), 0.0)
    z = jnp.maximum(bn(h2 @ p["w3"] + p["b3"], p["g3"], p["bt3"], p["m3"], p["v3"]), 0.0)
    z_d = z @ p["w4"]
    return z, z_d


def _check(tags, params, prepared, tb):
    z, z_d = tag_encoder_forward(tags, *prepared, tb=tb)
    jax.block_until_ready((z, z_d))
    z_ref, zd_ref = reference_forward(tags, params)
    B = tags.shape[0]
    assert z.shape == (B, D_OUT) and z_d.shape == (B, D_OUT)
    # bf16 operands / bf16 outputs / f32 accumulation vs. pure-f32 reference.
    assert jnp.allclose(z.astype(jnp.float32), z_ref, atol=2e-2, rtol=2e-2), "z mismatch"
    assert jnp.allclose(z_d.astype(jnp.float32), zd_ref, atol=2e-2, rtol=2e-2), "z_d mismatch"


if __name__ == "__main__":
    key = jax.random.PRNGKey(0)
    k_x, k_x2, k_p = jax.random.split(key, 3)

    params = init_params(k_p)
    prepared = prepare_params(params)   # fold BN + cast bf16 once, outside jit

    # Small batch (B <= tb): single grid step, tile = B, no padding, no wrapper ops.
    tags_small = jax.random.uniform(k_x, (30, D_IN), jnp.float32)
    _check(tags_small, params, prepared, tb=512)

    # Larger batch (B > tb): balanced batch tiles (600 -> 3 steps of 208, pad to 624)
    # exercising the multi-step / batch-padding path.
    tags_big = jax.random.uniform(k_x2, (600, D_IN), jnp.float32)
    _check(tags_big, params, prepared, tb=256)

    print("KERNEL_OK")
</pallas_src>

<mosaic_0001>
module attributes {stable_mosaic.version = 11 : i64} {
  func.func @tag_encoder_kernel(%arg0: i32, %arg1: memref<30x1000xf32, #tpu.memory_space<vmem>>, %arg2: memref<1000x512xbf16, #tpu.memory_space<vmem>>, %arg3: memref<1x512xf32, #tpu.memory_space<vmem>>, %arg4: memref<512x512xbf16, #tpu.memory_space<vmem>>, %arg5: memref<1x512xf32, #tpu.memory_space<vmem>>, %arg6: memref<512x1152xbf16, #tpu.memory_space<vmem>>, %arg7: memref<1x1152xf32, #tpu.memory_space<vmem>>, %arg8: memref<1152x1152xbf16, #tpu.memory_space<vmem>>, %arg9: memref<30x1152xbf16, #tpu.memory_space<vmem>>, %arg10: memref<30x1152xbf16, #tpu.memory_space<vmem>>) attributes {dimension_semantics = [#tpu.dimension_semantics<parallel>], iteration_bounds = array<i64: 1>, scalar_prefetch = 0 : i64, scratch_operands = 0 : i64, tpu.core_type = #tpu.core_type<tc>, window_params = [{transform_indices = @transform_0, window_bounds = array<i64: 30, 1000>}, {pipeline_mode = #tpu.pipeline_mode<synchronous>, transform_indices = @transform_1, window_bounds = array<i64: 1000, 512>}, {pipeline_mode = #tpu.pipeline_mode<synchronous>, transform_indices = @transform_2, window_bounds = array<i64: 1, 512>}, {pipeline_mode = #tpu.pipeline_mode<synchronous>, transform_indices = @transform_3, window_bounds = array<i64: 512, 512>}, {pipeline_mode = #tpu.pipeline_mode<synchronous>, transform_indices = @transform_4, window_bounds = array<i64: 1, 512>}, {pipeline_mode = #tpu.pipeline_mode<synchronous>, transform_indices = @transform_5, window_bounds = array<i64: 512, 1152>}, {pipeline_mode = #tpu.pipeline_mode<synchronous>, transform_indices = @transform_6, window_bounds = array<i64: 1, 1152>}, {pipeline_mode = #tpu.pipeline_mode<synchronous>, transform_indices = @transform_7, window_bounds = array<i64: 1152, 1152>}, {transform_indices = @transform_8, window_bounds = array<i64: 30, 1152>}, {transform_indices = @transform_9, window_bounds = array<i64: 30, 1152>}]} {
    %c0 = arith.constant 0 : index
    %c0_0 = arith.constant 0 : index
    %0 = vector.load %arg1[%c0, %c0_0] : memref<30x1000xf32, #tpu.memory_space<vmem>>, vector<30x1000xf32>
    %1 = arith.truncf %0 : vector<30x1000xf32> to vector<30x1000xbf16>
    %c0_1 = arith.constant 0 : index
    %c0_2 = arith.constant 0 : index
    %2 = vector.load %arg2[%c0_1, %c0_2] : memref<1000x512xbf16, #tpu.memory_space<vmem>>, vector<1000x512xbf16>
    %cst = arith.constant dense<0.000000e+00> : vector<30x512xf32>
    %3 = tpu.matmul %1, %2, %cst {dimension_numbers = #tpu.dot_dimension_numbers<[1], [0], [0], [1], [0, 0, 1, 1], [], []>} : vector<30x1000xbf16>, vector<1000x512xbf16>, vector<30x512xf32> -> vector<30x512xf32>
    %c0_3 = arith.constant 0 : index
    %c0_4 = arith.constant 0 : index
    %4 = vector.load %arg3[%c0_3, %c0_4] : memref<1x512xf32, #tpu.memory_space<vmem>>, vector<1x512xf32>
    %5 = vector.broadcast %4 : vector<1x512xf32> to vector<30x512xf32>
    %6 = arith.addf %3, %5 : vector<30x512xf32>
    %cst_5 = arith.constant 0.000000e+00 : f32
    %7 = vector.broadcast %cst_5 : f32 to vector<30x512xf32>
    %8 = arith.maximumf %6, %7 : vector<30x512xf32>
    %9 = arith.truncf %8 : vector<30x512xf32> to vector<30x512xbf16>
    %c0_6 = arith.constant 0 : index
    %c0_7 = arith.constant 0 : index
    %10 = vector.load %arg4[%c0_6, %c0_7] : memref<512x512xbf16, #tpu.memory_space<vmem>>, vector<512x512xbf16>
    %cst_8 = arith.constant dense<0.000000e+00> : vector<30x512xf32>
    %11 = tpu.matmul %9, %10, %cst_8 {dimension_numbers = #tpu.dot_dimension_numbers<[1], [0], [0], [1], [0, 0, 1, 1], [], []>} : vector<30x512xbf16>, vector<512x512xbf16>, vector<30x512xf32> -> vector<30x512xf32>
    %c0_9 = arith.constant 0 : index
    %c0_10 = arith.constant 0 : index
    %12 = vector.load %arg5[%c0_9, %c0_10] : memref<1x512xf32, #tpu.memory_space<vmem>>, vector<1x512xf32>
    %13 = vector.broadcast %12 : vector<1x512xf32> to vector<30x512xf32>
    %14 = arith.addf %11, %13 : vector<30x512xf32>
    %cst_11 = arith.constant 0.000000e+00 : f32
    %15 = vector.broadcast %cst_11 : f32 to vector<30x512xf32>
    %16 = arith.maximumf %14, %15 : vector<30x512xf32>
    %17 = arith.truncf %16 : vector<30x512xf32> to vector<30x512xbf16>
    %c0_12 = arith.constant 0 : index
    %c0_13 = arith.constant 0 : index
    %18 = vector.load %arg6[%c0_12, %c0_13] : memref<512x1152xbf16, #tpu.memory_space<vmem>>, vector<512x1152xbf16>
    %cst_14 = arith.constant dense<0.000000e+00> : vector<30x1152xf32>
    %19 = tpu.matmul %17, %18, %cst_14 {dimension_numbers = #tpu.dot_dimension_numbers<[1], [0], [0], [1], [0, 0, 1, 1], [], []>} : vector<30x512xbf16>, vector<512x1152xbf16>, vector<30x1152xf32> -> vector<30x1152xf32>
    %c0_15 = arith.constant 0 : index
    %c0_16 = arith.constant 0 : index
    %20 = vector.load %arg7[%c0_15, %c0_16] : memref<1x1152xf32, #tpu.memory_space<vmem>>, vector<1x1152xf32>
    %21 = vector.broadcast %20 : vector<1x1152xf32> to vector<30x1152xf32>
    %22 = arith.addf %19, %21 : vector<30x1152xf32>
    %cst_17 = arith.constant 0.000000e+00 : f32
    %23 = vector.broadcast %cst_17 : f32 to vector<30x1152xf32>
    %24 = arith.maximumf %22, %23 : vector<30x1152xf32>
    %25 = arith.truncf %24 : vector<30x1152xf32> to vector<30x1152xbf16>
    %c0_18 = arith.constant 0 : index
    %c0_19 = arith.constant 0 : index
    %26 = vector.load %arg9[%c0_18, %c0_19] : memref<30x1152xbf16, #tpu.memory_space<vmem>>, vector<30x1152xbf16>
    tpu.vector_store %arg9[%c0_18, %c0_19], %25 {strides = array<i32>} : memref<30x1152xbf16, #tpu.memory_space<vmem>>, vector<30x1152xbf16>,
    %27 = arith.truncf %24 : vector<30x1152xf32> to vector<30x1152xbf16>
    %c0_20 = arith.constant 0 : index
    %c0_21 = arith.constant 0 : index
    %28 = vector.load %arg8[%c0_20, %c0_21] : memref<1152x1152xbf16, #tpu.memory_space<vmem>>, vector<1152x1152xbf16>
    %cst_22 = arith.constant dense<0.000000e+00> : vector<30x1152xf32>
    %29 = tpu.matmul %27, %28, %cst_22 {dimension_numbers = #tpu.dot_dimension_numbers<[1], [0], [0], [1], [0, 0, 1, 1], [], []>} : vector<30x1152xbf16>, vector<1152x1152xbf16>, vector<30x1152xf32> -> vector<30x1152xf32>
    %30 = arith.truncf %29 : vector<30x1152xf32> to vector<30x1152xbf16>
    %c0_23 = arith.constant 0 : index
    %c0_24 = arith.constant 0 : index
    %31 = vector.load %arg10[%c0_23, %c0_24] : memref<30x1152xbf16, #tpu.memory_space<vmem>>, vector<30x1152xbf16>
    tpu.vector_store %arg10[%c0_23, %c0_24], %30 {strides = array<i32>} : memref<30x1152xbf16, #tpu.memory_space<vmem>>, vector<30x1152xbf16>,
    return
  }
  func.func @transform_0(%arg0: i32) -> (i32, i32) {
    %c0_i32 = arith.constant 0 : i32
    %c0_i32_0 = arith.constant 0 : i32
    return %arg0, %c0_i32 : i32, i32
  }
  func.func @transform_1(%arg0: i32) -> (i32, i32) {
    %c0_i32 = arith.constant 0 : i32
    %c0_i32_0 = arith.constant 0 : i32
    %c0_i32_1 = arith.constant 0 : i32
    return %c0_i32, %c0_i32_0 : i32, i32
  }
  func.func @transform_2(%arg0: i32) -> (i32, i32) {
    %c0_i32 = arith.constant 0 : i32
    %c0_i32_0 = arith.constant 0 : i32
    %c0_i32_1 = arith.constant 0 : i32
    return %c0_i32, %c0_i32_0 : i32, i32
  }
  func.func @transform_3(%arg0: i32) -> (i32, i32) {
    %c0_i32 = arith.constant 0 : i32
    %c0_i32_0 = arith.constant 0 : i32
    %c0_i32_1 = arith.constant 0 : i32
    return %c0_i32, %c0_i32_0 : i32, i32
  }
  func.func @transform_4(%arg0: i32) -> (i32, i32) {
    %c0_i32 = arith.constant 0 : i32
    %c0_i32_0 = arith.constant 0 : i32
    %c0_i32_1 = arith.constant 0 : i32
    return %c0_i32, %c0_i32_0 : i32, i32
  }
  func.func @transform_5(%arg0: i32) -> (i32, i32) {
    %c0_i32 = arith.constant 0 : i32
    %c0_i32_0 = arith.constant 0 : i32
    %c0_i32_1 = arith.constant 0 : i32
    return %c0_i32, %c0_i32_0 : i32, i32
  }
  func.func @transform_6(%arg0: i32) -> (i32, i32) {
    %c0_i32 = arith.constant 0 : i32
    %c0_i32_0 = arith.constant 0 : i32
    %c0_i32_1 = arith.constant 0 : i32
    return %c0_i32, %c0_i32_0 : i32, i32
  }
  func.func @transform_7(%arg0: i32) -> (i32, i32) {
    %c0_i32 = arith.constant 0 : i32
    %c0_i32_0 = arith.constant 0 : i32
    %c0_i32_1 = arith.constant 0 : i32
    return %c0_i32, %c0_i32_0 : i32, i32
  }
  func.func @transform_8(%arg0: i32) -> (i32, i32) {
    %c0_i32 = arith.constant 0 : i32
    %c0_i32_0 = arith.constant 0 : i32
    return %arg0, %c0_i32 : i32, i32
  }
  func.func @transform_9(%arg0: i32) -> (i32, i32) {
    %c0_i32 = arith.constant 0 : i32
    %c0_i32_0 = arith.constant 0 : i32
    return %arg0, %c0_i32 : i32, i32
  }
}

</mosaic_0001>

<llo_original>
// kernel: tag_encoder_forward.1
$region0: #{tag_encoder_forward.1}
  #allocation0 [shape = 'u32[]', space=smem, size = 0x4, offset = 0x4, fixed_abs, tag = 'smem constant byte address 0x4 - core index']
  #allocation1 [shape = 'u32[144,128]{1,0:T(1,128)}', space=vmem, size = 0x12000, scoped, tag = 'internal scratch']
  %s0 = inlined_call_operand.hbm [shape: f32[30,1000], index: 0, kind: input, shape index: {}]
  %s1 = inlined_call_operand.hbm [shape: bf16[1000,512], index: 1, kind: input, shape index: {}]
  %s2 = inlined_call_operand.hbm [shape: f32[1,512], index: 2, kind: input, shape index: {}]
  %s3 = inlined_call_operand.hbm [shape: bf16[512,512], index: 3, kind: input, shape index: {}]
  %s4 = inlined_call_operand.hbm [shape: f32[1,512], index: 4, kind: input, shape index: {}]
  %s5 = inlined_call_operand.hbm [shape: bf16[512,1152], index: 5, kind: input, shape index: {}]
  %s6 = inlined_call_operand.hbm [shape: f32[1,1152], index: 6, kind: input, shape index: {}]
  %s7 = inlined_call_operand.hbm [shape: bf16[1152,1152], index: 7, kind: input, shape index: {}]
  %s8 = inlined_call_operand.hbm [shape: bf16[30,1152], index: 8, kind: output, shape index: {0}]
  %s9 = inlined_call_operand.hbm [shape: bf16[30,1152], index: 9, kind: output, shape index: {1}]
  %10 = xla_tuple %s8, %s9
  %s11 = sld [smem:[#allocation0]]
  $region82: #{tag_encoder_forward.1} parent=0
    _
  %s13 = ssub.s32 1, %s11
  %s14 = scalar_select 0, %s13, %s11
  $region1: #{tag_encoder_forward.1} parent=0
    #allocation2 [shape = 'u8[131072]{0}', space=vmem, size = 0x20000, scoped, tag = 'input window, operand 0, single buffered']
    #allocation3 [shape = 's32[1]{0}', space=sflag, size = 0x4, scoped, tag = 'scoped memory for tag_encoder_forward.1']
    #allocation4 [shape = 's32[1]{0}', space=sflag, size = 0x4, scoped, tag = 'scoped memory for tag_encoder_forward.1']
    #allocation5 [shape = 'u8[1024000]{0}', space=vmem, size = 0xfa000, scoped, tag = 'input window, operand 1, single buffered']
    #allocation6 [shape = 's32[1]{0}', space=sflag, size = 0x4, scoped, tag = 'scoped memory for tag_encoder_forward.1']
    #allocation7 [shape = 'u8[2048]{0}', space=vmem, size = 0x800, scoped, tag = 'input window, operand 2, single buffered']
    #allocation8 [shape = 'u8[524288]{0}', space=vmem, size = 0x80000, scoped, tag = 'input window, operand 3, single buffered']
    #allocation9 [shape = 's32[1]{0}', space=sflag, size = 0x4, scoped, tag = 'scoped memory for tag_encoder_forward.1']
    #allocation10 [shape = 'u8[2048]{0}', space=vmem, size = 0x800, scoped, tag = 'input window, operand 4, single buffered']
    #allocation11 [shape = 'u8[1179648]{0}', space=vmem, size = 0x120000, scoped, tag = 'input window, operand 5, single buffered']
    #allocation12 [shape = 's32[1]{0}', space=sflag, size = 0x4, scoped, tag = 'scoped memory for tag_encoder_forward.1']
    #allocation13 [shape = 'u8[4608]{0}', space=vmem, size = 0x1400, scoped, tag = 'input window, operand 6, single buffered']
    #allocation14 [shape = 'u8[2654208]{0}', space=vmem, size = 0x288000, scoped, tag = 'input window, operand 7, single buffered']
    #allocation15 [shape = 's32[1]{0}', space=sflag, size = 0x4, scoped, tag = 'scoped memory for tag_encoder_forward.1']
    #allocation16 [shape = 'u8[73728]{0}', space=vmem, size = 0x12000, scoped, tag = 'output window, operand 0, single buffered']
    #allocation17 [shape = 'u8[73728]{0}', space=vmem, size = 0x12000, scoped, tag = 'output window, operand 1, single buffered']
    #allocation18 [shape = 's32[1]{0}', space=sflag, size = 0x4, scoped, tag = 'scoped memory for tag_encoder_forward.1']
    %15 = vsyncpa [#allocation3], 0
    %16 = vsyncpa [#allocation6], 0
    %17 = vsyncpa [#allocation9], 0
    %18 = vsyncpa [#allocation12], 0
    %19 = vsyncpa [#allocation15], 0
    %20 = vsyncpa [#allocation4], 0
    %21 = vsyncpa [#allocation18], 0
    // Predicated region
    $region2: #{tag_encoder_forward.1} parent=1 // pred_check
      _
    $region3: #{tag_encoder_forward.1} parent=1 // pred_check_branch
      %23 = sbr.rel (0) target = $region5
    $region4: #{tag_encoder_forward.1} parent=1 // pred_region
      %s25 = ssub.s32 4096, 4096
      %26 = vsyncadd [#allocation3], %s25
      %s27 = sshll.u32 [#allocation2], 4
      %s28 = int_to_ptr.vmem [resolvable:$true] %s27
      %33 = dma.hbm_to_vmem [thread:$0]  %s0, 4096, %s28, [#allocation3], 1024, 1024, 64
    $region5: #{tag_encoder_forward.1} parent=1 // pred_fallthru
      _
    // Predicated region
    $region6: #{tag_encoder_forward.1} parent=1 // pred_check
      _
    $region7: #{tag_encoder_forward.1} parent=1 // pred_check_branch
      %35 = sbr.rel (0) target = $region9
    $region8: #{tag_encoder_forward.1} parent=1 // pred_region
      %s37 = ssub.s32 32000, 32000
      %38 = vsyncadd [#allocation6], %s37
      %s39 = sshll.u32 [#allocation5], 4
      %s40 = int_to_ptr.vmem [resolvable:$true] %s39
      %45 = dma.hbm_to_vmem [thread:$0]  %s1, 32000, %s40, [#allocation6], 256, 256, 16
    $region9: #{tag_encoder_forward.1} parent=1 // pred_fallthru
      _
    // Predicated region
    $region10: #{tag_encoder_forward.1} parent=1 // pred_check
      _
    $region11: #{tag_encoder_forward.1} parent=1 // pred_check_branch
      %47 = sbr.rel (0) target = $region13
    $region12: #{tag_encoder_forward.1} parent=1 // pred_region
      %s49 = ssub.s32 64, 64
      %50 = vsyncadd [#allocation6], %s49
      %s52 = sshll.u32 [#allocation7], 4
      %s53 = int_to_ptr.vmem [resolvable:$true] %s52
      %55 = dma.hbm_to_vmem [thread:$0]  %s2, 64, %s53, [#allocation6]
    $region13: #{tag_encoder_forward.1} parent=1 // pred_fallthru
      _
    // Predicated region
    $region14: #{tag_encoder_forward.1} parent=1 // pred_check
      _
    $region15: #{tag_encoder_forward.1} parent=1 // pred_check_branch
      %57 = sbr.rel (0) target = $region17
    $region16: #{tag_encoder_forward.1} parent=1 // pred_region
      %s59 = ssub.s32 16384, 16384
      %60 = vsyncadd [#allocation9], %s59
      %s61 = sshll.u32 [#allocation8], 4
      %s62 = int_to_ptr.vmem [resolvable:$true] %s61
      %67 = dma.hbm_to_vmem [thread:$0]  %s3, 16384, %s62, [#allocation9], 256, 256, 16
    $region17: #{tag_encoder_forward.1} parent=1 // pred_fallthru
      _
    // Predicated region
    $region18: #{tag_encoder_forward.1} parent=1 // pred_check
      _
    $region19: #{tag_encoder_forward.1} parent=1 // pred_check_branch
      %69 = sbr.rel (0) target = $region21
    $region20: #{tag_encoder_forward.1} parent=1 // pred_region
      %s71 = ssub.s32 64, 64
      %72 = vsyncadd [#allocation9], %s71
      %s74 = sshll.u32 [#allocation10], 4
      %s75 = int_to_ptr.vmem [resolvable:$true] %s74
      %77 = dma.hbm_to_vmem [thread:$0]  %s4, 64, %s75, [#allocation9]
    $region21: #{tag_encoder_forward.1} parent=1 // pred_fallthru
      _
    // Predicated region
    $region22: #{tag_encoder_forward.1} parent=1 // pred_check
      _
    $region23: #{tag_encoder_forward.1} parent=1 // pred_check_branch
      %79 = sbr.rel (0) target = $region25
    $region24: #{tag_encoder_forward.1} parent=1 // pred_region
      %s81 = ssub.s32 36864, 36864
      %82 = vsyncadd [#allocation12], %s81
      %s83 = sshll.u32 [#allocation11], 4
      %s84 = int_to_ptr.vmem [resolvable:$true] %s83
      %89 = dma.hbm_to_vmem [thread:$0]  %s5, 36864, %s84, [#allocation12], 576, 576, 36
    $region25: #{tag_encoder_forward.1} parent=1 // pred_fallthru
      _
    // Predicated region
    $region26: #{tag_encoder_forward.1} parent=1 // pred_check
      _
    $region27: #{tag_encoder_forward.1} parent=1 // pred_check_branch
      %91 = sbr.rel (0) target = $region29
    $region28: #{tag_encoder_forward.1} parent=1 // pred_region
      %s93 = ssub.s32 144, 144
      %94 = vsyncadd [#allocation12], %s93
      %s96 = sshll.u32 [#allocation13], 4
      %s97 = int_to_ptr.vmem [resolvable:$true] %s96
      %99 = dma.hbm_to_vmem [thread:$0]  %s6, 144, %s97, [#allocation12]
    $region29: #{tag_encoder_forward.1} parent=1 // pred_fallthru
      _
    // Predicated region
    $region30: #{tag_encoder_forward.1} parent=1 // pred_check
      _
    $region31: #{tag_encoder_forward.1} parent=1 // pred_check_branch
      %101 = sbr.rel (0) target = $region33
    $region32: #{tag_encoder_forward.1} parent=1 // pred_region
      %s103 = ssub.s32 82944, 82944
      %104 = vsyncadd [#allocation15], %s103
      %s105 = sshll.u32 [#allocation14], 4
      %s106 = int_to_ptr.vmem [resolvable:$true] %s105
      %111 = dma.hbm_to_vmem [thread:$0]  %s7, 82944, %s106, [#allocation15], 576, 576, 36
    $region33: #{tag_encoder_forward.1} parent=1 // pred_fallthru
      _
    // Predicated region
    $region34: #{tag_encoder_forward.1} parent=1 // pred_check
      _
    $region35: #{tag_encoder_forward.1} parent=1 // pred_check_branch
      %113 = sbr.rel (0) target = $region37
    $region36: #{tag_encoder_forward.1} parent=1 // pred_region
      %114 = dma.done [#allocation3], 4096
    $region37: #{tag_encoder_forward.1} parent=1 // pred_fallthru
      _
    // Predicated region
    $region38: #{tag_encoder_forward.1} parent=1 // pred_check
      _
    $region39: #{tag_encoder_forward.1} parent=1 // pred_check_branch
      %116 = sbr.rel (0) target = $region41
    $region40: #{tag_encoder_forward.1} parent=1 // pred_region
      %117 = dma.done [#allocation6], 32000
    $region41: #{tag_encoder_forward.1} parent=1 // pred_fallthru
      _
    // Predicated region
    $region42: #{tag_encoder_forward.1} parent=1 // pred_check
      _
    $region43: #{tag_encoder_forward.1} parent=1 // pred_check_branch
      %119 = sbr.rel (0) target = $region45
    $region44: #{tag_encoder_forward.1} parent=1 // pred_region
      %120 = dma.done [#allocation6], 64
    $region45: #{tag_encoder_forward.1} parent=1 // pred_fallthru
      _
    // Predicated region
    $region46: #{tag_encoder_forward.1} parent=1 // pred_check
      _
    $region47: #{tag_encoder_forward.1} parent=1 // pred_check_branch
      %122 = sbr.rel (0) target = $region49
    $region48: #{tag_encoder_forward.1} parent=1 // pred_region
      %123 = dma.done [#allocation9], 16384
    $region49: #{tag_encoder_forward.1} parent=1 // pred_fallthru
      _
    // Predicated region
    $region50: #{tag_encoder_forward.1} parent=1 // pred_check
      _
    $region51: #{tag_encoder_forward.1} parent=1 // pred_check_branch
      %125 = sbr.rel (0) target = $region53
    $region52: #{tag_encoder_forward.1} parent=1 // pred_region
      %126 = dma.done [#allocation9], 64
    $region53: #{tag_encoder_forward.1} parent=1 // pred_fallthru
      _
    // Predicated region
    $region54: #{tag_encoder_forward.1} parent=1 // pred_check
      _
    $region55: #{tag_encoder_forward.1} parent=1 // pred_check_branch
      %128 = sbr.rel (0) target = $region57
    $region56: #{tag_encoder_forward.1} parent=1 // pred_region
      %129 = dma.done [#allocation12], 36864
    $region57: #{tag_encoder_forward.1} parent=1 // pred_fallthru
      _
    // Predicated region
    $region58: #{tag_encoder_forward.1} parent=1 // pred_check
      _
    $region59: #{tag_encoder_forward.1} parent=1 // pred_check_branch
      %131 = sbr.rel (0) target = $region61
    $region60: #{tag_encoder_forward.1} parent=1 // pred_region
      %132 = dma.done [#allocation12], 144
    $region61: #{tag_encoder_forward.1} parent=1 // pred_fallthru
      _
    // Predicated region
    $region62: #{tag_encoder_forward.1} parent=1 // pred_check
      _
    $region63: #{tag_encoder_forward.1} parent=1 // pred_check_branch
      %134 = sbr.rel (0) target = $region65
    $region64: #{tag_encoder_forward.1} parent=1 // pred_region
      %135 = dma.done [#allocation15], 82944
    $region65: #{tag_encoder_forward.1} parent=1 // pred_fallthru
      _
    %v137 = vld [vmem:[#allocation2] sm:$0xff]
    %v138 = vld [vmem:[#allocation2 + $0x8] sm:$0xff]
    %v139 = vld [vmem:[#allocation2 + $0x10] sm:$0xff]
    %v140 = vld [vmem:[#allocation2 + $0x18] sm:$0xff]
    %v141 = vld [vmem:[#allocation2 + $0x20] sm:$0xff]
    %v142 = vld [vmem:[#allocation2 + $0x28] sm:$0xff]
    %v143 = vld [vmem:[#allocation2 + $0x30] sm:$0xff]
    %v144 = vld [vmem:[#allocation2 + $0x38] sm:$0xff]
    %v145 = vld [vmem:[#allocation2 + $0x40] sm:$0xff]
    %v146 = vld [vmem:[#allocation2 + $0x48] sm:$0xff]
    %v147 = vld [vmem:[#allocation2 + $0x50] sm:$0xff]
    %v148 = vld [vmem:[#allocation2 + $0x58] sm:$0xff]
    %v149 = vld [vmem:[#allocation2 + $0x60] sm:$0xff]
    %v150 = vld [vmem:[#allocation2 + $0x68] sm:$0xff]
    %v151 = vld [vmem:[#allocation2 + $0x70] sm:$0xff]
    %v152 = vld [vmem:[#allocation2 + $0x78] sm:$0xff]
    %v153 = vld [vmem:[#allocation2 + $0x80] sm:$0xff]
    %v154 = vld [vmem:[#allocation2 + $0x88] sm:$0xff]
    %v155 = vld [vmem:[#allocation2 + $0x90] sm:$0xff]
    %v156 = vld [vmem:[#allocation2 + $0x98] sm:$0xff]
    %v157 = vld [vmem:[#allocation2 + $0xa0] sm:$0xff]
    %v158 = vld [vmem:[#allocation2 + $0xa8] sm:$0xff]
    %v159 = vld [vmem:[#allocation2 + $0xb0] sm:$0xff]
    %v160 = vld [vmem:[#allocation2 + $0xb8] sm:$0xff]
    %v161 = vld [vmem:[#allocation2 + $0xc0] sm:$0x3f]
    %v162 = vld [vmem:[#allocation2 + $0xc8] sm:$0x3f]
    %v163 = vld [vmem:[#allocation2 + $0xd0] sm:$0x3f]
    %v164 = vld [vmem:[#allocation2 + $0xd8] sm:$0x3f]
    %v165 = vld [vmem:[#allocation2 + $0xe0] sm:$0x3f]
    %v166 = vld [vmem:[#allocation2 + $0xe8] sm:$0x3f]
    %v167 = vld [vmem:[#allocation2 + $0xf0] sm:$0x3f]
    %v168 = vld [vmem:[#allocation2 + $0xf8] sm:$0x3f]
    %v169 = vpack.c.bf16 %v145, %v137
    %v170 = vpack.c.bf16 %v146, %v138
    %v171 = vpack.c.bf16 %v147, %v139
    %v172 = vpack.c.bf16 %v148, %v140
    %v173 = vpack.c.bf16 %v149, %v141
    %v174 = vpack.c.bf16 %v150, %v142
    %v175 = vpack.c.bf16 %v151, %v143
    %v176 = vpack.c.bf16 %v152, %v144
    %v177 = vpack.c.bf16 %v161, %v153
    %v178 = vpack.c.bf16 %v162, %v154
    %v179 = vpack.c.bf16 %v163, %v155
    %v180 = vpack.c.bf16 %v164, %v156
    %v181 = vpack.c.bf16 %v165, %v157
    %v182 = vpack.c.bf16 %v166, %v158
    %v183 = vpack.c.bf16 %v167, %v159
    %v184 = vpack.c.bf16 %v168, %v160
    %v185 = vld [vmem:[#allocation5] sm:$0xff]
    %v186 = vld [vmem:[#allocation5 + $0x8] sm:$0xff]
    %v187 = vld [vmem:[#allocation5 + $0x10] sm:$0xff]
    %v188 = vld [vmem:[#allocation5 + $0x18] sm:$0xff]
    %v189 = vld [vmem:[#allocation5 + $0x20] sm:$0xff]
    %v190 = vld [vmem:[#allocation5 + $0x28] sm:$0xff]
    %v191 = vld [vmem:[#allocation5 + $0x30] sm:$0xff]
    %v192 = vld [vmem:[#allocation5 + $0x38] sm:$0xff]
    %v193 = vld [vmem:[#allocation5 + $0x40] sm:$0xff]
    %v194 = vld [vmem:[#allocation5 + $0x48] sm:$0xff]
    %v195 = vld [vmem:[#allocation5 + $0x50] sm:$0xff]
    %v196 = vld [vmem:[#allocation5 + $0x58] sm:$0xff]
    %v197 = vld [vmem:[#allocation5 + $0x60] sm:$0xff]
    %v198 = vld [vmem:[#allocation5 + $0x68] sm:$0xff]
    %v199 = vld [vmem:[#allocation5 + $0x70] sm:$0xff]
    %v200 = vld [vmem:[#allocation5 + $0x78] sm:$0xff]
    %v201 = vld [vmem:[#allocation5 + $0x80] sm:$0xff]
    %v202 = vld [vmem:[#allocation5 + $0x88] sm:$0xff]
    %v203 = vld [vmem:[#allocation5 + $0x90] sm:$0xff]
    %v204 = vld [vmem:[#allocation5 + $0x98] sm:$0xff]
    %v205 = vld [vmem:[#allocation5 + $0xa0] sm:$0xff]
    %v206 = vld [vmem:[#allocation5 + $0xa8] sm:$0xff]
    %v207 = vld [vmem:[#allocation5 + $0xb0] sm:$0xff]
    %v208 = vld [vmem:[#allocation5 + $0xb8] sm:$0xff]
    %v209 = vld [vmem:[#allocation5 + $0xc0] sm:$0xff]
    %v210 = vld [vmem:[#allocation5 + $0xc8] sm:$0xff]
    %v211 = vld [vmem:[#allocation5 + $0xd0] sm:$0xff]
    %v212 = vld [vmem:[#allocation5 + $0xd8] sm:$0xff]
    %v213 = vld [vmem:[#allocation5 + $0xe0] sm:$0xff]
    %v214 = vld [vmem:[#allocation5 + $0xe8] sm:$0xff]
    %v215 = vld [vmem:[#allocation5 + $0xf0] sm:$0xff]
    %v216 = vld [vmem:[#allocation5 + $0xf8] sm:$0xff]
    %v217 = vld [vmem:[#allocation5 + $0x100] sm:$0xff]
    %v218 = vld [vmem:[#allocation5 + $0x108] sm:$0xff]
    %v219 = vld [vmem:[#allocation5 + $0x110] sm:$0xff]
    %v220 = vld [vmem:[#allocation5 + $0x118] sm:$0xff]
    %v221 = vld [vmem:[#allocation5 + $0x120] sm:$0xff]
    %v222 = vld [vmem:[#allocation5 + $0x128] sm:$0xff]
    %v223 = vld [vmem:[#allocation5 + $0x130] sm:$0xff]
    %v224 = vld [vmem:[#allocation5 + $0x138] sm:$0xff]
    %v225 = vld [vmem:[#allocation5 + $0x140] sm:$0xff]
    %v226 = vld [vmem:[#allocation5 + $0x148] sm:$0xff]
    %v227 = vld [vmem:[#allocation5 + $0x150] sm:$0xff]
    %v228 = vld [vmem:[#allocation5 + $0x158] sm:$0xff]
    %v229 = vld [vmem:[#allocation5 + $0x160] sm:$0xff]
    %v230 = vld [vmem:[#allocation5 + $0x168] sm:$0xff]
    %v231 = vld [vmem:[#allocation5 + $0x170] sm:$0xff]
    %v232 = vld [vmem:[#allocation5 + $0x178] sm:$0xff]
    %v233 = vld [vmem:[#allocation5 + $0x180] sm:$0xff]
    %v234 = vld [vmem:[#allocation5 + $0x188] sm:$0xff]
    %v235 = vld [vmem:[#allocation5 + $0x190] sm:$0xff]
    %v236 = vld [vmem:[#allocation5 + $0x198] sm:$0xff]
    %v237 = vld [vmem:[#allocation5 + $0x1a0] sm:$0xff]
    %v238 = vld [vmem:[#allocation5 + $0x1a8] sm:$0xff]
    %v239 = vld [vmem:[#allocation5 + $0x1b0] sm:$0xff]
    %v240 = vld [vmem:[#allocation5 + $0x1b8] sm:$0xff]
    %v241 = vld [vmem:[#allocation5 + $0x1c0] sm:$0xff]
    %v242 = vld [vmem:[#allocation5 + $0x1c8] sm:$0xff]
    %v243 = vld [vmem:[#allocation5 + $0x1d0] sm:$0xff]
    %v244 = vld [vmem:[#allocation5 + $0x1d8] sm:$0xff]
    %v245 = vld [vmem:[#allocation5 + $0x1e0] sm:$0xff]
    %v246 = vld [vmem:[#allocation5 + $0x1e8] sm:$0xff]
    %v247 = vld [vmem:[#allocation5 + $0x1f0] sm:$0xff]
    %v248 = vld [vmem:[#allocation5 + $0x1f8] sm:$0xff]
    %v249 = vld [vmem:[#allocation5 + $0x200] sm:$0xff]
    %v250 = vld [vmem:[#allocation5 + $0x208] sm:$0xff]
    %v251 = vld [vmem:[#allocation5 + $0x210] sm:$0xff]
    %v252 = vld [vmem:[#allocation5 + $0x218] sm:$0xff]
    %v253 = vld [vmem:[#allocation5 + $0x220] sm:$0xff]
    %v254 = vld [vmem:[#allocation5 + $0x228] sm:$0xff]
    %v255 = vld [vmem:[#allocation5 + $0x230] sm:$0xff]
    %v256 = vld [vmem:[#allocation5 + $0x238] sm:$0xff]
    %v257 = vld [vmem:[#allocation5 + $0x240] sm:$0xff]
    %v258 = vld [vmem:[#allocation5 + $0x248] sm:$0xff]
    %v259 = vld [vmem:[#allocation5 + $0x250] sm:$0xff]
    %v260 = vld [vmem:[#allocation5 + $0x258] sm:$0xff]
    %v261 = vld [vmem:[#allocation5 + $0x260] sm:$0xff]
    %v262 = vld [vmem:[#allocation5 + $0x268] sm:$0xff]
    %v263 = vld [vmem:[#allocation5 + $0x270] sm:$0xff]
    %v264 = vld [vmem:[#allocation5 + $0x278] sm:$0xff]
    %v265 = vld [vmem:[#allocation5 + $0x280] sm:$0xff]
    %v266 = vld [vmem:[#allocation5 + $0x288] sm:$0xff]
    %v267 = vld [vmem:[#allocation5 + $0x290] sm:$0xff]
    %v268 = vld [vmem:[#allocation5 + $0x298] sm:$0xff]
    %v269 = vld [vmem:[#allocation5 + $0x2a0] sm:$0xff]
    %v270 = vld [vmem:[#allocation5 + $0x2a8] sm:$0xff]
    %v271 = vld [vmem:[#allocation5 + $0x2b0] sm:$0xff]
    %v272 = vld [vmem:[#allocation5 + $0x2b8] sm:$0xff]
    %v273 = vld [vmem:[#allocation5 + $0x2c0] sm:$0xff]
    %v274 = vld [vmem:[#allocation5 + $0x2c8] sm:$0xff]
    %v275 = vld [vmem:[#allocation5 + $0x2d0] sm:$0xff]
    %v276 = vld [vmem:[#allocation5 + $0x2d8] sm:$0xff]
    %v277 = vld [vmem:[#allocation5 + $0x2e0] sm:$0xff]
    %v278 = vld [vmem:[#allocation5 + $0x2e8] sm:$0xff]
    %v279 = vld [vmem:[#allocation5 + $0x2f0] sm:$0xff]
    %v280 = vld [vmem:[#allocation5 + $0x2f8] sm:$0xff]
    %v281 = vld [vmem:[#allocation5 + $0x300] sm:$0xff]
    %v282 = vld [vmem:[#allocation5 + $0x308] sm:$0xff]
    %v283 = vld [vmem:[#allocation5 + $0x310] sm:$0xff]
    %v284 = vld [vmem:[#allocation5 + $0x318] sm:$0xff]
    %v285 = vld [vmem:[#allocation5 + $0x320] sm:$0xff]
    %v286 = vld [vmem:[#allocation5 + $0x328] sm:$0xff]
    %v287 = vld [vmem:[#allocation5 + $0x330] sm:$0xff]
    %v288 = vld [vmem:[#allocation5 + $0x338] sm:$0xff]
    %v289 = vld [vmem:[#allocation5 + $0x340] sm:$0xff]
    %v290 = vld [vmem:[#allocation5 + $0x348] sm:$0xff]
    %v291 = vld [vmem:[#allocation5 + $0x350] sm:$0xff]
    %v292 = vld [vmem:[#allocation5 + $0x358] sm:$0xff]
    %v293 = vld [vmem:[#allocation5 + $0x360] sm:$0xff]
    %v294 = vld [vmem:[#allocation5 + $0x368] sm:$0xff]
    %v295 = vld [vmem:[#allocation5 + $0x370] sm:$0xff]
    %v296 = vld [vmem:[#allocation5 + $0x378] sm:$0xff]
    %v297 = vld [vmem:[#allocation5 + $0x380] sm:$0xff]
    %v298 = vld [vmem:[#allocation5 + $0x388] sm:$0xff]
    %v299 = vld [vmem:[#allocation5 + $0x390] sm:$0xff]
    %v300 = vld [vmem:[#allocation5 + $0x398] sm:$0xff]
    %v301 = vld [vmem:[#allocation5 + $0x3a0] sm:$0xff]
    %v302 = vld [vmem:[#allocation5 + $0x3a8] sm:$0xff]
    %v303 = vld [vmem:[#allocation5 + $0x3b0] sm:$0xff]
    %v304 = vld [vmem:[#allocation5 + $0x3b8] sm:$0xff]
    %v305 = vld [vmem:[#allocation5 + $0x3c0] sm:$0xff]
    %v306 = vld [vmem:[#allocation5 + $0x3c8] sm:$0xff]
    %v307 = vld [vmem:[#allocation5 + $0x3d0] sm:$0xff]
    %v308 = vld [vmem:[#allocation5 + $0x3d8] sm:$0xff]
    %v309 = vld [vmem:[#allocation5 + $0x3e0] sm:$0xff]
    %v310 = vld [vmem:[#allocation5 + $0x3e8] sm:$0xff]
    %v311 = vld [vmem:[#allocation5 + $0x3f0] sm:$0xff]
    %v312 = vld [vmem:[#allocation5 + $0x3f8] sm:$0xff]
    %v313 = vld [vmem:[#allocation5 + $0x400] sm:$0xff]
    %v314 = vld [vmem:[#allocation5 + $0x408] sm:$0xff]
    %v315 = vld [vmem:[#allocation5 + $0x410] sm:$0xff]
    %v316 = vld [vmem:[#allocation5 + $0x418] sm:$0xff]
    %v317 = vld [vmem:[#allocation5 + $0x420] sm:$0xff]
    %v318 = vld [vmem:[#allocation5 + $0x428] sm:$0xff]
    %v319 = vld [vmem:[#allocation5 + $0x430] sm:$0xff]
    %v320 = vld [vmem:[#allocation5 + $0x438] sm:$0xff]
    %v321 = vld [vmem:[#allocation5 + $0x440] sm:$0xff]
    %v322 = vld [vmem:[#allocation5 + $0x448] sm:$0xff]
    %v323 = vld [vmem:[#allocation5 + $0x450] sm:$0xff]
    %v324 = vld [vmem:[#allocation5 + $0x458] sm:$0xff]
    %v325 = vld [vmem:[#allocation5 + $0x460] sm:$0xff]
    %v326 = vld [vmem:[#allocation5 + $0x468] sm:$0xff]
    %v327 = vld [vmem:[#allocation5 + $0x470] sm:$0xff]
    %v328 = vld [vmem:[#allocation5 + $0x478] sm:$0xff]
    %v329 = vld [vmem:[#allocation5 + $0x480] sm:$0xff]
    %v330 = vld [vmem:[#allocation5 + $0x488] sm:$0xff]
    %v331 = vld [vmem:[#allocation5 + $0x490] sm:$0xff]
    %v332 = vld [vmem:[#allocation5 + $0x498] sm:$0xff]
    %v333 = vld [vmem:[#allocation5 + $0x4a0] sm:$0xff]
    %v334 = vld [vmem:[#allocation5 + $0x4a8] sm:$0xff]
    %v335 = vld [vmem:[#allocation5 + $0x4b0] sm:$0xff]
    %v336 = vld [vmem:[#allocation5 + $0x4b8] sm:$0xff]
    %v337 = vld [vmem:[#allocation5 + $0x4c0] sm:$0xff]
    %v338 = vld [vmem:[#allocation5 + $0x4c8] sm:$0xff]
    %v339 = vld [vmem:[#allocation5 + $0x4d0] sm:$0xff]
    %v340 = vld [vmem:[#allocation5 + $0x4d8] sm:$0xff]
    %v341 = vld [vmem:[#allocation5 + $0x4e0] sm:$0xff]
    %v342 = vld [vmem:[#allocation5 + $0x4e8] sm:$0xff]
    %v343 = vld [vmem:[#allocation5 + $0x4f0] sm:$0xff]
    %v344 = vld [vmem:[#allocation5 + $0x4f8] sm:$0xff]
    %v345 = vld [vmem:[#allocation5 + $0x500] sm:$0xff]
    %v346 = vld [vmem:[#allocation5 + $0x508] sm:$0xff]
    %v347 = vld [vmem:[#allocation5 + $0x510] sm:$0xff]
    %v348 = vld [vmem:[#allocation5 + $0x518] sm:$0xff]
    %v349 = vld [vmem:[#allocation5 + $0x520] sm:$0xff]
    %v350 = vld [vmem:[#allocation5 + $0x528] sm:$0xff]
    %v351 = vld [vmem:[#allocation5 + $0x530] sm:$0xff]
    %v352 = vld [vmem:[#allocation5 + $0x538] sm:$0xff]
    %v353 = vld [vmem:[#allocation5 + $0x540] sm:$0xff]
    %v354 = vld [vmem:[#allocation5 + $0x548] sm:$0xff]
    %v355 = vld [vmem:[#allocation5 + $0x550] sm:$0xff]
    %v356 = vld [vmem:[#allocation5 + $0x558] sm:$0xff]
    %v357 = vld [vmem:[#allocation5 + $0x560] sm:$0xff]
    %v358 = vld [vmem:[#allocation5 + $0x568] sm:$0xff]
    %v359 = vld [vmem:[#allocation5 + $0x570] sm:$0xff]
    %v360 = vld [vmem:[#allocation5 + $0x578] sm:$0xff]
    %v361 = vld [vmem:[#allocation5 + $0x580] sm:$0xff]
    %v362 = vld [vmem:[#allocation5 + $0x588] sm:$0xff]
    %v363 = vld [vmem:[#allocation5 + $0x590] sm:$0xff]
    %v364 = vld [vmem:[#allocation5 + $0x598] sm:$0xff]
    %v365 = vld [vmem:[#allocation5 + $0x5a0] sm:$0xff]
    %v366 = vld [vmem:[#allocation5 + $0x5a8] sm:$0xff]
    %v367 = vld [vmem:[#allocation5 + $0x5b0] sm:$0xff]
    %v368 = vld [vmem:[#allocation5 + $0x5b8] sm:$0xff]
    %v369 = vld [vmem:[#allocation5 + $0x5c0] sm:$0xff]
    %v370 = vld [vmem:[#allocation5 + $0x5c8] sm:$0xff]
    %v371 = vld [vmem:[#allocation5 + $0x5d0] sm:$0xff]
    %v372 = vld [vmem:[#allocation5 + $0x5d8] sm:$0xff]
    %v373 = vld [vmem:[#allocation5 + $0x5e0] sm:$0xff]
    %v374 = vld [vmem:[#allocation5 + $0x5e8] sm:$0xff]
    %v375 = vld [vmem:[#allocation5 + $0x5f0] sm:$0xff]
    %v376 = vld [vmem:[#allocation5 + $0x5f8] sm:$0xff]
    %v377 = vld [vmem:[#allocation5 + $0x600] sm:$0xff]
    %v378 = vld [vmem:[#allocation5 + $0x608] sm:$0xff]
    %v379 = vld [vmem:[#allocation5 + $0x610] sm:$0xff]
    %v380 = vld [vmem:[#allocation5 + $0x618] sm:$0xff]
    %v381 = vld [vmem:[#allocation5 + $0x620] sm:$0xff]
    %v382 = vld [vmem:[#allocation5 + $0x628] sm:$0xff]
    %v383 = vld [vmem:[#allocation5 + $0x630] sm:$0xff]
    %v384 = vld [vmem:[#allocation5 + $0x638] sm:$0xff]
    %v385 = vld [vmem:[#allocation5 + $0x640] sm:$0xff]
    %v386 = vld [vmem:[#allocation5 + $0x648] sm:$0xff]
    %v387 = vld [vmem:[#allocation5 + $0x650] sm:$0xff]
    %v388 = vld [vmem:[#allocation5 + $0x658] sm:$0xff]
    %v389 = vld [vmem:[#allocation5 + $0x660] sm:$0xff]
    %v390 = vld [vmem:[#allocation5 + $0x668] sm:$0xff]
    %v391 = vld [vmem:[#allocation5 + $0x670] sm:$0xff]
    %v392 = vld [vmem:[#allocation5 + $0x678] sm:$0xff]
    %v393 = vld [vmem:[#allocation5 + $0x680] sm:$0xff]
    %v394 = vld [vmem:[#allocation5 + $0x688] sm:$0xff]
    %v395 = vld [vmem:[#allocation5 + $0x690] sm:$0xff]
    %v396 = vld [vmem:[#allocation5 + $0x698] sm:$0xff]
    %v397 = vld [vmem:[#allocation5 + $0x6a0] sm:$0xff]
    %v398 = vld [vmem:[#allocation5 + $0x6a8] sm:$0xff]
    %v399 = vld [vmem:[#allocation5 + $0x6b0] sm:$0xff]
    %v400 = vld [vmem:[#allocation5 + $0x6b8] sm:$0xff]
    %v401 = vld [vmem:[#allocation5 + $0x6c0] sm:$0xff]
    %v402 = vld [vmem:[#allocation5 + $0x6c8] sm:$0xff]
    %v403 = vld [vmem:[#allocation5 + $0x6d0] sm:$0xff]
    %v404 = vld [vmem:[#allocation5 + $0x6d8] sm:$0xff]
    %v405 = vld [vmem:[#allocation5 + $0x6e0] sm:$0xff]
    %v406 = vld [vmem:[#allocation5 + $0x6e8] sm:$0xff]
    %v407 = vld [vmem:[#allocation5 + $0x6f0] sm:$0xff]
    %v408 = vld [vmem:[#allocation5 + $0x6f8] sm:$0xff]
    %v409 = vld [vmem:[#allocation5 + $0x700] sm:$0xff]
    %v410 = vld [vmem:[#allocation5 + $0x708] sm:$0xff]
    %v411 = vld [vmem:[#allocation5 + $0x710] sm:$0xff]
    %v412 = vld [vmem:[#allocation5 + $0x718] sm:$0xff]
    %v413 = vld [vmem:[#allocation5 + $0x720] sm:$0xff]
    %v414 = vld [vmem:[#allocation5 + $0x728] sm:$0xff]
    %v415 = vld [vmem:[#allocation5 + $0x730] sm:$0xff]
    %v416 = vld [vmem:[#allocation5 + $0x738] sm:$0xff]
    %v417 = vld [vmem:[#allocation5 + $0x740] sm:$0xff]
    %v418 = vld [vmem:[#allocation5 + $0x748] sm:$0xff]
    %v419 = vld [vmem:[#allocation5 + $0x750] sm:$0xff]
    %v420 = vld [vmem:[#allocation5 + $0x758] sm:$0xff]
    %v421 = vld [vmem:[#allocation5 + $0x760] sm:$0xff]
    %v422 = vld [vmem:[#allocation5 + $0x768] sm:$0xff]
    %v423 = vld [vmem:[#allocation5 + $0x770] sm:$0xff]
    %v424 = vld [vmem:[#allocation5 + $0x778] sm:$0xff]
    %v425 = vld [vmem:[#allocation5 + $0x780] sm:$0xff]
    %v426 = vld [vmem:[#allocation5 + $0x788] sm:$0xff]
    %v427 = vld [vmem:[#allocation5 + $0x790] sm:$0xff]
    %v428 = vld [vmem:[#allocation5 + $0x798] sm:$0xff]
    %v429 = vld [vmem:[#allocation5 + $0x7a0] sm:$0xff]
    %v430 = vld [vmem:[#allocation5 + $0x7a8] sm:$0xff]
    %v431 = vld [vmem:[#allocation5 + $0x7b0] sm:$0xff]
    %v432 = vld [vmem:[#allocation5 + $0x7b8] sm:$0xff]
    %v433 = vld [vmem:[#allocation5 + $0x7c0] sm:$0xff]
    %v434 = vld [vmem:[#allocation5 + $0x7c8] sm:$0xff]
    %v435 = vld [vmem:[#allocation7] sm:$0xf]
    %v437 = vlaneseq
    %v438 = vshrl.u32 %v437, 7
    %v439 = vsub.s32 0, %v438
    %v440 = vrot.slane %v435, %v439
    %v441 = vlaneseq
    %v442 = vshrl.u32 %v441, 7
    %v443 = vsub.s32 1, %v442
    %v444 = vrot.slane %v435, %v443
    %v445 = vlaneseq
    %v446 = vshrl.u32 %v445, 7
    %v447 = vsub.s32 2, %v446
    %v448 = vrot.slane %v435, %v447
    %v449 = vlaneseq
    %v450 = vshrl.u32 %v449, 7
    %v451 = vsub.s32 3, %v450
    %v452 = vrot.slane %v435, %v451
    %v707 = vunpack.c.l.b16 %v185
    %v708 = vunpack.c.h.b16 %v185
    %v709 = vunpack.c.l.b16 %v186
    %v710 = vunpack.c.h.b16 %v186
    %v711 = vunpack.c.l.b16 %v187
    %v712 = vunpack.c.h.b16 %v187
    %v713 = vunpack.c.l.b16 %v188
    %v714 = vunpack.c.h.b16 %v188
    %v715 = vunpack.c.l.b16 %v189
    %v716 = vunpack.c.h.b16 %v189
    %v717 = vunpack.c.l.b16 %v190
    %v718 = vunpack.c.h.b16 %v190
    %v719 = vunpack.c.l.b16 %v191
    %v720 = vunpack.c.h.b16 %v191
    %v721 = vunpack.c.l.b16 %v192
    %v722 = vunpack.c.h.b16 %v192
    %v723 = vunpack.c.l.b16 %v193
    %v724 = vunpack.c.h.b16 %v193
    %v725 = vunpack.c.l.b16 %v194
    %v726 = vunpack.c.h.b16 %v194
    %v727 = vunpack.c.l.b16 %v195
    %v728 = vunpack.c.h.b16 %v195
    %v729 = vunpack.c.l.b16 %v196
    %v730 = vunpack.c.h.b16 %v196
    %v731 = vunpack.c.l.b16 %v197
    %v732 = vunpack.c.h.b16 %v197
    %v733 = vunpack.c.l.b16 %v198
    %v734 = vunpack.c.h.b16 %v198
    %v735 = vunpack.c.l.b16 %v199
    %v736 = vunpack.c.h.b16 %v199
    %v737 = vunpack.c.l.b16 %v200
    %v738 = vunpack.c.h.b16 %v200
    %v739 = vunpack.c.l.b16 %v201
    %v740 = vunpack.c.h.b16 %v201
    %v741 = vunpack.c.l.b16 %v202
    %v742 = vunpack.c.h.b16 %v202
    %v743 = vunpack.c.l.b16 %v203
    %v744 = vunpack.c.h.b16 %v203
    %v745 = vunpack.c.l.b16 %v204
    %v746 = vunpack.c.h.b16 %v204
    %v747 = vunpack.c.l.b16 %v205
    %v748 = vunpack.c.h.b16 %v205
    %v749 = vunpack.c.l.b16 %v206
    %v750 = vunpack.c.h.b16 %v206
    %v751 = vunpack.c.l.b16 %v207
    %v752 = vunpack.c.h.b16 %v207
    %v753 = vunpack.c.l.b16 %v208
    %v754 = vunpack.c.h.b16 %v208
    %v755 = vunpack.c.l.b16 %v209
    %v756 = vunpack.c.h.b16 %v209
    %v757 = vunpack.c.l.b16 %v210
    %v758 = vunpack.c.h.b16 %v210
    %v759 = vunpack.c.l.b16 %v211
    %v760 = vunpack.c.h.b16 %v211
    %v761 = vunpack.c.l.b16 %v212
    %v762 = vunpack.c.h.b16 %v212
    %v763 = vunpack.c.l.b16 %v213
    %v764 = vunpack.c.h.b16 %v213
    %v765 = vunpack.c.l.b16 %v214
    %v766 = vunpack.c.h.b16 %v214
    %v767 = vunpack.c.l.b16 %v215
    %v768 = vunpack.c.h.b16 %v215
    %v769 = vunpack.c.l.b16 %v216
    %v770 = vunpack.c.h.b16 %v216
    %v771 = vunpack.c.l.b16 %v217
    %v772 = vunpack.c.h.b16 %v217
    %v773 = vunpack.c.l.b16 %v218
    %v774 = vunpack.c.h.b16 %v218
    %v775 = vunpack.c.l.b16 %v219
    %v776 = vunpack.c.h.b16 %v219
    %v777 = vunpack.c.l.b16 %v220
    %v778 = vunpack.c.h.b16 %v220
    %v779 = vunpack.c.l.b16 %v221
    %v780 = vunpack.c.h.b16 %v221
    %v781 = vunpack.c.l.b16 %v222
    %v782 = vunpack.c.h.b16 %v222
    %v783 = vunpack.c.l.b16 %v223
    %v784 = vunpack.c.h.b16 %v223
    %v785 = vunpack.c.l.b16 %v224
    %v786 = vunpack.c.h.b16 %v224
    %v787 = vunpack.c.l.b16 %v225
    %v788 = vunpack.c.h.b16 %v225
    %v789 = vunpack.c.l.b16 %v226
    %v790 = vunpack.c.h.b16 %v226
    %v791 = vunpack.c.l.b16 %v227
    %v792 = vunpack.c.h.b16 %v227
    %v793 = vunpack.c.l.b16 %v228
    %v794 = vunpack.c.h.b16 %v228
    %v795 = vunpack.c.l.b16 %v229
    %v796 = vunpack.c.h.b16 %v229
    %v797 = vunpack.c.l.b16 %v230
    %v798 = vunpack.c.h.b16 %v230
    %v799 = vunpack.c.l.b16 %v231
    %v800 = vunpack.c.h.b16 %v231
    %v801 = vunpack.c.l.b16 %v232
    %v802 = vunpack.c.h.b16 %v232
    %v803 = vunpack.c.l.b16 %v233
    %v804 = vunpack.c.h.b16 %v233
    %v805 = vunpack.c.l.b16 %v234
    %v806 = vunpack.c.h.b16 %v234
    %v807 = vunpack.c.l.b16 %v235
    %v808 = vunpack.c.h.b16 %v235
    %v809 = vunpack.c.l.b16 %v236
    %v810 = vunpack.c.h.b16 %v236
    %v811 = vunpack.c.l.b16 %v237
    %v812 = vunpack.c.h.b16 %v237
    %v813 = vunpack.c.l.b16 %v238
    %v814 = vunpack.c.h.b16 %v238
    %v815 = vunpack.c.l.b16 %v239
    %v816 = vunpack.c.h.b16 %v239
    %v817 = vunpack.c.l.b16 %v240
    %v818 = vunpack.c.h.b16 %v240
    %v819 = vunpack.c.l.b16 %v241
    %v820 = vunpack.c.h.b16 %v241
    %v821 = vunpack.c.l.b16 %v242
    %v822 = vunpack.c.h.b16 %v242
    %v823 = vunpack.c.l.b16 %v243
    %v824 = vunpack.c.h.b16 %v243
    %v825 = vunpack.c.l.b16 %v244
    %v826 = vunpack.c.h.b16 %v244
    %v827 = vunpack.c.l.b16 %v245
    %v828 = vunpack.c.h.b16 %v245
    %v829 = vunpack.c.l.b16 %v246
    %v830 = vunpack.c.h.b16 %v246
    %v831 = vunpack.c.l.b16 %v247
    %v832 = vunpack.c.h.b16 %v247
    %v833 = vunpack.c.l.b16 %v248
    %v834 = vunpack.c.h.b16 %v248
    %v835 = vunpack.c.l.b16 %v249
    %v836 = vunpack.c.h.b16 %v249
    %v837 = vunpack.c.l.b16 %v250
    %v838 = vunpack.c.h.b16 %v250
    %v839 = vunpack.c.l.b16 %v251
    %v840 = vunpack.c.h.b16 %v251
    %v841 = vunpack.c.l.b16 %v252
    %v842 = vunpack.c.h.b16 %v252
    %v843 = vunpack.c.l.b16 %v253
    %v844 = vunpack.c.h.b16 %v253
    %v845 = vunpack.c.l.b16 %v254
    %v846 = vunpack.c.h.b16 %v254
    %v847 = vunpack.c.l.b16 %v255
    %v848 = vunpack.c.h.b16 %v255
    %v849 = vunpack.c.l.b16 %v256
    %v850 = vunpack.c.h.b16 %v256
    %v851 = vunpack.c.l.b16 %v257
    %v852 = vunpack.c.h.b16 %v257
    %v853 = vunpack.c.l.b16 %v258
    %v854 = vunpack.c.h.b16 %v258
    %v855 = vunpack.c.l.b16 %v259
    %v856 = vunpack.c.h.b16 %v259
    %v857 = vunpack.c.l.b16 %v260
    %v858 = vunpack.c.h.b16 %v260
    %v859 = vunpack.c.l.b16 %v261
    %v860 = vunpack.c.h.b16 %v261
    %v861 = vunpack.c.l.b16 %v262
    %v862 = vunpack.c.h.b16 %v262
    %v863 = vunpack.c.l.b16 %v263
    %v864 = vunpack.c.h.b16 %v263
    %v865 = vunpack.c.l.b16 %v264
    %v866 = vunpack.c.h.b16 %v264
    %v867 = vunpack.c.l.b16 %v265
    %v868 = vunpack.c.h.b16 %v265
    %v869 = vunpack.c.l.b16 %v266
    %v870 = vunpack.c.h.b16 %v266
    %v871 = vunpack.c.l.b16 %v267
    %v872 = vunpack.c.h.b16 %v267
    %v873 = vunpack.c.l.b16 %v268
    %v874 = vunpack.c.h.b16 %v268
    %v875 = vunpack.c.l.b16 %v269
    %v876 = vunpack.c.h.b16 %v269
    %v877 = vunpack.c.l.b16 %v270
    %v878 = vunpack.c.h.b16 %v270
    %v879 = vunpack.c.l.b16 %v271
    %v880 = vunpack.c.h.b16 %v271
    %v881 = vunpack.c.l.b16 %v272
    %v882 = vunpack.c.h.b16 %v272
    %v883 = vunpack.c.l.b16 %v273
    %v884 = vunpack.c.h.b16 %v273
    %v885 = vunpack.c.l.b16 %v274
    %v886 = vunpack.c.h.b16 %v274
    %v887 = vunpack.c.l.b16 %v275
    %v888 = vunpack.c.h.b16 %v275
    %v889 = vunpack.c.l.b16 %v276
    %v890 = vunpack.c.h.b16 %v276
    %v891 = vunpack.c.l.b16 %v277
    %v892 = vunpack.c.h.b16 %v277
    %v893 = vunpack.c.l.b16 %v278
    %v894 = vunpack.c.h.b16 %v278
    %v895 = vunpack.c.l.b16 %v279
    %v896 = vunpack.c.h.b16 %v279
    %v897 = vunpack.c.l.b16 %v280
    %v898 = vunpack.c.h.b16 %v280
    %v899 = vunpack.c.l.b16 %v281
    %v900 = vunpack.c.h.b16 %v281
    %v901 = vunpack.c.l.b16 %v282
    %v902 = vunpack.c.h.b16 %v282
    %v903 = vunpack.c.l.b16 %v283
    %v904 = vunpack.c.h.b16 %v283
    %v905 = vunpack.c.l.b16 %v284
    %v906 = vunpack.c.h.b16 %v284
    %v907 = vunpack.c.l.b16 %v285
    %v908 = vunpack.c.h.b16 %v285
    %v909 = vunpack.c.l.b16 %v286
    %v910 = vunpack.c.h.b16 %v286
    %v911 = vunpack.c.l.b16 %v287
    %v912 = vunpack.c.h.b16 %v287
    %v913 = vunpack.c.l.b16 %v288
    %v914 = vunpack.c.h.b16 %v288
    %v915 = vunpack.c.l.b16 %v289
    %v916 = vunpack.c.h.b16 %v289
    %v917 = vunpack.c.l.b16 %v290
    %v918 = vunpack.c.h.b16 %v290
    %v919 = vunpack.c.l.b16 %v291
    %v920 = vunpack.c.h.b16 %v291
    %v921 = vunpack.c.l.b16 %v292
    %v922 = vunpack.c.h.b16 %v292
    %v923 = vunpack.c.l.b16 %v293
    %v924 = vunpack.c.h.b16 %v293
    %v925 = vunpack.c.l.b16 %v294
    %v926 = vunpack.c.h.b16 %v294
    %v927 = vunpack.c.l.b16 %v295
    %v928 = vunpack.c.h.b16 %v295
    %v929 = vunpack.c.l.b16 %v296
    %v930 = vunpack.c.h.b16 %v296
    %v931 = vunpack.c.l.b16 %v297
    %v932 = vunpack.c.h.b16 %v297
    %v933 = vunpack.c.l.b16 %v298
    %v934 = vunpack.c.h.b16 %v298
    %v935 = vunpack.c.l.b16 %v299
    %v936 = vunpack.c.h.b16 %v299
    %v937 = vunpack.c.l.b16 %v300
    %v938 = vunpack.c.h.b16 %v300
    %v939 = vunpack.c.l.b16 %v301
    %v940 = vunpack.c.h.b16 %v301
    %v941 = vunpack.c.l.b16 %v302
    %v942 = vunpack.c.h.b16 %v302
    %v943 = vunpack.c.l.b16 %v303
    %v944 = vunpack.c.h.b16 %v303
    %v945 = vunpack.c.l.b16 %v304
    %v946 = vunpack.c.h.b16 %v304
    %v947 = vunpack.c.l.b16 %v305
    %v948 = vunpack.c.h.b16 %v305
    %v949 = vunpack.c.l.b16 %v306
    %v950 = vunpack.c.h.b16 %v306
    %v951 = vunpack.c.l.b16 %v307
    %v952 = vunpack.c.h.b16 %v307
    %v953 = vunpack.c.l.b16 %v308
    %v954 = vunpack.c.h.b16 %v308
    %v955 = vunpack.c.l.b16 %v309
    %v956 = vunpack.c.h.b16 %v309
    %v957 = vunpack.c.l.b16 %v310
    %v958 = vunpack.c.h.b16 %v310
    %v959 = vunpack.c.l.b16 %v311
    %v960 = vunpack.c.h.b16 %v311
    %v961 = vunpack.c.l.b16 %v312
    %v962 = vunpack.c.h.b16 %v312
    %v963 = vunpack.c.l.b16 %v313
    %v964 = vunpack.c.h.b16 %v313
    %v965 = vunpack.c.l.b16 %v314
    %v966 = vunpack.c.h.b16 %v314
    %v967 = vunpack.c.l.b16 %v315
    %v968 = vunpack.c.h.b16 %v315
    %v969 = vunpack.c.l.b16 %v316
    %v970 = vunpack.c.h.b16 %v316
    %v971 = vunpack.c.l.b16 %v317
    %v972 = vunpack.c.h.b16 %v317
    %v973 = vunpack.c.l.b16 %v318
    %v974 = vunpack.c.h.b16 %v318
    %v975 = vunpack.c.l.b16 %v319
    %v976 = vunpack.c.h.b16 %v319
    %v977 = vunpack.c.l.b16 %v320
    %v978 = vunpack.c.h.b16 %v320
    %v979 = vunpack.c.l.b16 %v321
    %v980 = vunpack.c.h.b16 %v321
    %v981 = vunpack.c.l.b16 %v322
    %v982 = vunpack.c.h.b16 %v322
    %v983 = vunpack.c.l.b16 %v323
    %v984 = vunpack.c.h.b16 %v323
    %v985 = vunpack.c.l.b16 %v324
    %v986 = vunpack.c.h.b16 %v324
    %v987 = vunpack.c.l.b16 %v325
    %v988 = vunpack.c.h.b16 %v325
    %v989 = vunpack.c.l.b16 %v326
    %v990 = vunpack.c.h.b16 %v326
    %v991 = vunpack.c.l.b16 %v327
    %v992 = vunpack.c.h.b16 %v327
    %v993 = vunpack.c.l.b16 %v328
    %v994 = vunpack.c.h.b16 %v328
    %v995 = vunpack.c.l.b16 %v329
    %v996 = vunpack.c.h.b16 %v329
    %v997 = vunpack.c.l.b16 %v330
    %v998 = vunpack.c.h.b16 %v330
    %v999 = vunpack.c.l.b16 %v331
    %v1000 = vunpack.c.h.b16 %v331
    %v1001 = vunpack.c.l.b16 %v332
    %v1002 = vunpack.c.h.b16 %v332
    %v1003 = vunpack.c.l.b16 %v333
    %v1004 = vunpack.c.h.b16 %v333
    %v1005 = vunpack.c.l.b16 %v334
    %v1006 = vunpack.c.h.b16 %v334
    %v1007 = vunpack.c.l.b16 %v335
    %v1008 = vunpack.c.h.b16 %v335
    %v1009 = vunpack.c.l.b16 %v336
    %v1010 = vunpack.c.h.b16 %v336
    %v1011 = vunpack.c.l.b16 %v337
    %v1012 = vunpack.c.h.b16 %v337
    %v1013 = vunpack.c.l.b16 %v338
    %v1014 = vunpack.c.h.b16 %v338
    %v1015 = vunpack.c.l.b16 %v339
    %v1016 = vunpack.c.h.b16 %v339
    %v1017 = vunpack.c.l.b16 %v340
    %v1018 = vunpack.c.h.b16 %v340
    %v1019 = vunpack.c.l.b16 %v341
    %v1020 = vunpack.c.h.b16 %v341
    %v1021 = vunpack.c.l.b16 %v342
    %v1022 = vunpack.c.h.b16 %v342
    %v1023 = vunpack.c.l.b16 %v343
    %v1024 = vunpack.c.h.b16 %v343
    %v1025 = vunpack.c.l.b16 %v344
    %v1026 = vunpack.c.h.b16 %v344
    %v1027 = vunpack.c.l.b16 %v345
    %v1028 = vunpack.c.h.b16 %v345
    %v1029 = vunpack.c.l.b16 %v346
    %v1030 = vunpack.c.h.b16 %v346
    %v1031 = vunpack.c.l.b16 %v347
    %v1032 = vunpack.c.h.b16 %v347
    %v1033 = vunpack.c.l.b16 %v348
    %v1034 = vunpack.c.h.b16 %v348
    %v1035 = vunpack.c.l.b16 %v349
    %v1036 = vunpack.c.h.b16 %v349
    %v1037 = vunpack.c.l.b16 %v350
    %v1038 = vunpack.c.h.b16 %v350
    %v1039 = vunpack.c.l.b16 %v351
    %v1040 = vunpack.c.h.b16 %v351
    %v1041 = vunpack.c.l.b16 %v352
    %v1042 = vunpack.c.h.b16 %v352
    %v1043 = vunpack.c.l.b16 %v353
    %v1044 = vunpack.c.h.b16 %v353
    %v1045 = vunpack.c.l.b16 %v354
    %v1046 = vunpack.c.h.b16 %v354
    %v1047 = vunpack.c.l.b16 %v355
    %v1048 = vunpack.c.h.b16 %v355
    %v1049 = vunpack.c.l.b16 %v356
    %v1050 = vunpack.c.h.b16 %v356
    %v1051 = vunpack.c.l.b16 %v357
    %v1052 = vunpack.c.h.b16 %v357
    %v1053 = vunpack.c.l.b16 %v358
    %v1054 = vunpack.c.h.b16 %v358
    %v1055 = vunpack.c.l.b16 %v359
    %v1056 = vunpack.c.h.b16 %v359
    %v1057 = vunpack.c.l.b16 %v360
    %v1058 = vunpack.c.h.b16 %v360
    %v1059 = vunpack.c.l.b16 %v361
    %v1060 = vunpack.c.h.b16 %v361
    %v1061 = vunpack.c.l.b16 %v362
    %v1062 = vunpack.c.h.b16 %v362
    %v1063 = vunpack.c.l.b16 %v363
    %v1064 = vunpack.c.h.b16 %v363
    %v1065 = vunpack.c.l.b16 %v364
    %v1066 = vunpack.c.h.b16 %v364
    %v1067 = vunpack.c.l.b16 %v365
    %v1068 = vunpack.c.h.b16 %v365
    %v1069 = vunpack.c.l.b16 %v366
    %v1070 = vunpack.c.h.b16 %v366
    %v1071 = vunpack.c.l.b16 %v367
    %v1072 = vunpack.c.h.b16 %v367
    %v1073 = vunpack.c.l.b16 %v368
    %v1074 = vunpack.c.h.b16 %v368
    %v1075 = vunpack.c.l.b16 %v369
    %v1076 = vunpack.c.h.b16 %v369
    %v1077 = vunpack.c.l.b16 %v370
    %v1078 = vunpack.c.h.b16 %v370
    %v1079 = vunpack.c.l.b16 %v371
    %v1080 = vunpack.c.h.b16 %v371
    %v1081 = vunpack.c.l.b16 %v372
    %v1082 = vunpack.c.h.b16 %v372
    %v1083 = vunpack.c.l.b16 %v373
    %v1084 = vunpack.c.h.b16 %v373
    %v1085 = vunpack.c.l.b16 %v374
    %v1086 = vunpack.c.h.b16 %v374
    %v1087 = vunpack.c.l.b16 %v375
    %v1088 = vunpack.c.h.b16 %v375
    %v1089 = vunpack.c.l.b16 %v376
    %v1090 = vunpack.c.h.b16 %v376
    %v1091 = vunpack.c.l.b16 %v377
    %v1092 = vunpack.c.h.b16 %v377
    %v1093 = vunpack.c.l.b16 %v378
    %v1094 = vunpack.c.h.b16 %v378
    %v1095 = vunpack.c.l.b16 %v379
    %v1096 = vunpack.c.h.b16 %v379
    %v1097 = vunpack.c.l.b16 %v380
    %v1098 = vunpack.c.h.b16 %v380
    %v1099 = vunpack.c.l.b16 %v381
    %v1100 = vunpack.c.h.b16 %v381
    %v1101 = vunpack.c.l.b16 %v382
    %v1102 = vunpack.c.h.b16 %v382
    %v1103 = vunpack.c.l.b16 %v383
    %v1104 = vunpack.c.h.b16 %v383
    %v1105 = vunpack.c.l.b16 %v384
    %v1106 = vunpack.c.h.b16 %v384
    %v1107 = vunpack.c.l.b16 %v385
    %v1108 = vunpack.c.h.b16 %v385
    %v1109 = vunpack.c.l.b16 %v386
    %v1110 = vunpack.c.h.b16 %v386
    %v1111 = vunpack.c.l.b16 %v387
    %v1112 = vunpack.c.h.b16 %v387
    %v1113 = vunpack.c.l.b16 %v388
    %v1114 = vunpack.c.h.b16 %v388
    %v1115 = vunpack.c.l.b16 %v389
    %v1116 = vunpack.c.h.b16 %v389
    %v1117 = vunpack.c.l.b16 %v390
    %v1118 = vunpack.c.h.b16 %v390
    %v1119 = vunpack.c.l.b16 %v391
    %v1120 = vunpack.c.h.b16 %v391
    %v1121 = vunpack.c.l.b16 %v392
    %v1122 = vunpack.c.h.b16 %v392
    %v1123 = vunpack.c.l.b16 %v393
    %v1124 = vunpack.c.h.b16 %v393
    %v1125 = vunpack.c.l.b16 %v394
    %v1126 = vunpack.c.h.b16 %v394
    %v1127 = vunpack.c.l.b16 %v395
    %v1128 = vunpack.c.h.b16 %v395
    %v1129 = vunpack.c.l.b16 %v396
    %v1130 = vunpack.c.h.b16 %v396
    %v1131 = vunpack.c.l.b16 %v397
    %v1132 = vunpack.c.h.b16 %v397
    %v1133 = vunpack.c.l.b16 %v398
    %v1134 = vunpack.c.h.b16 %v398
    %v1135 = vunpack.c.l.b16 %v399
    %v1136 = vunpack.c.h.b16 %v399
    %v1137 = vunpack.c.l.b16 %v400
    %v1138 = vunpack.c.h.b16 %v400
    %v1139 = vunpack.c.l.b16 %v401
    %v1140 = vunpack.c.h.b16 %v401
    %v1141 = vunpack.c.l.b16 %v402
    %v1142 = vunpack.c.h.b16 %v402
    %v1143 = vunpack.c.l.b16 %v403
    %v1144 = vunpack.c.h.b16 %v403
    %v1145 = vunpack.c.l.b16 %v404
    %v1146 = vunpack.c.h.b16 %v404
    %v1147 = vunpack.c.l.b16 %v405
    %v1148 = vunpack.c.h.b16 %v405
    %v1149 = vunpack.c.l.b16 %v406
    %v1150 = vunpack.c.h.b16 %v406
    %v1151 = vunpack.c.l.b16 %v407
    %v1152 = vunpack.c.h.b16 %v407
    %v1153 = vunpack.c.l.b16 %v408
    %v1154 = vunpack.c.h.b16 %v408
    %v1155 = vunpack.c.l.b16 %v409
    %v1156 = vunpack.c.h.b16 %v409
    %v1157 = vunpack.c.l.b16 %v410
    %v1158 = vunpack.c.h.b16 %v410
    %v1159 = vunpack.c.l.b16 %v411
    %v1160 = vunpack.c.h.b16 %v411
    %v1161 = vunpack.c.l.b16 %v412
    %v1162 = vunpack.c.h.b16 %v412
    %v1163 = vunpack.c.l.b16 %v413
    %v1164 = vunpack.c.h.b16 %v413
    %v1165 = vunpack.c.l.b16 %v414
    %v1166 = vunpack.c.h.b16 %v414
    %v1167 = vunpack.c.l.b16 %v415
    %v1168 = vunpack.c.h.b16 %v415
    %v1169 = vunpack.c.l.b16 %v416
    %v1170 = vunpack.c.h.b16 %v416
    %v1171 = vunpack.c.l.b16 %v417
    %v1172 = vunpack.c.h.b16 %v417
    %v1173 = vunpack.c.l.b16 %v418
    %v1174 = vunpack.c.h.b16 %v418
    %v1175 = vunpack.c.l.b16 %v419
    %v1176 = vunpack.c.h.b16 %v419
    %v1177 = vunpack.c.l.b16 %v420
    %v1178 = vunpack.c.h.b16 %v420
    %v1179 = vunpack.c.l.b16 %v421
    %v1180 = vunpack.c.h.b16 %v421
    %v1181 = vunpack.c.l.b16 %v422
    %v1182 = vunpack.c.h.b16 %v422
    %v1183 = vunpack.c.l.b16 %v423
    %v1184 = vunpack.c.h.b16 %v423
    %v1185 = vunpack.c.l.b16 %v424
    %v1186 = vunpack.c.h.b16 %v424
    %v1187 = vunpack.c.l.b16 %v425
    %v1188 = vunpack.c.h.b16 %v425
    %v1189 = vunpack.c.l.b16 %v426
    %v1190 = vunpack.c.h.b16 %v426
    %v1191 = vunpack.c.l.b16 %v427
    %v1192 = vunpack.c.h.b16 %v427
    %v1193 = vunpack.c.l.b16 %v428
    %v1194 = vunpack.c.h.b16 %v428
    %v1195 = vunpack.c.l.b16 %v429
    %v1196 = vunpack.c.h.b16 %v429
    %v1197 = vunpack.c.l.b16 %v430
    %v1198 = vunpack.c.h.b16 %v430
    %v1199 = vunpack.c.l.b16 %v431
    %v1200 = vunpack.c.h.b16 %v431
    %v1201 = vunpack.c.l.b16 %v432
    %v1202 = vunpack.c.h.b16 %v432
    %v1203 = vunpack.c.l.b16 %v433
    %v1204 = vunpack.c.h.b16 %v433
    %v1205 = vunpack.c.l.b16 %v434
    %v1206 = vunpack.c.h.b16 %v434
    %v1207 = vpack.c.b16 %v711, %v707
    %v1208 = vpack.c.b16 %v712, %v708
    %v1209 = vpack.c.b16 %v713, %v709
    %v1210 = vpack.c.b16 %v714, %v710
    %v1211 = vpack.c.b16 %v719, %v715
    %v1212 = vpack.c.b16 %v720, %v716
    %v1213 = vpack.c.b16 %v721, %v717
    %v1214 = vpack.c.b16 %v722, %v718
    %v1215 = vpack.c.b16 %v727, %v723
    %v1216 = vpack.c.b16 %v728, %v724
    %v1217 = vpack.c.b16 %v729, %v725
    %v1218 = vpack.c.b16 %v730, %v726
    %v1219 = vpack.c.b16 %v735, %v731
    %v1220 = vpack.c.b16 %v736, %v732
    %v1221 = vpack.c.b16 %v737, %v733
    %v1222 = vpack.c.b16 %v738, %v734
    %v1223 = vpack.c.b16 %v743, %v739
    %v1224 = vpack.c.b16 %v744, %v740
    %v1225 = vpack.c.b16 %v745, %v741
    %v1226 = vpack.c.b16 %v746, %v742
    %v1227 = vpack.c.b16 %v751, %v747
    %v1228 = vpack.c.b16 %v752, %v748
    %v1229 = vpack.c.b16 %v753, %v749
    %v1230 = vpack.c.b16 %v754, %v750
    %v1231 = vpack.c.b16 %v759, %v755
    %v1232 = vpack.c.b16 %v760, %v756
    %v1233 = vpack.c.b16 %v761, %v757
    %v1234 = vpack.c.b16 %v762, %v758
    %v1235 = vpack.c.b16 %v767, %v763
    %v1236 = vpack.c.b16 %v768, %v764
    %v1237 = vpack.c.b16 %v769, %v765
    %v1238 = vpack.c.b16 %v770, %v766
    %v1239 = vpack.c.b16 %v775, %v771
    %v1240 = vpack.c.b16 %v776, %v772
    %v1241 = vpack.c.b16 %v777, %v773
    %v1242 = vpack.c.b16 %v778, %v774
    %v1243 = vpack.c.b16 %v783, %v779
    %v1244 = vpack.c.b16 %v784, %v780
    %v1245 = vpack.c.b16 %v785, %v781
    %v1246 = vpack.c.b16 %v786, %v782
    %v1247 = vpack.c.b16 %v791, %v787
    %v1248 = vpack.c.b16 %v792, %v788
    %v1249 = vpack.c.b16 %v793, %v789
    %v1250 = vpack.c.b16 %v794, %v790
    %v1251 = vpack.c.b16 %v799, %v795
    %v1252 = vpack.c.b16 %v800, %v796
    %v1253 = vpack.c.b16 %v801, %v797
    %v1254 = vpack.c.b16 %v802, %v798
    %v1255 = vpack.c.b16 %v807, %v803
    %v1256 = vpack.c.b16 %v808, %v804
    %v1257 = vpack.c.b16 %v809, %v805
    %v1258 = vpack.c.b16 %v810, %v806
    %v1259 = vpack.c.b16 %v815, %v811
    %v1260 = vpack.c.b16 %v816, %v812
    %v1261 = vpack.c.b16 %v817, %v813
    %v1262 = vpack.c.b16 %v818, %v814
    %v1263 = vpack.c.b16 %v823, %v819
    %v1264 = vpack.c.b16 %v824, %v820
    %v1265 = vpack.c.b16 %v825, %v821
    %v1266 = vpack.c.b16 %v826, %v822
    %v1267 = vpack.c.b16 %v831, %v827
    %v1268 = vpack.c.b16 %v832, %v828
    %v1269 = vpack.c.b16 %v833, %v829
    %v1270 = vpack.c.b16 %v834, %v830
    %v1271 = vpack.c.b16 %v839, %v835
    %v1272 = vpack.c.b16 %v840, %v836
    %v1273 = vpack.c.b16 %v841, %v837
    %v1274 = vpack.c.b16 %v842, %v838
    %v1275 = vpack.c.b16 %v847, %v843
    %v1276 = vpack.c.b16 %v848, %v844
    %v1277 = vpack.c.b16 %v849, %v845
    %v1278 = vpack.c.b16 %v850, %v846
    %v1279 = vpack.c.b16 %v855, %v851
    %v1280 = vpack.c.b16 %v856, %v852
    %v1281 = vpack.c.b16 %v857, %v853
    %v1282 = vpack.c.b16 %v858, %v854
    %v1283 = vpack.c.b16 %v863, %v859
    %v1284 = vpack.c.b16 %v864, %v860
    %v1285 = vpack.c.b16 %v865, %v861
    %v1286 = vpack.c.b16 %v866, %v862
    %v1287 = vpack.c.b16 %v871, %v867
    %v1288 = vpack.c.b16 %v872, %v868
    %v1289 = vpack.c.b16 %v873, %v869
    %v1290 = vpack.c.b16 %v874, %v870
    %v1291 = vpack.c.b16 %v879, %v875
    %v1292 = vpack.c.b16 %v880, %v876
    %v1293 = vpack.c.b16 %v881, %v877
    %v1294 = vpack.c.b16 %v882, %v878
    %v1295 = vpack.c.b16 %v887, %v883
    %v1296 = vpack.c.b16 %v888, %v884
    %v1297 = vpack.c.b16 %v889, %v885
    %v1298 = vpack.c.b16 %v890, %v886
    %v1299 = vpack.c.b16 %v895, %v891
    %v1300 = vpack.c.b16 %v896, %v892
    %v1301 = vpack.c.b16 %v897, %v893
    %v1302 = vpack.c.b16 %v898, %v894
    %v1303 = vpack.c.b16 %v903, %v899
    %v1304 = vpack.c.b16 %v904, %v900
    %v1305 = vpack.c.b16 %v905, %v901
    %v1306 = vpack.c.b16 %v906, %v902
    %v1307 = vpack.c.b16 %v911, %v907
    %v1308 = vpack.c.b16 %v912, %v908
    %v1309 = vpack.c.b16 %v913, %v909
    %v1310 = vpack.c.b16 %v914, %v910
    %v1311 = vpack.c.b16 %v919, %v915
    %v1312 = vpack.c.b16 %v920, %v916
    %v1313 = vpack.c.b16 %v921, %v917
    %v1314 = vpack.c.b16 %v922, %v918
    %v1315 = vpack.c.b16 %v927, %v923
    %v1316 = vpack.c.b16 %v928, %v924
    %v1317 = vpack.c.b16 %v929, %v925
    %v1318 = vpack.c.b16 %v930, %v926
    %v1319 = vpack.c.b16 %v935, %v931
    %v1320 = vpack.c.b16 %v936, %v932
    %v1321 = vpack.c.b16 %v937, %v933
    %v1322 = vpack.c.b16 %v938, %v934
    %v1323 = vpack.c.b16 %v943, %v939
    %v1324 = vpack.c.b16 %v944, %v940
    %v1325 = vpack.c.b16 %v945, %v941
    %v1326 = vpack.c.b16 %v946, %v942
    %v1327 = vpack.c.b16 %v951, %v947
    %v1328 = vpack.c.b16 %v952, %v948
    %v1329 = vpack.c.b16 %v953, %v949
    %v1330 = vpack.c.b16 %v954, %v950
    %v1331 = vpack.c.b16 %v959, %v955
    %v1332 = vpack.c.b16 %v960, %v956
    %v1333 = vpack.c.b16 %v961, %v957
    %v1334 = vpack.c.b16 %v962, %v958
    %v1335 = vpack.c.b16 %v967, %v963
    %v1336 = vpack.c.b16 %v968, %v964
    %v1337 = vpack.c.b16 %v969, %v965
    %v1338 = vpack.c.b16 %v970, %v966
    %v1339 = vpack.c.b16 %v975, %v971
    %v1340 = vpack.c.b16 %v976, %v972
    %v1341 = vpack.c.b16 %v977, %v973
    %v1342 = vpack.c.b16 %v978, %v974
    %v1343 = vpack.c.b16 %v983, %v979
    %v1344 = vpack.c.b16 %v984, %v980
    %v1345 = vpack.c.b16 %v985, %v981
    %v1346 = vpack.c.b16 %v986, %v982
    %v1347 = vpack.c.b16 %v991, %v987
    %v1348 = vpack.c.b16 %v992, %v988
    %v1349 = vpack.c.b16 %v993, %v989
    %v1350 = vpack.c.b16 %v994, %v990
    %v1351 = vpack.c.b16 %v999, %v995
    %v1352 = vpack.c.b16 %v1000, %v996
    %v1353 = vpack.c.b16 %v1001, %v997
    %v1354 = vpack.c.b16 %v1002, %v998
    %v1355 = vpack.c.b16 %v1007, %v1003
    %v1356 = vpack.c.b16 %v1008, %v1004
    %v1357 = vpack.c.b16 %v1009, %v1005
    %v1358 = vpack.c.b16 %v1010, %v1006
    %v1359 = vpack.c.b16 %v1015, %v1011
    %v1360 = vpack.c.b16 %v1016, %v1012
    %v1361 = vpack.c.b16 %v1017, %v1013
    %v1362 = vpack.c.b16 %v1018, %v1014
    %v1363 = vpack.c.b16 %v1023, %v1019
    %v1364 = vpack.c.b16 %v1024, %v1020
    %v1365 = vpack.c.b16 %v1025, %v1021
    %v1366 = vpack.c.b16 %v1026, %v1022
    %v1367 = vpack.c.b16 %v1031, %v1027
    %v1368 = vpack.c.b16 %v1032, %v1028
    %v1369 = vpack.c.b16 %v1033, %v1029
    %v1370 = vpack.c.b16 %v1034, %v1030
    %v1371 = vpack.c.b16 %v1039, %v1035
    %v1372 = vpack.c.b16 %v1040, %v1036
    %v1373 = vpack.c.b16 %v1041, %v1037
    %v1374 = vpack.c.b16 %v1042, %v1038
    %v1375 = vpack.c.b16 %v1047, %v1043
    %v1376 = vpack.c.b16 %v1048, %v1044
    %v1377 = vpack.c.b16 %v1049, %v1045
    %v1378 = vpack.c.b16 %v1050, %v1046
    %v1379 = vpack.c.b16 %v1055, %v1051
    %v1380 = vpack.c.b16 %v1056, %v1052
    %v1381 = vpack.c.b16 %v1057, %v1053
    %v1382 = vpack.c.b16 %v1058, %v1054
    %v1383 = vpack.c.b16 %v1063, %v1059
    %v1384 = vpack.c.b16 %v1064, %v1060
    %v1385 = vpack.c.b16 %v1065, %v1061
    %v1386 = vpack.c.b16 %v1066, %v1062
    %v1387 = vpack.c.b16 %v1071, %v1067
    %v1388 = vpack.c.b16 %v1072, %v1068
    %v1389 = vpack.c.b16 %v1073, %v1069
    %v1390 = vpack.c.b16 %v1074, %v1070
    %v1391 = vpack.c.b16 %v1079, %v1075
    %v1392 = vpack.c.b16 %v1080, %v1076
    %v1393 = vpack.c.b16 %v1081, %v1077
    %v1394 = vpack.c.b16 %v1082, %v1078
    %v1395 = vpack.c.b16 %v1087, %v1083
    %v1396 = vpack.c.b16 %v1088, %v1084
    %v1397 = vpack.c.b16 %v1089, %v1085
    %v1398 = vpack.c.b16 %v1090, %v1086
    %v1399 = vpack.c.b16 %v1095, %v1091
    %v1400 = vpack.c.b16 %v1096, %v1092
    %v1401 = vpack.c.b16 %v1097, %v1093
    %v1402 = vpack.c.b16 %v1098, %v1094
    %v1403 = vpack.c.b16 %v1103, %v1099
    %v1404 = vpack.c.b16 %v1104, %v1100
    %v1405 = vpack.c.b16 %v1105, %v1101
    %v1406 = vpack.c.b16 %v1106, %v1102
    %v1407 = vpack.c.b16 %v1111, %v1107
    %v1408 = vpack.c.b16 %v1112, %v1108
    %v1409 = vpack.c.b16 %v1113, %v1109
    %v1410 = vpack.c.b16 %v1114, %v1110
    %v1411 = vpack.c.b16 %v1119, %v1115
    %v1412 = vpack.c.b16 %v1120, %v1116
    %v1413 = vpack.c.b16 %v1121, %v1117
    %v1414 = vpack.c.b16 %v1122, %v1118
    %v1415 = vpack.c.b16 %v1127, %v1123
    %v1416 = vpack.c.b16 %v1128, %v1124
    %v1417 = vpack.c.b16 %v1129, %v1125
    %v1418 = vpack.c.b16 %v1130, %v1126
    %v1419 = vpack.c.b16 %v1135, %v1131
    %v1420 = vpack.c.b16 %v1136, %v1132
    %v1421 = vpack.c.b16 %v1137, %v1133
    %v1422 = vpack.c.b16 %v1138, %v1134
    %v1423 = vpack.c.b16 %v1143, %v1139
    %v1424 = vpack.c.b16 %v1144, %v1140
    %v1425 = vpack.c.b16 %v1145, %v1141
    %v1426 = vpack.c.b16 %v1146, %v1142
    %v1427 = vpack.c.b16 %v1151, %v1147
    %v1428 = vpack.c.b16 %v1152, %v1148
    %v1429 = vpack.c.b16 %v1153, %v1149
    %v1430 = vpack.c.b16 %v1154, %v1150
    %v1431 = vpack.c.b16 %v1159, %v1155
    %v1432 = vpack.c.b16 %v1160, %v1156
    %v1433 = vpack.c.b16 %v1161, %v1157
    %v1434 = vpack.c.b16 %v1162, %v1158
    %v1435 = vpack.c.b16 %v1167, %v1163
    %v1436 = vpack.c.b16 %v1168, %v1164
    %v1437 = vpack.c.b16 %v1169, %v1165
    %v1438 = vpack.c.b16 %v1170, %v1166
    %v1439 = vpack.c.b16 %v1175, %v1171
    %v1440 = vpack.c.b16 %v1176, %v1172
    %v1441 = vpack.c.b16 %v1177, %v1173
    %v1442 = vpack.c.b16 %v1178, %v1174
    %v1443 = vpack.c.b16 %v1183, %v1179
    %v1444 = vpack.c.b16 %v1184, %v1180
    %v1445 = vpack.c.b16 %v1185, %v1181
    %v1446 = vpack.c.b16 %v1186, %v1182
    %v1447 = vpack.c.b16 %v1191, %v1187
    %v1448 = vpack.c.b16 %v1192, %v1188
    %v1449 = vpack.c.b16 %v1193, %v1189
    %v1450 = vpack.c.b16 %v1194, %v1190
    %v1451 = vpack.c.b16 %v1199, %v1195
    %v1452 = vpack.c.b16 %v1200, %v1196
    %v1453 = vpack.c.b16 %v1201, %v1197
    %v1454 = vpack.c.b16 %v1202, %v1198
    %v1455 = vpack.c.b16 %v1203, %v1203
    %v1456 = vpack.c.b16 %v1204, %v1204
    %v1457 = vpack.c.b16 %v1205, %v1205
    %v1458 = vpack.c.b16 %v1206, %v1206
    %vm1707 = vcmask 850944
    %v1709 = vsel %vm1707, %v176, 0
    %v1712 = vsel %vm1707, %v184, 0
    %vm1714 = vcmask 1043456
    %v1716 = vsel %vm1714, %v1455, 0
    %v1719 = vsel %vm1714, %v1456, 0
    %v1722 = vsel %vm1714, %v1457, 0
    %v1725 = vsel %vm1714, %v1458, 0
    %1727 = vmatprep.subr.bf16.mxu0 %v1208
    %1728 = vmatpush1.bf16.msra.mxu0 %v1207
    %1729 = vmatprep.subr.bf16.mxu0 %v1212
    %1730 = vmatpush1.bf16.msra.mxu0 %v1211
    %1731 = vmatprep.subr.bf16.mxu0 %v1216
    %1732 = vmatpush1.bf16.msra.mxu0 %v1215
    %1733 = vmatprep.subr.bf16.mxu0 %v1220
    %1734 = vmatpush1.bf16.msra.mxu0 %v1219
    %1735 = vmatprep.subr.bf16.mxu0 %v1224
    %1736 = vmatpush1.bf16.msra.mxu0 %v1223
    %1737 = vmatprep.subr.bf16.mxu0 %v1228
    %1738 = vmatpush1.bf16.msra.mxu0 %v1227
    %1739 = vmatprep.subr.bf16.mxu0 %v1232
    %1740 = vmatpush1.bf16.msra.mxu0 %v1231
    %1741 = vmatprep.subr.bf16.mxu0 %v1236
    %1742 = vmatpush1.bf16.msra.mxu0 %v1235
    %1743 = vmatprep.subr.bf16.mxu0 %v1240
    %1744 = vmatpush1.bf16.msra.mxu0 %v1239
    %1745 = vmatprep.subr.bf16.mxu0 %v1244
    %1746 = vmatpush1.bf16.msra.mxu0 %v1243
    %1747 = vmatprep.subr.bf16.mxu0 %v1248
    %1748 = vmatpush1.bf16.msra.mxu0 %v1247
    %1749 = vmatprep.subr.bf16.mxu0 %v1252
    %1750 = vmatpush1.bf16.msra.mxu0 %v1251
    %1751 = vmatprep.subr.bf16.mxu0 %v1256
    %1752 = vmatpush1.bf16.msra.mxu0 %v1255
    %1753 = vmatprep.subr.bf16.mxu0 %v1260
    %1754 = vmatpush1.bf16.msra.mxu0 %v1259
    %1755 = vmatprep.subr.bf16.mxu0 %v1264
    %1756 = vmatpush1.bf16.msra.mxu0 %v1263
    %1757 = vmatprep.subr.bf16.mxu0 %v1268
    %1758 = vmatpush1.bf16.msra.mxu0 %v1267
    %1759 = vmatprep.mubr.bf16.mxu0 %v170
    %1760 = vmatmul.mubr.bf16.gmra.mrb[0].mxu0 %v169
    %v1761 = vpop.f32.mrb[0].mxu0
    %v1762 = vadd.f32 %v440, %v1761
    %v1763 = vpop.f32.mrb[0].mxu0
    %v1764 = vadd.f32 %v444, %v1763
    %v1765 = vpop.f32.mrb[0].mxu0
    %v1766 = vadd.f32 %v440, %v1765
    %v1767 = vpop.f32.mrb[0].mxu0
    %v1768 = vadd.f32 %v444, %v1767
    %1769 = vmatprep.mubr.bf16.mxu0 %v178
    %1770 = vmatmul.mubr.bf16.gmra.mrb[0].mxu0 %v177
    %v1771 = vpop.f32.mrb[0].mxu0
    %v1772 = vadd.f32 %v440, %v1771
    %v1773 = vpop.f32.mrb[0].mxu0
    %v1774 = vadd.f32 %v444, %v1773
    %v1775 = vpop.f32.mrb[0].mxu0
    %v1776 = vadd.f32 %v440, %v1775
    %v1777 = vpop.f32.mrb[0].mxu0
    %v1778 = vadd.f32 %v444, %v1777
    %1779 = vdwg.mxu0
    %1780 = vmatprep.subr.bf16.mxu0 %v1272
    %1781 = vmatpush1.bf16.msra.mxu0 %v1271
    %1782 = vmatprep.subr.bf16.mxu0 %v1276
    %1783 = vmatpush1.bf16.msra.mxu0 %v1275
    %1784 = vmatprep.subr.bf16.mxu0 %v1280
    %1785 = vmatpush1.bf16.msra.mxu0 %v1279
    %1786 = vmatprep.subr.bf16.mxu0 %v1284
    %1787 = vmatpush1.bf16.msra.mxu0 %v1283
    %1788 = vmatprep.subr.bf16.mxu0 %v1288
    %1789 = vmatpush1.bf16.msra.mxu0 %v1287
    %1790 = vmatprep.subr.bf16.mxu0 %v1292
    %1791 = vmatpush1.bf16.msra.mxu0 %v1291
    %1792 = vmatprep.subr.bf16.mxu0 %v1296
    %1793 = vmatpush1.bf16.msra.mxu0 %v1295
    %1794 = vmatprep.subr.bf16.mxu0 %v1300
    %1795 = vmatpush1.bf16.msra.mxu0 %v1299
    %1796 = vmatprep.subr.bf16.mxu0 %v1304
    %1797 = vmatpush1.bf16.msra.mxu0 %v1303
    %1798 = vmatprep.subr.bf16.mxu0 %v1308
    %1799 = vmatpush1.bf16.msra.mxu0 %v1307
    %1800 = vmatprep.subr.bf16.mxu0 %v1312
    %1801 = vmatpush1.bf16.msra.mxu0 %v1311
    %1802 = vmatprep.subr.bf16.mxu0 %v1316
    %1803 = vmatpush1.bf16.msra.mxu0 %v1315
    %1804 = vmatprep.subr.bf16.mxu0 %v1320
    %1805 = vmatpush1.bf16.msra.mxu0 %v1319
    %1806 = vmatprep.subr.bf16.mxu0 %v1324
    %1807 = vmatpush1.bf16.msra.mxu0 %v1323
    %1808 = vmatprep.subr.bf16.mxu0 %v1328
    %1809 = vmatpush1.bf16.msra.mxu0 %v1327
    %1810 = vmatprep.subr.bf16.mxu0 %v1332
    %1811 = vmatpush1.bf16.msra.mxu0 %v1331
    %1812 = vmatprep.mubr.bf16.mxu0 %v172
    %1813 = vmatmul.mubr.bf16.gmra.mrb[0].mxu0 %v171
    %v1814 = vpop.f32.mrb[0].mxu0
    %v1815 = vadd.f32 %v1762, %v1814
    %v1816 = vpop.f32.mrb[0].mxu0
    %v1817 = vadd.f32 %v1764, %v1816
    %v1818 = vpop.f32.mrb[0].mxu0
    %v1819 = vadd.f32 %v1766, %v1818
    %v1820 = vpop.f32.mrb[0].mxu0
    %v1821 = vadd.f32 %v1768, %v1820
    %1822 = vmatprep.mubr.bf16.mxu0 %v180
    %1823 = vmatmul.mubr.bf16.gmra.mrb[0].mxu0 %v179
    %v1824 = vpop.f32.mrb[0].mxu0
    %v1825 = vadd.f32 %v1772, %v1824
    %v1826 = vpop.f32.mrb[0].mxu0
    %v1827 = vadd.f32 %v1774, %v1826
    %v1828 = vpop.f32.mrb[0].mxu0
    %v1829 = vadd.f32 %v1776, %v1828
    %v1830 = vpop.f32.mrb[0].mxu0
    %v1831 = vadd.f32 %v1778, %v1830
    %1832 = vdwg.mxu0
    %1833 = vmatprep.subr.bf16.mxu0 %v1336
    %1834 = vmatpush1.bf16.msra.mxu0 %v1335
    %1835 = vmatprep.subr.bf16.mxu0 %v1340
    %1836 = vmatpush1.bf16.msra.mxu0 %v1339
    %1837 = vmatprep.subr.bf16.mxu0 %v1344
    %1838 = vmatpush1.bf16.msra.mxu0 %v1343
    %1839 = vmatprep.subr.bf16.mxu0 %v1348
    %1840 = vmatpush1.bf16.msra.mxu0 %v1347
    %1841 = vmatprep.subr.bf16.mxu0 %v1352
    %1842 = vmatpush1.bf16.msra.mxu0 %v1351
    %1843 = vmatprep.subr.bf16.mxu0 %v1356
    %1844 = vmatpush1.bf16.msra.mxu0 %v1355
    %1845 = vmatprep.subr.bf16.mxu0 %v1360
    %1846 = vmatpush1.bf16.msra.mxu0 %v1359
    %1847 = vmatprep.subr.bf16.mxu0 %v1364
    %1848 = vmatpush1.bf16.msra.mxu0 %v1363
    %1849 = vmatprep.subr.bf16.mxu0 %v1368
    %1850 = vmatpush1.bf16.msra.mxu0 %v1367
    %1851 = vmatprep.subr.bf16.mxu0 %v1372
    %1852 = vmatpush1.bf16.msra.mxu0 %v1371
    %1853 = vmatprep.subr.bf16.mxu0 %v1376
    %1854 = vmatpush1.bf16.msra.mxu0 %v1375
    %1855 = vmatprep.subr.bf16.mxu0 %v1380
    %1856 = vmatpush1.bf16.msra.mxu0 %v1379
    %1857 = vmatprep.subr.bf16.mxu0 %v1384
    %1858 = vmatpush1.bf16.msra.mxu0 %v1383
    %1859 = vmatprep.subr.bf16.mxu0 %v1388
    %1860 = vmatpush1.bf16.msra.mxu0 %v1387
    %1861 = vmatprep.subr.bf16.mxu0 %v1392
    %1862 = vmatpush1.bf16.msra.mxu0 %v1391
    %1863 = vmatprep.subr.bf16.mxu0 %v1396
    %1864 = vmatpush1.bf16.msra.mxu0 %v1395
    %1865 = vmatprep.mubr.bf16.mxu0 %v174
    %1866 = vmatmul.mubr.bf16.gmra.mrb[0].mxu0 %v173
    %v1867 = vpop.f32.mrb[0].mxu0
    %v1868 = vadd.f32 %v1815, %v1867
    %v1869 = vpop.f32.mrb[0].mxu0
    %v1870 = vadd.f32 %v1817, %v1869
    %v1871 = vpop.f32.mrb[0].mxu0
    %v1872 = vadd.f32 %v1819, %v1871
    %v1873 = vpop.f32.mrb[0].mxu0
    %v1874 = vadd.f32 %v1821, %v1873
    %1875 = vmatprep.mubr.bf16.mxu0 %v182
    %1876 = vmatmul.mubr.bf16.gmra.mrb[0].mxu0 %v181
    %v1877 = vpop.f32.mrb[0].mxu0
    %v1878 = vadd.f32 %v1825, %v1877
    %v1879 = vpop.f32.mrb[0].mxu0
    %v1880 = vadd.f32 %v1827, %v1879
    %v1881 = vpop.f32.mrb[0].mxu0
    %v1882 = vadd.f32 %v1829, %v1881
    %v1883 = vpop.f32.mrb[0].mxu0
    %v1884 = vadd.f32 %v1831, %v1883
    %1885 = vdwg.mxu0
    %1886 = vmatprep.subr.bf16.mxu0 %v1400
    %1887 = vmatpush1.bf16.msra.mxu0 %v1399
    %1888 = vmatprep.subr.bf16.mxu0 %v1404
    %1889 = vmatpush1.bf16.msra.mxu0 %v1403
    %1890 = vmatprep.subr.bf16.mxu0 %v1408
    %1891 = vmatpush1.bf16.msra.mxu0 %v1407
    %1892 = vmatprep.subr.bf16.mxu0 %v1412
    %1893 = vmatpush1.bf16.msra.mxu0 %v1411
    %1894 = vmatprep.subr.bf16.mxu0 %v1416
    %1895 = vmatpush1.bf16.msra.mxu0 %v1415
    %1896 = vmatprep.subr.bf16.mxu0 %v1420
    %1897 = vmatpush1.bf16.msra.mxu0 %v1419
    %1898 = vmatprep.subr.bf16.mxu0 %v1424
    %1899 = vmatpush1.bf16.msra.mxu0 %v1423
    %1900 = vmatprep.subr.bf16.mxu0 %v1428
    %1901 = vmatpush1.bf16.msra.mxu0 %v1427
    %1902 = vmatprep.subr.bf16.mxu0 %v1432
    %1903 = vmatpush1.bf16.msra.mxu0 %v1431
    %1904 = vmatprep.subr.bf16.mxu0 %v1436
    %1905 = vmatpush1.bf16.msra.mxu0 %v1435
    %1906 = vmatprep.subr.bf16.mxu0 %v1440
    %1907 = vmatpush1.bf16.msra.mxu0 %v1439
    %1908 = vmatprep.subr.bf16.mxu0 %v1444
    %1909 = vmatpush1.bf16.msra.mxu0 %v1443
    %1910 = vmatprep.subr.bf16.mxu0 %v1448
    %1911 = vmatpush1.bf16.msra.mxu0 %v1447
    %1912 = vmatprep.subr.bf16.mxu0 %v1452
    %1913 = vmatpush1.bf16.msra.mxu0 %v1451
    %1914 = vmatprep.subr.bf16.mxu0 %v1719
    %1915 = vmatpush1.bf16.msra.mxu0 %v1716
    %1916 = vmatprep.subr.bf16.mxu0 0
    %1917 = vmatpush1.bf16.msra.mxu0 0
    %1918 = vmatprep.mubr.bf16.mxu0 %v1709
    %1919 = vmatmul.mubr.bf16.gmra.mrb[0].mxu0 %v175
    %v1920 = vpop.f32.mrb[0].mxu0
    %v1921 = vadd.f32 %v1868, %v1920
    %v1922 = vpop.f32.mrb[0].mxu0
    %v1923 = vadd.f32 %v1870, %v1922
    %v1924 = vpop.f32.mrb[0].mxu0
    %v1925 = vadd.f32 %v1872, %v1924
    %v1926 = vpop.f32.mrb[0].mxu0
    %v1927 = vadd.f32 %v1874, %v1926
    %1928 = vmatprep.mubr.bf16.mxu0 %v1712
    %1929 = vmatmul.mubr.bf16.gmra.mrb[0].mxu0 %v183
    %v1930 = vpop.f32.mrb[0].mxu0
    %v1931 = vadd.f32 %v1878, %v1930
    %v1932 = vpop.f32.mrb[0].mxu0
    %v1933 = vadd.f32 %v1880, %v1932
    %v1934 = vpop.f32.mrb[0].mxu0
    %v1935 = vadd.f32 %v1882, %v1934
    %v1936 = vpop.f32.mrb[0].mxu0
    %v1937 = vadd.f32 %v1884, %v1936
    %1938 = vdwg.mxu0
    %1939 = vmatprep.subr.bf16.mxu0 %v1210
    %1940 = vmatpush1.bf16.msra.mxu0 %v1209
    %1941 = vmatprep.subr.bf16.mxu0 %v1214
    %1942 = vmatpush1.bf16.msra.mxu0 %v1213
    %1943 = vmatprep.subr.bf16.mxu0 %v1218
    %1944 = vmatpush1.bf16.msra.mxu0 %v1217
    %1945 = vmatprep.subr.bf16.mxu0 %v1222
    %1946 = vmatpush1.bf16.msra.mxu0 %v1221
    %1947 = vmatprep.subr.bf16.mxu0 %v1226
    %1948 = vmatpush1.bf16.msra.mxu0 %v1225
    %1949 = vmatprep.subr.bf16.mxu0 %v1230
    %1950 = vmatpush1.bf16.msra.mxu0 %v1229
    %1951 = vmatprep.subr.bf16.mxu0 %v1234
    %1952 = vmatpush1.bf16.msra.mxu0 %v1233
    %1953 = vmatprep.subr.bf16.mxu0 %v1238
    %1954 = vmatpush1.bf16.msra.mxu0 %v1237
    %1955 = vmatprep.subr.bf16.mxu0 %v1242
    %1956 = vmatpush1.bf16.msra.mxu0 %v1241
    %1957 = vmatprep.subr.bf16.mxu0 %v1246
    %1958 = vmatpush1.bf16.msra.mxu0 %v1245
    %1959 = vmatprep.subr.bf16.mxu0 %v1250
    %1960 = vmatpush1.bf16.msra.mxu0 %v1249
    %1961 = vmatprep.subr.bf16.mxu0 %v1254
    %1962 = vmatpush1.bf16.msra.mxu0 %v1253
    %1963 = vmatprep.subr.bf16.mxu0 %v1258
    %1964 = vmatpush1.bf16.msra.mxu0 %v1257
    %1965 = vmatprep.subr.bf16.mxu0 %v1262
    %1966 = vmatpush1.bf16.msra.mxu0 %v1261
    %1967 = vmatprep.subr.bf16.mxu0 %v1266
    %1968 = vmatpush1.bf16.msra.mxu0 %v1265
    %1969 = vmatprep.subr.bf16.mxu0 %v1270
    %1970 = vmatpush1.bf16.msra.mxu0 %v1269
    %1971 = vmatprep.mubr.bf16.mxu0 %v170
    %1972 = vmatmul.mubr.bf16.gmra.mrb[0].mxu0 %v169
    %v1973 = vpop.f32.mrb[0].mxu0
    %v1974 = vadd.f32 %v448, %v1973
    %v1975 = vpop.f32.mrb[0].mxu0
    %v1976 = vadd.f32 %v452, %v1975
    %v1977 = vpop.f32.mrb[0].mxu0
    %v1978 = vadd.f32 %v448, %v1977
    %v1979 = vpop.f32.mrb[0].mxu0
    %v1980 = vadd.f32 %v452, %v1979
    %1981 = vmatprep.mubr.bf16.mxu0 %v178
    %1982 = vmatmul.mubr.bf16.gmra.mrb[0].mxu0 %v177
    %v1983 = vpop.f32.mrb[0].mxu0
    %v1984 = vadd.f32 %v448, %v1983
    %v1985 = vpop.f32.mrb[0].mxu0
    %v1986 = vadd.f32 %v452, %v1985
    %v1987 = vpop.f32.mrb[0].mxu0
    %v1988 = vadd.f32 %v448, %v1987
    %v1989 = vpop.f32.mrb[0].mxu0
    %v1990 = vadd.f32 %v452, %v1989
    %1991 = vdwg.mxu0
    %1992 = vmatprep.subr.bf16.mxu0 %v1274
    %1993 = vmatpush1.bf16.msra.mxu0 %v1273
    %1994 = vmatprep.subr.bf16.mxu0 %v1278
    %1995 = vmatpush1.bf16.msra.mxu0 %v1277
    %1996 = vmatprep.subr.bf16.mxu0 %v1282
    %1997 = vmatpush1.bf16.msra.mxu0 %v1281
    %1998 = vmatprep.subr.bf16.mxu0 %v1286
    %1999 = vmatpush1.bf16.msra.mxu0 %v1285
    %2000 = vmatprep.subr.bf16.mxu0 %v1290
    %2001 = vmatpush1.bf16.msra.mxu0 %v1289
    %2002 = vmatprep.subr.bf16.mxu0 %v1294
    %2003 = vmatpush1.bf16.msra.mxu0 %v1293
    %2004 = vmatprep.subr.bf16.mxu0 %v1298
    %2005 = vmatpush1.bf16.msra.mxu0 %v1297
    %2006 = vmatprep.subr.bf16.mxu0 %v1302
    %2007 = vmatpush1.bf16.msra.mxu0 %v1301
    %2008 = vmatprep.subr.bf16.mxu0 %v1306
    %2009 = vmatpush1.bf16.msra.mxu0 %v1305
    %2010 = vmatprep.subr.bf16.mxu0 %v1310
    %2011 = vmatpush1.bf16.msra.mxu0 %v1309
    %2012 = vmatprep.subr.bf16.mxu0 %v1314
    %2013 = vmatpush1.bf16.msra.mxu0 %v1313
    %2014 = vmatprep.subr.bf16.mxu0 %v1318
    %2015 = vmatpush1.bf16.msra.mxu0 %v1317
    %2016 = vmatprep.subr.bf16.mxu0 %v1322
    %2017 = vmatpush1.bf16.msra.mxu0 %v1321
    %2018 = vmatprep.subr.bf16.mxu0 %v1326
    %2019 = vmatpush1.bf16.msra.mxu0 %v1325
    %2020 = vmatprep.subr.bf16.mxu0 %v1330
    %2021 = vmatpush1.bf16.msra.mxu0 %v1329
    %2022 = vmatprep.subr.bf16.mxu0 %v1334
    %2023 = vmatpush1.bf16.msra.mxu0 %v1333
    %2024 = vmatprep.mubr.bf16.mxu0 %v172
    %2025 = vmatmul.mubr.bf16.gmra.mrb[0].mxu0 %v171
    %v2026 = vpop.f32.mrb[0].mxu0
    %v2027 = vadd.f32 %v1974, %v2026
    %v2028 = vpop.f32.mrb[0].mxu0
    %v2029 = vadd.f32 %v1976, %v2028
    %v2030 = vpop.f32.mrb[0].mxu0
    %v2031 = vadd.f32 %v1978, %v2030
    %v2032 = vpop.f32.mrb[0].mxu0
    %v2033 = vadd.f32 %v1980, %v2032
    %2034 = vmatprep.mubr.bf16.mxu0 %v180
    %2035 = vmatmul.mubr.bf16.gmra.mrb[0].mxu0 %v179
    %v2036 = vpop.f32.mrb[0].mxu0
    %v2037 = vadd.f32 %v1984, %v2036
    %v2038 = vpop.f32.mrb[0].mxu0
    %v2039 = vadd.f32 %v1986, %v2038
    %v2040 = vpop.f32.mrb[0].mxu0
    %v2041 = vadd.f32 %v1988, %v2040
    %v2042 = vpop.f32.mrb[0].mxu0
    %v2043 = vadd.f32 %v1990, %v2042
    %2044 = vdwg.mxu0
    %2045 = vmatprep.subr.bf16.mxu0 %v1338
    %2046 = vmatpush1.bf16.msra.mxu0 %v1337
    %2047 = vmatprep.subr.bf16.mxu0 %v1342
    %2048 = vmatpush1.bf16.msra.mxu0 %v1341
    %2049 = vmatprep.subr.bf16.mxu0 %v1346
    %2050 = vmatpush1.bf16.msra.mxu0 %v1345
    %2051 = vmatprep.subr.bf16.mxu0 %v1350
    %2052 = vmatpush1.bf16.msra.mxu0 %v1349
    %2053 = vmatprep.subr.bf16.mxu0 %v1354
    %2054 = vmatpush1.bf16.msra.mxu0 %v1353
    %2055 = vmatprep.subr.bf16.mxu0 %v1358
    %2056 = vmatpush1.bf16.msra.mxu0 %v1357
    %2057 = vmatprep.subr.bf16.mxu0 %v1362
    %2058 = vmatpush1.bf16.msra.mxu0 %v1361
    %2059 = vmatprep.subr.bf16.mxu0 %v1366
    %2060 = vmatpush1.bf16.msra.mxu0 %v1365
    %2061 = vmatprep.subr.bf16.mxu0 %v1370
    %2062 = vmatpush1.bf16.msra.mxu0 %v1369
    %2063 = vmatprep.subr.bf16.mxu0 %v1374
    %2064 = vmatpush1.bf16.msra.mxu0 %v1373
    %2065 = vmatprep.subr.bf16.mxu0 %v1378
    %2066 = vmatpush1.bf16.msra.mxu0 %v1377
    %2067 = vmatprep.subr.bf16.mxu0 %v1382
    %2068 = vmatpush1.bf16.msra.mxu0 %v1381
    %2069 = vmatprep.subr.bf16.mxu0 %v1386
    %2070 = vmatpush1.bf16.msra.mxu0 %v1385
    %2071 = vmatprep.subr.bf16.mxu0 %v1390
    %2072 = vmatpush1.bf16.msra.mxu0 %v1389
    %2073 = vmatprep.subr.bf16.mxu0 %v1394
    %2074 = vmatpush1.bf16.msra.mxu0 %v1393
    %2075 = vmatprep.subr.bf16.mxu0 %v1398
    %2076 = vmatpush1.bf16.msra.mxu0 %v1397
    %2077 = vmatprep.mubr.bf16.mxu0 %v174
    %2078 = vmatmul.mubr.bf16.gmra.mrb[0].mxu0 %v173
    %v2079 = vpop.f32.mrb[0].mxu0
    %v2080 = vadd.f32 %v2027, %v2079
    %v2081 = vpop.f32.mrb[0].mxu0
    %v2082 = vadd.f32 %v2029, %v2081
    %v2083 = vpop.f32.mrb[0].mxu0
    %v2084 = vadd.f32 %v2031, %v2083
    %v2085 = vpop.f32.mrb[0].mxu0
    %v2086 = vadd.f32 %v2033, %v2085
    %2087 = vmatprep.mubr.bf16.mxu0 %v182
    %2088 = vmatmul.mubr.bf16.gmra.mrb[0].mxu0 %v181
    %v2089 = vpop.f32.mrb[0].mxu0
    %v2090 = vadd.f32 %v2037, %v2089
    %v2091 = vpop.f32.mrb[0].mxu0
    %v2092 = vadd.f32 %v2039, %v2091
    %v2093 = vpop.f32.mrb[0].mxu0
    %v2094 = vadd.f32 %v2041, %v2093
    %v2095 = vpop.f32.mrb[0].mxu0
    %v2096 = vadd.f32 %v2043, %v2095
    %2097 = vdwg.mxu0
    %2098 = vmatprep.subr.bf16.mxu0 %v1402
    %2099 = vmatpush1.bf16.msra.mxu0 %v1401
    %2100 = vmatprep.subr.bf16.mxu0 %v1406
    %2101 = vmatpush1.bf16.msra.mxu0 %v1405
    %2102 = vmatprep.subr.bf16.mxu0 %v1410
    %2103 = vmatpush1.bf16.msra.mxu0 %v1409
    %2104 = vmatprep.subr.bf16.mxu0 %v1414
    %2105 = vmatpush1.bf16.msra.mxu0 %v1413
    %2106 = vmatprep.subr.bf16.mxu0 %v1418
    %2107 = vmatpush1.bf16.msra.mxu0 %v1417
    %2108 = vmatprep.subr.bf16.mxu0 %v1422
    %2109 = vmatpush1.bf16.msra.mxu0 %v1421
    %2110 = vmatprep.subr.bf16.mxu0 %v1426
    %2111 = vmatpush1.bf16.msra.mxu0 %v1425
    %2112 = vmatprep.subr.bf16.mxu0 %v1430
    %2113 = vmatpush1.bf16.msra.mxu0 %v1429
    %2114 = vmatprep.subr.bf16.mxu0 %v1434
    %2115 = vmatpush1.bf16.msra.mxu0 %v1433
    %2116 = vmatprep.subr.bf16.mxu0 %v1438
    %2117 = vmatpush1.bf16.msra.mxu0 %v1437
    %2118 = vmatprep.subr.bf16.mxu0 %v1442
    %2119 = vmatpush1.bf16.msra.mxu0 %v1441
    %2120 = vmatprep.subr.bf16.mxu0 %v1446
    %2121 = vmatpush1.bf16.msra.mxu0 %v1445
    %2122 = vmatprep.subr.bf16.mxu0 %v1450
    %2123 = vmatpush1.bf16.msra.mxu0 %v1449
    %2124 = vmatprep.subr.bf16.mxu0 %v1454
    %2125 = vmatpush1.bf16.msra.mxu0 %v1453
    %2126 = vmatprep.subr.bf16.mxu0 %v1725
    %2127 = vmatpush1.bf16.msra.mxu0 %v1722
    %2128 = vmatprep.subr.bf16.mxu0 0
    %2129 = vmatpush1.bf16.msra.mxu0 0
    %2130 = vmatprep.mubr.bf16.mxu0 %v1709
    %2131 = vmatmul.mubr.bf16.gmra.mrb[0].mxu0 %v175
    %v2132 = vpop.f32.mrb[0].mxu0
    %v2133 = vadd.f32 %v2080, %v2132
    %v2134 = vpop.f32.mrb[0].mxu0
    %v2135 = vadd.f32 %v2082, %v2134
    %v2136 = vpop.f32.mrb[0].mxu0
    %v2137 = vadd.f32 %v2084, %v2136
    %v2138 = vpop.f32.mrb[0].mxu0
    %v2139 = vadd.f32 %v2086, %v2138
    %2140 = vmatprep.mubr.bf16.mxu0 %v1712
    %2141 = vmatmul.mubr.bf16.gmra.mrb[0].mxu0 %v183
    %v2142 = vpop.f32.mrb[0].mxu0
    %v2143 = vadd.f32 %v2090, %v2142
    %v2144 = vpop.f32.mrb[0].mxu0
    %v2145 = vadd.f32 %v2092, %v2144
    %v2146 = vpop.f32.mrb[0].mxu0
    %v2147 = vadd.f32 %v2094, %v2146
    %v2148 = vpop.f32.mrb[0].mxu0
    %v2149 = vadd.f32 %v2096, %v2148
    %2150 = vdwg.mxu0
    %v2151 = vmax.f32 %v1921, 0.0
    %v2152 = vmax.f32 %v1923, 0.0
    %v2153 = vmax.f32 %v2133, 0.0
    %v2154 = vmax.f32 %v2135, 0.0
    %v2155 = vmax.f32 %v1925, 0.0
    %v2156 = vmax.f32 %v1927, 0.0
    %v2157 = vmax.f32 %v2137, 0.0
    %v2158 = vmax.f32 %v2139, 0.0
    %v2159 = vmax.f32 %v1931, 0.0
    %v2160 = vmax.f32 %v1933, 0.0
    %v2161 = vmax.f32 %v2143, 0.0
    %v2162 = vmax.f32 %v2145, 0.0
    %v2163 = vmax.f32 %v1935, 0.0
    %v2164 = vmax.f32 %v1937, 0.0
    %v2165 = vmax.f32 %v2147, 0.0
    %v2166 = vmax.f32 %v2149, 0.0
    %v2167 = vpack.c.bf16 %v2155, %v2151
    %v2168 = vpack.c.bf16 %v2156, %v2152
    %v2169 = vpack.c.bf16 %v2157, %v2153
    %v2170 = vpack.c.bf16 %v2158, %v2154
    %v2171 = vpack.c.bf16 %v2163, %v2159
    %v2172 = vpack.c.bf16 %v2164, %v2160
    %v2173 = vpack.c.bf16 %v2165, %v2161
    %v2174 = vpack.c.bf16 %v2166, %v2162
    %v2175 = vld [vmem:[#allocation8] sm:$0xff]
    %v2176 = vld [vmem:[#allocation8 + $0x8] sm:$0xff]
    %v2177 = vld [vmem:[#allocation8 + $0x10] sm:$0xff]
    %v2178 = vld [vmem:[#allocation8 + $0x18] sm:$0xff]
    %v2179 = vld [vmem:[#allocation8 + $0x20] sm:$0xff]
    %v2180 = vld [vmem:[#allocation8 + $0x28] sm:$0xff]
    %v2181 = vld [vmem:[#allocation8 + $0x30] sm:$0xff]
    %v2182 = vld [vmem:[#allocation8 + $0x38] sm:$0xff]
    %v2183 = vld [vmem:[#allocation8 + $0x40] sm:$0xff]
    %v2184 = vld [vmem:[#allocation8 + $0x48] sm:$0xff]
    %v2185 = vld [vmem:[#allocation8 + $0x50] sm:$0xff]
    %v2186 = vld [vmem:[#allocation8 + $0x58] sm:$0xff]
    %v2187 = vld [vmem:[#allocation8 + $0x60] sm:$0xff]
    %v2188 = vld [vmem:[#allocation8 + $0x68] sm:$0xff]
    %v2189 = vld [vmem:[#allocation8 + $0x70] sm:$0xff]
    %v2190 = vld [vmem:[#allocation8 + $0x78] sm:$0xff]
    %v2191 = vld [vmem:[#allocation8 + $0x80] sm:$0xff]
    %v2192 = vld [vmem:[#allocation8 + $0x88] sm:$0xff]
    %v2193 = vld [vmem:[#allocation8 + $0x90] sm:$0xff]
    %v2194 = vld [vmem:[#allocation8 + $0x98] sm:$0xff]
    %v2195 = vld [vmem:[#allocation8 + $0xa0] sm:$0xff]
    %v2196 = vld [vmem:[#allocation8 + $0xa8] sm:$0xff]
    %v2197 = vld [vmem:[#allocation8 + $0xb0] sm:$0xff]
    %v2198 = vld [vmem:[#allocation8 + $0xb8] sm:$0xff]
    %v2199 = vld [vmem:[#allocation8 + $0xc0] sm:$0xff]
    %v2200 = vld [vmem:[#allocation8 + $0xc8] sm:$0xff]
    %v2201 = vld [vmem:[#allocation8 + $0xd0] sm:$0xff]
    %v2202 = vld [vmem:[#allocation8 + $0xd8] sm:$0xff]
    %v2203 = vld [vmem:[#allocation8 + $0xe0] sm:$0xff]
    %v2204 = vld [vmem:[#allocation8 + $0xe8] sm:$0xff]
    %v2205 = vld [vmem:[#allocation8 + $0xf0] sm:$0xff]
    %v2206 = vld [vmem:[#allocation8 + $0xf8] sm:$0xff]
    %v2207 = vld [vmem:[#allocation8 + $0x100] sm:$0xff]
    %v2208 = vld [vmem:[#allocation8 + $0x108] sm:$0xff]
    %v2209 = vld [vmem:[#allocation8 + $0x110] sm:$0xff]
    %v2210 = vld [vmem:[#allocation8 + $0x118] sm:$0xff]
    %v2211 = vld [vmem:[#allocation8 + $0x120] sm:$0xff]
    %v2212 = vld [vmem:[#allocation8 + $0x128] sm:$0xff]
    %v2213 = vld [vmem:[#allocation8 + $0x130] sm:$0xff]
    %v2214 = vld [vmem:[#allocation8 + $0x138] sm:$0xff]
    %v2215 = vld [vmem:[#allocation8 + $0x140] sm:$0xff]
    %v2216 = vld [vmem:[#allocation8 + $0x148] sm:$0xff]
    %v2217 = vld [vmem:[#allocation8 + $0x150] sm:$0xff]
    %v2218 = vld [vmem:[#allocation8 + $0x158] sm:$0xff]
    %v2219 = vld [vmem:[#allocation8 + $0x160] sm:$0xff]
    %v2220 = vld [vmem:[#allocation8 + $0x168] sm:$0xff]
    %v2221 = vld [vmem:[#allocation8 + $0x170] sm:$0xff]
    %v2222 = vld [vmem:[#allocation8 + $0x178] sm:$0xff]
    %v2223 = vld [vmem:[#allocation8 + $0x180] sm:$0xff]
    %v2224 = vld [vmem:[#allocation8 + $0x188] sm:$0xff]
    %v2225 = vld [vmem:[#allocation8 + $0x190] sm:$0xff]
    %v2226 = vld [vmem:[#allocation8 + $0x198] sm:$0xff]
    %v2227 = vld [vmem:[#allocation8 + $0x1a0] sm:$0xff]
    %v2228 = vld [vmem:[#allocation8 + $0x1a8] sm:$0xff]
    %v2229 = vld [vmem:[#allocation8 + $0x1b0] sm:$0xff]
    %v2230 = vld [vmem:[#allocation8 + $0x1b8] sm:$0xff]
    %v2231 = vld [vmem:[#allocation8 + $0x1c0] sm:$0xff]
    %v2232 = vld [vmem:[#allocation8 + $0x1c8] sm:$0xff]
    %v2233 = vld [vmem:[#allocation8 + $0x1d0] sm:$0xff]
    %v2234 = vld [vmem:[#allocation8 + $0x1d8] sm:$0xff]
    %v2235 = vld [vmem:[#allocation8 + $0x1e0] sm:$0xff]
    %v2236 = vld [vmem:[#allocation8 + $0x1e8] sm:$0xff]
    %v2237 = vld [vmem:[#allocation8 + $0x1f0] sm:$0xff]
    %v2238 = vld [vmem:[#allocation8 + $0x1f8] sm:$0xff]
    %v2239 = vld [vmem:[#allocation8 + $0x200] sm:$0xff]
    %v2240 = vld [vmem:[#allocation8 + $0x208] sm:$0xff]
    %v2241 = vld [vmem:[#allocation8 + $0x210] sm:$0xff]
    %v2242 = vld [vmem:[#allocation8 + $0x218] sm:$0xff]
    %v2243 = vld [vmem:[#allocation8 + $0x220] sm:$0xff]
    %v2244 = vld [vmem:[#allocation8 + $0x228] sm:$0xff]
    %v2245 = vld [vmem:[#allocation8 + $0x230] sm:$0xff]
    %v2246 = vld [vmem:[#allocation8 + $0x238] sm:$0xff]
    %v2247 = vld [vmem:[#allocation8 + $0x240] sm:$0xff]
    %v2248 = vld [vmem:[#allocation8 + $0x248] sm:$0xff]
    %v2249 = vld [vmem:[#allocation8 + $0x250] sm:$0xff]
    %v2250 = vld [vmem:[#allocation8 + $0x258] sm:$0xff]
    %v2251 = vld [vmem:[#allocation8 + $0x260] sm:$0xff]
    %v2252 = vld [vmem:[#allocation8 + $0x268] sm:$0xff]
    %v2253 = vld [vmem:[#allocation8 + $0x270] sm:$0xff]
    %v2254 = vld [vmem:[#allocation8 + $0x278] sm:$0xff]
    %v2255 = vld [vmem:[#allocation8 + $0x280] sm:$0xff]
    %v2256 = vld [vmem:[#allocation8 + $0x288] sm:$0xff]
    %v2257 = vld [vmem:[#allocation8 + $0x290] sm:$0xff]
    %v2258 = vld [vmem:[#allocation8 + $0x298] sm:$0xff]
    %v2259 = vld [vmem:[#allocation8 + $0x2a0] sm:$0xff]
    %v2260 = vld [vmem:[#allocation8 + $0x2a8] sm:$0xff]
    %v2261 = vld [vmem:[#allocation8 + $0x2b0] sm:$0xff]
    %v2262 = vld [vmem:[#allocation8 + $0x2b8] sm:$0xff]
    %v2263 = vld [vmem:[#allocation8 + $0x2c0] sm:$0xff]
    %v2264 = vld [vmem:[#allocation8 + $0x2c8] sm:$0xff]
    %v2265 = vld [vmem:[#allocation8 + $0x2d0] sm:$0xff]
    %v2266 = vld [vmem:[#allocation8 + $0x2d8] sm:$0xff]
    %v2267 = vld [vmem:[#allocation8 + $0x2e0] sm:$0xff]
    %v2268 = vld [vmem:[#allocation8 + $0x2e8] sm:$0xff]
    %v2269 = vld [vmem:[#allocation8 + $0x2f0] sm:$0xff]
    %v2270 = vld [vmem:[#allocation8 + $0x2f8] sm:$0xff]
    %v2271 = vld [vmem:[#allocation8 + $0x300] sm:$0xff]
    %v2272 = vld [vmem:[#allocation8 + $0x308] sm:$0xff]
    %v2273 = vld [vmem:[#allocation8 + $0x310] sm:$0xff]
    %v2274 = vld [vmem:[#allocation8 + $0x318] sm:$0xff]
    %v2275 = vld [vmem:[#allocation8 + $0x320] sm:$0xff]
    %v2276 = vld [vmem:[#allocation8 + $0x328] sm:$0xff]
    %v2277 = vld [vmem:[#allocation8 + $0x330] sm:$0xff]
    %v2278 = vld [vmem:[#allocation8 + $0x338] sm:$0xff]
    %v2279 = vld [vmem:[#allocation8 + $0x340] sm:$0xff]
    %v2280 = vld [vmem:[#allocation8 + $0x348] sm:$0xff]
    %v2281 = vld [vmem:[#allocation8 + $0x350] sm:$0xff]
    %v2282 = vld [vmem:[#allocation8 + $0x358] sm:$0xff]
    %v2283 = vld [vmem:[#allocation8 + $0x360] sm:$0xff]
    %v2284 = vld [vmem:[#allocation8 + $0x368] sm:$0xff]
    %v2285 = vld [vmem:[#allocation8 + $0x370] sm:$0xff]
    %v2286 = vld [vmem:[#allocation8 + $0x378] sm:$0xff]
    %v2287 = vld [vmem:[#allocation8 + $0x380] sm:$0xff]
    %v2288 = vld [vmem:[#allocation8 + $0x388] sm:$0xff]
    %v2289 = vld [vmem:[#allocation8 + $0x390] sm:$0xff]
    %v2290 = vld [vmem:[#allocation8 + $0x398] sm:$0xff]
    %v2291 = vld [vmem:[#allocation8 + $0x3a0] sm:$0xff]
    %v2292 = vld [vmem:[#allocation8 + $0x3a8] sm:$0xff]
    %v2293 = vld [vmem:[#allocation8 + $0x3b0] sm:$0xff]
    %v2294 = vld [vmem:[#allocation8 + $0x3b8] sm:$0xff]
    %v2295 = vld [vmem:[#allocation8 + $0x3c0] sm:$0xff]
    %v2296 = vld [vmem:[#allocation8 + $0x3c8] sm:$0xff]
    %v2297 = vld [vmem:[#allocation8 + $0x3d0] sm:$0xff]
    %v2298 = vld [vmem:[#allocation8 + $0x3d8] sm:$0xff]
    %v2299 = vld [vmem:[#allocation8 + $0x3e0] sm:$0xff]
    %v2300 = vld [vmem:[#allocation8 + $0x3e8] sm:$0xff]
    %v2301 = vld [vmem:[#allocation8 + $0x3f0] sm:$0xff]
    %v2302 = vld [vmem:[#allocation8 + $0x3f8] sm:$0xff]
    %v2303 = vld [vmem:[#allocation10] sm:$0xf]
    %v2305 = vlaneseq
    %v2306 = vshrl.u32 %v2305, 7
    %v2307 = vsub.s32 0, %v2306
    %v2308 = vrot.slane %v2303, %v2307
    %v2309 = vlaneseq
    %v2310 = vshrl.u32 %v2309, 7
    %v2311 = vsub.s32 1, %v2310
    %v2312 = vrot.slane %v2303, %v2311
    %v2313 = vlaneseq
    %v2314 = vshrl.u32 %v2313, 7
    %v2315 = vsub.s32 2, %v2314
    %v2316 = vrot.slane %v2303, %v2315
    %v2317 = vlaneseq
    %v2318 = vshrl.u32 %v2317, 7
    %v2319 = vsub.s32 3, %v2318
    %v2320 = vrot.slane %v2303, %v2319
    %v2453 = vunpack.c.l.b16 %v2175
    %v2454 = vunpack.c.h.b16 %v2175
    %v2455 = vunpack.c.l.b16 %v2176
    %v2456 = vunpack.c.h.b16 %v2176
    %v2457 = vunpack.c.l.b16 %v2177
    %v2458 = vunpack.c.h.b16 %v2177
    %v2459 = vunpack.c.l.b16 %v2178
    %v2460 = vunpack.c.h.b16 %v2178
    %v2461 = vunpack.c.l.b16 %v2179
    %v2462 = vunpack.c.h.b16 %v2179
    %v2463 = vunpack.c.l.b16 %v2180
    %v2464 = vunpack.c.h.b16 %v2180
    %v2465 = vunpack.c.l.b16 %v2181
    %v2466 = vunpack.c.h.b16 %v2181
    %v2467 = vunpack.c.l.b16 %v2182
    %v2468 = vunpack.c.h.b16 %v2182
    %v2469 = vunpack.c.l.b16 %v2183
    %v2470 = vunpack.c.h.b16 %v2183
    %v2471 = vunpack.c.l.b16 %v2184
    %v2472 = vunpack.c.h.b16 %v2184
    %v2473 = vunpack.c.l.b16 %v2185
    %v2474 = vunpack.c.h.b16 %v2185
    %v2475 = vunpack.c.l.b16 %v2186
    %v2476 = vunpack.c.h.b16 %v2186
    %v2477 = vunpack.c.l.b16 %v2187
    %v2478 = vunpack.c.h.b16 %v2187
    %v2479 = vunpack.c.l.b16 %v2188
    %v2480 = vunpack.c.h.b16 %v2188
    %v2481 = vunpack.c.l.b16 %v2189
    %v2482 = vunpack.c.h.b16 %v2189
    %v2483 = vunpack.c.l.b16 %v2190
    %v2484 = vunpack.c.h.b16 %v2190
    %v2485 = vunpack.c.l.b16 %v2191
    %v2486 = vunpack.c.h.b16 %v2191
    %v2487 = vunpack.c.l.b16 %v2192
    %v2488 = vunpack.c.h.b16 %v2192
    %v2489 = vunpack.c.l.b16 %v2193
    %v2490 = vunpack.c.h.b16 %v2193
    %v2491 = vunpack.c.l.b16 %v2194
    %v2492 = vunpack.c.h.b16 %v2194
    %v2493 = vunpack.c.l.b16 %v2195
    %v2494 = vunpack.c.h.b16 %v2195
    %v2495 = vunpack.c.l.b16 %v2196
    %v2496 = vunpack.c.h.b16 %v2196
    %v2497 = vunpack.c.l.b16 %v2197
    %v2498 = vunpack.c.h.b16 %v2197
    %v2499 = vunpack.c.l.b16 %v2198
    %v2500 = vunpack.c.h.b16 %v2198
    %v2501 = vunpack.c.l.b16 %v2199
    %v2502 = vunpack.c.h.b16 %v2199
    %v2503 = vunpack.c.l.b16 %v2200
    %v2504 = vunpack.c.h.b16 %v2200
    %v2505 = vunpack.c.l.b16 %v2201
    %v2506 = vunpack.c.h.b16 %v2201
    %v2507 = vunpack.c.l.b16 %v2202
    %v2508 = vunpack.c.h.b16 %v2202
    %v2509 = vunpack.c.l.b16 %v2203
    %v2510 = vunpack.c.h.b16 %v2203
    %v2511 = vunpack.c.l.b16 %v2204
    %v2512 = vunpack.c.h.b16 %v2204
    %v2513 = vunpack.c.l.b16 %v2205
    %v2514 = vunpack.c.h.b16 %v2205
    %v2515 = vunpack.c.l.b16 %v2206
    %v2516 = vunpack.c.h.b16 %v2206
    %v2517 = vunpack.c.l.b16 %v2207
    %v2518 = vunpack.c.h.b16 %v2207
    %v2519 = vunpack.c.l.b16 %v2208
    %v2520 = vunpack.c.h.b16 %v2208
    %v2521 = vunpack.c.l.b16 %v2209
    %v2522 = vunpack.c.h.b16 %v2209
    %v2523 = vunpack.c.l.b16 %v2210
    %v2524 = vunpack.c.h.b16 %v2210
    %v2525 = vunpack.c.l.b16 %v2211
    %v2526 = vunpack.c.h.b16 %v2211
    %v2527 = vunpack.c.l.b16 %v2212
    %v2528 = vunpack.c.h.b16 %v2212
    %v2529 = vunpack.c.l.b16 %v2213
    %v2530 = vunpack.c.h.b16 %v2213
    %v2531 = vunpack.c.l.b16 %v2214
    %v2532 = vunpack.c.h.b16 %v2214
    %v2533 = vunpack.c.l.b16 %v2215
    %v2534 = vunpack.c.h.b16 %v2215
    %v2535 = vunpack.c.l.b16 %v2216
    %v2536 = vunpack.c.h.b16 %v2216
    %v2537 = vunpack.c.l.b16 %v2217
    %v2538 = vunpack.c.h.b16 %v2217
    %v2539 = vunpack.c.l.b16 %v2218
    %v2540 = vunpack.c.h.b16 %v2218
    %v2541 = vunpack.c.l.b16 %v2219
    %v2542 = vunpack.c.h.b16 %v2219
    %v2543 = vunpack.c.l.b16 %v2220
    %v2544 = vunpack.c.h.b16 %v2220
    %v2545 = vunpack.c.l.b16 %v2221
    %v2546 = vunpack.c.h.b16 %v2221
    %v2547 = vunpack.c.l.b16 %v2222
    %v2548 = vunpack.c.h.b16 %v2222
    %v2549 = vunpack.c.l.b16 %v2223
    %v2550 = vunpack.c.h.b16 %v2223
    %v2551 = vunpack.c.l.b16 %v2224
    %v2552 = vunpack.c.h.b16 %v2224
    %v2553 = vunpack.c.l.b16 %v2225
    %v2554 = vunpack.c.h.b16 %v2225
    %v2555 = vunpack.c.l.b16 %v2226
    %v2556 = vunpack.c.h.b16 %v2226
    %v2557 = vunpack.c.l.b16 %v2227
    %v2558 = vunpack.c.h.b16 %v2227
    %v2559 = vunpack.c.l.b16 %v2228
    %v2560 = vunpack.c.h.b16 %v2228
    %v2561 = vunpack.c.l.b16 %v2229
    %v2562 = vunpack.c.h.b16 %v2229
    %v2563 = vunpack.c.l.b16 %v2230
    %v2564 = vunpack.c.h.b16 %v2230
    %v2565 = vunpack.c.l.b16 %v2231
    %v2566 = vunpack.c.h.b16 %v2231
    %v2567 = vunpack.c.l.b16 %v2232
    %v2568 = vunpack.c.h.b16 %v2232
    %v2569 = vunpack.c.l.b16 %v2233
    %v2570 = vunpack.c.h.b16 %v2233
    %v2571 = vunpack.c.l.b16 %v2234
    %v2572 = vunpack.c.h.b16 %v2234
    %v2573 = vunpack.c.l.b16 %v2235
    %v2574 = vunpack.c.h.b16 %v2235
    %v2575 = vunpack.c.l.b16 %v2236
    %v2576 = vunpack.c.h.b16 %v2236
    %v2577 = vunpack.c.l.b16 %v2237
    %v2578 = vunpack.c.h.b16 %v2237
    %v2579 = vunpack.c.l.b16 %v2238
    %v2580 = vunpack.c.h.b16 %v2238
    %v2581 = vunpack.c.l.b16 %v2239
    %v2582 = vunpack.c.h.b16 %v2239
    %v2583 = vunpack.c.l.b16 %v2240
    %v2584 = vunpack.c.h.b16 %v2240
    %v2585 = vunpack.c.l.b16 %v2241
    %v2586 = vunpack.c.h.b16 %v2241
    %v2587 = vunpack.c.l.b16 %v2242
    %v2588 = vunpack.c.h.b16 %v2242
    %v2589 = vunpack.c.l.b16 %v2243
    %v2590 = vunpack.c.h.b16 %v2243
    %v2591 = vunpack.c.l.b16 %v2244
    %v2592 = vunpack.c.h.b16 %v2244
    %v2593 = vunpack.c.l.b16 %v2245
    %v2594 = vunpack.c.h.b16 %v2245
    %v2595 = vunpack.c.l.b16 %v2246
    %v2596 = vunpack.c.h.b16 %v2246
    %v2597 = vunpack.c.l.b16 %v2247
    %v2598 = vunpack.c.h.b16 %v2247
    %v2599 = vunpack.c.l.b16 %v2248
    %v2600 = vunpack.c.h.b16 %v2248
    %v2601 = vunpack.c.l.b16 %v2249
    %v2602 = vunpack.c.h.b16 %v2249
    %v2603 = vunpack.c.l.b16 %v2250
    %v2604 = vunpack.c.h.b16 %v2250
    %v2605 = vunpack.c.l.b16 %v2251
    %v2606 = vunpack.c.h.b16 %v2251
    %v2607 = vunpack.c.l.b16 %v2252
    %v2608 = vunpack.c.h.b16 %v2252
    %v2609 = vunpack.c.l.b16 %v2253
    %v2610 = vunpack.c.h.b16 %v2253
    %v2611 = vunpack.c.l.b16 %v2254
    %v2612 = vunpack.c.h.b16 %v2254
    %v2613 = vunpack.c.l.b16 %v2255
    %v2614 = vunpack.c.h.b16 %v2255
    %v2615 = vunpack.c.l.b16 %v2256
    %v2616 = vunpack.c.h.b16 %v2256
    %v2617 = vunpack.c.l.b16 %v2257
    %v2618 = vunpack.c.h.b16 %v2257
    %v2619 = vunpack.c.l.b16 %v2258
    %v2620 = vunpack.c.h.b16 %v2258
    %v2621 = vunpack.c.l.b16 %v2259
    %v2622 = vunpack.c.h.b16 %v2259
    %v2623 = vunpack.c.l.b16 %v2260
    %v2624 = vunpack.c.h.b16 %v2260
    %v2625 = vunpack.c.l.b16 %v2261
    %v2626 = vunpack.c.h.b16 %v2261
    %v2627 = vunpack.c.l.b16 %v2262
    %v2628 = vunpack.c.h.b16 %v2262
    %v2629 = vunpack.c.l.b16 %v2263
    %v2630 = vunpack.c.h.b16 %v2263
    %v2631 = vunpack.c.l.b16 %v2264
    %v2632 = vunpack.c.h.b16 %v2264
    %v2633 = vunpack.c.l.b16 %v2265
    %v2634 = vunpack.c.h.b16 %v2265
    %v2635 = vunpack.c.l.b16 %v2266
    %v2636 = vunpack.c.h.b16 %v2266
    %v2637 = vunpack.c.l.b16 %v2267
    %v2638 = vunpack.c.h.b16 %v2267
    %v2639 = vunpack.c.l.b16 %v2268
    %v2640 = vunpack.c.h.b16 %v2268
    %v2641 = vunpack.c.l.b16 %v2269
    %v2642 = vunpack.c.h.b16 %v2269
    %v2643 = vunpack.c.l.b16 %v2270
    %v2644 = vunpack.c.h.b16 %v2270
    %v2645 = vunpack.c.l.b16 %v2271
    %v2646 = vunpack.c.h.b16 %v2271
    %v2647 = vunpack.c.l.b16 %v2272
    %v2648 = vunpack.c.h.b16 %v2272
    %v2649 = vunpack.c.l.b16 %v2273
    %v2650 = vunpack.c.h.b16 %v2273
    %v2651 = vunpack.c.l.b16 %v2274
    %v2652 = vunpack.c.h.b16 %v2274
    %v2653 = vunpack.c.l.b16 %v2275
    %v2654 = vunpack.c.h.b16 %v2275
    %v2655 = vunpack.c.l.b16 %v2276
    %v2656 = vunpack.c.h.b16 %v2276
    %v2657 = vunpack.c.l.b16 %v2277
    %v2658 = vunpack.c.h.b16 %v2277
    %v2659 = vunpack.c.l.b16 %v2278
    %v2660 = vunpack.c.h.b16 %v2278
    %v2661 = vunpack.c.l.b16 %v2279
    %v2662 = vunpack.c.h.b16 %v2279
    %v2663 = vunpack.c.l.b16 %v2280
    %v2664 = vunpack.c.h.b16 %v2280
    %v2665 = vunpack.c.l.b16 %v2281
    %v2666 = vunpack.c.h.b16 %v2281
    %v2667 = vunpack.c.l.b16 %v2282
    %v2668 = vunpack.c.h.b16 %v2282
    %v2669 = vunpack.c.l.b16 %v2283
    %v2670 = vunpack.c.h.b16 %v2283
    %v2671 = vunpack.c.l.b16 %v2284
    %v2672 = vunpack.c.h.b16 %v2284
    %v2673 = vunpack.c.l.b16 %v2285
    %v2674 = vunpack.c.h.b16 %v2285
    %v2675 = vunpack.c.l.b16 %v2286
    %v2676 = vunpack.c.h.b16 %v2286
    %v2677 = vunpack.c.l.b16 %v2287
    %v2678 = vunpack.c.h.b16 %v2287
    %v2679 = vunpack.c.l.b16 %v2288
    %v2680 = vunpack.c.h.b16 %v2288
    %v2681 = vunpack.c.l.b16 %v2289
    %v2682 = vunpack.c.h.b16 %v2289
    %v2683 = vunpack.c.l.b16 %v2290
    %v2684 = vunpack.c.h.b16 %v2290
    %v2685 = vunpack.c.l.b16 %v2291
    %v2686 = vunpack.c.h.b16 %v2291
    %v2687 = vunpack.c.l.b16 %v2292
    %v2688 = vunpack.c.h.b16 %v2292
    %v2689 = vunpack.c.l.b16 %v2293
    %v2690 = vunpack.c.h.b16 %v2293
    %v2691 = vunpack.c.l.b16 %v2294
    %v2692 = vunpack.c.h.b16 %v2294
    %v2693 = vunpack.c.l.b16 %v2295
    %v2694 = vunpack.c.h.b16 %v2295
    %v2695 = vunpack.c.l.b16 %v2296
    %v2696 = vunpack.c.h.b16 %v2296
    %v2697 = vunpack.c.l.b16 %v2297
    %v2698 = vunpack.c.h.b16 %v2297
    %v2699 = vunpack.c.l.b16 %v2298
    %v2700 = vunpack.c.h.b16 %v2298
    %v2701 = vunpack.c.l.b16 %v2299
    %v2702 = vunpack.c.h.b16 %v2299
    %v2703 = vunpack.c.l.b16 %v2300
    %v2704 = vunpack.c.h.b16 %v2300
    %v2705 = vunpack.c.l.b16 %v2301
    %v2706 = vunpack.c.h.b16 %v2301
    %v2707 = vunpack.c.l.b16 %v2302
    %v2708 = vunpack.c.h.b16 %v2302
    %v2709 = vpack.c.b16 %v2457, %v2453
    %v2710 = vpack.c.b16 %v2458, %v2454
    %v2711 = vpack.c.b16 %v2459, %v2455
    %v2712 = vpack.c.b16 %v2460, %v2456
    %v2713 = vpack.c.b16 %v2465, %v2461
    %v2714 = vpack.c.b16 %v2466, %v2462
    %v2715 = vpack.c.b16 %v2467, %v2463
    %v2716 = vpack.c.b16 %v2468, %v2464
    %v2717 = vpack.c.b16 %v2473, %v2469
    %v2718 = vpack.c.b16 %v2474, %v2470
    %v2719 = vpack.c.b16 %v2475, %v2471
    %v2720 = vpack.c.b16 %v2476, %v2472
    %v2721 = vpack.c.b16 %v2481, %v2477
    %v2722 = vpack.c.b16 %v2482, %v2478
    %v2723 = vpack.c.b16 %v2483, %v2479
    %v2724 = vpack.c.b16 %v2484, %v2480
    %v2725 = vpack.c.b16 %v2489, %v2485
    %v2726 = vpack.c.b16 %v2490, %v2486
    %v2727 = vpack.c.b16 %v2491, %v2487
    %v2728 = vpack.c.b16 %v2492, %v2488
    %v2729 = vpack.c.b16 %v2497, %v2493
    %v2730 = vpack.c.b16 %v2498, %v2494
    %v2731 = vpack.c.b16 %v2499, %v2495
    %v2732 = vpack.c.b16 %v2500, %v2496
    %v2733 = vpack.c.b16 %v2505, %v2501
    %v2734 = vpack.c.b16 %v2506, %v2502
    %v2735 = vpack.c.b16 %v2507, %v2503
    %v2736 = vpack.c.b16 %v2508, %v2504
    %v2737 = vpack.c.b16 %v2513, %v2509
    %v2738 = vpack.c.b16 %v2514, %v2510
    %v2739 = vpack.c.b16 %v2515, %v2511
    %v2740 = vpack.c.b16 %v2516, %v2512
    %v2741 = vpack.c.b16 %v2521, %v2517
    %v2742 = vpack.c.b16 %v2522, %v2518
    %v2743 = vpack.c.b16 %v2523, %v2519
    %v2744 = vpack.c.b16 %v2524, %v2520
    %v2745 = vpack.c.b16 %v2529, %v2525
    %v2746 = vpack.c.b16 %v2530, %v2526
    %v2747 = vpack.c.b16 %v2531, %v2527
    %v2748 = vpack.c.b16 %v2532, %v2528
    %v2749 = vpack.c.b16 %v2537, %v2533
    %v2750 = vpack.c.b16 %v2538, %v2534
    %v2751 = vpack.c.b16 %v2539, %v2535
    %v2752 = vpack.c.b16 %v2540, %v2536
    %v2753 = vpack.c.b16 %v2545, %v2541
    %v2754 = vpack.c.b16 %v2546, %v2542
    %v2755 = vpack.c.b16 %v2547, %v2543
    %v2756 = vpack.c.b16 %v2548, %v2544
    %v2757 = vpack.c.b16 %v2553, %v2549
    %v2758 = vpack.c.b16 %v2554, %v2550
    %v2759 = vpack.c.b16 %v2555, %v2551
    %v2760 = vpack.c.b16 %v2556, %v2552
    %v2761 = vpack.c.b16 %v2561, %v2557
    %v2762 = vpack.c.b16 %v2562, %v2558
    %v2763 = vpack.c.b16 %v2563, %v2559
    %v2764 = vpack.c.b16 %v2564, %v2560
    %v2765 = vpack.c.b16 %v2569, %v2565
    %v2766 = vpack.c.b16 %v2570, %v2566
    %v2767 = vpack.c.b16 %v2571, %v2567
    %v2768 = vpack.c.b16 %v2572, %v2568
    %v2769 = vpack.c.b16 %v2577, %v2573
    %v2770 = vpack.c.b16 %v2578, %v2574
    %v2771 = vpack.c.b16 %v2579, %v2575
    %v2772 = vpack.c.b16 %v2580, %v2576
    %v2773 = vpack.c.b16 %v2585, %v2581
    %v2774 = vpack.c.b16 %v2586, %v2582
    %v2775 = vpack.c.b16 %v2587, %v2583
    %v2776 = vpack.c.b16 %v2588, %v2584
    %v2777 = vpack.c.b16 %v2593, %v2589
    %v2778 = vpack.c.b16 %v2594, %v2590
    %v2779 = vpack.c.b16 %v2595, %v2591
    %v2780 = vpack.c.b16 %v2596, %v2592
    %v2781 = vpack.c.b16 %v2601, %v2597
    %v2782 = vpack.c.b16 %v2602, %v2598
    %v2783 = vpack.c.b16 %v2603, %v2599
    %v2784 = vpack.c.b16 %v2604, %v2600
    %v2785 = vpack.c.b16 %v2609, %v2605
    %v2786 = vpack.c.b16 %v2610, %v2606
    %v2787 = vpack.c.b16 %v2611, %v2607
    %v2788 = vpack.c.b16 %v2612, %v2608
    %v2789 = vpack.c.b16 %v2617, %v2613
    %v2790 = vpack.c.b16 %v2618, %v2614
    %v2791 = vpack.c.b16 %v2619, %v2615
    %v2792 = vpack.c.b16 %v2620, %v2616
    %v2793 = vpack.c.b16 %v2625, %v2621
    %v2794 = vpack.c.b16 %v2626, %v2622
    %v2795 = vpack.c.b16 %v2627, %v2623
    %v2796 = vpack.c.b16 %v2628, %v2624
    %v2797 = vpack.c.b16 %v2633, %v2629
    %v2798 = vpack.c.b16 %v2634, %v2630
    %v2799 = vpack.c.b16 %v2635, %v2631
    %v2800 = vpack.c.b16 %v2636, %v2632
    %v2801 = vpack.c.b16 %v2641, %v2637
    %v2802 = vpack.c.b16 %v2642, %v2638
    %v2803 = vpack.c.b16 %v2643, %v2639
    %v2804 = vpack.c.b16 %v2644, %v2640
    %v2805 = vpack.c.b16 %v2649, %v2645
    %v2806 = vpack.c.b16 %v2650, %v2646
    %v2807 = vpack.c.b16 %v2651, %v2647
    %v2808 = vpack.c.b16 %v2652, %v2648
    %v2809 = vpack.c.b16 %v2657, %v2653
    %v2810 = vpack.c.b16 %v2658, %v2654
    %v2811 = vpack.c.b16 %v2659, %v2655
    %v2812 = vpack.c.b16 %v2660, %v2656
    %v2813 = vpack.c.b16 %v2665, %v2661
    %v2814 = vpack.c.b16 %v2666, %v2662
    %v2815 = vpack.c.b16 %v2667, %v2663
    %v2816 = vpack.c.b16 %v2668, %v2664
    %v2817 = vpack.c.b16 %v2673, %v2669
    %v2818 = vpack.c.b16 %v2674, %v2670
    %v2819 = vpack.c.b16 %v2675, %v2671
    %v2820 = vpack.c.b16 %v2676, %v2672
    %v2821 = vpack.c.b16 %v2681, %v2677
    %v2822 = vpack.c.b16 %v2682, %v2678
    %v2823 = vpack.c.b16 %v2683, %v2679
    %v2824 = vpack.c.b16 %v2684, %v2680
    %v2825 = vpack.c.b16 %v2689, %v2685
    %v2826 = vpack.c.b16 %v2690, %v2686
    %v2827 = vpack.c.b16 %v2691, %v2687
    %v2828 = vpack.c.b16 %v2692, %v2688
    %v2829 = vpack.c.b16 %v2697, %v2693
    %v2830 = vpack.c.b16 %v2698, %v2694
    %v2831 = vpack.c.b16 %v2699, %v2695
    %v2832 = vpack.c.b16 %v2700, %v2696
    %v2833 = vpack.c.b16 %v2705, %v2701
    %v2834 = vpack.c.b16 %v2706, %v2702
    %v2835 = vpack.c.b16 %v2707, %v2703
    %v2836 = vpack.c.b16 %v2708, %v2704
    %2965 = vmatprep.subr.bf16.mxu0 %v2710
    %2966 = vmatpush1.bf16.msra.mxu0 %v2709
    %2967 = vmatprep.subr.bf16.mxu0 %v2714
    %2968 = vmatpush1.bf16.msra.mxu0 %v2713
    %2969 = vmatprep.subr.bf16.mxu0 %v2718
    %2970 = vmatpush1.bf16.msra.mxu0 %v2717
    %2971 = vmatprep.subr.bf16.mxu0 %v2722
    %2972 = vmatpush1.bf16.msra.mxu0 %v2721
    %2973 = vmatprep.subr.bf16.mxu0 %v2726
    %2974 = vmatpush1.bf16.msra.mxu0 %v2725
    %2975 = vmatprep.subr.bf16.mxu0 %v2730
    %2976 = vmatpush1.bf16.msra.mxu0 %v2729
    %2977 = vmatprep.subr.bf16.mxu0 %v2734
    %2978 = vmatpush1.bf16.msra.mxu0 %v2733
    %2979 = vmatprep.subr.bf16.mxu0 %v2738
    %2980 = vmatpush1.bf16.msra.mxu0 %v2737
    %2981 = vmatprep.subr.bf16.mxu0 %v2742
    %2982 = vmatpush1.bf16.msra.mxu0 %v2741
    %2983 = vmatprep.subr.bf16.mxu0 %v2746
    %2984 = vmatpush1.bf16.msra.mxu0 %v2745
    %2985 = vmatprep.subr.bf16.mxu0 %v2750
    %2986 = vmatpush1.bf16.msra.mxu0 %v2749
    %2987 = vmatprep.subr.bf16.mxu0 %v2754
    %2988 = vmatpush1.bf16.msra.mxu0 %v2753
    %2989 = vmatprep.subr.bf16.mxu0 %v2758
    %2990 = vmatpush1.bf16.msra.mxu0 %v2757
    %2991 = vmatprep.subr.bf16.mxu0 %v2762
    %2992 = vmatpush1.bf16.msra.mxu0 %v2761
    %2993 = vmatprep.subr.bf16.mxu0 %v2766
    %2994 = vmatpush1.bf16.msra.mxu0 %v2765
    %2995 = vmatprep.subr.bf16.mxu0 %v2770
    %2996 = vmatpush1.bf16.msra.mxu0 %v2769
    %2997 = vmatprep.mubr.bf16.mxu0 %v2168
    %2998 = vmatmul.mubr.bf16.gmra.mrb[0].mxu0 %v2167
    %v2999 = vpop.f32.mrb[0].mxu0
    %v3000 = vadd.f32 %v2308, %v2999
    %v3001 = vpop.f32.mrb[0].mxu0
    %v3002 = vadd.f32 %v2312, %v3001
    %v3003 = vpop.f32.mrb[0].mxu0
    %v3004 = vadd.f32 %v2308, %v3003
    %v3005 = vpop.f32.mrb[0].mxu0
    %v3006 = vadd.f32 %v2312, %v3005
    %3007 = vmatprep.mubr.bf16.mxu0 %v2172
    %3008 = vmatmul.mubr.bf16.gmra.mrb[0].mxu0 %v2171
    %v3009 = vpop.f32.mrb[0].mxu0
    %v3010 = vadd.f32 %v2308, %v3009
    %v3011 = vpop.f32.mrb[0].mxu0
    %v3012 = vadd.f32 %v2312, %v3011
    %v3013 = vpop.f32.mrb[0].mxu0
    %v3014 = vadd.f32 %v2308, %v3013
    %v3015 = vpop.f32.mrb[0].mxu0
    %v3016 = vadd.f32 %v2312, %v3015
    %3017 = vdwg.mxu0
    %3018 = vmatprep.subr.bf16.mxu0 %v2774
    %3019 = vmatpush1.bf16.msra.mxu0 %v2773
    %3020 = vmatprep.subr.bf16.mxu0 %v2778
    %3021 = vmatpush1.bf16.msra.mxu0 %v2777
    %3022 = vmatprep.subr.bf16.mxu0 %v2782
    %3023 = vmatpush1.bf16.msra.mxu0 %v2781
    %3024 = vmatprep.subr.bf16.mxu0 %v2786
    %3025 = vmatpush1.bf16.msra.mxu0 %v2785
    %3026 = vmatprep.subr.bf16.mxu0 %v2790
    %3027 = vmatpush1.bf16.msra.mxu0 %v2789
    %3028 = vmatprep.subr.bf16.mxu0 %v2794
    %3029 = vmatpush1.bf16.msra.mxu0 %v2793
    %3030 = vmatprep.subr.bf16.mxu0 %v2798
    %3031 = vmatpush1.bf16.msra.mxu0 %v2797
    %3032 = vmatprep.subr.bf16.mxu0 %v2802
    %3033 = vmatpush1.bf16.msra.mxu0 %v2801
    %3034 = vmatprep.subr.bf16.mxu0 %v2806
    %3035 = vmatpush1.bf16.msra.mxu0 %v2805
    %3036 = vmatprep.subr.bf16.mxu0 %v2810
    %3037 = vmatpush1.bf16.msra.mxu0 %v2809
    %3038 = vmatprep.subr.bf16.mxu0 %v2814
    %3039 = vmatpush1.bf16.msra.mxu0 %v2813
    %3040 = vmatprep.subr.bf16.mxu0 %v2818
    %3041 = vmatpush1.bf16.msra.mxu0 %v2817
    %3042 = vmatprep.subr.bf16.mxu0 %v2822
    %3043 = vmatpush1.bf16.msra.mxu0 %v2821
    %3044 = vmatprep.subr.bf16.mxu0 %v2826
    %3045 = vmatpush1.bf16.msra.mxu0 %v2825
    %3046 = vmatprep.subr.bf16.mxu0 %v2830
    %3047 = vmatpush1.bf16.msra.mxu0 %v2829
    %3048 = vmatprep.subr.bf16.mxu0 %v2834
    %3049 = vmatpush1.bf16.msra.mxu0 %v2833
    %3050 = vmatprep.mubr.bf16.mxu0 %v2170
    %3051 = vmatmul.mubr.bf16.gmra.mrb[0].mxu0 %v2169
    %v3052 = vpop.f32.mrb[0].mxu0
    %v3053 = vadd.f32 %v3000, %v3052
    %v3054 = vpop.f32.mrb[0].mxu0
    %v3055 = vadd.f32 %v3002, %v3054
    %v3056 = vpop.f32.mrb[0].mxu0
    %v3057 = vadd.f32 %v3004, %v3056
    %v3058 = vpop.f32.mrb[0].mxu0
    %v3059 = vadd.f32 %v3006, %v3058
    %3060 = vmatprep.mubr.bf16.mxu0 %v2174
    %3061 = vmatmul.mubr.bf16.gmra.mrb[0].mxu0 %v2173
    %v3062 = vpop.f32.mrb[0].mxu0
    %v3063 = vadd.f32 %v3010, %v3062
    %v3064 = vpop.f32.mrb[0].mxu0
    %v3065 = vadd.f32 %v3012, %v3064
    %v3066 = vpop.f32.mrb[0].mxu0
    %v3067 = vadd.f32 %v3014, %v3066
    %v3068 = vpop.f32.mrb[0].mxu0
    %v3069 = vadd.f32 %v3016, %v3068
    %3070 = vdwg.mxu0
    %3071 = vmatprep.subr.bf16.mxu0 %v2712
    %3072 = vmatpush1.bf16.msra.mxu0 %v2711
    %3073 = vmatprep.subr.bf16.mxu0 %v2716
    %3074 = vmatpush1.bf16.msra.mxu0 %v2715
    %3075 = vmatprep.subr.bf16.mxu0 %v2720
    %3076 = vmatpush1.bf16.msra.mxu0 %v2719
    %3077 = vmatprep.subr.bf16.mxu0 %v2724
    %3078 = vmatpush1.bf16.msra.mxu0 %v2723
    %3079 = vmatprep.subr.bf16.mxu0 %v2728
    %3080 = vmatpush1.bf16.msra.mxu0 %v2727
    %3081 = vmatprep.subr.bf16.mxu0 %v2732
    %3082 = vmatpush1.bf16.msra.mxu0 %v2731
    %3083 = vmatprep.subr.bf16.mxu0 %v2736
    %3084 = vmatpush1.bf16.msra.mxu0 %v2735
    %3085 = vmatprep.subr.bf16.mxu0 %v2740
    %3086 = vmatpush1.bf16.msra.mxu0 %v2739
    %3087 = vmatprep.subr.bf16.mxu0 %v2744
    %3088 = vmatpush1.bf16.msra.mxu0 %v2743
    %3089 = vmatprep.subr.bf16.mxu0 %v2748
    %3090 = vmatpush1.bf16.msra.mxu0 %v2747
    %3091 = vmatprep.subr.bf16.mxu0 %v2752
    %3092 = vmatpush1.bf16.msra.mxu0 %v2751
    %3093 = vmatprep.subr.bf16.mxu0 %v2756
    %3094 = vmatpush1.bf16.msra.mxu0 %v2755
    %3095 = vmatprep.subr.bf16.mxu0 %v2760
    %3096 = vmatpush1.bf16.msra.mxu0 %v2759
    %3097 = vmatprep.subr.bf16.mxu0 %v2764
    %3098 = vmatpush1.bf16.msra.mxu0 %v2763
    %3099 = vmatprep.subr.bf16.mxu0 %v2768
    %3100 = vmatpush1.bf16.msra.mxu0 %v2767
    %3101 = vmatprep.subr.bf16.mxu0 %v2772
    %3102 = vmatpush1.bf16.msra.mxu0 %v2771
    %3103 = vmatprep.mubr.bf16.mxu0 %v2168
    %3104 = vmatmul.mubr.bf16.gmra.mrb[0].mxu0 %v2167
    %v3105 = vpop.f32.mrb[0].mxu0
    %v3106 = vadd.f32 %v2316, %v3105
    %v3107 = vpop.f32.mrb[0].mxu0
    %v3108 = vadd.f32 %v2320, %v3107
    %v3109 = vpop.f32.mrb[0].mxu0
    %v3110 = vadd.f32 %v2316, %v3109
    %v3111 = vpop.f32.mrb[0].mxu0
    %v3112 = vadd.f32 %v2320, %v3111
    %3113 = vmatprep.mubr.bf16.mxu0 %v2172
    %3114 = vmatmul.mubr.bf16.gmra.mrb[0].mxu0 %v2171
    %v3115 = vpop.f32.mrb[0].mxu0
    %v3116 = vadd.f32 %v2316, %v3115
    %v3117 = vpop.f32.mrb[0].mxu0
    %v3118 = vadd.f32 %v2320, %v3117
    %v3119 = vpop.f32.mrb[0].mxu0
    %v3120 = vadd.f32 %v2316, %v3119
    %v3121 = vpop.f32.mrb[0].mxu0
    %v3122 = vadd.f32 %v2320, %v3121
    %3123 = vdwg.mxu0
    %3124 = vmatprep.subr.bf16.mxu0 %v2776
    %3125 = vmatpush1.bf16.msra.mxu0 %v2775
    %3126 = vmatprep.subr.bf16.mxu0 %v2780
    %3127 = vmatpush1.bf16.msra.mxu0 %v2779
    %3128 = vmatprep.subr.bf16.mxu0 %v2784
    %3129 = vmatpush1.bf16.msra.mxu0 %v2783
    %3130 = vmatprep.subr.bf16.mxu0 %v2788
    %3131 = vmatpush1.bf16.msra.mxu0 %v2787
    %3132 = vmatprep.subr.bf16.mxu0 %v2792
    %3133 = vmatpush1.bf16.msra.mxu0 %v2791
    %3134 = vmatprep.subr.bf16.mxu0 %v2796
    %3135 = vmatpush1.bf16.msra.mxu0 %v2795
    %3136 = vmatprep.subr.bf16.mxu0 %v2800
    %3137 = vmatpush1.bf16.msra.mxu0 %v2799
    %3138 = vmatprep.subr.bf16.mxu0 %v2804
    %3139 = vmatpush1.bf16.msra.mxu0 %v2803
    %3140 = vmatprep.subr.bf16.mxu0 %v2808
    %3141 = vmatpush1.bf16.msra.mxu0 %v2807
    %3142 = vmatprep.subr.bf16.mxu0 %v2812
    %3143 = vmatpush1.bf16.msra.mxu0 %v2811
    %3144 = vmatprep.subr.bf16.mxu0 %v2816
    %3145 = vmatpush1.bf16.msra.mxu0 %v2815
    %3146 = vmatprep.subr.bf16.mxu0 %v2820
    %3147 = vmatpush1.bf16.msra.mxu0 %v2819
    %3148 = vmatprep.subr.bf16.mxu0 %v2824
    %3149 = vmatpush1.bf16.msra.mxu0 %v2823
    %3150 = vmatprep.subr.bf16.mxu0 %v2828
    %3151 = vmatpush1.bf16.msra.mxu0 %v2827
    %3152 = vmatprep.subr.bf16.mxu0 %v2832
    %3153 = vmatpush1.bf16.msra.mxu0 %v2831
    %3154 = vmatprep.subr.bf16.mxu0 %v2836
    %3155 = vmatpush1.bf16.msra.mxu0 %v2835
    %3156 = vmatprep.mubr.bf16.mxu0 %v2170
    %3157 = vmatmul.mubr.bf16.gmra.mrb[0].mxu0 %v2169
    %v3158 = vpop.f32.mrb[0].mxu0
    %v3159 = vadd.f32 %v3106, %v3158
    %v3160 = vpop.f32.mrb[0].mxu0
    %v3161 = vadd.f32 %v3108, %v3160
    %v3162 = vpop.f32.mrb[0].mxu0
    %v3163 = vadd.f32 %v3110, %v3162
    %v3164 = vpop.f32.mrb[0].mxu0
    %v3165 = vadd.f32 %v3112, %v3164
    %3166 = vmatprep.mubr.bf16.mxu0 %v2174
    %3167 = vmatmul.mubr.bf16.gmra.mrb[0].mxu0 %v2173
    %v3168 = vpop.f32.mrb[0].mxu0
    %v3169 = vadd.f32 %v3116, %v3168
    %v3170 = vpop.f32.mrb[0].mxu0
    %v3171 = vadd.f32 %v3118, %v3170
    %v3172 = vpop.f32.mrb[0].mxu0
    %v3173 = vadd.f32 %v3120, %v3172
    %v3174 = vpop.f32.mrb[0].mxu0
    %v3175 = vadd.f32 %v3122, %v3174
    %3176 = vdwg.mxu0
    %v3177 = vmax.f32 %v3053, 0.0
    %v3178 = vmax.f32 %v3055, 0.0
    %v3179 = vmax.f32 %v3159, 0.0
    %v3180 = vmax.f32 %v3161, 0.0
    %v3181 = vmax.f32 %v3057, 0.0
    %v3182 = vmax.f32 %v3059, 0.0
    %v3183 = vmax.f32 %v3163, 0.0
    %v3184 = vmax.f32 %v3165, 0.0
    %v3185 = vmax.f32 %v3063, 0.0
    %v3186 = vmax.f32 %v3065, 0.0
    %v3187 = vmax.f32 %v3169, 0.0
    %v3188 = vmax.f32 %v3171, 0.0
    %v3189 = vmax.f32 %v3067, 0.0
    %v3190 = vmax.f32 %v3069, 0.0
    %v3191 = vmax.f32 %v3173, 0.0
    %v3192 = vmax.f32 %v3175, 0.0
    %v3193 = vpack.c.bf16 %v3181, %v3177
    %v3194 = vpack.c.bf16 %v3182, %v3178
    %v3195 = vpack.c.bf16 %v3183, %v3179
    %v3196 = vpack.c.bf16 %v3184, %v3180
    %v3197 = vpack.c.bf16 %v3189, %v3185
    %v3198 = vpack.c.bf16 %v3190, %v3186
    %v3199 = vpack.c.bf16 %v3191, %v3187
    %v3200 = vpack.c.bf16 %v3192, %v3188
    %v3201 = vld [vmem:[#allocation11] sm:$0xff]
    %v3202 = vld [vmem:[#allocation11 + $0x8] sm:$0xff]
    %v3203 = vld [vmem:[#allocation11 + $0x10] sm:$0xff]
    %v3204 = vld [vmem:[#allocation11 + $0x18] sm:$0xff]
    %v3205 = vld [vmem:[#allocation11 + $0x20] sm:$0xf]
    %v3206 = vld [vmem:[#allocation11 + $0x24] sm:$0xff]
    %v3207 = vld [vmem:[#allocation11 + $0x2c] sm:$0xff]
    %v3208 = vld [vmem:[#allocation11 + $0x34] sm:$0xff]
    %v3209 = vld [vmem:[#allocation11 + $0x3c] sm:$0xff]
    %v3210 = vld [vmem:[#allocation11 + $0x44] sm:$0xf]
    %v3211 = vld [vmem:[#allocation11 + $0x48] sm:$0xff]
    %v3212 = vld [vmem:[#allocation11 + $0x50] sm:$0xff]
    %v3213 = vld [vmem:[#allocation11 + $0x58] sm:$0xff]
    %v3214 = vld [vmem:[#allocation11 + $0x60] sm:$0xff]
    %v3215 = vld [vmem:[#allocation11 + $0x68] sm:$0xf]
    %v3216 = vld [vmem:[#allocation11 + $0x6c] sm:$0xff]
    %v3217 = vld [vmem:[#allocation11 + $0x74] sm:$0xff]
    %v3218 = vld [vmem:[#allocation11 + $0x7c] sm:$0xff]
    %v3219 = vld [vmem:[#allocation11 + $0x84] sm:$0xff]
    %v3220 = vld [vmem:[#allocation11 + $0x8c] sm:$0xf]
    %v3221 = vld [vmem:[#allocation11 + $0x90] sm:$0xff]
    %v3222 = vld [vmem:[#allocation11 + $0x98] sm:$0xff]
    %v3223 = vld [vmem:[#allocation11 + $0xa0] sm:$0xff]
    %v3224 = vld [vmem:[#allocation11 + $0xa8] sm:$0xff]
    %v3225 = vld [vmem:[#allocation11 + $0xb0] sm:$0xf]
    %v3226 = vld [vmem:[#allocation11 + $0xb4] sm:$0xff]
    %v3227 = vld [vmem:[#allocation11 + $0xbc] sm:$0xff]
    %v3228 = vld [vmem:[#allocation11 + $0xc4] sm:$0xff]
    %v3229 = vld [vmem:[#allocation11 + $0xcc] sm:$0xff]
    %v3230 = vld [vmem:[#allocation11 + $0xd4] sm:$0xf]
    %v3231 = vld [vmem:[#allocation11 + $0xd8] sm:$0xff]
    %v3232 = vld [vmem:[#allocation11 + $0xe0] sm:$0xff]
    %v3233 = vld [vmem:[#allocation11 + $0xe8] sm:$0xff]
    %v3234 = vld [vmem:[#allocation11 + $0xf0] sm:$0xff]
    %v3235 = vld [vmem:[#allocation11 + $0xf8] sm:$0xf]
    %v3236 = vld [vmem:[#allocation11 + $0xfc] sm:$0xff]
    %v3237 = vld [vmem:[#allocation11 + $0x104] sm:$0xff]
    %v3238 = vld [vmem:[#allocation11 + $0x10c] sm:$0xff]
    %v3239 = vld [vmem:[#allocation11 + $0x114] sm:$0xff]
    %v3240 = vld [vmem:[#allocation11 + $0x11c] sm:$0xf]
    %v3241 = vld [vmem:[#allocation11 + $0x120] sm:$0xff]
    %v3242 = vld [vmem:[#allocation11 + $0x128] sm:$0xff]
    %v3243 = vld [vmem:[#allocation11 + $0x130] sm:$0xff]
    %v3244 = vld [vmem:[#allocation11 + $0x138] sm:$0xff]
    %v3245 = vld [vmem:[#allocation11 + $0x140] sm:$0xf]
    %v3246 = vld [vmem:[#allocation11 + $0x144] sm:$0xff]
    %v3247 = vld [vmem:[#allocation11 + $0x14c] sm:$0xff]
    %v3248 = vld [vmem:[#allocation11 + $0x154] sm:$0xff]
    %v3249 = vld [vmem:[#allocation11 + $0x15c] sm:$0xff]
    %v3250 = vld [vmem:[#allocation11 + $0x164] sm:$0xf]
    %v3251 = vld [vmem:[#allocation11 + $0x168] sm:$0xff]
    %v3252 = vld [vmem:[#allocation11 + $0x170] sm:$0xff]
    %v3253 = vld [vmem:[#allocation11 + $0x178] sm:$0xff]
    %v3254 = vld [vmem:[#allocation11 + $0x180] sm:$0xff]
    %v3255 = vld [vmem:[#allocation11 + $0x188] sm:$0xf]
    %v3256 = vld [vmem:[#allocation11 + $0x18c] sm:$0xff]
    %v3257 = vld [vmem:[#allocation11 + $0x194] sm:$0xff]
    %v3258 = vld [vmem:[#allocation11 + $0x19c] sm:$0xff]
    %v3259 = vld [vmem:[#allocation11 + $0x1a4] sm:$0xff]
    %v3260 = vld [vmem:[#allocation11 + $0x1ac] sm:$0xf]
    %v3261 = vld [vmem:[#allocation11 + $0x1b0] sm:$0xff]
    %v3262 = vld [vmem:[#allocation11 + $0x1b8] sm:$0xff]
    %v3263 = vld [vmem:[#allocation11 + $0x1c0] sm:$0xff]
    %v3264 = vld [vmem:[#allocation11 + $0x1c8] sm:$0xff]
    %v3265 = vld [vmem:[#allocation11 + $0x1d0] sm:$0xf]
    %v3266 = vld [vmem:[#allocation11 + $0x1d4] sm:$0xff]
    %v3267 = vld [vmem:[#allocation11 + $0x1dc] sm:$0xff]
    %v3268 = vld [vmem:[#allocation11 + $0x1e4] sm:$0xff]
    %v3269 = vld [vmem:[#allocation11 + $0x1ec] sm:$0xff]
    %v3270 = vld [vmem:[#allocation11 + $0x1f4] sm:$0xf]
    %v3271 = vld [vmem:[#allocation11 + $0x1f8] sm:$0xff]
    %v3272 = vld [vmem:[#allocation11 + $0x200] sm:$0xff]
    %v3273 = vld [vmem:[#allocation11 + $0x208] sm:$0xff]
    %v3274 = vld [vmem:[#allocation11 + $0x210] sm:$0xff]
    %v3275 = vld [vmem:[#allocation11 + $0x218] sm:$0xf]
    %v3276 = vld [vmem:[#allocation11 + $0x21c] sm:$0xff]
    %v3277 = vld [vmem:[#allocation11 + $0x224] sm:$0xff]
    %v3278 = vld [vmem:[#allocation11 + $0x22c] sm:$0xff]
    %v3279 = vld [vmem:[#allocation11 + $0x234] sm:$0xff]
    %v3280 = vld [vmem:[#allocation11 + $0x23c] sm:$0xf]
    %v3281 = vld [vmem:[#allocation11 + $0x240] sm:$0xff]
    %v3282 = vld [vmem:[#allocation11 + $0x248] sm:$0xff]
    %v3283 = vld [vmem:[#allocation11 + $0x250] sm:$0xff]
    %v3284 = vld [vmem:[#allocation11 + $0x258] sm:$0xff]
    %v3285 = vld [vmem:[#allocation11 + $0x260] sm:$0xf]
    %v3286 = vld [vmem:[#allocation11 + $0x264] sm:$0xff]
    %v3287 = vld [vmem:[#allocation11 + $0x26c] sm:$0xff]
    %v3288 = vld [vmem:[#allocation11 + $0x274] sm:$0xff]
    %v3289 = vld [vmem:[#allocation11 + $0x27c] sm:$0xff]
    %v3290 = vld [vmem:[#allocation11 + $0x284] sm:$0xf]
    %v3291 = vld [vmem:[#allocation11 + $0x288] sm:$0xff]
    %v3292 = vld [vmem:[#allocation11 + $0x290] sm:$0xff]
    %v3293 = vld [vmem:[#allocation11 + $0x298] sm:$0xff]
    %v3294 = vld [vmem:[#allocation11 + $0x2a0] sm:$0xff]
    %v3295 = vld [vmem:[#allocation11 + $0x2a8] sm:$0xf]
    %v3296 = vld [vmem:[#allocation11 + $0x2ac] sm:$0xff]
    %v3297 = vld [vmem:[#allocation11 + $0x2b4] sm:$0xff]
    %v3298 = vld [vmem:[#allocation11 + $0x2bc] sm:$0xff]
    %v3299 = vld [vmem:[#allocation11 + $0x2c4] sm:$0xff]
    %v3300 = vld [vmem:[#allocation11 + $0x2cc] sm:$0xf]
    %v3301 = vld [vmem:[#allocation11 + $0x2d0] sm:$0xff]
    %v3302 = vld [vmem:[#allocation11 + $0x2d8] sm:$0xff]
    %v3303 = vld [vmem:[#allocation11 + $0x2e0] sm:$0xff]
    %v3304 = vld [vmem:[#allocation11 + $0x2e8] sm:$0xff]
    %v3305 = vld [vmem:[#allocation11 + $0x2f0] sm:$0xf]
    %v3306 = vld [vmem:[#allocation11 + $0x2f4] sm:$0xff]
    %v3307 = vld [vmem:[#allocation11 + $0x2fc] sm:$0xff]
    %v3308 = vld [vmem:[#allocation11 + $0x304] sm:$0xff]
    %v3309 = vld [vmem:[#allocation11 + $0x30c] sm:$0xff]
    %v3310 = vld [vmem:[#allocation11 + $0x314] sm:$0xf]
    %v3311 = vld [vmem:[#allocation11 + $0x318] sm:$0xff]
    %v3312 = vld [vmem:[#allocation11 + $0x320] sm:$0xff]
    %v3313 = vld [vmem:[#allocation11 + $0x328] sm:$0xff]
    %v3314 = vld [vmem:[#allocation11 + $0x330] sm:$0xff]
    %v3315 = vld [vmem:[#allocation11 + $0x338] sm:$0xf]
    %v3316 = vld [vmem:[#allocation11 + $0x33c] sm:$0xff]
    %v3317 = vld [vmem:[#allocation11 + $0x344] sm:$0xff]
    %v3318 = vld [vmem:[#allocation11 + $0x34c] sm:$0xff]
    %v3319 = vld [vmem:[#allocation11 + $0x354] sm:$0xff]
    %v3320 = vld [vmem:[#allocation11 + $0x35c] sm:$0xf]
    %v3321 = vld [vmem:[#allocation11 + $0x360] sm:$0xff]
    %v3322 = vld [vmem:[#allocation11 + $0x368] sm:$0xff]
    %v3323 = vld [vmem:[#allocation11 + $0x370] sm:$0xff]
    %v3324 = vld [vmem:[#allocation11 + $0x378] sm:$0xff]
    %v3325 = vld [vmem:[#allocation11 + $0x380] sm:$0xf]
    %v3326 = vld [vmem:[#allocation11 + $0x384] sm:$0xff]
    %v3327 = vld [vmem:[#allocation11 + $0x38c] sm:$0xff]
    %v3328 = vld [vmem:[#allocation11 + $0x394] sm:$0xff]
    %v3329 = vld [vmem:[#allocation11 + $0x39c] sm:$0xff]
    %v3330 = vld [vmem:[#allocation11 + $0x3a4] sm:$0xf]
    %v3331 = vld [vmem:[#allocation11 + $0x3a8] sm:$0xff]
    %v3332 = vld [vmem:[#allocation11 + $0x3b0] sm:$0xff]
    %v3333 = vld [vmem:[#allocation11 + $0x3b8] sm:$0xff]
    %v3334 = vld [vmem:[#allocation11 + $0x3c0] sm:$0xff]
    %v3335 = vld [vmem:[#allocation11 + $0x3c8] sm:$0xf]
    %v3336 = vld [vmem:[#allocation11 + $0x3cc] sm:$0xff]
    %v3337 = vld [vmem:[#allocation11 + $0x3d4] sm:$0xff]
    %v3338 = vld [vmem:[#allocation11 + $0x3dc] sm:$0xff]
    %v3339 = vld [vmem:[#allocation11 + $0x3e4] sm:$0xff]
    %v3340 = vld [vmem:[#allocation11 + $0x3ec] sm:$0xf]
    %v3341 = vld [vmem:[#allocation11 + $0x3f0] sm:$0xff]
    %v3342 = vld [vmem:[#allocation11 + $0x3f8] sm:$0xff]
    %v3343 = vld [vmem:[#allocation11 + $0x400] sm:$0xff]
    %v3344 = vld [vmem:[#allocation11 + $0x408] sm:$0xff]
    %v3345 = vld [vmem:[#allocation11 + $0x410] sm:$0xf]
    %v3346 = vld [vmem:[#allocation11 + $0x414] sm:$0xff]
    %v3347 = vld [vmem:[#allocation11 + $0x41c] sm:$0xff]
    %v3348 = vld [vmem:[#allocation11 + $0x424] sm:$0xff]
    %v3349 = vld [vmem:[#allocation11 + $0x42c] sm:$0xff]
    %v3350 = vld [vmem:[#allocation11 + $0x434] sm:$0xf]
    %v3351 = vld [vmem:[#allocation11 + $0x438] sm:$0xff]
    %v3352 = vld [vmem:[#allocation11 + $0x440] sm:$0xff]
    %v3353 = vld [vmem:[#allocation11 + $0x448] sm:$0xff]
    %v3354 = vld [vmem:[#allocation11 + $0x450] sm:$0xff]
    %v3355 = vld [vmem:[#allocation11 + $0x458] sm:$0xf]
    %v3356 = vld [vmem:[#allocation11 + $0x45c] sm:$0xff]
    %v3357 = vld [vmem:[#allocation11 + $0x464] sm:$0xff]
    %v3358 = vld [vmem:[#allocation11 + $0x46c] sm:$0xff]
    %v3359 = vld [vmem:[#allocation11 + $0x474] sm:$0xff]
    %v3360 = vld [vmem:[#allocation11 + $0x47c] sm:$0xf]
    %v3361 = vld [vmem:[#allocation11 + $0x480] sm:$0xff]
    %v3362 = vld [vmem:[#allocation11 + $0x488] sm:$0xff]
    %v3363 = vld [vmem:[#allocation11 + $0x490] sm:$0xff]
    %v3364 = vld [vmem:[#allocation11 + $0x498] sm:$0xff]
    %v3365 = vld [vmem:[#allocation11 + $0x4a0] sm:$0xf]
    %v3366 = vld [vmem:[#allocation11 + $0x4a4] sm:$0xff]
    %v3367 = vld [vmem:[#allocation11 + $0x4ac] sm:$0xff]
    %v3368 = vld [vmem:[#allocation11 + $0x4b4] sm:$0xff]
    %v3369 = vld [vmem:[#allocation11 + $0x4bc] sm:$0xff]
    %v3370 = vld [vmem:[#allocation11 + $0x4c4] sm:$0xf]
    %v3371 = vld [vmem:[#allocation11 + $0x4c8] sm:$0xff]
    %v3372 = vld [vmem:[#allocation11 + $0x4d0] sm:$0xff]
    %v3373 = vld [vmem:[#allocation11 + $0x4d8] sm:$0xff]
    %v3374 = vld [vmem:[#allocation11 + $0x4e0] sm:$0xff]
    %v3375 = vld [vmem:[#allocation11 + $0x4e8] sm:$0xf]
    %v3376 = vld [vmem:[#allocation11 + $0x4ec] sm:$0xff]
    %v3377 = vld [vmem:[#allocation11 + $0x4f4] sm:$0xff]
    %v3378 = vld [vmem:[#allocation11 + $0x4fc] sm:$0xff]
    %v3379 = vld [vmem:[#allocation11 + $0x504] sm:$0xff]
    %v3380 = vld [vmem:[#allocation11 + $0x50c] sm:$0xf]
    %v3381 = vld [vmem:[#allocation11 + $0x510] sm:$0xff]
    %v3382 = vld [vmem:[#allocation11 + $0x518] sm:$0xff]
    %v3383 = vld [vmem:[#allocation11 + $0x520] sm:$0xff]
    %v3384 = vld [vmem:[#allocation11 + $0x528] sm:$0xff]
    %v3385 = vld [vmem:[#allocation11 + $0x530] sm:$0xf]
    %v3386 = vld [vmem:[#allocation11 + $0x534] sm:$0xff]
    %v3387 = vld [vmem:[#allocation11 + $0x53c] sm:$0xff]
    %v3388 = vld [vmem:[#allocation11 + $0x544] sm:$0xff]
    %v3389 = vld [vmem:[#allocation11 + $0x54c] sm:$0xff]
    %v3390 = vld [vmem:[#allocation11 + $0x554] sm:$0xf]
    %v3391 = vld [vmem:[#allocation11 + $0x558] sm:$0xff]
    %v3392 = vld [vmem:[#allocation11 + $0x560] sm:$0xff]
    %v3393 = vld [vmem:[#allocation11 + $0x568] sm:$0xff]
    %v3394 = vld [vmem:[#allocation11 + $0x570] sm:$0xff]
    %v3395 = vld [vmem:[#allocation11 + $0x578] sm:$0xf]
    %v3396 = vld [vmem:[#allocation11 + $0x57c] sm:$0xff]
    %v3397 = vld [vmem:[#allocation11 + $0x584] sm:$0xff]
    %v3398 = vld [vmem:[#allocation11 + $0x58c] sm:$0xff]
    %v3399 = vld [vmem:[#allocation11 + $0x594] sm:$0xff]
    %v3400 = vld [vmem:[#allocation11 + $0x59c] sm:$0xf]
    %v3401 = vld [vmem:[#allocation11 + $0x5a0] sm:$0xff]
    %v3402 = vld [vmem:[#allocation11 + $0x5a8] sm:$0xff]
    %v3403 = vld [vmem:[#allocation11 + $0x5b0] sm:$0xff]
    %v3404 = vld [vmem:[#allocation11 + $0x5b8] sm:$0xff]
    %v3405 = vld [vmem:[#allocation11 + $0x5c0] sm:$0xf]
    %v3406 = vld [vmem:[#allocation11 + $0x5c4] sm:$0xff]
    %v3407 = vld [vmem:[#allocation11 + $0x5cc] sm:$0xff]
    %v3408 = vld [vmem:[#allocation11 + $0x5d4] sm:$0xff]
    %v3409 = vld [vmem:[#allocation11 + $0x5dc] sm:$0xff]
    %v3410 = vld [vmem:[#allocation11 + $0x5e4] sm:$0xf]
    %v3411 = vld [vmem:[#allocation11 + $0x5e8] sm:$0xff]
    %v3412 = vld [vmem:[#allocation11 + $0x5f0] sm:$0xff]
    %v3413 = vld [vmem:[#allocation11 + $0x5f8] sm:$0xff]
    %v3414 = vld [vmem:[#allocation11 + $0x600] sm:$0xff]
    %v3415 = vld [vmem:[#allocation11 + $0x608] sm:$0xf]
    %v3416 = vld [vmem:[#allocation11 + $0x60c] sm:$0xff]
    %v3417 = vld [vmem:[#allocation11 + $0x614] sm:$0xff]
    %v3418 = vld [vmem:[#allocation11 + $0x61c] sm:$0xff]
    %v3419 = vld [vmem:[#allocation11 + $0x624] sm:$0xff]
    %v3420 = vld [vmem:[#allocation11 + $0x62c] sm:$0xf]
    %v3421 = vld [vmem:[#allocation11 + $0x630] sm:$0xff]
    %v3422 = vld [vmem:[#allocation11 + $0x638] sm:$0xff]
    %v3423 = vld [vmem:[#allocation11 + $0x640] sm:$0xff]
    %v3424 = vld [vmem:[#allocation11 + $0x648] sm:$0xff]
    %v3425 = vld [vmem:[#allocation11 + $0x650] sm:$0xf]
    %v3426 = vld [vmem:[#allocation11 + $0x654] sm:$0xff]
    %v3427 = vld [vmem:[#allocation11 + $0x65c] sm:$0xff]
    %v3428 = vld [vmem:[#allocation11 + $0x664] sm:$0xff]
    %v3429 = vld [vmem:[#allocation11 + $0x66c] sm:$0xff]
    %v3430 = vld [vmem:[#allocation11 + $0x674] sm:$0xf]
    %v3431 = vld [vmem:[#allocation11 + $0x678] sm:$0xff]
    %v3432 = vld [vmem:[#allocation11 + $0x680] sm:$0xff]
    %v3433 = vld [vmem:[#allocation11 + $0x688] sm:$0xff]
    %v3434 = vld [vmem:[#allocation11 + $0x690] sm:$0xff]
    %v3435 = vld [vmem:[#allocation11 + $0x698] sm:$0xf]
    %v3436 = vld [vmem:[#allocation11 + $0x69c] sm:$0xff]
    %v3437 = vld [vmem:[#allocation11 + $0x6a4] sm:$0xff]
    %v3438 = vld [vmem:[#allocation11 + $0x6ac] sm:$0xff]
    %v3439 = vld [vmem:[#allocation11 + $0x6b4] sm:$0xff]
    %v3440 = vld [vmem:[#allocation11 + $0x6bc] sm:$0xf]
    %v3441 = vld [vmem:[#allocation11 + $0x6c0] sm:$0xff]
    %v3442 = vld [vmem:[#allocation11 + $0x6c8] sm:$0xff]
    %v3443 = vld [vmem:[#allocation11 + $0x6d0] sm:$0xff]
    %v3444 = vld [vmem:[#allocation11 + $0x6d8] sm:$0xff]
    %v3445 = vld [vmem:[#allocation11 + $0x6e0] sm:$0xf]
    %v3446 = vld [vmem:[#allocation11 + $0x6e4] sm:$0xff]
    %v3447 = vld [vmem:[#allocation11 + $0x6ec] sm:$0xff]
    %v3448 = vld [vmem:[#allocation11 + $0x6f4] sm:$0xff]
    %v3449 = vld [vmem:[#allocation11 + $0x6fc] sm:$0xff]
    %v3450 = vld [vmem:[#allocation11 + $0x704] sm:$0xf]
    %v3451 = vld [vmem:[#allocation11 + $0x708] sm:$0xff]
    %v3452 = vld [vmem:[#allocation11 + $0x710] sm:$0xff]
    %v3453 = vld [vmem:[#allocation11 + $0x718] sm:$0xff]
    %v3454 = vld [vmem:[#allocation11 + $0x720] sm:$0xff]
    %v3455 = vld [vmem:[#allocation11 + $0x728] sm:$0xf]
    %v3456 = vld [vmem:[#allocation11 + $0x72c] sm:$0xff]
    %v3457 = vld [vmem:[#allocation11 + $0x734] sm:$0xff]
    %v3458 = vld [vmem:[#allocation11 + $0x73c] sm:$0xff]
    %v3459 = vld [vmem:[#allocation11 + $0x744] sm:$0xff]
    %v3460 = vld [vmem:[#allocation11 + $0x74c] sm:$0xf]
    %v3461 = vld [vmem:[#allocation11 + $0x750] sm:$0xff]
    %v3462 = vld [vmem:[#allocation11 + $0x758] sm:$0xff]
    %v3463 = vld [vmem:[#allocation11 + $0x760] sm:$0xff]
    %v3464 = vld [vmem:[#allocation11 + $0x768] sm:$0xff]
    %v3465 = vld [vmem:[#allocation11 + $0x770] sm:$0xf]
    %v3466 = vld [vmem:[#allocation11 + $0x774] sm:$0xff]
    %v3467 = vld [vmem:[#allocation11 + $0x77c] sm:$0xff]
    %v3468 = vld [vmem:[#allocation11 + $0x784] sm:$0xff]
    %v3469 = vld [vmem:[#allocation11 + $0x78c] sm:$0xff]
    %v3470 = vld [vmem:[#allocation11 + $0x794] sm:$0xf]
    %v3471 = vld [vmem:[#allocation11 + $0x798] sm:$0xff]
    %v3472 = vld [vmem:[#allocation11 + $0x7a0] sm:$0xff]
    %v3473 = vld [vmem:[#allocation11 + $0x7a8] sm:$0xff]
    %v3474 = vld [vmem:[#allocation11 + $0x7b0] sm:$0xff]
    %v3475 = vld [vmem:[#allocation11 + $0x7b8] sm:$0xf]
    %v3476 = vld [vmem:[#allocation11 + $0x7bc] sm:$0xff]
    %v3477 = vld [vmem:[#allocation11 + $0x7c4] sm:$0xff]
    %v3478 = vld [vmem:[#allocation11 + $0x7cc] sm:$0xff]
    %v3479 = vld [vmem:[#allocation11 + $0x7d4] sm:$0xff]
    %v3480 = vld [vmem:[#allocation11 + $0x7dc] sm:$0xf]
    %v3481 = vld [vmem:[#allocation11 + $0x7e0] sm:$0xff]
    %v3482 = vld [vmem:[#allocation11 + $0x7e8] sm:$0xff]
    %v3483 = vld [vmem:[#allocation11 + $0x7f0] sm:$0xff]
    %v3484 = vld [vmem:[#allocation11 + $0x7f8] sm:$0xff]
    %v3485 = vld [vmem:[#allocation11 + $0x800] sm:$0xf]
    %v3486 = vld [vmem:[#allocation11 + $0x804] sm:$0xff]
    %v3487 = vld [vmem:[#allocation11 + $0x80c] sm:$0xff]
    %v3488 = vld [vmem:[#allocation11 + $0x814] sm:$0xff]
    %v3489 = vld [vmem:[#allocation11 + $0x81c] sm:$0xff]
    %v3490 = vld [vmem:[#allocation11 + $0x824] sm:$0xf]
    %v3491 = vld [vmem:[#allocation11 + $0x828] sm:$0xff]
    %v3492 = vld [vmem:[#allocation11 + $0x830] sm:$0xff]
    %v3493 = vld [vmem:[#allocation11 + $0x838] sm:$0xff]
    %v3494 = vld [vmem:[#allocation11 + $0x840] sm:$0xff]
    %v3495 = vld [vmem:[#allocation11 + $0x848] sm:$0xf]
    %v3496 = vld [vmem:[#allocation11 + $0x84c] sm:$0xff]
    %v3497 = vld [vmem:[#allocation11 + $0x854] sm:$0xff]
    %v3498 = vld [vmem:[#allocation11 + $0x85c] sm:$0xff]
    %v3499 = vld [vmem:[#allocation11 + $0x864] sm:$0xff]
    %v3500 = vld [vmem:[#allocation11 + $0x86c] sm:$0xf]
    %v3501 = vld [vmem:[#allocation11 + $0x870] sm:$0xff]
    %v3502 = vld [vmem:[#allocation11 + $0x878] sm:$0xff]
    %v3503 = vld [vmem:[#allocation11 + $0x880] sm:$0xff]
    %v3504 = vld [vmem:[#allocation11 + $0x888] sm:$0xff]
    %v3505 = vld [vmem:[#allocation11 + $0x890] sm:$0xf]
    %v3506 = vld [vmem:[#allocation11 + $0x894] sm:$0xff]
    %v3507 = vld [vmem:[#allocation11 + $0x89c] sm:$0xff]
    %v3508 = vld [vmem:[#allocation11 + $0x8a4] sm:$0xff]
    %v3509 = vld [vmem:[#allocation11 + $0x8ac] sm:$0xff]
    %v3510 = vld [vmem:[#allocation11 + $0x8b4] sm:$0xf]
    %v3511 = vld [vmem:[#allocation11 + $0x8b8] sm:$0xff]
    %v3512 = vld [vmem:[#allocation11 + $0x8c0] sm:$0xff]
    %v3513 = vld [vmem:[#allocation11 + $0x8c8] sm:$0xff]
    %v3514 = vld [vmem:[#allocation11 + $0x8d0] sm:$0xff]
    %v3515 = vld [vmem:[#allocation11 + $0x8d8] sm:$0xf]
    %v3516 = vld [vmem:[#allocation11 + $0x8dc] sm:$0xff]
    %v3517 = vld [vmem:[#allocation11 + $0x8e4] sm:$0xff]
    %v3518 = vld [vmem:[#allocation11 + $0x8ec] sm:$0xff]
    %v3519 = vld [vmem:[#allocation11 + $0x8f4] sm:$0xff]
    %v3520 = vld [vmem:[#allocation11 + $0x8fc] sm:$0xf]
    %v3521 = vld [vmem:[#allocation13] sm:$0xff]
    %v3522 = vld [vmem:[#allocation13 + $0x8] sm:$0x1]
    %v3525 = vlaneseq
    %v3526 = vshrl.u32 %v3525, 7
    %v3527 = vsub.s32 0, %v3526
    %v3528 = vrot.slane %v3521, %v3527
    %v3529 = vlaneseq
    %v3530 = vshrl.u32 %v3529, 7
    %v3531 = vsub.s32 1, %v3530
    %v3532 = vrot.slane %v3521, %v3531
    %v3533 = vlaneseq
    %v3534 = vshrl.u32 %v3533, 7
    %v3535 = vsub.s32 2, %v3534
    %v3536 = vrot.slane %v3521, %v3535
    %v3537 = vlaneseq
    %v3538 = vshrl.u32 %v3537, 7
    %v3539 = vsub.s32 3, %v3538
    %v3540 = vrot.slane %v3521, %v3539
    %v3541 = vlaneseq
    %v3542 = vshrl.u32 %v3541, 7
    %v3543 = vsub.s32 4, %v3542
    %v3544 = vrot.slane %v3521, %v3543
    %v3545 = vlaneseq
    %v3546 = vshrl.u32 %v3545, 7
    %v3547 = vsub.s32 5, %v3546
    %v3548 = vrot.slane %v3521, %v3547
    %v3549 = vlaneseq
    %v3550 = vshrl.u32 %v3549, 7
    %v3551 = vsub.s32 6, %v3550
    %v3552 = vrot.slane %v3521, %v3551
    %v3553 = vlaneseq
    %v3554 = vshrl.u32 %v3553, 7
    %v3555 = vsub.s32 7, %v3554
    %v3556 = vrot.slane %v3521, %v3555
    %v3557 = vlaneseq
    %v3558 = vshrl.u32 %v3557, 7
    %v3559 = vsub.s32 0, %v3558
    %v3560 = vrot.slane %v3522, %v3559
    %v3890 = vunpack.c.l.b16 %v3201
    %v3891 = vunpack.c.h.b16 %v3201
    %v3892 = vunpack.c.l.b16 %v3202
    %v3893 = vunpack.c.h.b16 %v3202
    %v3894 = vunpack.c.l.b16 %v3203
    %v3895 = vunpack.c.h.b16 %v3203
    %v3896 = vunpack.c.l.b16 %v3204
    %v3897 = vunpack.c.h.b16 %v3204
    %v3898 = vunpack.c.l.b16 %v3205
    %v3899 = vunpack.c.l.b16 %v3206
    %v3900 = vunpack.c.h.b16 %v3206
    %v3901 = vunpack.c.l.b16 %v3207
    %v3902 = vunpack.c.h.b16 %v3207
    %v3903 = vunpack.c.l.b16 %v3208
    %v3904 = vunpack.c.h.b16 %v3208
    %v3905 = vunpack.c.l.b16 %v3209
    %v3906 = vunpack.c.h.b16 %v3209
    %v3907 = vunpack.c.l.b16 %v3210
    %v3908 = vunpack.c.l.b16 %v3211
    %v3909 = vunpack.c.h.b16 %v3211
    %v3910 = vunpack.c.l.b16 %v3212
    %v3911 = vunpack.c.h.b16 %v3212
    %v3912 = vunpack.c.l.b16 %v3213
    %v3913 = vunpack.c.h.b16 %v3213
    %v3914 = vunpack.c.l.b16 %v3214
    %v3915 = vunpack.c.h.b16 %v3214
    %v3916 = vunpack.c.l.b16 %v3215
    %v3917 = vunpack.c.l.b16 %v3216
    %v3918 = vunpack.c.h.b16 %v3216
    %v3919 = vunpack.c.l.b16 %v3217
    %v3920 = vunpack.c.h.b16 %v3217
    %v3921 = vunpack.c.l.b16 %v3218
    %v3922 = vunpack.c.h.b16 %v3218
    %v3923 = vunpack.c.l.b16 %v3219
    %v3924 = vunpack.c.h.b16 %v3219
    %v3925 = vunpack.c.l.b16 %v3220
    %v3926 = vunpack.c.l.b16 %v3221
    %v3927 = vunpack.c.h.b16 %v3221
    %v3928 = vunpack.c.l.b16 %v3222
    %v3929 = vunpack.c.h.b16 %v3222
    %v3930 = vunpack.c.l.b16 %v3223
    %v3931 = vunpack.c.h.b16 %v3223
    %v3932 = vunpack.c.l.b16 %v3224
    %v3933 = vunpack.c.h.b16 %v3224
    %v3934 = vunpack.c.l.b16 %v3225
    %v3935 = vunpack.c.l.b16 %v3226
    %v3936 = vunpack.c.h.b16 %v3226
    %v3937 = vunpack.c.l.b16 %v3227
    %v3938 = vunpack.c.h.b16 %v3227
    %v3939 = vunpack.c.l.b16 %v3228
    %v3940 = vunpack.c.h.b16 %v3228
    %v3941 = vunpack.c.l.b16 %v3229
    %v3942 = vunpack.c.h.b16 %v3229
    %v3943 = vunpack.c.l.b16 %v3230
    %v3944 = vunpack.c.l.b16 %v3231
    %v3945 = vunpack.c.h.b16 %v3231
    %v3946 = vunpack.c.l.b16 %v3232
    %v3947 = vunpack.c.h.b16 %v3232
    %v3948 = vunpack.c.l.b16 %v3233
    %v3949 = vunpack.c.h.b16 %v3233
    %v3950 = vunpack.c.l.b16 %v3234
    %v3951 = vunpack.c.h.b16 %v3234
    %v3952 = vunpack.c.l.b16 %v3235
    %v3953 = vunpack.c.l.b16 %v3236
    %v3954 = vunpack.c.h.b16 %v3236
    %v3955 = vunpack.c.l.b16 %v3237
    %v3956 = vunpack.c.h.b16 %v3237
    %v3957 = vunpack.c.l.b16 %v3238
    %v3958 = vunpack.c.h.b16 %v3238
    %v3959 = vunpack.c.l.b16 %v3239
    %v3960 = vunpack.c.h.b16 %v3239
    %v3961 = vunpack.c.l.b16 %v3240
    %v3962 = vunpack.c.l.b16 %v3241
    %v3963 = vunpack.c.h.b16 %v3241
    %v3964 = vunpack.c.l.b16 %v3242
    %v3965 = vunpack.c.h.b16 %v3242
    %v3966 = vunpack.c.l.b16 %v3243
    %v3967 = vunpack.c.h.b16 %v3243
    %v3968 = vunpack.c.l.b16 %v3244
    %v3969 = vunpack.c.h.b16 %v3244
    %v3970 = vunpack.c.l.b16 %v3245
    %v3971 = vunpack.c.l.b16 %v3246
    %v3972 = vunpack.c.h.b16 %v3246
    %v3973 = vunpack.c.l.b16 %v3247
    %v3974 = vunpack.c.h.b16 %v3247
    %v3975 = vunpack.c.l.b16 %v3248
    %v3976 = vunpack.c.h.b16 %v3248
    %v3977 = vunpack.c.l.b16 %v3249
    %v3978 = vunpack.c.h.b16 %v3249
    %v3979 = vunpack.c.l.b16 %v3250
    %v3980 = vunpack.c.l.b16 %v3251
    %v3981 = vunpack.c.h.b16 %v3251
    %v3982 = vunpack.c.l.b16 %v3252
    %v3983 = vunpack.c.h.b16 %v3252
    %v3984 = vunpack.c.l.b16 %v3253
    %v3985 = vunpack.c.h.b16 %v3253
    %v3986 = vunpack.c.l.b16 %v3254
    %v3987 = vunpack.c.h.b16 %v3254
    %v3988 = vunpack.c.l.b16 %v3255
    %v3989 = vunpack.c.l.b16 %v3256
    %v3990 = vunpack.c.h.b16 %v3256
    %v3991 = vunpack.c.l.b16 %v3257
    %v3992 = vunpack.c.h.b16 %v3257
    %v3993 = vunpack.c.l.b16 %v3258
    %v3994 = vunpack.c.h.b16 %v3258
    %v3995 = vunpack.c.l.b16 %v3259
    %v3996 = vunpack.c.h.b16 %v3259
    %v3997 = vunpack.c.l.b16 %v3260
    %v3998 = vunpack.c.l.b16 %v3261
    %v3999 = vunpack.c.h.b16 %v3261
    %v4000 = vunpack.c.l.b16 %v3262
    %v4001 = vunpack.c.h.b16 %v3262
    %v4002 = vunpack.c.l.b16 %v3263
    %v4003 = vunpack.c.h.b16 %v3263
    %v4004 = vunpack.c.l.b16 %v3264
    %v4005 = vunpack.c.h.b16 %v3264
    %v4006 = vunpack.c.l.b16 %v3265
    %v4007 = vunpack.c.l.b16 %v3266
    %v4008 = vunpack.c.h.b16 %v3266
    %v4009 = vunpack.c.l.b16 %v3267
    %v4010 = vunpack.c.h.b16 %v3267
    %v4011 = vunpack.c.l.b16 %v3268
    %v4012 = vunpack.c.h.b16 %v3268
    %v4013 = vunpack.c.l.b16 %v3269
    %v4014 = vunpack.c.h.b16 %v3269
    %v4015 = vunpack.c.l.b16 %v3270
    %v4016 = vunpack.c.l.b16 %v3271
    %v4017 = vunpack.c.h.b16 %v3271
    %v4018 = vunpack.c.l.b16 %v3272
    %v4019 = vunpack.c.h.b16 %v3272
    %v4020 = vunpack.c.l.b16 %v3273
    %v4021 = vunpack.c.h.b16 %v3273
    %v4022 = vunpack.c.l.b16 %v3274
    %v4023 = vunpack.c.h.b16 %v3274
    %v4024 = vunpack.c.l.b16 %v3275
    %v4025 = vunpack.c.l.b16 %v3276
    %v4026 = vunpack.c.h.b16 %v3276
    %v4027 = vunpack.c.l.b16 %v3277
    %v4028 = vunpack.c.h.b16 %v3277
    %v4029 = vunpack.c.l.b16 %v3278
    %v4030 = vunpack.c.h.b16 %v3278
    %v4031 = vunpack.c.l.b16 %v3279
    %v4032 = vunpack.c.h.b16 %v3279
    %v4033 = vunpack.c.l.b16 %v3280
    %v4034 = vunpack.c.l.b16 %v3281
    %v4035 = vunpack.c.h.b16 %v3281
    %v4036 = vunpack.c.l.b16 %v3282
    %v4037 = vunpack.c.h.b16 %v3282
    %v4038 = vunpack.c.l.b16 %v3283
    %v4039 = vunpack.c.h.b16 %v3283
    %v4040 = vunpack.c.l.b16 %v3284
    %v4041 = vunpack.c.h.b16 %v3284
    %v4042 = vunpack.c.l.b16 %v3285
    %v4043 = vunpack.c.l.b16 %v3286
    %v4044 = vunpack.c.h.b16 %v3286
    %v4045 = vunpack.c.l.b16 %v3287
    %v4046 = vunpack.c.h.b16 %v3287
    %v4047 = vunpack.c.l.b16 %v3288
    %v4048 = vunpack.c.h.b16 %v3288
    %v4049 = vunpack.c.l.b16 %v3289
    %v4050 = vunpack.c.h.b16 %v3289
    %v4051 = vunpack.c.l.b16 %v3290
    %v4052 = vunpack.c.l.b16 %v3291
    %v4053 = vunpack.c.h.b16 %v3291
    %v4054 = vunpack.c.l.b16 %v3292
    %v4055 = vunpack.c.h.b16 %v3292
    %v4056 = vunpack.c.l.b16 %v3293
    %v4057 = vunpack.c.h.b16 %v3293
    %v4058 = vunpack.c.l.b16 %v3294
    %v4059 = vunpack.c.h.b16 %v3294
    %v4060 = vunpack.c.l.b16 %v3295
    %v4061 = vunpack.c.l.b16 %v3296
    %v4062 = vunpack.c.h.b16 %v3296
    %v4063 = vunpack.c.l.b16 %v3297
    %v4064 = vunpack.c.h.b16 %v3297
    %v4065 = vunpack.c.l.b16 %v3298
    %v4066 = vunpack.c.h.b16 %v3298
    %v4067 = vunpack.c.l.b16 %v3299
    %v4068 = vunpack.c.h.b16 %v3299
    %v4069 = vunpack.c.l.b16 %v3300
    %v4070 = vunpack.c.l.b16 %v3301
    %v4071 = vunpack.c.h.b16 %v3301
    %v4072 = vunpack.c.l.b16 %v3302
    %v4073 = vunpack.c.h.b16 %v3302
    %v4074 = vunpack.c.l.b16 %v3303
    %v4075 = vunpack.c.h.b16 %v3303
    %v4076 = vunpack.c.l.b16 %v3304
    %v4077 = vunpack.c.h.b16 %v3304
    %v4078 = vunpack.c.l.b16 %v3305
    %v4079 = vunpack.c.l.b16 %v3306
    %v4080 = vunpack.c.h.b16 %v3306
    %v4081 = vunpack.c.l.b16 %v3307
    %v4082 = vunpack.c.h.b16 %v3307
    %v4083 = vunpack.c.l.b16 %v3308
    %v4084 = vunpack.c.h.b16 %v3308
    %v4085 = vunpack.c.l.b16 %v3309
    %v4086 = vunpack.c.h.b16 %v3309
    %v4087 = vunpack.c.l.b16 %v3310
    %v4088 = vunpack.c.l.b16 %v3311
    %v4089 = vunpack.c.h.b16 %v3311
    %v4090 = vunpack.c.l.b16 %v3312
    %v4091 = vunpack.c.h.b16 %v3312
    %v4092 = vunpack.c.l.b16 %v3313
    %v4093 = vunpack.c.h.b16 %v3313
    %v4094 = vunpack.c.l.b16 %v3314
    %v4095 = vunpack.c.h.b16 %v3314
    %v4096 = vunpack.c.l.b16 %v3315
    %v4097 = vunpack.c.l.b16 %v3316
    %v4098 = vunpack.c.h.b16 %v3316
    %v4099 = vunpack.c.l.b16 %v3317
    %v4100 = vunpack.c.h.b16 %v3317
    %v4101 = vunpack.c.l.b16 %v3318
    %v4102 = vunpack.c.h.b16 %v3318
    %v4103 = vunpack.c.l.b16 %v3319
    %v4104 = vunpack.c.h.b16 %v3319
    %v4105 = vunpack.c.l.b16 %v3320
    %v4106 = vunpack.c.l.b16 %v3321
    %v4107 = vunpack.c.h.b16 %v3321
    %v4108 = vunpack.c.l.b16 %v3322
    %v4109 = vunpack.c.h.b16 %v3322
    %v4110 = vunpack.c.l.b16 %v3323
    %v4111 = vunpack.c.h.b16 %v3323
    %v4112 = vunpack.c.l.b16 %v3324
    %v4113 = vunpack.c.h.b16 %v3324
    %v4114 = vunpack.c.l.b16 %v3325
    %v4115 = vunpack.c.l.b16 %v3326
    %v4116 = vunpack.c.h.b16 %v3326
    %v4117 = vunpack.c.l.b16 %v3327
    %v4118 = vunpack.c.h.b16 %v3327
    %v4119 = vunpack.c.l.b16 %v3328
    %v4120 = vunpack.c.h.b16 %v3328
    %v4121 = vunpack.c.l.b16 %v3329
    %v4122 = vunpack.c.h.b16 %v3329
    %v4123 = vunpack.c.l.b16 %v3330
    %v4124 = vunpack.c.l.b16 %v3331
    %v4125 = vunpack.c.h.b16 %v3331
    %v4126 = vunpack.c.l.b16 %v3332
    %v4127 = vunpack.c.h.b16 %v3332
    %v4128 = vunpack.c.l.b16 %v3333
    %v4129 = vunpack.c.h.b16 %v3333
    %v4130 = vunpack.c.l.b16 %v3334
    %v4131 = vunpack.c.h.b16 %v3334
    %v4132 = vunpack.c.l.b16 %v3335
    %v4133 = vunpack.c.l.b16 %v3336
    %v4134 = vunpack.c.h.b16 %v3336
    %v4135 = vunpack.c.l.b16 %v3337
    %v4136 = vunpack.c.h.b16 %v3337
    %v4137 = vunpack.c.l.b16 %v3338
    %v4138 = vunpack.c.h.b16 %v3338
    %v4139 = vunpack.c.l.b16 %v3339
    %v4140 = vunpack.c.h.b16 %v3339
    %v4141 = vunpack.c.l.b16 %v3340
    %v4142 = vunpack.c.l.b16 %v3341
    %v4143 = vunpack.c.h.b16 %v3341
    %v4144 = vunpack.c.l.b16 %v3342
    %v4145 = vunpack.c.h.b16 %v3342
    %v4146 = vunpack.c.l.b16 %v3343
    %v4147 = vunpack.c.h.b16 %v3343
    %v4148 = vunpack.c.l.b16 %v3344
    %v4149 = vunpack.c.h.b16 %v3344
    %v4150 = vunpack.c.l.b16 %v3345
    %v4151 = vunpack.c.l.b16 %v3346
    %v4152 = vunpack.c.h.b16 %v3346
    %v4153 = vunpack.c.l.b16 %v3347
    %v4154 = vunpack.c.h.b16 %v3347
    %v4155 = vunpack.c.l.b16 %v3348
    %v4156 = vunpack.c.h.b16 %v3348
    %v4157 = vunpack.c.l.b16 %v3349
    %v4158 = vunpack.c.h.b16 %v3349
    %v4159 = vunpack.c.l.b16 %v3350
    %v4160 = vunpack.c.l.b16 %v3351
    %v4161 = vunpack.c.h.b16 %v3351
    %v4162 = vunpack.c.l.b16 %v3352
    %v4163 = vunpack.c.h.b16 %v3352
    %v4164 = vunpack.c.l.b16 %v3353
    %v4165 = vunpack.c.h.b16 %v3353
    %v4166 = vunpack.c.l.b16 %v3354
    %v4167 = vunpack.c.h.b16 %v3354
    %v4168 = vunpack.c.l.b16 %v3355
    %v4169 = vunpack.c.l.b16 %v3356
    %v4170 = vunpack.c.h.b16 %v3356
    %v4171 = vunpack.c.l.b16 %v3357
    %v4172 = vunpack.c.h.b16 %v3357
    %v4173 = vunpack.c.l.b16 %v3358
    %v4174 = vunpack.c.h.b16 %v3358
    %v4175 = vunpack.c.l.b16 %v3359
    %v4176 = vunpack.c.h.b16 %v3359
    %v4177 = vunpack.c.l.b16 %v3360
    %v4178 = vunpack.c.l.b16 %v3361
    %v4179 = vunpack.c.h.b16 %v3361
    %v4180 = vunpack.c.l.b16 %v3362
    %v4181 = vunpack.c.h.b16 %v3362
    %v4182 = vunpack.c.l.b16 %v3363
    %v4183 = vunpack.c.h.b16 %v3363
    %v4184 = vunpack.c.l.b16 %v3364
    %v4185 = vunpack.c.h.b16 %v3364
    %v4186 = vunpack.c.l.b16 %v3365
    %v4187 = vunpack.c.l.b16 %v3366
    %v4188 = vunpack.c.h.b16 %v3366
    %v4189 = vunpack.c.l.b16 %v3367
    %v4190 = vunpack.c.h.b16 %v3367
    %v4191 = vunpack.c.l.b16 %v3368
    %v4192 = vunpack.c.h.b16 %v3368
    %v4193 = vunpack.c.l.b16 %v3369
    %v4194 = vunpack.c.h.b16 %v3369
    %v4195 = vunpack.c.l.b16 %v3370
    %v4196 = vunpack.c.l.b16 %v3371
    %v4197 = vunpack.c.h.b16 %v3371
    %v4198 = vunpack.c.l.b16 %v3372
    %v4199 = vunpack.c.h.b16 %v3372
    %v4200 = vunpack.c.l.b16 %v3373
    %v4201 = vunpack.c.h.b16 %v3373
    %v4202 = vunpack.c.l.b16 %v3374
    %v4203 = vunpack.c.h.b16 %v3374
    %v4204 = vunpack.c.l.b16 %v3375
    %v4205 = vunpack.c.l.b16 %v3376
    %v4206 = vunpack.c.h.b16 %v3376
    %v4207 = vunpack.c.l.b16 %v3377
    %v4208 = vunpack.c.h.b16 %v3377
    %v4209 = vunpack.c.l.b16 %v3378
    %v4210 = vunpack.c.h.b16 %v3378
    %v4211 = vunpack.c.l.b16 %v3379
    %v4212 = vunpack.c.h.b16 %v3379
    %v4213 = vunpack.c.l.b16 %v3380
    %v4214 = vunpack.c.l.b16 %v3381
    %v4215 = vunpack.c.h.b16 %v3381
    %v4216 = vunpack.c.l.b16 %v3382
    %v4217 = vunpack.c.h.b16 %v3382
    %v4218 = vunpack.c.l.b16 %v3383
    %v4219 = vunpack.c.h.b16 %v3383
    %v4220 = vunpack.c.l.b16 %v3384
    %v4221 = vunpack.c.h.b16 %v3384
    %v4222 = vunpack.c.l.b16 %v3385
    %v4223 = vunpack.c.l.b16 %v3386
    %v4224 = vunpack.c.h.b16 %v3386
    %v4225 = vunpack.c.l.b16 %v3387
    %v4226 = vunpack.c.h.b16 %v3387
    %v4227 = vunpack.c.l.b16 %v3388
    %v4228 = vunpack.c.h.b16 %v3388
    %v4229 = vunpack.c.l.b16 %v3389
    %v4230 = vunpack.c.h.b16 %v3389
    %v4231 = vunpack.c.l.b16 %v3390
    %v4232 = vunpack.c.l.b16 %v3391
    %v4233 = vunpack.c.h.b16 %v3391
    %v4234 = vunpack.c.l.b16 %v3392
    %v4235 = vunpack.c.h.b16 %v3392
    %v4236 = vunpack.c.l.b16 %v3393
    %v4237 = vunpack.c.h.b16 %v3393
    %v4238 = vunpack.c.l.b16 %v3394
    %v4239 = vunpack.c.h.b16 %v3394
    %v4240 = vunpack.c.l.b16 %v3395
    %v4241 = vunpack.c.l.b16 %v3396
    %v4242 = vunpack.c.h.b16 %v3396
    %v4243 = vunpack.c.l.b16 %v3397
    %v4244 = vunpack.c.h.b16 %v3397
    %v4245 = vunpack.c.l.b16 %v3398
    %v4246 = vunpack.c.h.b16 %v3398
    %v4247 = vunpack.c.l.b16 %v3399
    %v4248 = vunpack.c.h.b16 %v3399
    %v4249 = vunpack.c.l.b16 %v3400
    %v4250 = vunpack.c.l.b16 %v3401
    %v4251 = vunpack.c.h.b16 %v3401
    %v4252 = vunpack.c.l.b16 %v3402
    %v4253 = vunpack.c.h.b16 %v3402
    %v4254 = vunpack.c.l.b16 %v3403
    %v4255 = vunpack.c.h.b16 %v3403
    %v4256 = vunpack.c.l.b16 %v3404
    %v4257 = vunpack.c.h.b16 %v3404
    %v4258 = vunpack.c.l.b16 %v3405
    %v4259 = vunpack.c.l.b16 %v3406
    %v4260 = vunpack.c.h.b16 %v3406
    %v4261 = vunpack.c.l.b16 %v3407
    %v4262 = vunpack.c.h.b16 %v3407
    %v4263 = vunpack.c.l.b16 %v3408
    %v4264 = vunpack.c.h.b16 %v3408
    %v4265 = vunpack.c.l.b16 %v3409
    %v4266 = vunpack.c.h.b16 %v3409
    %v4267 = vunpack.c.l.b16 %v3410
    %v4268 = vunpack.c.l.b16 %v3411
    %v4269 = vunpack.c.h.b16 %v3411
    %v4270 = vunpack.c.l.b16 %v3412
    %v4271 = vunpack.c.h.b16 %v3412
    %v4272 = vunpack.c.l.b16 %v3413
    %v4273 = vunpack.c.h.b16 %v3413
    %v4274 = vunpack.c.l.b16 %v3414
    %v4275 = vunpack.c.h.b16 %v3414
    %v4276 = vunpack.c.l.b16 %v3415
    %v4277 = vunpack.c.l.b16 %v3416
    %v4278 = vunpack.c.h.b16 %v3416
    %v4279 = vunpack.c.l.b16 %v3417
    %v4280 = vunpack.c.h.b16 %v3417
    %v4281 = vunpack.c.l.b16 %v3418
    %v4282 = vunpack.c.h.b16 %v3418
    %v4283 = vunpack.c.l.b16 %v3419
    %v4284 = vunpack.c.h.b16 %v3419
    %v4285 = vunpack.c.l.b16 %v3420
    %v4286 = vunpack.c.l.b16 %v3421
    %v4287 = vunpack.c.h.b16 %v3421
    %v4288 = vunpack.c.l.b16 %v3422
    %v4289 = vunpack.c.h.b16 %v3422
    %v4290 = vunpack.c.l.b16 %v3423
    %v4291 = vunpack.c.h.b16 %v3423
    %v4292 = vunpack.c.l.b16 %v3424
    %v4293 = vunpack.c.h.b16 %v3424
    %v4294 = vunpack.c.l.b16 %v3425
    %v4295 = vunpack.c.l.b16 %v3426
    %v4296 = vunpack.c.h.b16 %v3426
    %v4297 = vunpack.c.l.b16 %v3427
    %v4298 = vunpack.c.h.b16 %v3427
    %v4299 = vunpack.c.l.b16 %v3428
    %v4300 = vunpack.c.h.b16 %v3428
    %v4301 = vunpack.c.l.b16 %v3429
    %v4302 = vunpack.c.h.b16 %v3429
    %v4303 = vunpack.c.l.b16 %v3430
    %v4304 = vunpack.c.l.b16 %v3431
    %v4305 = vunpack.c.h.b16 %v3431
    %v4306 = vunpack.c.l.b16 %v3432
    %v4307 = vunpack.c.h.b16 %v3432
    %v4308 = vunpack.c.l.b16 %v3433
    %v4309 = vunpack.c.h.b16 %v3433
    %v4310 = vunpack.c.l.b16 %v3434
    %v4311 = vunpack.c.h.b16 %v3434
    %v4312 = vunpack.c.l.b16 %v3435
    %v4313 = vunpack.c.l.b16 %v3436
    %v4314 = vunpack.c.h.b16 %v3436
    %v4315 = vunpack.c.l.b16 %v3437
    %v4316 = vunpack.c.h.b16 %v3437
    %v4317 = vunpack.c.l.b16 %v3438
    %v4318 = vunpack.c.h.b16 %v3438
    %v4319 = vunpack.c.l.b16 %v3439
    %v4320 = vunpack.c.h.b16 %v3439
    %v4321 = vunpack.c.l.b16 %v3440
    %v4322 = vunpack.c.l.b16 %v3441
    %v4323 = vunpack.c.h.b16 %v3441
    %v4324 = vunpack.c.l.b16 %v3442
    %v4325 = vunpack.c.h.b16 %v3442
    %v4326 = vunpack.c.l.b16 %v3443
    %v4327 = vunpack.c.h.b16 %v3443
    %v4328 = vunpack.c.l.b16 %v3444
    %v4329 = vunpack.c.h.b16 %v3444
    %v4330 = vunpack.c.l.b16 %v3445
    %v4331 = vunpack.c.l.b16 %v3446
    %v4332 = vunpack.c.h.b16 %v3446
    %v4333 = vunpack.c.l.b16 %v3447
    %v4334 = vunpack.c.h.b16 %v3447
    %v4335 = vunpack.c.l.b16 %v3448
    %v4336 = vunpack.c.h.b16 %v3448
    %v4337 = vunpack.c.l.b16 %v3449
    %v4338 = vunpack.c.h.b16 %v3449
    %v4339 = vunpack.c.l.b16 %v3450
    %v4340 = vunpack.c.l.b16 %v3451
    %v4341 = vunpack.c.h.b16 %v3451
    %v4342 = vunpack.c.l.b16 %v3452
    %v4343 = vunpack.c.h.b16 %v3452
    %v4344 = vunpack.c.l.b16 %v3453
    %v4345 = vunpack.c.h.b16 %v3453
    %v4346 = vunpack.c.l.b16 %v3454
    %v4347 = vunpack.c.h.b16 %v3454
    %v4348 = vunpack.c.l.b16 %v3455
    %v4349 = vunpack.c.l.b16 %v3456
    %v4350 = vunpack.c.h.b16 %v3456
    %v4351 = vunpack.c.l.b16 %v3457
    %v4352 = vunpack.c.h.b16 %v3457
    %v4353 = vunpack.c.l.b16 %v3458
    %v4354 = vunpack.c.h.b16 %v3458
    %v4355 = vunpack.c.l.b16 %v3459
    %v4356 = vunpack.c.h.b16 %v3459
    %v4357 = vunpack.c.l.b16 %v3460
    %v4358 = vunpack.c.l.b16 %v3461
    %v4359 = vunpack.c.h.b16 %v3461
    %v4360 = vunpack.c.l.b16 %v3462
    %v4361 = vunpack.c.h.b16 %v3462
    %v4362 = vunpack.c.l.b16 %v3463
    %v4363 = vunpack.c.h.b16 %v3463
    %v4364 = vunpack.c.l.b16 %v3464
    %v4365 = vunpack.c.h.b16 %v3464
    %v4366 = vunpack.c.l.b16 %v3465
    %v4367 = vunpack.c.l.b16 %v3466
    %v4368 = vunpack.c.h.b16 %v3466
    %v4369 = vunpack.c.l.b16 %v3467
    %v4370 = vunpack.c.h.b16 %v3467
    %v4371 = vunpack.c.l.b16 %v3468
    %v4372 = vunpack.c.h.b16 %v3468
    %v4373 = vunpack.c.l.b16 %v3469
    %v4374 = vunpack.c.h.b16 %v3469
    %v4375 = vunpack.c.l.b16 %v3470
    %v4376 = vunpack.c.l.b16 %v3471
    %v4377 = vunpack.c.h.b16 %v3471
    %v4378 = vunpack.c.l.b16 %v3472
    %v4379 = vunpack.c.h.b16 %v3472
    %v4380 = vunpack.c.l.b16 %v3473
    %v4381 = vunpack.c.h.b16 %v3473
    %v4382 = vunpack.c.l.b16 %v3474
    %v4383 = vunpack.c.h.b16 %v3474
    %v4384 = vunpack.c.l.b16 %v3475
    %v4385 = vunpack.c.l.b16 %v3476
    %v4386 = vunpack.c.h.b16 %v3476
    %v4387 = vunpack.c.l.b16 %v3477
    %v4388 = vunpack.c.h.b16 %v3477
    %v4389 = vunpack.c.l.b16 %v3478
    %v4390 = vunpack.c.h.b16 %v3478
    %v4391 = vunpack.c.l.b16 %v3479
    %v4392 = vunpack.c.h.b16 %v3479
    %v4393 = vunpack.c.l.b16 %v3480
    %v4394 = vunpack.c.l.b16 %v3481
    %v4395 = vunpack.c.h.b16 %v3481
    %v4396 = vunpack.c.l.b16 %v3482
    %v4397 = vunpack.c.h.b16 %v3482
    %v4398 = vunpack.c.l.b16 %v3483
    %v4399 = vunpack.c.h.b16 %v3483
    %v4400 = vunpack.c.l.b16 %v3484
    %v4401 = vunpack.c.h.b16 %v3484
    %v4402 = vunpack.c.l.b16 %v3485
    %v4403 = vunpack.c.l.b16 %v3486
    %v4404 = vunpack.c.h.b16 %v3486
    %v4405 = vunpack.c.l.b16 %v3487
    %v4406 = vunpack.c.h.b16 %v3487
    %v4407 = vunpack.c.l.b16 %v3488
    %v4408 = vunpack.c.h.b16 %v3488
    %v4409 = vunpack.c.l.b16 %v3489
    %v4410 = vunpack.c.h.b16 %v3489
    %v4411 = vunpack.c.l.b16 %v3490
    %v4412 = vunpack.c.l.b16 %v3491
    %v4413 = vunpack.c.h.b16 %v3491
    %v4414 = vunpack.c.l.b16 %v3492
    %v4415 = vunpack.c.h.b16 %v3492
    %v4416 = vunpack.c.l.b16 %v3493
    %v4417 = vunpack.c.h.b16 %v3493
    %v4418 = vunpack.c.l.b16 %v3494
    %v4419 = vunpack.c.h.b16 %v3494
    %v4420 = vunpack.c.l.b16 %v3495
    %v4421 = vunpack.c.l.b16 %v3496
    %v4422 = vunpack.c.h.b16 %v3496
    %v4423 = vunpack.c.l.b16 %v3497
    %v4424 = vunpack.c.h.b16 %v3497
    %v4425 = vunpack.c.l.b16 %v3498
    %v4426 = vunpack.c.h.b16 %v3498
    %v4427 = vunpack.c.l.b16 %v3499
    %v4428 = vunpack.c.h.b16 %v3499
    %v4429 = vunpack.c.l.b16 %v3500
    %v4430 = vunpack.c.l.b16 %v3501
    %v4431 = vunpack.c.h.b16 %v3501
    %v4432 = vunpack.c.l.b16 %v3502
    %v4433 = vunpack.c.h.b16 %v3502
    %v4434 = vunpack.c.l.b16 %v3503
    %v4435 = vunpack.c.h.b16 %v3503
    %v4436 = vunpack.c.l.b16 %v3504
    %v4437 = vunpack.c.h.b16 %v3504
    %v4438 = vunpack.c.l.b16 %v3505
    %v4439 = vunpack.c.l.b16 %v3506
    %v4440 = vunpack.c.h.b16 %v3506
    %v4441 = vunpack.c.l.b16 %v3507
    %v4442 = vunpack.c.h.b16 %v3507
    %v4443 = vunpack.c.l.b16 %v3508
    %v4444 = vunpack.c.h.b16 %v3508
    %v4445 = vunpack.c.l.b16 %v3509
    %v4446 = vunpack.c.h.b16 %v3509
    %v4447 = vunpack.c.l.b16 %v3510
    %v4448 = vunpack.c.l.b16 %v3511
    %v4449 = vunpack.c.h.b16 %v3511
    %v4450 = vunpack.c.l.b16 %v3512
    %v4451 = vunpack.c.h.b16 %v3512
    %v4452 = vunpack.c.l.b16 %v3513
    %v4453 = vunpack.c.h.b16 %v3513
    %v4454 = vunpack.c.l.b16 %v3514
    %v4455 = vunpack.c.h.b16 %v3514
    %v4456 = vunpack.c.l.b16 %v3515
    %v4457 = vunpack.c.l.b16 %v3516
    %v4458 = vunpack.c.h.b16 %v3516
    %v4459 = vunpack.c.l.b16 %v3517
    %v4460 = vunpack.c.h.b16 %v3517
    %v4461 = vunpack.c.l.b16 %v3518
    %v4462 = vunpack.c.h.b16 %v3518
    %v4463 = vunpack.c.l.b16 %v3519
    %v4464 = vunpack.c.h.b16 %v3519
    %v4465 = vunpack.c.l.b16 %v3520
    %v4466 = vpack.c.b16 %v3899, %v3890
    %v4467 = vpack.c.b16 %v3900, %v3891
    %v4468 = vpack.c.b16 %v3901, %v3892
    %v4469 = vpack.c.b16 %v3902, %v3893
    %v4470 = vpack.c.b16 %v3903, %v3894
    %v4471 = vpack.c.b16 %v3904, %v3895
    %v4472 = vpack.c.b16 %v3905, %v3896
    %v4473 = vpack.c.b16 %v3906, %v3897
    %v4474 = vpack.c.b16 %v3907, %v3898
    %v4475 = vpack.c.b16 %v3917, %v3908
    %v4476 = vpack.c.b16 %v3918, %v3909
    %v4477 = vpack.c.b16 %v3919, %v3910
    %v4478 = vpack.c.b16 %v3920, %v3911
    %v4479 = vpack.c.b16 %v3921, %v3912
    %v4480 = vpack.c.b16 %v3922, %v3913
    %v4481 = vpack.c.b16 %v3923, %v3914
    %v4482 = vpack.c.b16 %v3924, %v3915
    %v4483 = vpack.c.b16 %v3925, %v3916
    %v4484 = vpack.c.b16 %v3935, %v3926
    %v4485 = vpack.c.b16 %v3936, %v3927
    %v4486 = vpack.c.b16 %v3937, %v3928
    %v4487 = vpack.c.b16 %v3938, %v3929
    %v4488 = vpack.c.b16 %v3939, %v3930
    %v4489 = vpack.c.b16 %v3940, %v3931
    %v4490 = vpack.c.b16 %v3941, %v3932
    %v4491 = vpack.c.b16 %v3942, %v3933
    %v4492 = vpack.c.b16 %v3943, %v3934
    %v4493 = vpack.c.b16 %v3953, %v3944
    %v4494 = vpack.c.b16 %v3954, %v3945
    %v4495 = vpack.c.b16 %v3955, %v3946
    %v4496 = vpack.c.b16 %v3956, %v3947
    %v4497 = vpack.c.b16 %v3957, %v3948
    %v4498 = vpack.c.b16 %v3958, %v3949
    %v4499 = vpack.c.b16 %v3959, %v3950
    %v4500 = vpack.c.b16 %v3960, %v3951
    %v4501 = vpack.c.b16 %v3961, %v3952
    %v4502 = vpack.c.b16 %v3971, %v3962
    %v4503 = vpack.c.b16 %v3972, %v3963
    %v4504 = vpack.c.b16 %v3973, %v3964
    %v4505 = vpack.c.b16 %v3974, %v3965
    %v4506 = vpack.c.b16 %v3975, %v3966
    %v4507 = vpack.c.b16 %v3976, %v3967
    %v4508 = vpack.c.b16 %v3977, %v3968
    %v4509 = vpack.c.b16 %v3978, %v3969
    %v4510 = vpack.c.b16 %v3979, %v3970
    %v4511 = vpack.c.b16 %v3989, %v3980
    %v4512 = vpack.c.b16 %v3990, %v3981
    %v4513 = vpack.c.b16 %v3991, %v3982
    %v4514 = vpack.c.b16 %v3992, %v3983
    %v4515 = vpack.c.b16 %v3993, %v3984
    %v4516 = vpack.c.b16 %v3994, %v3985
    %v4517 = vpack.c.b16 %v3995, %v3986
    %v4518 = vpack.c.b16 %v3996, %v3987
    %v4519 = vpack.c.b16 %v3997, %v3988
    %v4520 = vpack.c.b16 %v4007, %v3998
    %v4521 = vpack.c.b16 %v4008, %v3999
    %v4522 = vpack.c.b16 %v4009, %v4000
    %v4523 = vpack.c.b16 %v4010, %v4001
    %v4524 = vpack.c.b16 %v4011, %v4002
    %v4525 = vpack.c.b16 %v4012, %v4003
    %v4526 = vpack.c.b16 %v4013, %v4004
    %v4527 = vpack.c.b16 %v4014, %v4005
    %v4528 = vpack.c.b16 %v4015, %v4006
    %v4529 = vpack.c.b16 %v4025, %v4016
    %v4530 = vpack.c.b16 %v4026, %v4017
    %v4531 = vpack.c.b16 %v4027, %v4018
    %v4532 = vpack.c.b16 %v4028, %v4019
    %v4533 = vpack.c.b16 %v4029, %v4020
    %v4534 = vpack.c.b16 %v4030, %v4021
    %v4535 = vpack.c.b16 %v4031, %v4022
    %v4536 = vpack.c.b16 %v4032, %v4023
    %v4537 = vpack.c.b16 %v4033, %v4024
    %v4538 = vpack.c.b16 %v4043, %v4034
    %v4539 = vpack.c.b16 %v4044, %v4035
    %v4540 = vpack.c.b16 %v4045, %v4036
    %v4541 = vpack.c.b16 %v4046, %v4037
    %v4542 = vpack.c.b16 %v4047, %v4038
    %v4543 = vpack.c.b16 %v4048, %v4039
    %v4544 = vpack.c.b16 %v4049, %v4040
    %v4545 = vpack.c.b16 %v4050, %v4041
    %v4546 = vpack.c.b16 %v4051, %v4042
    %v4547 = vpack.c.b16 %v4061, %v4052
    %v4548 = vpack.c.b16 %v4062, %v4053
    %v4549 = vpack.c.b16 %v4063, %v4054
    %v4550 = vpack.c.b16 %v4064, %v4055
    %v4551 = vpack.c.b16 %v4065, %v4056
    %v4552 = vpack.c.b16 %v4066, %v4057
    %v4553 = vpack.c.b16 %v4067, %v4058
    %v4554 = vpack.c.b16 %v4068, %v4059
    %v4555 = vpack.c.b16 %v4069, %v4060
    %v4556 = vpack.c.b16 %v4079, %v4070
    %v4557 = vpack.c.b16 %v4080, %v4071
    %v4558 = vpack.c.b16 %v4081, %v4072
    %v4559 = vpack.c.b16 %v4082, %v4073
    %v4560 = vpack.c.b16 %v4083, %v4074
    %v4561 = vpack.c.b16 %v4084, %v4075
    %v4562 = vpack.c.b16 %v4085, %v4076
    %v4563 = vpack.c.b16 %v4086, %v4077
    %v4564 = vpack.c.b16 %v4087, %v4078
    %v4565 = vpack.c.b16 %v4097, %v4088
    %v4566 = vpack.c.b16 %v4098, %v4089
    %v4567 = vpack.c.b16 %v4099, %v4090
    %v4568 = vpack.c.b16 %v4100, %v4091
    %v4569 = vpack.c.b16 %v4101, %v4092
    %v4570 = vpack.c.b16 %v4102, %v4093
    %v4571 = vpack.c.b16 %v4103, %v4094
    %v4572 = vpack.c.b16 %v4104, %v4095
    %v4573 = vpack.c.b16 %v4105, %v4096
    %v4574 = vpack.c.b16 %v4115, %v4106
    %v4575 = vpack.c.b16 %v4116, %v4107
    %v4576 = vpack.c.b16 %v4117, %v4108
    %v4577 = vpack.c.b16 %v4118, %v4109
    %v4578 = vpack.c.b16 %v4119, %v4110
    %v4579 = vpack.c.b16 %v4120, %v4111
    %v4580 = vpack.c.b16 %v4121, %v4112
    %v4581 = vpack.c.b16 %v4122, %v4113
    %v4582 = vpack.c.b16 %v4123, %v4114
    %v4583 = vpack.c.b16 %v4133, %v4124
    %v4584 = vpack.c.b16 %v4134, %v4125
    %v4585 = vpack.c.b16 %v4135, %v4126
    %v4586 = vpack.c.b16 %v4136, %v4127
    %v4587 = vpack.c.b16 %v4137, %v4128
    %v4588 = vpack.c.b16 %v4138, %v4129
    %v4589 = vpack.c.b16 %v4139, %v4130
    %v4590 = vpack.c.b16 %v4140, %v4131
    %v4591 = vpack.c.b16 %v4141, %v4132
    %v4592 = vpack.c.b16 %v4151, %v4142
    %v4593 = vpack.c.b16 %v4152, %v4143
    %v4594 = vpack.c.b16 %v4153, %v4144
    %v4595 = vpack.c.b16 %v4154, %v4145
    %v4596 = vpack.c.b16 %v4155, %v4146
    %v4597 = vpack.c.b16 %v4156, %v4147
    %v4598 = vpack.c.b16 %v4157, %v4148
    %v4599 = vpack.c.b16 %v4158, %v4149
    %v4600 = vpack.c.b16 %v4159, %v4150
    %v4601 = vpack.c.b16 %v4169, %v4160
    %v4602 = vpack.c.b16 %v4170, %v4161
    %v4603 = vpack.c.b16 %v4171, %v4162
    %v4604 = vpack.c.b16 %v4172, %v4163
    %v4605 = vpack.c.b16 %v4173, %v4164
    %v4606 = vpack.c.b16 %v4174, %v4165
    %v4607 = vpack.c.b16 %v4175, %v4166
    %v4608 = vpack.c.b16 %v4176, %v4167
    %v4609 = vpack.c.b16 %v4177, %v4168
    %v4610 = vpack.c.b16 %v4187, %v4178
    %v4611 = vpack.c.b16 %v4188, %v4179
    %v4612 = vpack.c.b16 %v4189, %v4180
    %v4613 = vpack.c.b16 %v4190, %v4181
    %v4614 = vpack.c.b16 %v4191, %v4182
    %v4615 = vpack.c.b16 %v4192, %v4183
    %v4616 = vpack.c.b16 %v4193, %v4184
    %v4617 = vpack.c.b16 %v4194, %v4185
    %v4618 = vpack.c.b16 %v4195, %v4186
    %v4619 = vpack.c.b16 %v4205, %v4196
    %v4620 = vpack.c.b16 %v4206, %v4197
    %v4621 = vpack.c.b16 %v4207, %v4198
    %v4622 = vpack.c.b16 %v4208, %v4199
    %v4623 = vpack.c.b16 %v4209, %v4200
    %v4624 = vpack.c.b16 %v4210, %v4201
    %v4625 = vpack.c.b16 %v4211, %v4202
    %v4626 = vpack.c.b16 %v4212, %v4203
    %v4627 = vpack.c.b16 %v4213, %v4204
    %v4628 = vpack.c.b16 %v4223, %v4214
    %v4629 = vpack.c.b16 %v4224, %v4215
    %v4630 = vpack.c.b16 %v4225, %v4216
    %v4631 = vpack.c.b16 %v4226, %v4217
    %v4632 = vpack.c.b16 %v4227, %v4218
    %v4633 = vpack.c.b16 %v4228, %v4219
    %v4634 = vpack.c.b16 %v4229, %v4220
    %v4635 = vpack.c.b16 %v4230, %v4221
    %v4636 = vpack.c.b16 %v4231, %v4222
    %v4637 = vpack.c.b16 %v4241, %v4232
    %v4638 = vpack.c.b16 %v4242, %v4233
    %v4639 = vpack.c.b16 %v4243, %v4234
    %v4640 = vpack.c.b16 %v4244, %v4235
    %v4641 = vpack.c.b16 %v4245, %v4236
    %v4642 = vpack.c.b16 %v4246, %v4237
    %v4643 = vpack.c.b16 %v4247, %v4238
    %v4644 = vpack.c.b16 %v4248, %v4239
    %v4645 = vpack.c.b16 %v4249, %v4240
    %v4646 = vpack.c.b16 %v4259, %v4250
    %v4647 = vpack.c.b16 %v4260, %v4251
    %v4648 = vpack.c.b16 %v4261, %v4252
    %v4649 = vpack.c.b16 %v4262, %v4253
    %v4650 = vpack.c.b16 %v4263, %v4254
    %v4651 = vpack.c.b16 %v4264, %v4255
    %v4652 = vpack.c.b16 %v4265, %v4256
    %v4653 = vpack.c.b16 %v4266, %v4257
    %v4654 = vpack.c.b16 %v4267, %v4258
    %v4655 = vpack.c.b16 %v4277, %v4268
    %v4656 = vpack.c.b16 %v4278, %v4269
    %v4657 = vpack.c.b16 %v4279, %v4270
    %v4658 = vpack.c.b16 %v4280, %v4271
    %v4659 = vpack.c.b16 %v4281, %v4272
    %v4660 = vpack.c.b16 %v4282, %v4273
    %v4661 = vpack.c.b16 %v4283, %v4274
    %v4662 = vpack.c.b16 %v4284, %v4275
    %v4663 = vpack.c.b16 %v4285, %v4276
    %v4664 = vpack.c.b16 %v4295, %v4286
    %v4665 = vpack.c.b16 %v4296, %v4287
    %v4666 = vpack.c.b16 %v4297, %v4288
    %v4667 = vpack.c.b16 %v4298, %v4289
    %v4668 = vpack.c.b16 %v4299, %v4290
    %v4669 = vpack.c.b16 %v4300, %v4291
    %v4670 = vpack.c.b16 %v4301, %v4292
    %v4671 = vpack.c.b16 %v4302, %v4293
    %v4672 = vpack.c.b16 %v4303, %v4294
    %v4673 = vpack.c.b16 %v4313, %v4304
    %v4674 = vpack.c.b16 %v4314, %v4305
    %v4675 = vpack.c.b16 %v4315, %v4306
    %v4676 = vpack.c.b16 %v4316, %v4307
    %v4677 = vpack.c.b16 %v4317, %v4308
    %v4678 = vpack.c.b16 %v4318, %v4309
    %v4679 = vpack.c.b16 %v4319, %v4310
    %v4680 = vpack.c.b16 %v4320, %v4311
    %v4681 = vpack.c.b16 %v4321, %v4312
    %v4682 = vpack.c.b16 %v4331, %v4322
    %v4683 = vpack.c.b16 %v4332, %v4323
    %v4684 = vpack.c.b16 %v4333, %v4324
    %v4685 = vpack.c.b16 %v4334, %v4325
    %v4686 = vpack.c.b16 %v4335, %v4326
    %v4687 = vpack.c.b16 %v4336, %v4327
    %v4688 = vpack.c.b16 %v4337, %v4328
    %v4689 = vpack.c.b16 %v4338, %v4329
    %v4690 = vpack.c.b16 %v4339, %v4330
    %v4691 = vpack.c.b16 %v4349, %v4340
    %v4692 = vpack.c.b16 %v4350, %v4341
    %v4693 = vpack.c.b16 %v4351, %v4342
    %v4694 = vpack.c.b16 %v4352, %v4343
    %v4695 = vpack.c.b16 %v4353, %v4344
    %v4696 = vpack.c.b16 %v4354, %v4345
    %v4697 = vpack.c.b16 %v4355, %v4346
    %v4698 = vpack.c.b16 %v4356, %v4347
    %v4699 = vpack.c.b16 %v4357, %v4348
    %v4700 = vpack.c.b16 %v4367, %v4358
    %v4701 = vpack.c.b16 %v4368, %v4359
    %v4702 = vpack.c.b16 %v4369, %v4360
    %v4703 = vpack.c.b16 %v4370, %v4361
    %v4704 = vpack.c.b16 %v4371, %v4362
    %v4705 = vpack.c.b16 %v4372, %v4363
    %v4706 = vpack.c.b16 %v4373, %v4364
    %v4707 = vpack.c.b16 %v4374, %v4365
    %v4708 = vpack.c.b16 %v4375, %v4366
    %v4709 = vpack.c.b16 %v4385, %v4376
    %v4710 = vpack.c.b16 %v4386, %v4377
    %v4711 = vpack.c.b16 %v4387, %v4378
    %v4712 = vpack.c.b16 %v4388, %v4379
    %v4713 = vpack.c.b16 %v4389, %v4380
    %v4714 = vpack.c.b16 %v4390, %v4381
    %v4715 = vpack.c.b16 %v4391, %v4382
    %v4716 = vpack.c.b16 %v4392, %v4383
    %v4717 = vpack.c.b16 %v4393, %v4384
    %v4718 = vpack.c.b16 %v4403, %v4394
    %v4719 = vpack.c.b16 %v4404, %v4395
    %v4720 = vpack.c.b16 %v4405, %v4396
    %v4721 = vpack.c.b16 %v4406, %v4397
    %v4722 = vpack.c.b16 %v4407, %v4398
    %v4723 = vpack.c.b16 %v4408, %v4399
    %v4724 = vpack.c.b16 %v4409, %v4400
    %v4725 = vpack.c.b16 %v4410, %v4401
    %v4726 = vpack.c.b16 %v4411, %v4402
    %v4727 = vpack.c.b16 %v4421, %v4412
    %v4728 = vpack.c.b16 %v4422, %v4413
    %v4729 = vpack.c.b16 %v4423, %v4414
    %v4730 = vpack.c.b16 %v4424, %v4415
    %v4731 = vpack.c.b16 %v4425, %v4416
    %v4732 = vpack.c.b16 %v4426, %v4417
    %v4733 = vpack.c.b16 %v4427, %v4418
    %v4734 = vpack.c.b16 %v4428, %v4419
    %v4735 = vpack.c.b16 %v4429, %v4420
    %v4736 = vpack.c.b16 %v4439, %v4430
    %v4737 = vpack.c.b16 %v4440, %v4431
    %v4738 = vpack.c.b16 %v4441, %v4432
    %v4739 = vpack.c.b16 %v4442, %v4433
    %v4740 = vpack.c.b16 %v4443, %v4434
    %v4741 = vpack.c.b16 %v4444, %v4435
    %v4742 = vpack.c.b16 %v4445, %v4436
    %v4743 = vpack.c.b16 %v4446, %v4437
    %v4744 = vpack.c.b16 %v4447, %v4438
    %v4745 = vpack.c.b16 %v4457, %v4448
    %v4746 = vpack.c.b16 %v4458, %v4449
    %v4747 = vpack.c.b16 %v4459, %v4450
    %v4748 = vpack.c.b16 %v4460, %v4451
    %v4749 = vpack.c.b16 %v4461, %v4452
    %v4750 = vpack.c.b16 %v4462, %v4453
    %v4751 = vpack.c.b16 %v4463, %v4454
    %v4752 = vpack.c.b16 %v4464, %v4455
    %v4753 = vpack.c.b16 %v4465, %v4456
    %5042 = vmatprep.subr.bf16.mxu0 %v4467
    %5043 = vmatpush1.bf16.msra.mxu0 %v4466
    %5044 = vmatprep.subr.bf16.mxu0 %v4476
    %5045 = vmatpush1.bf16.msra.mxu0 %v4475
    %5046 = vmatprep.subr.bf16.mxu0 %v4485
    %5047 = vmatpush1.bf16.msra.mxu0 %v4484
    %5048 = vmatprep.subr.bf16.mxu0 %v4494
    %5049 = vmatpush1.bf16.msra.mxu0 %v4493
    %5050 = vmatprep.subr.bf16.mxu0 %v4503
    %5051 = vmatpush1.bf16.msra.mxu0 %v4502
    %5052 = vmatprep.subr.bf16.mxu0 %v4512
    %5053 = vmatpush1.bf16.msra.mxu0 %v4511
    %5054 = vmatprep.subr.bf16.mxu0 %v4521
    %5055 = vmatpush1.bf16.msra.mxu0 %v4520
    %5056 = vmatprep.subr.bf16.mxu0 %v4530
    %5057 = vmatpush1.bf16.msra.mxu0 %v4529
    %5058 = vmatprep.subr.bf16.mxu0 %v4539
    %5059 = vmatpush1.bf16.msra.mxu0 %v4538
    %5060 = vmatprep.subr.bf16.mxu0 %v4548
    %5061 = vmatpush1.bf16.msra.mxu0 %v4547
    %5062 = vmatprep.subr.bf16.mxu0 %v4557
    %5063 = vmatpush1.bf16.msra.mxu0 %v4556
    %5064 = vmatprep.subr.bf16.mxu0 %v4566
    %5065 = vmatpush1.bf16.msra.mxu0 %v4565
    %5066 = vmatprep.subr.bf16.mxu0 %v4575
    %5067 = vmatpush1.bf16.msra.mxu0 %v4574
    %5068 = vmatprep.subr.bf16.mxu0 %v4584
    %5069 = vmatpush1.bf16.msra.mxu0 %v4583
    %5070 = vmatprep.subr.bf16.mxu0 %v4593
    %5071 = vmatpush1.bf16.msra.mxu0 %v4592
    %5072 = vmatprep.subr.bf16.mxu0 %v4602
    %5073 = vmatpush1.bf16.msra.mxu0 %v4601
    %5074 = vmatprep.mubr.bf16.mxu0 %v3194
    %5075 = vmatmul.mubr.bf16.gmra.mrb[0].mxu0 %v3193
    %v5076 = vpop.f32.mrb[0].mxu0
    %v5077 = vadd.f32 %v3528, %v5076
    %v5078 = vpop.f32.mrb[0].mxu0
    %v5079 = vadd.f32 %v3532, %v5078
    %v5080 = vpop.f32.mrb[0].mxu0
    %v5081 = vadd.f32 %v3528, %v5080
    %v5082 = vpop.f32.mrb[0].mxu0
    %v5083 = vadd.f32 %v3532, %v5082
    %5084 = vmatprep.mubr.bf16.mxu0 %v3198
    %5085 = vmatmul.mubr.bf16.gmra.mrb[0].mxu0 %v3197
    %v5086 = vpop.f32.mrb[0].mxu0
    %v5087 = vadd.f32 %v3528, %v5086
    %v5088 = vpop.f32.mrb[0].mxu0
    %v5089 = vadd.f32 %v3532, %v5088
    %v5090 = vpop.f32.mrb[0].mxu0
    %v5091 = vadd.f32 %v3528, %v5090
    %v5092 = vpop.f32.mrb[0].mxu0
    %v5093 = vadd.f32 %v3532, %v5092
    %5094 = vdwg.mxu0
    %5095 = vmatprep.subr.bf16.mxu0 %v4611
    %5096 = vmatpush1.bf16.msra.mxu0 %v4610
    %5097 = vmatprep.subr.bf16.mxu0 %v4620
    %5098 = vmatpush1.bf16.msra.mxu0 %v4619
    %5099 = vmatprep.subr.bf16.mxu0 %v4629
    %5100 = vmatpush1.bf16.msra.mxu0 %v4628
    %5101 = vmatprep.subr.bf16.mxu0 %v4638
    %5102 = vmatpush1.bf16.msra.mxu0 %v4637
    %5103 = vmatprep.subr.bf16.mxu0 %v4647
    %5104 = vmatpush1.bf16.msra.mxu0 %v4646
    %5105 = vmatprep.subr.bf16.mxu0 %v4656
    %5106 = vmatpush1.bf16.msra.mxu0 %v4655
    %5107 = vmatprep.subr.bf16.mxu0 %v4665
    %5108 = vmatpush1.bf16.msra.mxu0 %v4664
    %5109 = vmatprep.subr.bf16.mxu0 %v4674
    %5110 = vmatpush1.bf16.msra.mxu0 %v4673
    %5111 = vmatprep.subr.bf16.mxu0 %v4683
    %5112 = vmatpush1.bf16.msra.mxu0 %v4682
    %5113 = vmatprep.subr.bf16.mxu0 %v4692
    %5114 = vmatpush1.bf16.msra.mxu0 %v4691
    %5115 = vmatprep.subr.bf16.mxu0 %v4701
    %5116 = vmatpush1.bf16.msra.mxu0 %v4700
    %5117 = vmatprep.subr.bf16.mxu0 %v4710
    %5118 = vmatpush1.bf16.msra.mxu0 %v4709
    %5119 = vmatprep.subr.bf16.mxu0 %v4719
    %5120 = vmatpush1.bf16.msra.mxu0 %v4718
    %5121 = vmatprep.subr.bf16.mxu0 %v4728
    %5122 = vmatpush1.bf16.msra.mxu0 %v4727
    %5123 = vmatprep.subr.bf16.mxu0 %v4737
    %5124 = vmatpush1.bf16.msra.mxu0 %v4736
    %5125 = vmatprep.subr.bf16.mxu0 %v4746
    %5126 = vmatpush1.bf16.msra.mxu0 %v4745
    %5127 = vmatprep.mubr.bf16.mxu0 %v3196
    %5128 = vmatmul.mubr.bf16.gmra.mrb[0].mxu0 %v3195
    %v5129 = vpop.f32.mrb[0].mxu0
    %v5130 = vadd.f32 %v5077, %v5129
    %v5131 = vpop.f32.mrb[0].mxu0
    %v5132 = vadd.f32 %v5079, %v5131
    %v5133 = vpop.f32.mrb[0].mxu0
    %v5134 = vadd.f32 %v5081, %v5133
    %v5135 = vpop.f32.mrb[0].mxu0
    %v5136 = vadd.f32 %v5083, %v5135
    %5137 = vmatprep.mubr.bf16.mxu0 %v3200
    %5138 = vmatmul.mubr.bf16.gmra.mrb[0].mxu0 %v3199
    %v5139 = vpop.f32.mrb[0].mxu0
    %v5140 = vadd.f32 %v5087, %v5139
    %v5141 = vpop.f32.mrb[0].mxu0
    %v5142 = vadd.f32 %v5089, %v5141
    %v5143 = vpop.f32.mrb[0].mxu0
    %v5144 = vadd.f32 %v5091, %v5143
    %v5145 = vpop.f32.mrb[0].mxu0
    %v5146 = vadd.f32 %v5093, %v5145
    %5147 = vdwg.mxu0
    %5148 = vmatprep.subr.bf16.mxu0 %v4469
    %5149 = vmatpush1.bf16.msra.mxu0 %v4468
    %5150 = vmatprep.subr.bf16.mxu0 %v4478
    %5151 = vmatpush1.bf16.msra.mxu0 %v4477
    %5152 = vmatprep.subr.bf16.mxu0 %v4487
    %5153 = vmatpush1.bf16.msra.mxu0 %v4486
    %5154 = vmatprep.subr.bf16.mxu0 %v4496
    %5155 = vmatpush1.bf16.msra.mxu0 %v4495
    %5156 = vmatprep.subr.bf16.mxu0 %v4505
    %5157 = vmatpush1.bf16.msra.mxu0 %v4504
    %5158 = vmatprep.subr.bf16.mxu0 %v4514
    %5159 = vmatpush1.bf16.msra.mxu0 %v4513
    %5160 = vmatprep.subr.bf16.mxu0 %v4523
    %5161 = vmatpush1.bf16.msra.mxu0 %v4522
    %5162 = vmatprep.subr.bf16.mxu0 %v4532
    %5163 = vmatpush1.bf16.msra.mxu0 %v4531
    %5164 = vmatprep.subr.bf16.mxu0 %v4541
    %5165 = vmatpush1.bf16.msra.mxu0 %v4540
    %5166 = vmatprep.subr.bf16.mxu0 %v4550
    %5167 = vmatpush1.bf16.msra.mxu0 %v4549
    %5168 = vmatprep.subr.bf16.mxu0 %v4559
    %5169 = vmatpush1.bf16.msra.mxu0 %v4558
    %5170 = vmatprep.subr.bf16.mxu0 %v4568
    %5171 = vmatpush1.bf16.msra.mxu0 %v4567
    %5172 = vmatprep.subr.bf16.mxu0 %v4577
    %5173 = vmatpush1.bf16.msra.mxu0 %v4576
    %5174 = vmatprep.subr.bf16.mxu0 %v4586
    %5175 = vmatpush1.bf16.msra.mxu0 %v4585
    %5176 = vmatprep.subr.bf16.mxu0 %v4595
    %5177 = vmatpush1.bf16.msra.mxu0 %v4594
    %5178 = vmatprep.subr.bf16.mxu0 %v4604
    %5179 = vmatpush1.bf16.msra.mxu0 %v4603
    %5180 = vmatprep.mubr.bf16.mxu0 %v3194
    %5181 = vmatmul.mubr.bf16.gmra.mrb[0].mxu0 %v3193
    %v5182 = vpop.f32.mrb[0].mxu0
    %v5183 = vadd.f32 %v3536, %v5182
    %v5184 = vpop.f32.mrb[0].mxu0
    %v5185 = vadd.f32 %v3540, %v5184
    %v5186 = vpop.f32.mrb[0].mxu0
    %v5187 = vadd.f32 %v3536, %v5186
    %v5188 = vpop.f32.mrb[0].mxu0
    %v5189 = vadd.f32 %v3540, %v5188
    %5190 = vmatprep.mubr.bf16.mxu0 %v3198
    %5191 = vmatmul.mubr.bf16.gmra.mrb[0].mxu0 %v3197
    %v5192 = vpop.f32.mrb[0].mxu0
    %v5193 = vadd.f32 %v3536, %v5192
    %v5194 = vpop.f32.mrb[0].mxu0
    %v5195 = vadd.f32 %v3540, %v5194
    %v5196 = vpop.f32.mrb[0].mxu0
    %v5197 = vadd.f32 %v3536, %v5196
    %v5198 = vpop.f32.mrb[0].mxu0
    %v5199 = vadd.f32 %v3540, %v5198
    %5200 = vdwg.mxu0
    %5201 = vmatprep.subr.bf16.mxu0 %v4613
    %5202 = vmatpush1.bf16.msra.mxu0 %v4612
    %5203 = vmatprep.subr.bf16.mxu0 %v4622
    %5204 = vmatpush1.bf16.msra.mxu0 %v4621
    %5205 = vmatprep.subr.bf16.mxu0 %v4631
    %5206 = vmatpush1.bf16.msra.mxu0 %v4630
    %5207 = vmatprep.subr.bf16.mxu0 %v4640
    %5208 = vmatpush1.bf16.msra.mxu0 %v4639
    %5209 = vmatprep.subr.bf16.mxu0 %v4649
    %5210 = vmatpush1.bf16.msra.mxu0 %v4648
    %5211 = vmatprep.subr.bf16.mxu0 %v4658
    %5212 = vmatpush1.bf16.msra.mxu0 %v4657
    %5213 = vmatprep.subr.bf16.mxu0 %v4667
    %5214 = vmatpush1.bf16.msra.mxu0 %v4666
    %5215 = vmatprep.subr.bf16.mxu0 %v4676
    %5216 = vmatpush1.bf16.msra.mxu0 %v4675
    %5217 = vmatprep.subr.bf16.mxu0 %v4685
    %5218 = vmatpush1.bf16.msra.mxu0 %v4684
    %5219 = vmatprep.subr.bf16.mxu0 %v4694
    %5220 = vmatpush1.bf16.msra.mxu0 %v4693
    %5221 = vmatprep.subr.bf16.mxu0 %v4703
    %5222 = vmatpush1.bf16.msra.mxu0 %v4702
    %5223 = vmatprep.subr.bf16.mxu0 %v4712
    %5224 = vmatpush1.bf16.msra.mxu0 %v4711
    %5225 = vmatprep.subr.bf16.mxu0 %v4721
    %5226 = vmatpush1.bf16.msra.mxu0 %v4720
    %5227 = vmatprep.subr.bf16.mxu0 %v4730
    %5228 = vmatpush1.bf16.msra.mxu0 %v4729
    %5229 = vmatprep.subr.bf16.mxu0 %v4739
    %5230 = vmatpush1.bf16.msra.mxu0 %v4738
    %5231 = vmatprep.subr.bf16.mxu0 %v4748
    %5232 = vmatpush1.bf16.msra.mxu0 %v4747
    %5233 = vmatprep.mubr.bf16.mxu0 %v3196
    %5234 = vmatmul.mubr.bf16.gmra.mrb[0].mxu0 %v3195
    %v5235 = vpop.f32.mrb[0].mxu0
    %v5236 = vadd.f32 %v5183, %v5235
    %v5237 = vpop.f32.mrb[0].mxu0
    %v5238 = vadd.f32 %v5185, %v5237
    %v5239 = vpop.f32.mrb[0].mxu0
    %v5240 = vadd.f32 %v5187, %v5239
    %v5241 = vpop.f32.mrb[0].mxu0
    %v5242 = vadd.f32 %v5189, %v5241
    %5243 = vmatprep.mubr.bf16.mxu0 %v3200
    %5244 = vmatmul.mubr.bf16.gmra.mrb[0].mxu0 %v3199
    %v5245 = vpop.f32.mrb[0].mxu0
    %v5246 = vadd.f32 %v5193, %v5245
    %v5247 = vpop.f32.mrb[0].mxu0
    %v5248 = vadd.f32 %v5195, %v5247
    %v5249 = vpop.f32.mrb[0].mxu0
    %v5250 = vadd.f32 %v5197, %v5249
    %v5251 = vpop.f32.mrb[0].mxu0
    %v5252 = vadd.f32 %v5199, %v5251
    %5253 = vdwg.mxu0
    %5254 = vmatprep.subr.bf16.mxu0 %v4471
    %5255 = vmatpush1.bf16.msra.mxu0 %v4470
    %5256 = vmatprep.subr.bf16.mxu0 %v4480
    %5257 = vmatpush1.bf16.msra.mxu0 %v4479
    %5258 = vmatprep.subr.bf16.mxu0 %v4489
    %5259 = vmatpush1.bf16.msra.mxu0 %v4488
    %5260 = vmatprep.subr.bf16.mxu0 %v4498
    %5261 = vmatpush1.bf16.msra.mxu0 %v4497
    %5262 = vmatprep.subr.bf16.mxu0 %v4507
    %5263 = vmatpush1.bf16.msra.mxu0 %v4506
    %5264 = vmatprep.subr.bf16.mxu0 %v4516
    %5265 = vmatpush1.bf16.msra.mxu0 %v4515
    %5266 = vmatprep.subr.bf16.mxu0 %v4525
    %5267 = vmatpush1.bf16.msra.mxu0 %v4524
    %5268 = vmatprep.subr.bf16.mxu0 %v4534
    %5269 = vmatpush1.bf16.msra.mxu0 %v4533
    %5270 = vmatprep.subr.bf16.mxu0 %v4543
    %5271 = vmatpush1.bf16.msra.mxu0 %v4542
    %5272 = vmatprep.subr.bf16.mxu0 %v4552
    %5273 = vmatpush1.bf16.msra.mxu0 %v4551
    %5274 = vmatprep.subr.bf16.mxu0 %v4561
    %5275 = vmatpush1.bf16.msra.mxu0 %v4560
    %5276 = vmatprep.subr.bf16.mxu0 %v4570
    %5277 = vmatpush1.bf16.msra.mxu0 %v4569
    %5278 = vmatprep.subr.bf16.mxu0 %v4579
    %5279 = vmatpush1.bf16.msra.mxu0 %v4578
    %5280 = vmatprep.subr.bf16.mxu0 %v4588
    %5281 = vmatpush1.bf16.msra.mxu0 %v4587
    %5282 = vmatprep.subr.bf16.mxu0 %v4597
    %5283 = vmatpush1.bf16.msra.mxu0 %v4596
    %5284 = vmatprep.subr.bf16.mxu0 %v4606
    %5285 = vmatpush1.bf16.msra.mxu0 %v4605
    %5286 = vmatprep.mubr.bf16.mxu0 %v3194
    %5287 = vmatmul.mubr.bf16.gmra.mrb[0].mxu0 %v3193
    %v5288 = vpop.f32.mrb[0].mxu0
    %v5289 = vadd.f32 %v3544, %v5288
    %v5290 = vpop.f32.mrb[0].mxu0
    %v5291 = vadd.f32 %v3548, %v5290
    %v5292 = vpop.f32.mrb[0].mxu0
    %v5293 = vadd.f32 %v3544, %v5292
    %v5294 = vpop.f32.mrb[0].mxu0
    %v5295 = vadd.f32 %v3548, %v5294
    %5296 = vmatprep.mubr.bf16.mxu0 %v3198
    %5297 = vmatmul.mubr.bf16.gmra.mrb[0].mxu0 %v3197
    %v5298 = vpop.f32.mrb[0].mxu0
    %v5299 = vadd.f32 %v3544, %v5298
    %v5300 = vpop.f32.mrb[0].mxu0
    %v5301 = vadd.f32 %v3548, %v5300
    %v5302 = vpop.f32.mrb[0].mxu0
    %v5303 = vadd.f32 %v3544, %v5302
    %v5304 = vpop.f32.mrb[0].mxu0
    %v5305 = vadd.f32 %v3548, %v5304
    %5306 = vdwg.mxu0
    %5307 = vmatprep.subr.bf16.mxu0 %v4615
    %5308 = vmatpush1.bf16.msra.mxu0 %v4614
    %5309 = vmatprep.subr.bf16.mxu0 %v4624
    %5310 = vmatpush1.bf16.msra.mxu0 %v4623
    %5311 = vmatprep.subr.bf16.mxu0 %v4633
    %5312 = vmatpush1.bf16.msra.mxu0 %v4632
    %5313 = vmatprep.subr.bf16.mxu0 %v4642
    %5314 = vmatpush1.bf16.msra.mxu0 %v4641
    %5315 = vmatprep.subr.bf16.mxu0 %v4651
    %5316 = vmatpush1.bf16.msra.mxu0 %v4650
    %5317 = vmatprep.subr.bf16.mxu0 %v4660
    %5318 = vmatpush1.bf16.msra.mxu0 %v4659
    %5319 = vmatprep.subr.bf16.mxu0 %v4669
    %5320 = vmatpush1.bf16.msra.mxu0 %v4668
    %5321 = vmatprep.subr.bf16.mxu0 %v4678
    %5322 = vmatpush1.bf16.msra.mxu0 %v4677
    %5323 = vmatprep.subr.bf16.mxu0 %v4687
    %5324 = vmatpush1.bf16.msra.mxu0 %v4686
    %5325 = vmatprep.subr.bf16.mxu0 %v4696
    %5326 = vmatpush1.bf16.msra.mxu0 %v4695
    %5327 = vmatprep.subr.bf16.mxu0 %v4705
    %5328 = vmatpush1.bf16.msra.mxu0 %v4704
    %5329 = vmatprep.subr.bf16.mxu0 %v4714
    %5330 = vmatpush1.bf16.msra.mxu0 %v4713
    %5331 = vmatprep.subr.bf16.mxu0 %v4723
    %5332 = vmatpush1.bf16.msra.mxu0 %v4722
    %5333 = vmatprep.subr.bf16.mxu0 %v4732
    %5334 = vmatpush1.bf16.msra.mxu0 %v4731
    %5335 = vmatprep.subr.bf16.mxu0 %v4741
    %5336 = vmatpush1.bf16.msra.mxu0 %v4740
    %5337 = vmatprep.subr.bf16.mxu0 %v4750
    %5338 = vmatpush1.bf16.msra.mxu0 %v4749
    %5339 = vmatprep.mubr.bf16.mxu0 %v3196
    %5340 = vmatmul.mubr.bf16.gmra.mrb[0].mxu0 %v3195
    %v5341 = vpop.f32.mrb[0].mxu0
    %v5342 = vadd.f32 %v5289, %v5341
    %v5343 = vpop.f32.mrb[0].mxu0
    %v5344 = vadd.f32 %v5291, %v5343
    %v5345 = vpop.f32.mrb[0].mxu0
    %v5346 = vadd.f32 %v5293, %v5345
    %v5347 = vpop.f32.mrb[0].mxu0
    %v5348 = vadd.f32 %v5295, %v5347
    %5349 = vmatprep.mubr.bf16.mxu0 %v3200
    %5350 = vmatmul.mubr.bf16.gmra.mrb[0].mxu0 %v3199
    %v5351 = vpop.f32.mrb[0].mxu0
    %v5352 = vadd.f32 %v5299, %v5351
    %v5353 = vpop.f32.mrb[0].mxu0
    %v5354 = vadd.f32 %v5301, %v5353
    %v5355 = vpop.f32.mrb[0].mxu0
    %v5356 = vadd.f32 %v5303, %v5355
    %v5357 = vpop.f32.mrb[0].mxu0
    %v5358 = vadd.f32 %v5305, %v5357
    %5359 = vdwg.mxu0
    %5360 = vmatprep.subr.bf16.mxu0 %v4473
    %5361 = vmatpush1.bf16.msra.mxu0 %v4472
    %5362 = vmatprep.subr.bf16.mxu0 %v4482
    %5363 = vmatpush1.bf16.msra.mxu0 %v4481
    %5364 = vmatprep.subr.bf16.mxu0 %v4491
    %5365 = vmatpush1.bf16.msra.mxu0 %v4490
    %5366 = vmatprep.subr.bf16.mxu0 %v4500
    %5367 = vmatpush1.bf16.msra.mxu0 %v4499
    %5368 = vmatprep.subr.bf16.mxu0 %v4509
    %5369 = vmatpush1.bf16.msra.mxu0 %v4508
    %5370 = vmatprep.subr.bf16.mxu0 %v4518
    %5371 = vmatpush1.bf16.msra.mxu0 %v4517
    %5372 = vmatprep.subr.bf16.mxu0 %v4527
    %5373 = vmatpush1.bf16.msra.mxu0 %v4526
    %5374 = vmatprep.subr.bf16.mxu0 %v4536
    %5375 = vmatpush1.bf16.msra.mxu0 %v4535
    %5376 = vmatprep.subr.bf16.mxu0 %v4545
    %5377 = vmatpush1.bf16.msra.mxu0 %v4544
    %5378 = vmatprep.subr.bf16.mxu0 %v4554
    %5379 = vmatpush1.bf16.msra.mxu0 %v4553
    %5380 = vmatprep.subr.bf16.mxu0 %v4563
    %5381 = vmatpush1.bf16.msra.mxu0 %v4562
    %5382 = vmatprep.subr.bf16.mxu0 %v4572
    %5383 = vmatpush1.bf16.msra.mxu0 %v4571
    %5384 = vmatprep.subr.bf16.mxu0 %v4581
    %5385 = vmatpush1.bf16.msra.mxu0 %v4580
    %5386 = vmatprep.subr.bf16.mxu0 %v4590
    %5387 = vmatpush1.bf16.msra.mxu0 %v4589
    %5388 = vmatprep.subr.bf16.mxu0 %v4599
    %5389 = vmatpush1.bf16.msra.mxu0 %v4598
    %5390 = vmatprep.subr.bf16.mxu0 %v4608
    %5391 = vmatpush1.bf16.msra.mxu0 %v4607
    %5392 = vmatprep.mubr.bf16.mxu0 %v3194
    %5393 = vmatmul.mubr.bf16.gmra.mrb[0].mxu0 %v3193
    %v5394 = vpop.f32.mrb[0].mxu0
    %v5395 = vadd.f32 %v3552, %v5394
    %v5396 = vpop.f32.mrb[0].mxu0
    %v5397 = vadd.f32 %v3556, %v5396
    %v5398 = vpop.f32.mrb[0].mxu0
    %v5399 = vadd.f32 %v3552, %v5398
    %v5400 = vpop.f32.mrb[0].mxu0
    %v5401 = vadd.f32 %v3556, %v5400
    %5402 = vmatprep.mubr.bf16.mxu0 %v3198
    %5403 = vmatmul.mubr.bf16.gmra.mrb[0].mxu0 %v3197
    %v5404 = vpop.f32.mrb[0].mxu0
    %v5405 = vadd.f32 %v3552, %v5404
    %v5406 = vpop.f32.mrb[0].mxu0
    %v5407 = vadd.f32 %v3556, %v5406
    %v5408 = vpop.f32.mrb[0].mxu0
    %v5409 = vadd.f32 %v3552, %v5408
    %v5410 = vpop.f32.mrb[0].mxu0
    %v5411 = vadd.f32 %v3556, %v5410
    %5412 = vdwg.mxu0
    %5413 = vmatprep.subr.bf16.mxu0 %v4617
    %5414 = vmatpush1.bf16.msra.mxu0 %v4616
    %5415 = vmatprep.subr.bf16.mxu0 %v4626
    %5416 = vmatpush1.bf16.msra.mxu0 %v4625
    %5417 = vmatprep.subr.bf16.mxu0 %v4635
    %5418 = vmatpush1.bf16.msra.mxu0 %v4634
    %5419 = vmatprep.subr.bf16.mxu0 %v4644
    %5420 = vmatpush1.bf16.msra.mxu0 %v4643
    %5421 = vmatprep.subr.bf16.mxu0 %v4653
    %5422 = vmatpush1.bf16.msra.mxu0 %v4652
    %5423 = vmatprep.subr.bf16.mxu0 %v4662
    %5424 = vmatpush1.bf16.msra.mxu0 %v4661
    %5425 = vmatprep.subr.bf16.mxu0 %v4671
    %5426 = vmatpush1.bf16.msra.mxu0 %v4670
    %5427 = vmatprep.subr.bf16.mxu0 %v4680
    %5428 = vmatpush1.bf16.msra.mxu0 %v4679
    %5429 = vmatprep.subr.bf16.mxu0 %v4689
    %5430 = vmatpush1.bf16.msra.mxu0 %v4688
    %5431 = vmatprep.subr.bf16.mxu0 %v4698
    %5432 = vmatpush1.bf16.msra.mxu0 %v4697
    %5433 = vmatprep.subr.bf16.mxu0 %v4707
    %5434 = vmatpush1.bf16.msra.mxu0 %v4706
    %5435 = vmatprep.subr.bf16.mxu0 %v4716
    %5436 = vmatpush1.bf16.msra.mxu0 %v4715
    %5437 = vmatprep.subr.bf16.mxu0 %v4725
    %5438 = vmatpush1.bf16.msra.mxu0 %v4724
    %5439 = vmatprep.subr.bf16.mxu0 %v4734
    %5440 = vmatpush1.bf16.msra.mxu0 %v4733
    %5441 = vmatprep.subr.bf16.mxu0 %v4743
    %5442 = vmatpush1.bf16.msra.mxu0 %v4742
    %5443 = vmatprep.subr.bf16.mxu0 %v4752
    %5444 = vmatpush1.bf16.msra.mxu0 %v4751
    %5445 = vmatprep.mubr.bf16.mxu0 %v3196
    %5446 = vmatmul.mubr.bf16.gmra.mrb[0].mxu0 %v3195
    %v5447 = vpop.f32.mrb[0].mxu0
    %v5448 = vadd.f32 %v5395, %v5447
    %v5449 = vpop.f32.mrb[0].mxu0
    %v5450 = vadd.f32 %v5397, %v5449
    %v5451 = vpop.f32.mrb[0].mxu0
    %v5452 = vadd.f32 %v5399, %v5451
    %v5453 = vpop.f32.mrb[0].mxu0
    %v5454 = vadd.f32 %v5401, %v5453
    %5455 = vmatprep.mubr.bf16.mxu0 %v3200
    %5456 = vmatmul.mubr.bf16.gmra.mrb[0].mxu0 %v3199
    %v5457 = vpop.f32.mrb[0].mxu0
    %v5458 = vadd.f32 %v5405, %v5457
    %v5459 = vpop.f32.mrb[0].mxu0
    %v5460 = vadd.f32 %v5407, %v5459
    %v5461 = vpop.f32.mrb[0].mxu0
    %v5462 = vadd.f32 %v5409, %v5461
    %v5463 = vpop.f32.mrb[0].mxu0
    %v5464 = vadd.f32 %v5411, %v5463
    %5465 = vdwg.mxu0
    %5466 = vmatprep.subr.bf16.mxu0 0
    %5467 = vmatpush1.bf16.msra.mxu0 %v4474
    %5468 = vmatprep.subr.bf16.mxu0 0
    %5469 = vmatpush1.bf16.msra.mxu0 %v4483
    %5470 = vmatprep.subr.bf16.mxu0 0
    %5471 = vmatpush1.bf16.msra.mxu0 %v4492
    %5472 = vmatprep.subr.bf16.mxu0 0
    %5473 = vmatpush1.bf16.msra.mxu0 %v4501
    %5474 = vmatprep.subr.bf16.mxu0 0
    %5475 = vmatpush1.bf16.msra.mxu0 %v4510
    %5476 = vmatprep.subr.bf16.mxu0 0
    %5477 = vmatpush1.bf16.msra.mxu0 %v4519
    %5478 = vmatprep.subr.bf16.mxu0 0
    %5479 = vmatpush1.bf16.msra.mxu0 %v4528
    %5480 = vmatprep.subr.bf16.mxu0 0
    %5481 = vmatpush1.bf16.msra.mxu0 %v4537
    %5482 = vmatprep.subr.bf16.mxu0 0
    %5483 = vmatpush1.bf16.msra.mxu0 %v4546
    %5484 = vmatprep.subr.bf16.mxu0 0
    %5485 = vmatpush1.bf16.msra.mxu0 %v4555
    %5486 = vmatprep.subr.bf16.mxu0 0
    %5487 = vmatpush1.bf16.msra.mxu0 %v4564
    %5488 = vmatprep.subr.bf16.mxu0 0
    %5489 = vmatpush1.bf16.msra.mxu0 %v4573
    %5490 = vmatprep.subr.bf16.mxu0 0
    %5491 = vmatpush1.bf16.msra.mxu0 %v4582
    %5492 = vmatprep.subr.bf16.mxu0 0
    %5493 = vmatpush1.bf16.msra.mxu0 %v4591
    %5494 = vmatprep.subr.bf16.mxu0 0
    %5495 = vmatpush1.bf16.msra.mxu0 %v4600
    %5496 = vmatprep.subr.bf16.mxu0 0
    %5497 = vmatpush1.bf16.msra.mxu0 %v4609
    %5498 = vmatprep.mubr.bf16.mxu0 %v3194
    %5499 = vmatmul.mubr.bf16.gmra.mrb[0].mxu0 %v3193
    %v5500 = vpop.f32.mrb[0].mxu0
    %v5501 = vadd.f32 %v3560, %v5500
    %v5502 = vpop.f32.mrb[0].mxu0
    %v5503 = vpop.f32.mrb[0].mxu0
    %v5504 = vadd.f32 %v3560, %v5503
    %v5505 = vpop.f32.mrb[0].mxu0
    %5506 = vmatprep.mubr.bf16.mxu0 %v3198
    %5507 = vmatmul.mubr.bf16.gmra.mrb[0].mxu0 %v3197
    %v5508 = vpop.f32.mrb[0].mxu0
    %v5509 = vadd.f32 %v3560, %v5508
    %v5510 = vpop.f32.mrb[0].mxu0
    %v5511 = vpop.f32.mrb[0].mxu0
    %v5512 = vadd.f32 %v3560, %v5511
    %v5513 = vpop.f32.mrb[0].mxu0
    %5514 = vdwg.mxu0
    %5515 = vmatprep.subr.bf16.mxu0 0
    %5516 = vmatpush1.bf16.msra.mxu0 %v4618
    %5517 = vmatprep.subr.bf16.mxu0 0
    %5518 = vmatpush1.bf16.msra.mxu0 %v4627
    %5519 = vmatprep.subr.bf16.mxu0 0
    %5520 = vmatpush1.bf16.msra.mxu0 %v4636
    %5521 = vmatprep.subr.bf16.mxu0 0
    %5522 = vmatpush1.bf16.msra.mxu0 %v4645
    %5523 = vmatprep.subr.bf16.mxu0 0
    %5524 = vmatpush1.bf16.msra.mxu0 %v4654
    %5525 = vmatprep.subr.bf16.mxu0 0
    %5526 = vmatpush1.bf16.msra.mxu0 %v4663
    %5527 = vmatprep.subr.bf16.mxu0 0
    %5528 = vmatpush1.bf16.msra.mxu0 %v4672
    %5529 = vmatprep.subr.bf16.mxu0 0
    %5530 = vmatpush1.bf16.msra.mxu0 %v4681
    %5531 = vmatprep.subr.bf16.mxu0 0
    %5532 = vmatpush1.bf16.msra.mxu0 %v4690
    %5533 = vmatprep.subr.bf16.mxu0 0
    %5534 = vmatpush1.bf16.msra.mxu0 %v4699
    %5535 = vmatprep.subr.bf16.mxu0 0
    %5536 = vmatpush1.bf16.msra.mxu0 %v4708
    %5537 = vmatprep.subr.bf16.mxu0 0
    %5538 = vmatpush1.bf16.msra.mxu0 %v4717
    %5539 = vmatprep.subr.bf16.mxu0 0
    %5540 = vmatpush1.bf16.msra.mxu0 %v4726
    %5541 = vmatprep.subr.bf16.mxu0 0
    %5542 = vmatpush1.bf16.msra.mxu0 %v4735
    %5543 = vmatprep.subr.bf16.mxu0 0
    %5544 = vmatpush1.bf16.msra.mxu0 %v4744
    %5545 = vmatprep.subr.bf16.mxu0 0
    %5546 = vmatpush1.bf16.msra.mxu0 %v4753
    %5547 = vmatprep.mubr.bf16.mxu0 %v3196
    %5548 = vmatmul.mubr.bf16.gmra.mrb[0].mxu0 %v3195
    %v5549 = vpop.f32.mrb[0].mxu0
    %v5550 = vadd.f32 %v5501, %v5549
    %v5551 = vpop.f32.mrb[0].mxu0
    %v5552 = vpop.f32.mrb[0].mxu0
    %v5553 = vadd.f32 %v5504, %v5552
    %v5554 = vpop.f32.mrb[0].mxu0
    %5555 = vmatprep.mubr.bf16.mxu0 %v3200
    %5556 = vmatmul.mubr.bf16.gmra.mrb[0].mxu0 %v3199
    %v5557 = vpop.f32.mrb[0].mxu0
    %v5558 = vadd.f32 %v5509, %v5557
    %v5559 = vpop.f32.mrb[0].mxu0
    %v5560 = vpop.f32.mrb[0].mxu0
    %v5561 = vadd.f32 %v5512, %v5560
    %v5562 = vpop.f32.mrb[0].mxu0
    %5563 = vdwg.mxu0
    %v5564 = vmax.f32 %v5130, 0.0
    %v5565 = vmax.f32 %v5132, 0.0
    %v5566 = vmax.f32 %v5236, 0.0
    %v5567 = vmax.f32 %v5238, 0.0
    %v5568 = vmax.f32 %v5342, 0.0
    %v5569 = vmax.f32 %v5344, 0.0
    %v5570 = vmax.f32 %v5448, 0.0
    %v5571 = vmax.f32 %v5450, 0.0
    %v5572 = vmax.f32 %v5550, 0.0
    %v5573 = vmax.f32 %v5134, 0.0
    %v5574 = vmax.f32 %v5136, 0.0
    %v5575 = vmax.f32 %v5240, 0.0
    %v5576 = vmax.f32 %v5242, 0.0
    %v5577 = vmax.f32 %v5346, 0.0
    %v5578 = vmax.f32 %v5348, 0.0
    %v5579 = vmax.f32 %v5452, 0.0
    %v5580 = vmax.f32 %v5454, 0.0
    %v5581 = vmax.f32 %v5553, 0.0
    %v5582 = vmax.f32 %v5140, 0.0
    %v5583 = vmax.f32 %v5142, 0.0
    %v5584 = vmax.f32 %v5246, 0.0
    %v5585 = vmax.f32 %v5248, 0.0
    %v5586 = vmax.f32 %v5352, 0.0
    %v5587 = vmax.f32 %v5354, 0.0
    %v5588 = vmax.f32 %v5458, 0.0
    %v5589 = vmax.f32 %v5460, 0.0
    %v5590 = vmax.f32 %v5558, 0.0
    %v5591 = vmax.f32 %v5144, 0.0
    %v5592 = vmax.f32 %v5146, 0.0
    %v5593 = vmax.f32 %v5250, 0.0
    %v5594 = vmax.f32 %v5252, 0.0
    %v5595 = vmax.f32 %v5356, 0.0
    %v5596 = vmax.f32 %v5358, 0.0
    %v5597 = vmax.f32 %v5462, 0.0
    %v5598 = vmax.f32 %v5464, 0.0
    %v5599 = vmax.f32 %v5561, 0.0
    %v5600 = vpack.c.bf16 %v5573, %v5564
    %v5601 = vpack.c.bf16 %v5574, %v5565
    %v5602 = vpack.c.bf16 %v5575, %v5566
    %v5603 = vpack.c.bf16 %v5576, %v5567
    %v5604 = vpack.c.bf16 %v5577, %v5568
    %v5605 = vpack.c.bf16 %v5578, %v5569
    %v5606 = vpack.c.bf16 %v5579, %v5570
    %v5607 = vpack.c.bf16 %v5580, %v5571
    %v5608 = vpack.c.bf16 %v5581, %v5572
    %v5609 = vpack.c.bf16 %v5591, %v5582
    %v5610 = vpack.c.bf16 %v5592, %v5583
    %v5611 = vpack.c.bf16 %v5593, %v5584
    %v5612 = vpack.c.bf16 %v5594, %v5585
    %v5613 = vpack.c.bf16 %v5595, %v5586
    %v5614 = vpack.c.bf16 %v5596, %v5587
    %v5615 = vpack.c.bf16 %v5597, %v5588
    %v5616 = vpack.c.bf16 %v5598, %v5589
    %v5617 = vpack.c.bf16 %v5599, %v5590
    %v5636 = vunpack.c.l.b16 %v5600
    %v5637 = vunpack.c.l.b16 %v5601
    %v5638 = vunpack.c.l.b16 %v5602
    %v5639 = vunpack.c.l.b16 %v5603
    %v5640 = vunpack.c.l.b16 %v5604
    %v5641 = vunpack.c.l.b16 %v5605
    %v5642 = vunpack.c.l.b16 %v5606
    %v5643 = vunpack.c.l.b16 %v5607
    %v5644 = vunpack.c.l.b16 %v5608
    %v5645 = vunpack.c.h.b16 %v5600
    %v5646 = vunpack.c.h.b16 %v5601
    %v5647 = vunpack.c.h.b16 %v5602
    %v5648 = vunpack.c.h.b16 %v5603
    %v5649 = vunpack.c.h.b16 %v5604
    %v5650 = vunpack.c.h.b16 %v5605
    %v5651 = vunpack.c.h.b16 %v5606
    %v5652 = vunpack.c.h.b16 %v5607
    %v5653 = vunpack.c.h.b16 %v5608
    %v5654 = vunpack.c.l.b16 %v5609
    %v5655 = vunpack.c.l.b16 %v5610
    %v5656 = vunpack.c.l.b16 %v5611
    %v5657 = vunpack.c.l.b16 %v5612
    %v5658 = vunpack.c.l.b16 %v5613
    %v5659 = vunpack.c.l.b16 %v5614
    %v5660 = vunpack.c.l.b16 %v5615
    %v5661 = vunpack.c.l.b16 %v5616
    %v5662 = vunpack.c.l.b16 %v5617
    %v5663 = vunpack.c.h.b16 %v5609
    %v5664 = vunpack.c.h.b16 %v5610
    %v5665 = vunpack.c.h.b16 %v5611
    %v5666 = vunpack.c.h.b16 %v5612
    %v5667 = vunpack.c.h.b16 %v5613
    %v5668 = vunpack.c.h.b16 %v5614
    %v5669 = vunpack.c.h.b16 %v5615
    %v5670 = vunpack.c.h.b16 %v5616
    %v5671 = vunpack.c.h.b16 %v5617
    %v5672 = vpack.c.b16 %v5637, %v5636
    %v5673 = vpack.c.b16 %v5639, %v5638
    %v5674 = vpack.c.b16 %v5641, %v5640
    %v5675 = vpack.c.b16 %v5643, %v5642
    %v5676 = vpack.c.b16 %v5644, %v5644
    %v5677 = vpack.c.b16 %v5646, %v5645
    %v5678 = vpack.c.b16 %v5648, %v5647
    %v5679 = vpack.c.b16 %v5650, %v5649
    %v5680 = vpack.c.b16 %v5652, %v5651
    %v5681 = vpack.c.b16 %v5653, %v5653
    %v5682 = vpack.c.b16 %v5655, %v5654
    %v5683 = vpack.c.b16 %v5657, %v5656
    %v5684 = vpack.c.b16 %v5659, %v5658
    %v5685 = vpack.c.b16 %v5661, %v5660
    %v5686 = vpack.c.b16 %v5662, %v5662
    %v5687 = vpack.c.b16 %v5664, %v5663
    %v5688 = vpack.c.b16 %v5666, %v5665
    %v5689 = vpack.c.b16 %v5668, %v5667
    %v5690 = vpack.c.b16 %v5670, %v5669
    %v5691 = vpack.c.b16 %v5671, %v5671
    %5712 = vst [vmem:[#allocation16] sm:$0xff] %v5672
    %5713 = vst [vmem:[#allocation16 + $0x8] sm:$0xff] %v5673
    %5714 = vst [vmem:[#allocation16 + $0x10] sm:$0xff] %v5674
    %5715 = vst [vmem:[#allocation16 + $0x18] sm:$0xff] %v5675
    %5716 = vst [vmem:[#allocation16 + $0x20] sm:$0xf] %v5676
    %5717 = vst [vmem:[#allocation16 + $0x24] sm:$0xff] %v5677
    %5718 = vst [vmem:[#allocation16 + $0x2c] sm:$0xff] %v5678
    %5719 = vst [vmem:[#allocation16 + $0x34] sm:$0xff] %v5679
    %5720 = vst [vmem:[#allocation16 + $0x3c] sm:$0xff] %v5680
    %5721 = vst [vmem:[#allocation16 + $0x44] sm:$0xf] %v5681
    %5722 = vst [vmem:[#allocation16 + $0x48] sm:$0xff] %v5682
    %5723 = vst [vmem:[#allocation16 + $0x50] sm:$0xff] %v5683
    %5724 = vst [vmem:[#allocation16 + $0x58] sm:$0xff] %v5684
    %5725 = vst [vmem:[#allocation16 + $0x60] sm:$0xff] %v5685
    %5726 = vst [vmem:[#allocation16 + $0x68] sm:$0xf] %v5686
    %5727 = vst [vmem:[#allocation16 + $0x6c] sm:$0x77] %v5687
    %5728 = vst [vmem:[#allocation16 + $0x74] sm:$0x77] %v5688
    %5729 = vst [vmem:[#allocation16 + $0x7c] sm:$0x77] %v5689
    %5730 = vst [vmem:[#allocation16 + $0x84] sm:$0x77] %v5690
    %5731 = vst [vmem:[#allocation16 + $0x8c] sm:$0x7] %v5691
    %v5732 = vld [vmem:[#allocation14] sm:$0xff]
    %v5733 = vld [vmem:[#allocation14 + $0x8] sm:$0xff]
    %v5734 = vld [vmem:[#allocation14 + $0x10] sm:$0xff]
    %v5735 = vld [vmem:[#allocation14 + $0x18] sm:$0xff]
    %v5736 = vld [vmem:[#allocation14 + $0x20] sm:$0xf]
    %v5737 = vld [vmem:[#allocation14 + $0x24] sm:$0xff]
    %v5738 = vld [vmem:[#allocation14 + $0x2c] sm:$0xff]
    %v5739 = vld [vmem:[#allocation14 + $0x34] sm:$0xff]
    %v5740 = vld [vmem:[#allocation14 + $0x3c] sm:$0xff]
    %v5741 = vld [vmem:[#allocation14 + $0x44] sm:$0xf]
    %v5742 = vld [vmem:[#allocation14 + $0x48] sm:$0xff]
    %v5743 = vld [vmem:[#allocation14 + $0x50] sm:$0xff]
    %v5744 = vld [vmem:[#allocation14 + $0x58] sm:$0xff]
    %v5745 = vld [vmem:[#allocation14 + $0x60] sm:$0xff]
    %v5746 = vld [vmem:[#allocation14 + $0x68] sm:$0xf]
    %v5747 = vld [vmem:[#allocation14 + $0x6c] sm:$0xff]
    %v5748 = vld [vmem:[#allocation14 + $0x74] sm:$0xff]
    %v5749 = vld [vmem:[#allocation14 + $0x7c] sm:$0xff]
    %v5750 = vld [vmem:[#allocation14 + $0x84] sm:$0xff]
    %v5751 = vld [vmem:[#allocation14 + $0x8c] sm:$0xf]
    %v5752 = vld [vmem:[#allocation14 + $0x90] sm:$0xff]
    %v5753 = vld [vmem:[#allocation14 + $0x98] sm:$0xff]
    %v5754 = vld [vmem:[#allocation14 + $0xa0] sm:$0xff]
    %v5755 = vld [vmem:[#allocation14 + $0xa8] sm:$0xff]
    %v5756 = vld [vmem:[#allocation14 + $0xb0] sm:$0xf]
    %v5757 = vld [vmem:[#allocation14 + $0xb4] sm:$0xff]
    %v5758 = vld [vmem:[#allocation14 + $0xbc] sm:$0xff]
    %v5759 = vld [vmem:[#allocation14 + $0xc4] sm:$0xff]
    %v5760 = vld [vmem:[#allocation14 + $0xcc] sm:$0xff]
    %v5761 = vld [vmem:[#allocation14 + $0xd4] sm:$0xf]
    %v5762 = vld [vmem:[#allocation14 + $0xd8] sm:$0xff]
    %v5763 = vld [vmem:[#allocation14 + $0xe0] sm:$0xff]
    %v5764 = vld [vmem:[#allocation14 + $0xe8] sm:$0xff]
    %v5765 = vld [vmem:[#allocation14 + $0xf0] sm:$0xff]
    %v5766 = vld [vmem:[#allocation14 + $0xf8] sm:$0xf]
    %v5767 = vld [vmem:[#allocation14 + $0xfc] sm:$0xff]
    %v5768 = vld [vmem:[#allocation14 + $0x104] sm:$0xff]
    %v5769 = vld [vmem:[#allocation14 + $0x10c] sm:$0xff]
    %v5770 = vld [vmem:[#allocation14 + $0x114] sm:$0xff]
    %v5771 = vld [vmem:[#allocation14 + $0x11c] sm:$0xf]
    %v5772 = vld [vmem:[#allocation14 + $0x120] sm:$0xff]
    %v5773 = vld [vmem:[#allocation14 + $0x128] sm:$0xff]
    %v5774 = vld [vmem:[#allocation14 + $0x130] sm:$0xff]
    %v5775 = vld [vmem:[#allocation14 + $0x138] sm:$0xff]
    %v5776 = vld [vmem:[#allocation14 + $0x140] sm:$0xf]
    %v5777 = vld [vmem:[#allocation14 + $0x144] sm:$0xff]
    %v5778 = vld [vmem:[#allocation14 + $0x14c] sm:$0xff]
    %v5779 = vld [vmem:[#allocation14 + $0x154] sm:$0xff]
    %v5780 = vld [vmem:[#allocation14 + $0x15c] sm:$0xff]
    %v5781 = vld [vmem:[#allocation14 + $0x164] sm:$0xf]
    %v5782 = vld [vmem:[#allocation14 + $0x168] sm:$0xff]
    %v5783 = vld [vmem:[#allocation14 + $0x170] sm:$0xff]
    %v5784 = vld [vmem:[#allocation14 + $0x178] sm:$0xff]
    %v5785 = vld [vmem:[#allocation14 + $0x180] sm:$0xff]
    %v5786 = vld [vmem:[#allocation14 + $0x188] sm:$0xf]
    %v5787 = vld [vmem:[#allocation14 + $0x18c] sm:$0xff]
    %v5788 = vld [vmem:[#allocation14 + $0x194] sm:$0xff]
    %v5789 = vld [vmem:[#allocation14 + $0x19c] sm:$0xff]
    %v5790 = vld [vmem:[#allocation14 + $0x1a4] sm:$0xff]
    %v5791 = vld [vmem:[#allocation14 + $0x1ac] sm:$0xf]
    %v5792 = vld [vmem:[#allocation14 + $0x1b0] sm:$0xff]
    %v5793 = vld [vmem:[#allocation14 + $0x1b8] sm:$0xff]
    %v5794 = vld [vmem:[#allocation14 + $0x1c0] sm:$0xff]
    %v5795 = vld [vmem:[#allocation14 + $0x1c8] sm:$0xff]
    %v5796 = vld [vmem:[#allocation14 + $0x1d0] sm:$0xf]
    %v5797 = vld [vmem:[#allocation14 + $0x1d4] sm:$0xff]
    %v5798 = vld [vmem:[#allocation14 + $0x1dc] sm:$0xff]
    %v5799 = vld [vmem:[#allocation14 + $0x1e4] sm:$0xff]
    %v5800 = vld [vmem:[#allocation14 + $0x1ec] sm:$0xff]
    %v5801 = vld [vmem:[#allocation14 + $0x1f4] sm:$0xf]
    %v5802 = vld [vmem:[#allocation14 + $0x1f8] sm:$0xff]
    %v5803 = vld [vmem:[#allocation14 + $0x200] sm:$0xff]
    %v5804 = vld [vmem:[#allocation14 + $0x208] sm:$0xff]
    %v5805 = vld [vmem:[#allocation14 + $0x210] sm:$0xff]
    %v5806 = vld [vmem:[#allocation14 + $0x218] sm:$0xf]
    %v5807 = vld [vmem:[#allocation14 + $0x21c] sm:$0xff]
    %v5808 = vld [vmem:[#allocation14 + $0x224] sm:$0xff]
    %v5809 = vld [vmem:[#allocation14 + $0x22c] sm:$0xff]
    %v5810 = vld [vmem:[#allocation14 + $0x234] sm:$0xff]
    %v5811 = vld [vmem:[#allocation14 + $0x23c] sm:$0xf]
    %v5812 = vld [vmem:[#allocation14 + $0x240] sm:$0xff]
    %v5813 = vld [vmem:[#allocation14 + $0x248] sm:$0xff]
    %v5814 = vld [vmem:[#allocation14 + $0x250] sm:$0xff]
    %v5815 = vld [vmem:[#allocation14 + $0x258] sm:$0xff]
    %v5816 = vld [vmem:[#allocation14 + $0x260] sm:$0xf]
    %v5817 = vld [vmem:[#allocation14 + $0x264] sm:$0xff]
    %v5818 = vld [vmem:[#allocation14 + $0x26c] sm:$0xff]
    %v5819 = vld [vmem:[#allocation14 + $0x274] sm:$0xff]
    %v5820 = vld [vmem:[#allocation14 + $0x27c] sm:$0xff]
    %v5821 = vld [vmem:[#allocation14 + $0x284] sm:$0xf]
    %v5822 = vld [vmem:[#allocation14 + $0x288] sm:$0xff]
    %v5823 = vld [vmem:[#allocation14 + $0x290] sm:$0xff]
    %v5824 = vld [vmem:[#allocation14 + $0x298] sm:$0xff]
    %v5825 = vld [vmem:[#allocation14 + $0x2a0] sm:$0xff]
    %v5826 = vld [vmem:[#allocation14 + $0x2a8] sm:$0xf]
    %v5827 = vld [vmem:[#allocation14 + $0x2ac] sm:$0xff]
    %v5828 = vld [vmem:[#allocation14 + $0x2b4] sm:$0xff]
    %v5829 = vld [vmem:[#allocation14 + $0x2bc] sm:$0xff]
    %v5830 = vld [vmem:[#allocation14 + $0x2c4] sm:$0xff]
    %v5831 = vld [vmem:[#allocation14 + $0x2cc] sm:$0xf]
    %v5832 = vld [vmem:[#allocation14 + $0x2d0] sm:$0xff]
    %v5833 = vld [vmem:[#allocation14 + $0x2d8] sm:$0xff]
    %v5834 = vld [vmem:[#allocation14 + $0x2e0] sm:$0xff]
    %v5835 = vld [vmem:[#allocation14 + $0x2e8] sm:$0xff]
    %v5836 = vld [vmem:[#allocation14 + $0x2f0] sm:$0xf]
    %v5837 = vld [vmem:[#allocation14 + $0x2f4] sm:$0xff]
    %v5838 = vld [vmem:[#allocation14 + $0x2fc] sm:$0xff]
    %v5839 = vld [vmem:[#allocation14 + $0x304] sm:$0xff]
    %v5840 = vld [vmem:[#allocation14 + $0x30c] sm:$0xff]
    %v5841 = vld [vmem:[#allocation14 + $0x314] sm:$0xf]
    %v5842 = vld [vmem:[#allocation14 + $0x318] sm:$0xff]
    %v5843 = vld [vmem:[#allocation14 + $0x320] sm:$0xff]
    %v5844 = vld [vmem:[#allocation14 + $0x328] sm:$0xff]
    %v5845 = vld [vmem:[#allocation14 + $0x330] sm:$0xff]
    %v5846 = vld [vmem:[#allocation14 + $0x338] sm:$0xf]
    %v5847 = vld [vmem:[#allocation14 + $0x33c] sm:$0xff]
    %v5848 = vld [vmem:[#allocation14 + $0x344] sm:$0xff]
    %v5849 = vld [vmem:[#allocation14 + $0x34c] sm:$0xff]
    %v5850 = vld [vmem:[#allocation14 + $0x354] sm:$0xff]
    %v5851 = vld [vmem:[#allocation14 + $0x35c] sm:$0xf]
    %v5852 = vld [vmem:[#allocation14 + $0x360] sm:$0xff]
    %v5853 = vld [vmem:[#allocation14 + $0x368] sm:$0xff]
    %v5854 = vld [vmem:[#allocation14 + $0x370] sm:$0xff]
    %v5855 = vld [vmem:[#allocation14 + $0x378] sm:$0xff]
    %v5856 = vld [vmem:[#allocation14 + $0x380] sm:$0xf]
    %v5857 = vld [vmem:[#allocation14 + $0x384] sm:$0xff]
    %v5858 = vld [vmem:[#allocation14 + $0x38c] sm:$0xff]
    %v5859 = vld [vmem:[#allocation14 + $0x394] sm:$0xff]
    %v5860 = vld [vmem:[#allocation14 + $0x39c] sm:$0xff]
    %v5861 = vld [vmem:[#allocation14 + $0x3a4] sm:$0xf]
    %v5862 = vld [vmem:[#allocation14 + $0x3a8] sm:$0xff]
    %v5863 = vld [vmem:[#allocation14 + $0x3b0] sm:$0xff]
    %v5864 = vld [vmem:[#allocation14 + $0x3b8] sm:$0xff]
    %v5865 = vld [vmem:[#allocation14 + $0x3c0] sm:$0xff]
    %v5866 = vld [vmem:[#allocation14 + $0x3c8] sm:$0xf]
    %v5867 = vld [vmem:[#allocation14 + $0x3cc] sm:$0xff]
    %v5868 = vld [vmem:[#allocation14 + $0x3d4] sm:$0xff]
    %v5869 = vld [vmem:[#allocation14 + $0x3dc] sm:$0xff]
    %v5870 = vld [vmem:[#allocation14 + $0x3e4] sm:$0xff]
    %v5871 = vld [vmem:[#allocation14 + $0x3ec] sm:$0xf]
    %v5872 = vld [vmem:[#allocation14 + $0x3f0] sm:$0xff]
    %v5873 = vld [vmem:[#allocation14 + $0x3f8] sm:$0xff]
    %v5874 = vld [vmem:[#allocation14 + $0x400] sm:$0xff]
    %v5875 = vld [vmem:[#allocation14 + $0x408] sm:$0xff]
    %v5876 = vld [vmem:[#allocation14 + $0x410] sm:$0xf]
    %v5877 = vld [vmem:[#allocation14 + $0x414] sm:$0xff]
    %v5878 = vld [vmem:[#allocation14 + $0x41c] sm:$0xff]
    %v5879 = vld [vmem:[#allocation14 + $0x424] sm:$0xff]
    %v5880 = vld [vmem:[#allocation14 + $0x42c] sm:$0xff]
    %v5881 = vld [vmem:[#allocation14 + $0x434] sm:$0xf]
    %v5882 = vld [vmem:[#allocation14 + $0x438] sm:$0xff]
    %v5883 = vld [vmem:[#allocation14 + $0x440] sm:$0xff]
    %v5884 = vld [vmem:[#allocation14 + $0x448] sm:$0xff]
    %v5885 = vld [vmem:[#allocation14 + $0x450] sm:$0xff]
    %v5886 = vld [vmem:[#allocation14 + $0x458] sm:$0xf]
    %v5887 = vld [vmem:[#allocation14 + $0x45c] sm:$0xff]
    %v5888 = vld [vmem:[#allocation14 + $0x464] sm:$0xff]
    %v5889 = vld [vmem:[#allocation14 + $0x46c] sm:$0xff]
    %v5890 = vld [vmem:[#allocation14 + $0x474] sm:$0xff]
    %v5891 = vld [vmem:[#allocation14 + $0x47c] sm:$0xf]
    %v5892 = vld [vmem:[#allocation14 + $0x480] sm:$0xff]
    %v5893 = vld [vmem:[#allocation14 + $0x488] sm:$0xff]
    %v5894 = vld [vmem:[#allocation14 + $0x490] sm:$0xff]
    %v5895 = vld [vmem:[#allocation14 + $0x498] sm:$0xff]
    %v5896 = vld [vmem:[#allocation14 + $0x4a0] sm:$0xf]
    %v5897 = vld [vmem:[#allocation14 + $0x4a4] sm:$0xff]
    %v5898 = vld [vmem:[#allocation14 + $0x4ac] sm:$0xff]
    %v5899 = vld [vmem:[#allocation14 + $0x4b4] sm:$0xff]
    %v5900 = vld [vmem:[#allocation14 + $0x4bc] sm:$0xff]
    %v5901 = vld [vmem:[#allocation14 + $0x4c4] sm:$0xf]
    %v5902 = vld [vmem:[#allocation14 + $0x4c8] sm:$0xff]
    %v5903 = vld [vmem:[#allocation14 + $0x4d0] sm:$0xff]
    %v5904 = vld [vmem:[#allocation14 + $0x4d8] sm:$0xff]
    %v5905 = vld [vmem:[#allocation14 + $0x4e0] sm:$0xff]
    %v5906 = vld [vmem:[#allocation14 + $0x4e8] sm:$0xf]
    %v5907 = vld [vmem:[#allocation14 + $0x4ec] sm:$0xff]
    %v5908 = vld [vmem:[#allocation14 + $0x4f4] sm:$0xff]
    %v5909 = vld [vmem:[#allocation14 + $0x4fc] sm:$0xff]
    %v5910 = vld [vmem:[#allocation14 + $0x504] sm:$0xff]
    %v5911 = vld [vmem:[#allocation14 + $0x50c] sm:$0xf]
    %v5912 = vld [vmem:[#allocation14 + $0x510] sm:$0xff]
    %v5913 = vld [vmem:[#allocation14 + $0x518] sm:$0xff]
    %v5914 = vld [vmem:[#allocation14 + $0x520] sm:$0xff]
    %v5915 = vld [vmem:[#allocation14 + $0x528] sm:$0xff]
    %v5916 = vld [vmem:[#allocation14 + $0x530] sm:$0xf]
    %v5917 = vld [vmem:[#allocation14 + $0x534] sm:$0xff]
    %v5918 = vld [vmem:[#allocation14 + $0x53c] sm:$0xff]
    %v5919 = vld [vmem:[#allocation14 + $0x544] sm:$0xff]
    %v5920 = vld [vmem:[#allocation14 + $0x54c] sm:$0xff]
    %v5921 = vld [vmem:[#allocation14 + $0x554] sm:$0xf]
    %v5922 = vld [vmem:[#allocation14 + $0x558] sm:$0xff]
    %v5923 = vld [vmem:[#allocation14 + $0x560] sm:$0xff]
    %v5924 = vld [vmem:[#allocation14 + $0x568] sm:$0xff]
    %v5925 = vld [vmem:[#allocation14 + $0x570] sm:$0xff]
    %v5926 = vld [vmem:[#allocation14 + $0x578] sm:$0xf]
    %v5927 = vld [vmem:[#allocation14 + $0x57c] sm:$0xff]
    %v5928 = vld [vmem:[#allocation14 + $0x584] sm:$0xff]
    %v5929 = vld [vmem:[#allocation14 + $0x58c] sm:$0xff]
    %v5930 = vld [vmem:[#allocation14 + $0x594] sm:$0xff]
    %v5931 = vld [vmem:[#allocation14 + $0x59c] sm:$0xf]
    %v5932 = vld [vmem:[#allocation14 + $0x5a0] sm:$0xff]
    %v5933 = vld [vmem:[#allocation14 + $0x5a8] sm:$0xff]
    %v5934 = vld [vmem:[#allocation14 + $0x5b0] sm:$0xff]
    %v5935 = vld [vmem:[#allocation14 + $0x5b8] sm:$0xff]
    %v5936 = vld [vmem:[#allocation14 + $0x5c0] sm:$0xf]
    %v5937 = vld [vmem:[#allocation14 + $0x5c4] sm:$0xff]
    %v5938 = vld [vmem:[#allocation14 + $0x5cc] sm:$0xff]
    %v5939 = vld [vmem:[#allocation14 + $0x5d4] sm:$0xff]
    %v5940 = vld [vmem:[#allocation14 + $0x5dc] sm:$0xff]
    %v5941 = vld [vmem:[#allocation14 + $0x5e4] sm:$0xf]
    %v5942 = vld [vmem:[#allocation14 + $0x5e8] sm:$0xff]
    %v5943 = vld [vmem:[#allocation14 + $0x5f0] sm:$0xff]
    %v5944 = vld [vmem:[#allocation14 + $0x5f8] sm:$0xff]
    %v5945 = vld [vmem:[#allocation14 + $0x600] sm:$0xff]
    %v5946 = vld [vmem:[#allocation14 + $0x608] sm:$0xf]
    %v5947 = vld [vmem:[#allocation14 + $0x60c] sm:$0xff]
    %v5948 = vld [vmem:[#allocation14 + $0x614] sm:$0xff]
    %v5949 = vld [vmem:[#allocation14 + $0x61c] sm:$0xff]
    %v5950 = vld [vmem:[#allocation14 + $0x624] sm:$0xff]
    %v5951 = vld [vmem:[#allocation14 + $0x62c] sm:$0xf]
    %v5952 = vld [vmem:[#allocation14 + $0x630] sm:$0xff]
    %v5953 = vld [vmem:[#allocation14 + $0x638] sm:$0xff]
    %v5954 = vld [vmem:[#allocation14 + $0x640] sm:$0xff]
    %v5955 = vld [vmem:[#allocation14 + $0x648] sm:$0xff]
    %v5956 = vld [vmem:[#allocation14 + $0x650] sm:$0xf]
    %v5957 = vld [vmem:[#allocation14 + $0x654] sm:$0xff]
    %v5958 = vld [vmem:[#allocation14 + $0x65c] sm:$0xff]
    %v5959 = vld [vmem:[#allocation14 + $0x664] sm:$0xff]
    %v5960 = vld [vmem:[#allocation14 + $0x66c] sm:$0xff]
    %v5961 = vld [vmem:[#allocation14 + $0x674] sm:$0xf]
    %v5962 = vld [vmem:[#allocation14 + $0x678] sm:$0xff]
    %v5963 = vld [vmem:[#allocation14 + $0x680] sm:$0xff]
    %v5964 = vld [vmem:[#allocation14 + $0x688] sm:$0xff]
    %v5965 = vld [vmem:[#allocation14 + $0x690] sm:$0xff]
    %v5966 = vld [vmem:[#allocation14 + $0x698] sm:$0xf]
    %v5967 = vld [vmem:[#allocation14 + $0x69c] sm:$0xff]
    %v5968 = vld [vmem:[#allocation14 + $0x6a4] sm:$0xff]
    %v5969 = vld [vmem:[#allocation14 + $0x6ac] sm:$0xff]
    %v5970 = vld [vmem:[#allocation14 + $0x6b4] sm:$0xff]
    %v5971 = vld [vmem:[#allocation14 + $0x6bc] sm:$0xf]
    %v5972 = vld [vmem:[#allocation14 + $0x6c0] sm:$0xff]
    %v5973 = vld [vmem:[#allocation14 + $0x6c8] sm:$0xff]
    %v5974 = vld [vmem:[#allocation14 + $0x6d0] sm:$0xff]
    %v5975 = vld [vmem:[#allocation14 + $0x6d8] sm:$0xff]
    %v5976 = vld [vmem:[#allocation14 + $0x6e0] sm:$0xf]
    %v5977 = vld [vmem:[#allocation14 + $0x6e4] sm:$0xff]
    %v5978 = vld [vmem:[#allocation14 + $0x6ec] sm:$0xff]
    %v5979 = vld [vmem:[#allocation14 + $0x6f4] sm:$0xff]
    %v5980 = vld [vmem:[#allocation14 + $0x6fc] sm:$0xff]
    %v5981 = vld [vmem:[#allocation14 + $0x704] sm:$0xf]
    %v5982 = vld [vmem:[#allocation14 + $0x708] sm:$0xff]
    %v5983 = vld [vmem:[#allocation14 + $0x710] sm:$0xff]
    %v5984 = vld [vmem:[#allocation14 + $0x718] sm:$0xff]
    %v5985 = vld [vmem:[#allocation14 + $0x720] sm:$0xff]
    %v5986 = vld [vmem:[#allocation14 + $0x728] sm:$0xf]
    %v5987 = vld [vmem:[#allocation14 + $0x72c] sm:$0xff]
    %v5988 = vld [vmem:[#allocation14 + $0x734] sm:$0xff]
    %v5989 = vld [vmem:[#allocation14 + $0x73c] sm:$0xff]
    %v5990 = vld [vmem:[#allocation14 + $0x744] sm:$0xff]
    %v5991 = vld [vmem:[#allocation14 + $0x74c] sm:$0xf]
    %v5992 = vld [vmem:[#allocation14 + $0x750] sm:$0xff]
    %v5993 = vld [vmem:[#allocation14 + $0x758] sm:$0xff]
    %v5994 = vld [vmem:[#allocation14 + $0x760] sm:$0xff]
    %v5995 = vld [vmem:[#allocation14 + $0x768] sm:$0xff]
    %v5996 = vld [vmem:[#allocation14 + $0x770] sm:$0xf]
    %v5997 = vld [vmem:[#allocation14 + $0x774] sm:$0xff]
    %v5998 = vld [vmem:[#allocation14 + $0x77c] sm:$0xff]
    %v5999 = vld [vmem:[#allocation14 + $0x784] sm:$0xff]
    %v6000 = vld [vmem:[#allocation14 + $0x78c] sm:$0xff]
    %v6001 = vld [vmem:[#allocation14 + $0x794] sm:$0xf]
    %v6002 = vld [vmem:[#allocation14 + $0x798] sm:$0xff]
    %v6003 = vld [vmem:[#allocation14 + $0x7a0] sm:$0xff]
    %v6004 = vld [vmem:[#allocation14 + $0x7a8] sm:$0xff]
    %v6005 = vld [vmem:[#allocation14 + $0x7b0] sm:$0xff]
    %v6006 = vld [vmem:[#allocation14 + $0x7b8] sm:$0xf]
    %v6007 = vld [vmem:[#allocation14 + $0x7bc] sm:$0xff]
    %v6008 = vld [vmem:[#allocation14 + $0x7c4] sm:$0xff]
    %v6009 = vld [vmem:[#allocation14 + $0x7cc] sm:$0xff]
    %v6010 = vld [vmem:[#allocation14 + $0x7d4] sm:$0xff]
    %v6011 = vld [vmem:[#allocation14 + $0x7dc] sm:$0xf]
    %v6012 = vld [vmem:[#allocation14 + $0x7e0] sm:$0xff]
    %v6013 = vld [vmem:[#allocation14 + $0x7e8] sm:$0xff]
    %v6014 = vld [vmem:[#allocation14 + $0x7f0] sm:$0xff]
    %v6015 = vld [vmem:[#allocation14 + $0x7f8] sm:$0xff]
    %v6016 = vld [vmem:[#allocation14 + $0x800] sm:$0xf]
    %v6017 = vld [vmem:[#allocation14 + $0x804] sm:$0xff]
    %v6018 = vld [vmem:[#allocation14 + $0x80c] sm:$0xff]
    %v6019 = vld [vmem:[#allocation14 + $0x814] sm:$0xff]
    %v6020 = vld [vmem:[#allocation14 + $0x81c] sm:$0xff]
    %v6021 = vld [vmem:[#allocation14 + $0x824] sm:$0xf]
    %v6022 = vld [vmem:[#allocation14 + $0x828] sm:$0xff]
    %v6023 = vld [vmem:[#allocation14 + $0x830] sm:$0xff]
    %v6024 = vld [vmem:[#allocation14 + $0x838] sm:$0xff]
    %v6025 = vld [vmem:[#allocation14 + $0x840] sm:$0xff]
    %v6026 = vld [vmem:[#allocation14 + $0x848] sm:$0xf]
    %v6027 = vld [vmem:[#allocation14 + $0x84c] sm:$0xff]
    %v6028 = vld [vmem:[#allocation14 + $0x854] sm:$0xff]
    %v6029 = vld [vmem:[#allocation14 + $0x85c] sm:$0xff]
    %v6030 = vld [vmem:[#allocation14 + $0x864] sm:$0xff]
    %v6031 = vld [vmem:[#allocation14 + $0x86c] sm:$0xf]
    %v6032 = vld [vmem:[#allocation14 + $0x870] sm:$0xff]
    %v6033 = vld [vmem:[#allocation14 + $0x878] sm:$0xff]
    %v6034 = vld [vmem:[#allocation14 + $0x880] sm:$0xff]
    %v6035 = vld [vmem:[#allocation14 + $0x888] sm:$0xff]
    %v6036 = vld [vmem:[#allocation14 + $0x890] sm:$0xf]
    %v6037 = vld [vmem:[#allocation14 + $0x894] sm:$0xff]
    %v6038 = vld [vmem:[#allocation14 + $0x89c] sm:$0xff]
    %v6039 = vld [vmem:[#allocation14 + $0x8a4] sm:$0xff]
    %v6040 = vld [vmem:[#allocation14 + $0x8ac] sm:$0xff]
    %v6041 = vld [vmem:[#allocation14 + $0x8b4] sm:$0xf]
    %v6042 = vld [vmem:[#allocation14 + $0x8b8] sm:$0xff]
    %v6043 = vld [vmem:[#allocation14 + $0x8c0] sm:$0xff]
    %v6044 = vld [vmem:[#allocation14 + $0x8c8] sm:$0xff]
    %v6045 = vld [vmem:[#allocation14 + $0x8d0] sm:$0xff]
    %v6046 = vld [vmem:[#allocation14 + $0x8d8] sm:$0xf]
    %v6047 = vld [vmem:[#allocation14 + $0x8dc] sm:$0xff]
    %v6048 = vld [vmem:[#allocation14 + $0x8e4] sm:$0xff]
    %v6049 = vld [vmem:[#allocation14 + $0x8ec] sm:$0xff]
    %v6050 = vld [vmem:[#allocation14 + $0x8f4] sm:$0xff]
    %v6051 = vld [vmem:[#allocation14 + $0x8fc] sm:$0xf]
    %v6052 = vld [vmem:[#allocation14 + $0x900] sm:$0xff]
    %v6053 = vld [vmem:[#allocation14 + $0x908] sm:$0xff]
    %v6054 = vld [vmem:[#allocation14 + $0x910] sm:$0xff]
    %v6055 = vld [vmem:[#allocation14 + $0x918] sm:$0xff]
    %v6056 = vld [vmem:[#allocation14 + $0x920] sm:$0xf]
    %v6057 = vld [vmem:[#allocation14 + $0x924] sm:$0xff]
    %v6058 = vld [vmem:[#allocation14 + $0x92c] sm:$0xff]
    %v6059 = vld [vmem:[#allocation14 + $0x934] sm:$0xff]
    %v6060 = vld [vmem:[#allocation14 + $0x93c] sm:$0xff]
    %v6061 = vld [vmem:[#allocation14 + $0x944] sm:$0xf]
    %v6062 = vld [vmem:[#allocation14 + $0x948] sm:$0xff]
    %v6063 = vld [vmem:[#allocation14 + $0x950] sm:$0xff]
    %v6064 = vld [vmem:[#allocation14 + $0x958] sm:$0xff]
    %v6065 = vld [vmem:[#allocation14 + $0x960] sm:$0xff]
    %v6066 = vld [vmem:[#allocation14 + $0x968] sm:$0xf]
    %v6067 = vld [vmem:[#allocation14 + $0x96c] sm:$0xff]
    %v6068 = vld [vmem:[#allocation14 + $0x974] sm:$0xff]
    %v6069 = vld [vmem:[#allocation14 + $0x97c] sm:$0xff]
    %v6070 = vld [vmem:[#allocation14 + $0x984] sm:$0xff]
    %v6071 = vld [vmem:[#allocation14 + $0x98c] sm:$0xf]
    %v6072 = vld [vmem:[#allocation14 + $0x990] sm:$0xff]
    %v6073 = vld [vmem:[#allocation14 + $0x998] sm:$0xff]
    %v6074 = vld [vmem:[#allocation14 + $0x9a0] sm:$0xff]
    %v6075 = vld [vmem:[#allocation14 + $0x9a8] sm:$0xff]
    %v6076 = vld [vmem:[#allocation14 + $0x9b0] sm:$0xf]
    %v6077 = vld [vmem:[#allocation14 + $0x9b4] sm:$0xff]
    %v6078 = vld [vmem:[#allocation14 + $0x9bc] sm:$0xff]
    %v6079 = vld [vmem:[#allocation14 + $0x9c4] sm:$0xff]
    %v6080 = vld [vmem:[#allocation14 + $0x9cc] sm:$0xff]
    %v6081 = vld [vmem:[#allocation14 + $0x9d4] sm:$0xf]
    %v6082 = vld [vmem:[#allocation14 + $0x9d8] sm:$0xff]
    %v6083 = vld [vmem:[#allocation14 + $0x9e0] sm:$0xff]
    %v6084 = vld [vmem:[#allocation14 + $0x9e8] sm:$0xff]
    %v6085 = vld [vmem:[#allocation14 + $0x9f0] sm:$0xff]
    %v6086 = vld [vmem:[#allocation14 + $0x9f8] sm:$0xf]
    %v6087 = vld [vmem:[#allocation14 + $0x9fc] sm:$0xff]
    %v6088 = vld [vmem:[#allocation14 + $0xa04] sm:$0xff]
    %v6089 = vld [vmem:[#allocation14 + $0xa0c] sm:$0xff]
    %v6090 = vld [vmem:[#allocation14 + $0xa14] sm:$0xff]
    %v6091 = vld [vmem:[#allocation14 + $0xa1c] sm:$0xf]
    %v6092 = vld [vmem:[#allocation14 + $0xa20] sm:$0xff]
    %v6093 = vld [vmem:[#allocation14 + $0xa28] sm:$0xff]
    %v6094 = vld [vmem:[#allocation14 + $0xa30] sm:$0xff]
    %v6095 = vld [vmem:[#allocation14 + $0xa38] sm:$0xff]
    %v6096 = vld [vmem:[#allocation14 + $0xa40] sm:$0xf]
    %v6097 = vld [vmem:[#allocation14 + $0xa44] sm:$0xff]
    %v6098 = vld [vmem:[#allocation14 + $0xa4c] sm:$0xff]
    %v6099 = vld [vmem:[#allocation14 + $0xa54] sm:$0xff]
    %v6100 = vld [vmem:[#allocation14 + $0xa5c] sm:$0xff]
    %v6101 = vld [vmem:[#allocation14 + $0xa64] sm:$0xf]
    %v6102 = vld [vmem:[#allocation14 + $0xa68] sm:$0xff]
    %v6103 = vld [vmem:[#allocation14 + $0xa70] sm:$0xff]
    %v6104 = vld [vmem:[#allocation14 + $0xa78] sm:$0xff]
    %v6105 = vld [vmem:[#allocation14 + $0xa80] sm:$0xff]
    %v6106 = vld [vmem:[#allocation14 + $0xa88] sm:$0xf]
    %v6107 = vld [vmem:[#allocation14 + $0xa8c] sm:$0xff]
    %v6108 = vld [vmem:[#allocation14 + $0xa94] sm:$0xff]
    %v6109 = vld [vmem:[#allocation14 + $0xa9c] sm:$0xff]
    %v6110 = vld [vmem:[#allocation14 + $0xaa4] sm:$0xff]
    %v6111 = vld [vmem:[#allocation14 + $0xaac] sm:$0xf]
    %v6112 = vld [vmem:[#allocation14 + $0xab0] sm:$0xff]
    %v6113 = vld [vmem:[#allocation14 + $0xab8] sm:$0xff]
    %v6114 = vld [vmem:[#allocation14 + $0xac0] sm:$0xff]
    %v6115 = vld [vmem:[#allocation14 + $0xac8] sm:$0xff]
    %v6116 = vld [vmem:[#allocation14 + $0xad0] sm:$0xf]
    %v6117 = vld [vmem:[#allocation14 + $0xad4] sm:$0xff]
    %v6118 = vld [vmem:[#allocation14 + $0xadc] sm:$0xff]
    %v6119 = vld [vmem:[#allocation14 + $0xae4] sm:$0xff]
    %v6120 = vld [vmem:[#allocation14 + $0xaec] sm:$0xff]
    %v6121 = vld [vmem:[#allocation14 + $0xaf4] sm:$0xf]
    %v6122 = vld [vmem:[#allocation14 + $0xaf8] sm:$0xff]
    %v6123 = vld [vmem:[#allocation14 + $0xb00] sm:$0xff]
    %v6124 = vld [vmem:[#allocation14 + $0xb08] sm:$0xff]
    %v6125 = vld [vmem:[#allocation14 + $0xb10] sm:$0xff]
    %v6126 = vld [vmem:[#allocation14 + $0xb18] sm:$0xf]
    %v6127 = vld [vmem:[#allocation14 + $0xb1c] sm:$0xff]
    %v6128 = vld [vmem:[#allocation14 + $0xb24] sm:$0xff]
    %v6129 = vld [vmem:[#allocation14 + $0xb2c] sm:$0xff]
    %v6130 = vld [vmem:[#allocation14 + $0xb34] sm:$0xff]
    %v6131 = vld [vmem:[#allocation14 + $0xb3c] sm:$0xf]
    %v6132 = vld [vmem:[#allocation14 + $0xb40] sm:$0xff]
    %v6133 = vld [vmem:[#allocation14 + $0xb48] sm:$0xff]
    %v6134 = vld [vmem:[#allocation14 + $0xb50] sm:$0xff]
    %v6135 = vld [vmem:[#allocation14 + $0xb58] sm:$0xff]
    %v6136 = vld [vmem:[#allocation14 + $0xb60] sm:$0xf]
    %v6137 = vld [vmem:[#allocation14 + $0xb64] sm:$0xff]
    %v6138 = vld [vmem:[#allocation14 + $0xb6c] sm:$0xff]
    %v6139 = vld [vmem:[#allocation14 + $0xb74] sm:$0xff]
    %v6140 = vld [vmem:[#allocation14 + $0xb7c] sm:$0xff]
    %v6141 = vld [vmem:[#allocation14 + $0xb84] sm:$0xf]
    %v6142 = vld [vmem:[#allocation14 + $0xb88] sm:$0xff]
    %v6143 = vld [vmem:[#allocation14 + $0xb90] sm:$0xff]
    %v6144 = vld [vmem:[#allocation14 + $0xb98] sm:$0xff]
    %v6145 = vld [vmem:[#allocation14 + $0xba0] sm:$0xff]
    %v6146 = vld [vmem:[#allocation14 + $0xba8] sm:$0xf]
    %v6147 = vld [vmem:[#allocation14 + $0xbac] sm:$0xff]
    %v6148 = vld [vmem:[#allocation14 + $0xbb4] sm:$0xff]
    %v6149 = vld [vmem:[#allocation14 + $0xbbc] sm:$0xff]
    %v6150 = vld [vmem:[#allocation14 + $0xbc4] sm:$0xff]
    %v6151 = vld [vmem:[#allocation14 + $0xbcc] sm:$0xf]
    %v6152 = vld [vmem:[#allocation14 + $0xbd0] sm:$0xff]
    %v6153 = vld [vmem:[#allocation14 + $0xbd8] sm:$0xff]
    %v6154 = vld [vmem:[#allocation14 + $0xbe0] sm:$0xff]
    %v6155 = vld [vmem:[#allocation14 + $0xbe8] sm:$0xff]
    %v6156 = vld [vmem:[#allocation14 + $0xbf0] sm:$0xf]
    %v6157 = vld [vmem:[#allocation14 + $0xbf4] sm:$0xff]
    %v6158 = vld [vmem:[#allocation14 + $0xbfc] sm:$0xff]
    %v6159 = vld [vmem:[#allocation14 + $0xc04] sm:$0xff]
    %v6160 = vld [vmem:[#allocation14 + $0xc0c] sm:$0xff]
    %v6161 = vld [vmem:[#allocation14 + $0xc14] sm:$0xf]
    %v6162 = vld [vmem:[#allocation14 + $0xc18] sm:$0xff]
    %v6163 = vld [vmem:[#allocation14 + $0xc20] sm:$0xff]
    %v6164 = vld [vmem:[#allocation14 + $0xc28] sm:$0xff]
    %v6165 = vld [vmem:[#allocation14 + $0xc30] sm:$0xff]
    %v6166 = vld [vmem:[#allocation14 + $0xc38] sm:$0xf]
    %v6167 = vld [vmem:[#allocation14 + $0xc3c] sm:$0xff]
    %v6168 = vld [vmem:[#allocation14 + $0xc44] sm:$0xff]
    %v6169 = vld [vmem:[#allocation14 + $0xc4c] sm:$0xff]
    %v6170 = vld [vmem:[#allocation14 + $0xc54] sm:$0xff]
    %v6171 = vld [vmem:[#allocation14 + $0xc5c] sm:$0xf]
    %v6172 = vld [vmem:[#allocation14 + $0xc60] sm:$0xff]
    %v6173 = vld [vmem:[#allocation14 + $0xc68] sm:$0xff]
    %v6174 = vld [vmem:[#allocation14 + $0xc70] sm:$0xff]
    %v6175 = vld [vmem:[#allocation14 + $0xc78] sm:$0xff]
    %v6176 = vld [vmem:[#allocation14 + $0xc80] sm:$0xf]
    %v6177 = vld [vmem:[#allocation14 + $0xc84] sm:$0xff]
    %v6178 = vld [vmem:[#allocation14 + $0xc8c] sm:$0xff]
    %v6179 = vld [vmem:[#allocation14 + $0xc94] sm:$0xff]
    %v6180 = vld [vmem:[#allocation14 + $0xc9c] sm:$0xff]
    %v6181 = vld [vmem:[#allocation14 + $0xca4] sm:$0xf]
    %v6182 = vld [vmem:[#allocation14 + $0xca8] sm:$0xff]
    %v6183 = vld [vmem:[#allocation14 + $0xcb0] sm:$0xff]
    %v6184 = vld [vmem:[#allocation14 + $0xcb8] sm:$0xff]
    %v6185 = vld [vmem:[#allocation14 + $0xcc0] sm:$0xff]
    %v6186 = vld [vmem:[#allocation14 + $0xcc8] sm:$0xf]
    %v6187 = vld [vmem:[#allocation14 + $0xccc] sm:$0xff]
    %v6188 = vld [vmem:[#allocation14 + $0xcd4] sm:$0xff]
    %v6189 = vld [vmem:[#allocation14 + $0xcdc] sm:$0xff]
    %v6190 = vld [vmem:[#allocation14 + $0xce4] sm:$0xff]
    %v6191 = vld [vmem:[#allocation14 + $0xcec] sm:$0xf]
    %v6192 = vld [vmem:[#allocation14 + $0xcf0] sm:$0xff]
    %v6193 = vld [vmem:[#allocation14 + $0xcf8] sm:$0xff]
    %v6194 = vld [vmem:[#allocation14 + $0xd00] sm:$0xff]
    %v6195 = vld [vmem:[#allocation14 + $0xd08] sm:$0xff]
    %v6196 = vld [vmem:[#allocation14 + $0xd10] sm:$0xf]
    %v6197 = vld [vmem:[#allocation14 + $0xd14] sm:$0xff]
    %v6198 = vld [vmem:[#allocation14 + $0xd1c] sm:$0xff]
    %v6199 = vld [vmem:[#allocation14 + $0xd24] sm:$0xff]
    %v6200 = vld [vmem:[#allocation14 + $0xd2c] sm:$0xff]
    %v6201 = vld [vmem:[#allocation14 + $0xd34] sm:$0xf]
    %v6202 = vld [vmem:[#allocation14 + $0xd38] sm:$0xff]
    %v6203 = vld [vmem:[#allocation14 + $0xd40] sm:$0xff]
    %v6204 = vld [vmem:[#allocation14 + $0xd48] sm:$0xff]
    %v6205 = vld [vmem:[#allocation14 + $0xd50] sm:$0xff]
    %v6206 = vld [vmem:[#allocation14 + $0xd58] sm:$0xf]
    %v6207 = vld [vmem:[#allocation14 + $0xd5c] sm:$0xff]
    %v6208 = vld [vmem:[#allocation14 + $0xd64] sm:$0xff]
    %v6209 = vld [vmem:[#allocation14 + $0xd6c] sm:$0xff]
    %v6210 = vld [vmem:[#allocation14 + $0xd74] sm:$0xff]
    %v6211 = vld [vmem:[#allocation14 + $0xd7c] sm:$0xf]
    %v6212 = vld [vmem:[#allocation14 + $0xd80] sm:$0xff]
    %v6213 = vld [vmem:[#allocation14 + $0xd88] sm:$0xff]
    %v6214 = vld [vmem:[#allocation14 + $0xd90] sm:$0xff]
    %v6215 = vld [vmem:[#allocation14 + $0xd98] sm:$0xff]
    %v6216 = vld [vmem:[#allocation14 + $0xda0] sm:$0xf]
    %v6217 = vld [vmem:[#allocation14 + $0xda4] sm:$0xff]
    %v6218 = vld [vmem:[#allocation14 + $0xdac] sm:$0xff]
    %v6219 = vld [vmem:[#allocation14 + $0xdb4] sm:$0xff]
    %v6220 = vld [vmem:[#allocation14 + $0xdbc] sm:$0xff]
    %v6221 = vld [vmem:[#allocation14 + $0xdc4] sm:$0xf]
    %v6222 = vld [vmem:[#allocation14 + $0xdc8] sm:$0xff]
    %v6223 = vld [vmem:[#allocation14 + $0xdd0] sm:$0xff]
    %v6224 = vld [vmem:[#allocation14 + $0xdd8] sm:$0xff]
    %v6225 = vld [vmem:[#allocation14 + $0xde0] sm:$0xff]
    %v6226 = vld [vmem:[#allocation14 + $0xde8] sm:$0xf]
    %v6227 = vld [vmem:[#allocation14 + $0xdec] sm:$0xff]
    %v6228 = vld [vmem:[#allocation14 + $0xdf4] sm:$0xff]
    %v6229 = vld [vmem:[#allocation14 + $0xdfc] sm:$0xff]
    %v6230 = vld [vmem:[#allocation14 + $0xe04] sm:$0xff]
    %v6231 = vld [vmem:[#allocation14 + $0xe0c] sm:$0xf]
    %v6232 = vld [vmem:[#allocation14 + $0xe10] sm:$0xff]
    %v6233 = vld [vmem:[#allocation14 + $0xe18] sm:$0xff]
    %v6234 = vld [vmem:[#allocation14 + $0xe20] sm:$0xff]
    %v6235 = vld [vmem:[#allocation14 + $0xe28] sm:$0xff]
    %v6236 = vld [vmem:[#allocation14 + $0xe30] sm:$0xf]
    %v6237 = vld [vmem:[#allocation14 + $0xe34] sm:$0xff]
    %v6238 = vld [vmem:[#allocation14 + $0xe3c] sm:$0xff]
    %v6239 = vld [vmem:[#allocation14 + $0xe44] sm:$0xff]
    %v6240 = vld [vmem:[#allocation14 + $0xe4c] sm:$0xff]
    %v6241 = vld [vmem:[#allocation14 + $0xe54] sm:$0xf]
    %v6242 = vld [vmem:[#allocation14 + $0xe58] sm:$0xff]
    %v6243 = vld [vmem:[#allocation14 + $0xe60] sm:$0xff]
    %v6244 = vld [vmem:[#allocation14 + $0xe68] sm:$0xff]
    %v6245 = vld [vmem:[#allocation14 + $0xe70] sm:$0xff]
    %v6246 = vld [vmem:[#allocation14 + $0xe78] sm:$0xf]
    %v6247 = vld [vmem:[#allocation14 + $0xe7c] sm:$0xff]
    %v6248 = vld [vmem:[#allocation14 + $0xe84] sm:$0xff]
    %v6249 = vld [vmem:[#allocation14 + $0xe8c] sm:$0xff]
    %v6250 = vld [vmem:[#allocation14 + $0xe94] sm:$0xff]
    %v6251 = vld [vmem:[#allocation14 + $0xe9c] sm:$0xf]
    %v6252 = vld [vmem:[#allocation14 + $0xea0] sm:$0xff]
    %v6253 = vld [vmem:[#allocation14 + $0xea8] sm:$0xff]
    %v6254 = vld [vmem:[#allocation14 + $0xeb0] sm:$0xff]
    %v6255 = vld [vmem:[#allocation14 + $0xeb8] sm:$0xff]
    %v6256 = vld [vmem:[#allocation14 + $0xec0] sm:$0xf]
    %v6257 = vld [vmem:[#allocation14 + $0xec4] sm:$0xff]
    %v6258 = vld [vmem:[#allocation14 + $0xecc] sm:$0xff]
    %v6259 = vld [vmem:[#allocation14 + $0xed4] sm:$0xff]
    %v6260 = vld [vmem:[#allocation14 + $0xedc] sm:$0xff]
    %v6261 = vld [vmem:[#allocation14 + $0xee4] sm:$0xf]
    %v6262 = vld [vmem:[#allocation14 + $0xee8] sm:$0xff]
    %v6263 = vld [vmem:[#allocation14 + $0xef0] sm:$0xff]
    %v6264 = vld [vmem:[#allocation14 + $0xef8] sm:$0xff]
    %v6265 = vld [vmem:[#allocation14 + $0xf00] sm:$0xff]
    %v6266 = vld [vmem:[#allocation14 + $0xf08] sm:$0xf]
    %v6267 = vld [vmem:[#allocation14 + $0xf0c] sm:$0xff]
    %v6268 = vld [vmem:[#allocation14 + $0xf14] sm:$0xff]
    %v6269 = vld [vmem:[#allocation14 + $0xf1c] sm:$0xff]
    %v6270 = vld [vmem:[#allocation14 + $0xf24] sm:$0xff]
    %v6271 = vld [vmem:[#allocation14 + $0xf2c] sm:$0xf]
    %v6272 = vld [vmem:[#allocation14 + $0xf30] sm:$0xff]
    %v6273 = vld [vmem:[#allocation14 + $0xf38] sm:$0xff]
    %v6274 = vld [vmem:[#allocation14 + $0xf40] sm:$0xff]
    %v6275 = vld [vmem:[#allocation14 + $0xf48] sm:$0xff]
    %v6276 = vld [vmem:[#allocation14 + $0xf50] sm:$0xf]
    %v6277 = vld [vmem:[#allocation14 + $0xf54] sm:$0xff]
    %v6278 = vld [vmem:[#allocation14 + $0xf5c] sm:$0xff]
    %v6279 = vld [vmem:[#allocation14 + $0xf64] sm:$0xff]
    %v6280 = vld [vmem:[#allocation14 + $0xf6c] sm:$0xff]
    %v6281 = vld [vmem:[#allocation14 + $0xf74] sm:$0xf]
    %v6282 = vld [vmem:[#allocation14 + $0xf78] sm:$0xff]
    %v6283 = vld [vmem:[#allocation14 + $0xf80] sm:$0xff]
    %v6284 = vld [vmem:[#allocation14 + $0xf88] sm:$0xff]
    %v6285 = vld [vmem:[#allocation14 + $0xf90] sm:$0xff]
    %v6286 = vld [vmem:[#allocation14 + $0xf98] sm:$0xf]
    %v6287 = vld [vmem:[#allocation14 + $0xf9c] sm:$0xff]
    %v6288 = vld [vmem:[#allocation14 + $0xfa4] sm:$0xff]
    %v6289 = vld [vmem:[#allocation14 + $0xfac] sm:$0xff]
    %v6290 = vld [vmem:[#allocation14 + $0xfb4] sm:$0xff]
    %v6291 = vld [vmem:[#allocation14 + $0xfbc] sm:$0xf]
    %v6292 = vld [vmem:[#allocation14 + $0xfc0] sm:$0xff]
    %v6293 = vld [vmem:[#allocation14 + $0xfc8] sm:$0xff]
    %v6294 = vld [vmem:[#allocation14 + $0xfd0] sm:$0xff]
    %v6295 = vld [vmem:[#allocation14 + $0xfd8] sm:$0xff]
    %v6296 = vld [vmem:[#allocation14 + $0xfe0] sm:$0xf]
    %v6297 = vld [vmem:[#allocation14 + $0xfe4] sm:$0xff]
    %v6298 = vld [vmem:[#allocation14 + $0xfec] sm:$0xff]
    %v6299 = vld [vmem:[#allocation14 + $0xff4] sm:$0xff]
    %v6300 = vld [vmem:[#allocation14 + $0xffc] sm:$0xff]
    %v6301 = vld [vmem:[#allocation14 + $0x1004] sm:$0xf]
    %v6302 = vld [vmem:[#allocation14 + $0x1008] sm:$0xff]
    %v6303 = vld [vmem:[#allocation14 + $0x1010] sm:$0xff]
    %v6304 = vld [vmem:[#allocation14 + $0x1018] sm:$0xff]
    %v6305 = vld [vmem:[#allocation14 + $0x1020] sm:$0xff]
    %v6306 = vld [vmem:[#allocation14 + $0x1028] sm:$0xf]
    %v6307 = vld [vmem:[#allocation14 + $0x102c] sm:$0xff]
    %v6308 = vld [vmem:[#allocation14 + $0x1034] sm:$0xff]
    %v6309 = vld [vmem:[#allocation14 + $0x103c] sm:$0xff]
    %v6310 = vld [vmem:[#allocation14 + $0x1044] sm:$0xff]
    %v6311 = vld [vmem:[#allocation14 + $0x104c] sm:$0xf]
    %v6312 = vld [vmem:[#allocation14 + $0x1050] sm:$0xff]
    %v6313 = vld [vmem:[#allocation14 + $0x1058] sm:$0xff]
    %v6314 = vld [vmem:[#allocation14 + $0x1060] sm:$0xff]
    %v6315 = vld [vmem:[#allocation14 + $0x1068] sm:$0xff]
    %v6316 = vld [vmem:[#allocation14 + $0x1070] sm:$0xf]
    %v6317 = vld [vmem:[#allocation14 + $0x1074] sm:$0xff]
    %v6318 = vld [vmem:[#allocation14 + $0x107c] sm:$0xff]
    %v6319 = vld [vmem:[#allocation14 + $0x1084] sm:$0xff]
    %v6320 = vld [vmem:[#allocation14 + $0x108c] sm:$0xff]
    %v6321 = vld [vmem:[#allocation14 + $0x1094] sm:$0xf]
    %v6322 = vld [vmem:[#allocation14 + $0x1098] sm:$0xff]
    %v6323 = vld [vmem:[#allocation14 + $0x10a0] sm:$0xff]
    %v6324 = vld [vmem:[#allocation14 + $0x10a8] sm:$0xff]
    %v6325 = vld [vmem:[#allocation14 + $0x10b0] sm:$0xff]
    %v6326 = vld [vmem:[#allocation14 + $0x10b8] sm:$0xf]
    %v6327 = vld [vmem:[#allocation14 + $0x10bc] sm:$0xff]
    %v6328 = vld [vmem:[#allocation14 + $0x10c4] sm:$0xff]
    %v6329 = vld [vmem:[#allocation14 + $0x10cc] sm:$0xff]
    %v6330 = vld [vmem:[#allocation14 + $0x10d4] sm:$0xff]
    %v6331 = vld [vmem:[#allocation14 + $0x10dc] sm:$0xf]
    %v6332 = vld [vmem:[#allocation14 + $0x10e0] sm:$0xff]
    %v6333 = vld [vmem:[#allocation14 + $0x10e8] sm:$0xff]
    %v6334 = vld [vmem:[#allocation14 + $0x10f0] sm:$0xff]
    %v6335 = vld [vmem:[#allocation14 + $0x10f8] sm:$0xff]
    %v6336 = vld [vmem:[#allocation14 + $0x1100] sm:$0xf]
    %v6337 = vld [vmem:[#allocation14 + $0x1104] sm:$0xff]
    %v6338 = vld [vmem:[#allocation14 + $0x110c] sm:$0xff]
    %v6339 = vld [vmem:[#allocation14 + $0x1114] sm:$0xff]
    %v6340 = vld [vmem:[#allocation14 + $0x111c] sm:$0xff]
    %v6341 = vld [vmem:[#allocation14 + $0x1124] sm:$0xf]
    %v6342 = vld [vmem:[#allocation14 + $0x1128] sm:$0xff]
    %v6343 = vld [vmem:[#allocation14 + $0x1130] sm:$0xff]
    %v6344 = vld [vmem:[#allocation14 + $0x1138] sm:$0xff]
    %v6345 = vld [vmem:[#allocation14 + $0x1140] sm:$0xff]
    %v6346 = vld [vmem:[#allocation14 + $0x1148] sm:$0xf]
    %v6347 = vld [vmem:[#allocation14 + $0x114c] sm:$0xff]
    %v6348 = vld [vmem:[#allocation14 + $0x1154] sm:$0xff]
    %v6349 = vld [vmem:[#allocation14 + $0x115c] sm:$0xff]
    %v6350 = vld [vmem:[#allocation14 + $0x1164] sm:$0xff]
    %v6351 = vld [vmem:[#allocation14 + $0x116c] sm:$0xf]
    %v6352 = vld [vmem:[#allocation14 + $0x1170] sm:$0xff]
    %v6353 = vld [vmem:[#allocation14 + $0x1178] sm:$0xff]
    %v6354 = vld [vmem:[#allocation14 + $0x1180] sm:$0xff]
    %v6355 = vld [vmem:[#allocation14 + $0x1188] sm:$0xff]
    %v6356 = vld [vmem:[#allocation14 + $0x1190] sm:$0xf]
    %v6357 = vld [vmem:[#allocation14 + $0x1194] sm:$0xff]
    %v6358 = vld [vmem:[#allocation14 + $0x119c] sm:$0xff]
    %v6359 = vld [vmem:[#allocation14 + $0x11a4] sm:$0xff]
    %v6360 = vld [vmem:[#allocation14 + $0x11ac] sm:$0xff]
    %v6361 = vld [vmem:[#allocation14 + $0x11b4] sm:$0xf]
    %v6362 = vld [vmem:[#allocation14 + $0x11b8] sm:$0xff]
    %v6363 = vld [vmem:[#allocation14 + $0x11c0] sm:$0xff]
    %v6364 = vld [vmem:[#allocation14 + $0x11c8] sm:$0xff]
    %v6365 = vld [vmem:[#allocation14 + $0x11d0] sm:$0xff]
    %v6366 = vld [vmem:[#allocation14 + $0x11d8] sm:$0xf]
    %v6367 = vld [vmem:[#allocation14 + $0x11dc] sm:$0xff]
    %v6368 = vld [vmem:[#allocation14 + $0x11e4] sm:$0xff]
    %v6369 = vld [vmem:[#allocation14 + $0x11ec] sm:$0xff]
    %v6370 = vld [vmem:[#allocation14 + $0x11f4] sm:$0xff]
    %v6371 = vld [vmem:[#allocation14 + $0x11fc] sm:$0xf]
    %v6372 = vld [vmem:[#allocation14 + $0x1200] sm:$0xff]
    %v6373 = vld [vmem:[#allocation14 + $0x1208] sm:$0xff]
    %v6374 = vld [vmem:[#allocation14 + $0x1210] sm:$0xff]
    %v6375 = vld [vmem:[#allocation14 + $0x1218] sm:$0xff]
    %v6376 = vld [vmem:[#allocation14 + $0x1220] sm:$0xf]
    %v6377 = vld [vmem:[#allocation14 + $0x1224] sm:$0xff]
    %v6378 = vld [vmem:[#allocation14 + $0x122c] sm:$0xff]
    %v6379 = vld [vmem:[#allocation14 + $0x1234] sm:$0xff]
    %v6380 = vld [vmem:[#allocation14 + $0x123c] sm:$0xff]
    %v6381 = vld [vmem:[#allocation14 + $0x1244] sm:$0xf]
    %v6382 = vld [vmem:[#allocation14 + $0x1248] sm:$0xff]
    %v6383 = vld [vmem:[#allocation14 + $0x1250] sm:$0xff]
    %v6384 = vld [vmem:[#allocation14 + $0x1258] sm:$0xff]
    %v6385 = vld [vmem:[#allocation14 + $0x1260] sm:$0xff]
    %v6386 = vld [vmem:[#allocation14 + $0x1268] sm:$0xf]
    %v6387 = vld [vmem:[#allocation14 + $0x126c] sm:$0xff]
    %v6388 = vld [vmem:[#allocation14 + $0x1274] sm:$0xff]
    %v6389 = vld [vmem:[#allocation14 + $0x127c] sm:$0xff]
    %v6390 = vld [vmem:[#allocation14 + $0x1284] sm:$0xff]
    %v6391 = vld [vmem:[#allocation14 + $0x128c] sm:$0xf]
    %v6392 = vld [vmem:[#allocation14 + $0x1290] sm:$0xff]
    %v6393 = vld [vmem:[#allocation14 + $0x1298] sm:$0xff]
    %v6394 = vld [vmem:[#allocation14 + $0x12a0] sm:$0xff]
    %v6395 = vld [vmem:[#allocation14 + $0x12a8] sm:$0xff]
    %v6396 = vld [vmem:[#allocation14 + $0x12b0] sm:$0xf]
    %v6397 = vld [vmem:[#allocation14 + $0x12b4] sm:$0xff]
    %v6398 = vld [vmem:[#allocation14 + $0x12bc] sm:$0xff]
    %v6399 = vld [vmem:[#allocation14 + $0x12c4] sm:$0xff]
    %v6400 = vld [vmem:[#allocation14 + $0x12cc] sm:$0xff]
    %v6401 = vld [vmem:[#allocation14 + $0x12d4] sm:$0xf]
    %v6402 = vld [vmem:[#allocation14 + $0x12d8] sm:$0xff]
    %v6403 = vld [vmem:[#allocation14 + $0x12e0] sm:$0xff]
    %v6404 = vld [vmem:[#allocation14 + $0x12e8] sm:$0xff]
    %v6405 = vld [vmem:[#allocation14 + $0x12f0] sm:$0xff]
    %v6406 = vld [vmem:[#allocation14 + $0x12f8] sm:$0xf]
    %v6407 = vld [vmem:[#allocation14 + $0x12fc] sm:$0xff]
    %v6408 = vld [vmem:[#allocation14 + $0x1304] sm:$0xff]
    %v6409 = vld [vmem:[#allocation14 + $0x130c] sm:$0xff]
    %v6410 = vld [vmem:[#allocation14 + $0x1314] sm:$0xff]
    %v6411 = vld [vmem:[#allocation14 + $0x131c] sm:$0xf]
    %v6412 = vld [vmem:[#allocation14 + $0x1320] sm:$0xff]
    %v6413 = vld [vmem:[#allocation14 + $0x1328] sm:$0xff]
    %v6414 = vld [vmem:[#allocation14 + $0x1330] sm:$0xff]
    %v6415 = vld [vmem:[#allocation14 + $0x1338] sm:$0xff]
    %v6416 = vld [vmem:[#allocation14 + $0x1340] sm:$0xf]
    %v6417 = vld [vmem:[#allocation14 + $0x1344] sm:$0xff]
    %v6418 = vld [vmem:[#allocation14 + $0x134c] sm:$0xff]
    %v6419 = vld [vmem:[#allocation14 + $0x1354] sm:$0xff]
    %v6420 = vld [vmem:[#allocation14 + $0x135c] sm:$0xff]
    %v6421 = vld [vmem:[#allocation14 + $0x1364] sm:$0xf]
    %v6422 = vld [vmem:[#allocation14 + $0x1368] sm:$0xff]
    %v6423 = vld [vmem:[#allocation14 + $0x1370] sm:$0xff]
    %v6424 = vld [vmem:[#allocation14 + $0x1378] sm:$0xff]
    %v6425 = vld [vmem:[#allocation14 + $0x1380] sm:$0xff]
    %v6426 = vld [vmem:[#allocation14 + $0x1388] sm:$0xf]
    %v6427 = vld [vmem:[#allocation14 + $0x138c] sm:$0xff]
    %v6428 = vld [vmem:[#allocation14 + $0x1394] sm:$0xff]
    %v6429 = vld [vmem:[#allocation14 + $0x139c] sm:$0xff]
    %v6430 = vld [vmem:[#allocation14 + $0x13a4] sm:$0xff]
    %v6431 = vld [vmem:[#allocation14 + $0x13ac] sm:$0xf]
    %v6432 = vld [vmem:[#allocation14 + $0x13b0] sm:$0xff]
    %v6433 = vld [vmem:[#allocation14 + $0x13b8] sm:$0xff]
    %v6434 = vld [vmem:[#allocation14 + $0x13c0] sm:$0xff]
    %v6435 = vld [vmem:[#allocation14 + $0x13c8] sm:$0xff]
    %v6436 = vld [vmem:[#allocation14 + $0x13d0] sm:$0xf]
    %v6437 = vld [vmem:[#allocation14 + $0x13d4] sm:$0xff]
    %v6438 = vld [vmem:[#allocation14 + $0x13dc] sm:$0xff]
    %v6439 = vld [vmem:[#allocation14 + $0x13e4] sm:$0xff]
    %v6440 = vld [vmem:[#allocation14 + $0x13ec] sm:$0xff]
    %v6441 = vld [vmem:[#allocation14 + $0x13f4] sm:$0xf]
    %v6442 = vld [vmem:[#allocation14 + $0x13f8] sm:$0xff]
    %v6443 = vld [vmem:[#allocation14 + $0x1400] sm:$0xff]
    %v6444 = vld [vmem:[#allocation14 + $0x1408] sm:$0xff]
    %v6445 = vld [vmem:[#allocation14 + $0x1410] sm:$0xff]
    %v6446 = vld [vmem:[#allocation14 + $0x1418] sm:$0xf]
    %v6447 = vld [vmem:[#allocation14 + $0x141c] sm:$0xff]
    %v6448 = vld [vmem:[#allocation14 + $0x1424] sm:$0xff]
    %v6449 = vld [vmem:[#allocation14 + $0x142c] sm:$0xff]
    %v6450 = vld [vmem:[#allocation14 + $0x1434] sm:$0xff]
    %v6451 = vld [vmem:[#allocation14 + $0x143c] sm:$0xf]
    %v7172 = vunpack.c.l.b16 %v5732
    %v7173 = vunpack.c.h.b16 %v5732
    %v7174 = vunpack.c.l.b16 %v5733
    %v7175 = vunpack.c.h.b16 %v5733
    %v7176 = vunpack.c.l.b16 %v5734
    %v7177 = vunpack.c.h.b16 %v5734
    %v7178 = vunpack.c.l.b16 %v5735
    %v7179 = vunpack.c.h.b16 %v5735
    %v7180 = vunpack.c.l.b16 %v5736
    %v7181 = vunpack.c.l.b16 %v5737
    %v7182 = vunpack.c.h.b16 %v5737
    %v7183 = vunpack.c.l.b16 %v5738
    %v7184 = vunpack.c.h.b16 %v5738
    %v7185 = vunpack.c.l.b16 %v5739
    %v7186 = vunpack.c.h.b16 %v5739
    %v7187 = vunpack.c.l.b16 %v5740
    %v7188 = vunpack.c.h.b16 %v5740
    %v7189 = vunpack.c.l.b16 %v5741
    %v7190 = vunpack.c.l.b16 %v5742
    %v7191 = vunpack.c.h.b16 %v5742
    %v7192 = vunpack.c.l.b16 %v5743
    %v7193 = vunpack.c.h.b16 %v5743
    %v7194 = vunpack.c.l.b16 %v5744
    %v7195 = vunpack.c.h.b16 %v5744
    %v7196 = vunpack.c.l.b16 %v5745
    %v7197 = vunpack.c.h.b16 %v5745
    %v7198 = vunpack.c.l.b16 %v5746
    %v7199 = vunpack.c.l.b16 %v5747
    %v7200 = vunpack.c.h.b16 %v5747
    %v7201 = vunpack.c.l.b16 %v5748
    %v7202 = vunpack.c.h.b16 %v5748
    %v7203 = vunpack.c.l.b16 %v5749
    %v7204 = vunpack.c.h.b16 %v5749
    %v7205 = vunpack.c.l.b16 %v5750
    %v7206 = vunpack.c.h.b16 %v5750
    %v7207 = vunpack.c.l.b16 %v5751
    %v7208 = vunpack.c.l.b16 %v5752
    %v7209 = vunpack.c.h.b16 %v5752
    %v7210 = vunpack.c.l.b16 %v5753
    %v7211 = vunpack.c.h.b16 %v5753
    %v7212 = vunpack.c.l.b16 %v5754
    %v7213 = vunpack.c.h.b16 %v5754
    %v7214 = vunpack.c.l.b16 %v5755
    %v7215 = vunpack.c.h.b16 %v5755
    %v7216 = vunpack.c.l.b16 %v5756
    %v7217 = vunpack.c.l.b16 %v5757
    %v7218 = vunpack.c.h.b16 %v5757
    %v7219 = vunpack.c.l.b16 %v5758
    %v7220 = vunpack.c.h.b16 %v5758
    %v7221 = vunpack.c.l.b16 %v5759
    %v7222 = vunpack.c.h.b16 %v5759
    %v7223 = vunpack.c.l.b16 %v5760
    %v7224 = vunpack.c.h.b16 %v5760
    %v7225 = vunpack.c.l.b16 %v5761
    %v7226 = vunpack.c.l.b16 %v5762
    %v7227 = vunpack.c.h.b16 %v5762
    %v7228 = vunpack.c.l.b16 %v5763
    %v7229 = vunpack.c.h.b16 %v5763
    %v7230 = vunpack.c.l.b16 %v5764
    %v7231 = vunpack.c.h.b16 %v5764
    %v7232 = vunpack.c.l.b16 %v5765
    %v7233 = vunpack.c.h.b16 %v5765
    %v7234 = vunpack.c.l.b16 %v5766
    %v7235 = vunpack.c.l.b16 %v5767
    %v7236 = vunpack.c.h.b16 %v5767
    %v7237 = vunpack.c.l.b16 %v5768
    %v7238 = vunpack.c.h.b16 %v5768
    %v7239 = vunpack.c.l.b16 %v5769
    %v7240 = vunpack.c.h.b16 %v5769
    %v7241 = vunpack.c.l.b16 %v5770
    %v7242 = vunpack.c.h.b16 %v5770
    %v7243 = vunpack.c.l.b16 %v5771
    %v7244 = vunpack.c.l.b16 %v5772
    %v7245 = vunpack.c.h.b16 %v5772
    %v7246 = vunpack.c.l.b16 %v5773
    %v7247 = vunpack.c.h.b16 %v5773
    %v7248 = vunpack.c.l.b16 %v5774
    %v7249 = vunpack.c.h.b16 %v5774
    %v7250 = vunpack.c.l.b16 %v5775
    %v7251 = vunpack.c.h.b16 %v5775
    %v7252 = vunpack.c.l.b16 %v5776
    %v7253 = vunpack.c.l.b16 %v5777
    %v7254 = vunpack.c.h.b16 %v5777
    %v7255 = vunpack.c.l.b16 %v5778
    %v7256 = vunpack.c.h.b16 %v5778
    %v7257 = vunpack.c.l.b16 %v5779
    %v7258 = vunpack.c.h.b16 %v5779
    %v7259 = vunpack.c.l.b16 %v5780
    %v7260 = vunpack.c.h.b16 %v5780
    %v7261 = vunpack.c.l.b16 %v5781
    %v7262 = vunpack.c.l.b16 %v5782
    %v7263 = vunpack.c.h.b16 %v5782
    %v7264 = vunpack.c.l.b16 %v5783
    %v7265 = vunpack.c.h.b16 %v5783
    %v7266 = vunpack.c.l.b16 %v5784
    %v7267 = vunpack.c.h.b16 %v5784
    %v7268 = vunpack.c.l.b16 %v5785
    %v7269 = vunpack.c.h.b16 %v5785
    %v7270 = vunpack.c.l.b16 %v5786
    %v7271 = vunpack.c.l.b16 %v5787
    %v7272 = vunpack.c.h.b16 %v5787
    %v7273 = vunpack.c.l.b16 %v5788
    %v7274 = vunpack.c.h.b16 %v5788
    %v7275 = vunpack.c.l.b16 %v5789
    %v7276 = vunpack.c.h.b16 %v5789
    %v7277 = vunpack.c.l.b16 %v5790
    %v7278 = vunpack.c.h.b16 %v5790
    %v7279 = vunpack.c.l.b16 %v5791
    %v7280 = vunpack.c.l.b16 %v5792
    %v7281 = vunpack.c.h.b16 %v5792
    %v7282 = vunpack.c.l.b16 %v5793
    %v7283 = vunpack.c.h.b16 %v5793
    %v7284 = vunpack.c.l.b16 %v5794
    %v7285 = vunpack.c.h.b16 %v5794
    %v7286 = vunpack.c.l.b16 %v5795
    %v7287 = vunpack.c.h.b16 %v5795
    %v7288 = vunpack.c.l.b16 %v5796
    %v7289 = vunpack.c.l.b16 %v5797
    %v7290 = vunpack.c.h.b16 %v5797
    %v7291 = vunpack.c.l.b16 %v5798
    %v7292 = vunpack.c.h.b16 %v5798
    %v7293 = vunpack.c.l.b16 %v5799
    %v7294 = vunpack.c.h.b16 %v5799
    %v7295 = vunpack.c.l.b16 %v5800
    %v7296 = vunpack.c.h.b16 %v5800
    %v7297 = vunpack.c.l.b16 %v5801
    %v7298 = vunpack.c.l.b16 %v5802
    %v7299 = vunpack.c.h.b16 %v5802
    %v7300 = vunpack.c.l.b16 %v5803
    %v7301 = vunpack.c.h.b16 %v5803
    %v7302 = vunpack.c.l.b16 %v5804
    %v7303 = vunpack.c.h.b16 %v5804
    %v7304 = vunpack.c.l.b16 %v5805
    %v7305 = vunpack.c.h.b16 %v5805
    %v7306 = vunpack.c.l.b16 %v5806
    %v7307 = vunpack.c.l.b16 %v5807
    %v7308 = vunpack.c.h.b16 %v5807
    %v7309 = vunpack.c.l.b16 %v5808
    %v7310 = vunpack.c.h.b16 %v5808
    %v7311 = vunpack.c.l.b16 %v5809
    %v7312 = vunpack.c.h.b16 %v5809
    %v7313 = vunpack.c.l.b16 %v5810
    %v7314 = vunpack.c.h.b16 %v5810
    %v7315 = vunpack.c.l.b16 %v5811
    %v7316 = vunpack.c.l.b16 %v5812
    %v7317 = vunpack.c.h.b16 %v5812
    %v7318 = vunpack.c.l.b16 %v5813
    %v7319 = vunpack.c.h.b16 %v5813
    %v7320 = vunpack.c.l.b16 %v5814
    %v7321 = vunpack.c.h.b16 %v5814
    %v7322 = vunpack.c.l.b16 %v5815
    %v7323 = vunpack.c.h.b16 %v5815
    %v7324 = vunpack.c.l.b16 %v5816
    %v7325 = vunpack.c.l.b16 %v5817
    %v7326 = vunpack.c.h.b16 %v5817
    %v7327 = vunpack.c.l.b16 %v5818
    %v7328 = vunpack.c.h.b16 %v5818
    %v7329 = vunpack.c.l.b16 %v5819
    %v7330 = vunpack.c.h.b16 %v5819
    %v7331 = vunpack.c.l.b16 %v5820
    %v7332 = vunpack.c.h.b16 %v5820
    %v7333 = vunpack.c.l.b16 %v5821
    %v7334 = vunpack.c.l.b16 %v5822
    %v7335 = vunpack.c.h.b16 %v5822
    %v7336 = vunpack.c.l.b16 %v5823
    %v7337 = vunpack.c.h.b16 %v5823
    %v7338 = vunpack.c.l.b16 %v5824
    %v7339 = vunpack.c.h.b16 %v5824
    %v7340 = vunpack.c.l.b16 %v5825
    %v7341 = vunpack.c.h.b16 %v5825
    %v7342 = vunpack.c.l.b16 %v5826
    %v7343 = vunpack.c.l.b16 %v5827
    %v7344 = vunpack.c.h.b16 %v5827
    %v7345 = vunpack.c.l.b16 %v5828
    %v7346 = vunpack.c.h.b16 %v5828
    %v7347 = vunpack.c.l.b16 %v5829
    %v7348 = vunpack.c.h.b16 %v5829
    %v7349 = vunpack.c.l.b16 %v5830
    %v7350 = vunpack.c.h.b16 %v5830
    %v7351 = vunpack.c.l.b16 %v5831
    %v7352 = vunpack.c.l.b16 %v5832
    %v7353 = vunpack.c.h.b16 %v5832
    %v7354 = vunpack.c.l.b16 %v5833
    %v7355 = vunpack.c.h.b16 %v5833
    %v7356 = vunpack.c.l.b16 %v5834
    %v7357 = vunpack.c.h.b16 %v5834
    %v7358 = vunpack.c.l.b16 %v5835
    %v7359 = vunpack.c.h.b16 %v5835
    %v7360 = vunpack.c.l.b16 %v5836
    %v7361 = vunpack.c.l.b16 %v5837
    %v7362 = vunpack.c.h.b16 %v5837
    %v7363 = vunpack.c.l.b16 %v5838
    %v7364 = vunpack.c.h.b16 %v5838
    %v7365 = vunpack.c.l.b16 %v5839
    %v7366 = vunpack.c.h.b16 %v5839
    %v7367 = vunpack.c.l.b16 %v5840
    %v7368 = vunpack.c.h.b16 %v5840
    %v7369 = vunpack.c.l.b16 %v5841
    %v7370 = vunpack.c.l.b16 %v5842
    %v7371 = vunpack.c.h.b16 %v5842
    %v7372 = vunpack.c.l.b16 %v5843
    %v7373 = vunpack.c.h.b16 %v5843
    %v7374 = vunpack.c.l.b16 %v5844
    %v7375 = vunpack.c.h.b16 %v5844
    %v7376 = vunpack.c.l.b16 %v5845
    %v7377 = vunpack.c.h.b16 %v5845
    %v7378 = vunpack.c.l.b16 %v5846
    %v7379 = vunpack.c.l.b16 %v5847
    %v7380 = vunpack.c.h.b16 %v5847
    %v7381 = vunpack.c.l.b16 %v5848
    %v7382 = vunpack.c.h.b16 %v5848
    %v7383 = vunpack.c.l.b16 %v5849
    %v7384 = vunpack.c.h.b16 %v5849
    %v7385 = vunpack.c.l.b16 %v5850
    %v7386 = vunpack.c.h.b16 %v5850
    %v7387 = vunpack.c.l.b16 %v5851
    %v7388 = vunpack.c.l.b16 %v5852
    %v7389 = vunpack.c.h.b16 %v5852
    %v7390 = vunpack.c.l.b16 %v5853
    %v7391 = vunpack.c.h.b16 %v5853
    %v7392 = vunpack.c.l.b16 %v5854
    %v7393 = vunpack.c.h.b16 %v5854
    %v7394 = vunpack.c.l.b16 %v5855
    %v7395 = vunpack.c.h.b16 %v5855
    %v7396 = vunpack.c.l.b16 %v5856
    %v7397 = vunpack.c.l.b16 %v5857
    %v7398 = vunpack.c.h.b16 %v5857
    %v7399 = vunpack.c.l.b16 %v5858
    %v7400 = vunpack.c.h.b16 %v5858
    %v7401 = vunpack.c.l.b16 %v5859
    %v7402 = vunpack.c.h.b16 %v5859
    %v7403 = vunpack.c.l.b16 %v5860
    %v7404 = vunpack.c.h.b16 %v5860
    %v7405 = vunpack.c.l.b16 %v5861
    %v7406 = vunpack.c.l.b16 %v5862
    %v7407 = vunpack.c.h.b16 %v5862
    %v7408 = vunpack.c.l.b16 %v5863
    %v7409 = vunpack.c.h.b16 %v5863
    %v7410 = vunpack.c.l.b16 %v5864
    %v7411 = vunpack.c.h.b16 %v5864
    %v7412 = vunpack.c.l.b16 %v5865
    %v7413 = vunpack.c.h.b16 %v5865
    %v7414 = vunpack.c.l.b16 %v5866
    %v7415 = vunpack.c.l.b16 %v5867
    %v7416 = vunpack.c.h.b16 %v5867
    %v7417 = vunpack.c.l.b16 %v5868
    %v7418 = vunpack.c.h.b16 %v5868
    %v7419 = vunpack.c.l.b16 %v5869
    %v7420 = vunpack.c.h.b16 %v5869
    %v7421 = vunpack.c.l.b16 %v5870
    %v7422 = vunpack.c.h.b16 %v5870
    %v7423 = vunpack.c.l.b16 %v5871
    %v7424 = vunpack.c.l.b16 %v5872
    %v7425 = vunpack.c.h.b16 %v5872
    %v7426 = vunpack.c.l.b16 %v5873
    %v7427 = vunpack.c.h.b16 %v5873
    %v7428 = vunpack.c.l.b16 %v5874
    %v7429 = vunpack.c.h.b16 %v5874
    %v7430 = vunpack.c.l.b16 %v5875
    %v7431 = vunpack.c.h.b16 %v5875
    %v7432 = vunpack.c.l.b16 %v5876
    %v7433 = vunpack.c.l.b16 %v5877
    %v7434 = vunpack.c.h.b16 %v5877
    %v7435 = vunpack.c.l.b16 %v5878
    %v7436 = vunpack.c.h.b16 %v5878
    %v7437 = vunpack.c.l.b16 %v5879
    %v7438 = vunpack.c.h.b16 %v5879
    %v7439 = vunpack.c.l.b16 %v5880
    %v7440 = vunpack.c.h.b16 %v5880
    %v7441 = vunpack.c.l.b16 %v5881
    %v7442 = vunpack.c.l.b16 %v5882
    %v7443 = vunpack.c.h.b16 %v5882
    %v7444 = vunpack.c.l.b16 %v5883
    %v7445 = vunpack.c.h.b16 %v5883
    %v7446 = vunpack.c.l.b16 %v5884
    %v7447 = vunpack.c.h.b16 %v5884
    %v7448 = vunpack.c.l.b16 %v5885
    %v7449 = vunpack.c.h.b16 %v5885
    %v7450 = vunpack.c.l.b16 %v5886
    %v7451 = vunpack.c.l.b16 %v5887
    %v7452 = vunpack.c.h.b16 %v5887
    %v7453 = vunpack.c.l.b16 %v5888
    %v7454 = vunpack.c.h.b16 %v5888
    %v7455 = vunpack.c.l.b16 %v5889
    %v7456 = vunpack.c.h.b16 %v5889
    %v7457 = vunpack.c.l.b16 %v5890
    %v7458 = vunpack.c.h.b16 %v5890
    %v7459 = vunpack.c.l.b16 %v5891
    %v7460 = vunpack.c.l.b16 %v5892
    %v7461 = vunpack.c.h.b16 %v5892
    %v7462 = vunpack.c.l.b16 %v5893
    %v7463 = vunpack.c.h.b16 %v5893
    %v7464 = vunpack.c.l.b16 %v5894
    %v7465 = vunpack.c.h.b16 %v5894
    %v7466 = vunpack.c.l.b16 %v5895
    %v7467 = vunpack.c.h.b16 %v5895
    %v7468 = vunpack.c.l.b16 %v5896
    %v7469 = vunpack.c.l.b16 %v5897
    %v7470 = vunpack.c.h.b16 %v5897
    %v7471 = vunpack.c.l.b16 %v5898
    %v7472 = vunpack.c.h.b16 %v5898
    %v7473 = vunpack.c.l.b16 %v5899
    %v7474 = vunpack.c.h.b16 %v5899
    %v7475 = vunpack.c.l.b16 %v5900
    %v7476 = vunpack.c.h.b16 %v5900
    %v7477 = vunpack.c.l.b16 %v5901
    %v7478 = vunpack.c.l.b16 %v5902
    %v7479 = vunpack.c.h.b16 %v5902
    %v7480 = vunpack.c.l.b16 %v5903
    %v7481 = vunpack.c.h.b16 %v5903
    %v7482 = vunpack.c.l.b16 %v5904
    %v7483 = vunpack.c.h.b16 %v5904
    %v7484 = vunpack.c.l.b16 %v5905
    %v7485 = vunpack.c.h.b16 %v5905
    %v7486 = vunpack.c.l.b16 %v5906
    %v7487 = vunpack.c.l.b16 %v5907
    %v7488 = vunpack.c.h.b16 %v5907
    %v7489 = vunpack.c.l.b16 %v5908
    %v7490 = vunpack.c.h.b16 %v5908
    %v7491 = vunpack.c.l.b16 %v5909
    %v7492 = vunpack.c.h.b16 %v5909
    %v7493 = vunpack.c.l.b16 %v5910
    %v7494 = vunpack.c.h.b16 %v5910
    %v7495 = vunpack.c.l.b16 %v5911
    %v7496 = vunpack.c.l.b16 %v5912
    %v7497 = vunpack.c.h.b16 %v5912
    %v7498 = vunpack.c.l.b16 %v5913
    %v7499 = vunpack.c.h.b16 %v5913
    %v7500 = vunpack.c.l.b16 %v5914
    %v7501 = vunpack.c.h.b16 %v5914
    %v7502 = vunpack.c.l.b16 %v5915
    %v7503 = vunpack.c.h.b16 %v5915
    %v7504 = vunpack.c.l.b16 %v5916
    %v7505 = vunpack.c.l.b16 %v5917
    %v7506 = vunpack.c.h.b16 %v5917
    %v7507 = vunpack.c.l.b16 %v5918
    %v7508 = vunpack.c.h.b16 %v5918
    %v7509 = vunpack.c.l.b16 %v5919
    %v7510 = vunpack.c.h.b16 %v5919
    %v7511 = vunpack.c.l.b16 %v5920
    %v7512 = vunpack.c.h.b16 %v5920
    %v7513 = vunpack.c.l.b16 %v5921
    %v7514 = vunpack.c.l.b16 %v5922
    %v7515 = vunpack.c.h.b16 %v5922
    %v7516 = vunpack.c.l.b16 %v5923
    %v7517 = vunpack.c.h.b16 %v5923
    %v7518 = vunpack.c.l.b16 %v5924
    %v7519 = vunpack.c.h.b16 %v5924
    %v7520 = vunpack.c.l.b16 %v5925
    %v7521 = vunpack.c.h.b16 %v5925
    %v7522 = vunpack.c.l.b16 %v5926
    %v7523 = vunpack.c.l.b16 %v5927
    %v7524 = vunpack.c.h.b16 %v5927
    %v7525 = vunpack.c.l.b16 %v5928
    %v7526 = vunpack.c.h.b16 %v5928
    %v7527 = vunpack.c.l.b16 %v5929
    %v7528 = vunpack.c.h.b16 %v5929
    %v7529 = vunpack.c.l.b16 %v5930
    %v7530 = vunpack.c.h.b16 %v5930
    %v7531 = vunpack.c.l.b16 %v5931
    %v7532 = vunpack.c.l.b16 %v5932
    %v7533 = vunpack.c.h.b16 %v5932
    %v7534 = vunpack.c.l.b16 %v5933
    %v7535 = vunpack.c.h.b16 %v5933
    %v7536 = vunpack.c.l.b16 %v5934
    %v7537 = vunpack.c.h.b16 %v5934
    %v7538 = vunpack.c.l.b16 %v5935
    %v7539 = vunpack.c.h.b16 %v5935
    %v7540 = vunpack.c.l.b16 %v5936
    %v7541 = vunpack.c.l.b16 %v5937
    %v7542 = vunpack.c.h.b16 %v5937
    %v7543 = vunpack.c.l.b16 %v5938
    %v7544 = vunpack.c.h.b16 %v5938
    %v7545 = vunpack.c.l.b16 %v5939
    %v7546 = vunpack.c.h.b16 %v5939
    %v7547 = vunpack.c.l.b16 %v5940
    %v7548 = vunpack.c.h.b16 %v5940
    %v7549 = vunpack.c.l.b16 %v5941
    %v7550 = vunpack.c.l.b16 %v5942
    %v7551 = vunpack.c.h.b16 %v5942
    %v7552 = vunpack.c.l.b16 %v5943
    %v7553 = vunpack.c.h.b16 %v5943
    %v7554 = vunpack.c.l.b16 %v5944
    %v7555 = vunpack.c.h.b16 %v5944
    %v7556 = vunpack.c.l.b16 %v5945
    %v7557 = vunpack.c.h.b16 %v5945
    %v7558 = vunpack.c.l.b16 %v5946
    %v7559 = vunpack.c.l.b16 %v5947
    %v7560 = vunpack.c.h.b16 %v5947
    %v7561 = vunpack.c.l.b16 %v5948
    %v7562 = vunpack.c.h.b16 %v5948
    %v7563 = vunpack.c.l.b16 %v5949
    %v7564 = vunpack.c.h.b16 %v5949
    %v7565 = vunpack.c.l.b16 %v5950
    %v7566 = vunpack.c.h.b16 %v5950
    %v7567 = vunpack.c.l.b16 %v5951
    %v7568 = vunpack.c.l.b16 %v5952
    %v7569 = vunpack.c.h.b16 %v5952
    %v7570 = vunpack.c.l.b16 %v5953
    %v7571 = vunpack.c.h.b16 %v5953
    %v7572 = vunpack.c.l.b16 %v5954
    %v7573 = vunpack.c.h.b16 %v5954
    %v7574 = vunpack.c.l.b16 %v5955
    %v7575 = vunpack.c.h.b16 %v5955
    %v7576 = vunpack.c.l.b16 %v5956
    %v7577 = vunpack.c.l.b16 %v5957
    %v7578 = vunpack.c.h.b16 %v5957
    %v7579 = vunpack.c.l.b16 %v5958
    %v7580 = vunpack.c.h.b16 %v5958
    %v7581 = vunpack.c.l.b16 %v5959
    %v7582 = vunpack.c.h.b16 %v5959
    %v7583 = vunpack.c.l.b16 %v5960
    %v7584 = vunpack.c.h.b16 %v5960
    %v7585 = vunpack.c.l.b16 %v5961
    %v7586 = vunpack.c.l.b16 %v5962
    %v7587 = vunpack.c.h.b16 %v5962
    %v7588 = vunpack.c.l.b16 %v5963
    %v7589 = vunpack.c.h.b16 %v5963
    %v7590 = vunpack.c.l.b16 %v5964
    %v7591 = vunpack.c.h.b16 %v5964
    %v7592 = vunpack.c.l.b16 %v5965
    %v7593 = vunpack.c.h.b16 %v5965
    %v7594 = vunpack.c.l.b16 %v5966
    %v7595 = vunpack.c.l.b16 %v5967
    %v7596 = vunpack.c.h.b16 %v5967
    %v7597 = vunpack.c.l.b16 %v5968
    %v7598 = vunpack.c.h.b16 %v5968
    %v7599 = vunpack.c.l.b16 %v5969
    %v7600 = vunpack.c.h.b16 %v5969
    %v7601 = vunpack.c.l.b16 %v5970
    %v7602 = vunpack.c.h.b16 %v5970
    %v7603 = vunpack.c.l.b16 %v5971
    %v7604 = vunpack.c.l.b16 %v5972
    %v7605 = vunpack.c.h.b16 %v5972
    %v7606 = vunpack.c.l.b16 %v5973
    %v7607 = vunpack.c.h.b16 %v5973
    %v7608 = vunpack.c.l.b16 %v5974
    %v7609 = vunpack.c.h.b16 %v5974
    %v7610 = vunpack.c.l.b16 %v5975
    %v7611 = vunpack.c.h.b16 %v5975
    %v7612 = vunpack.c.l.b16 %v5976
    %v7613 = vunpack.c.l.b16 %v5977
    %v7614 = vunpack.c.h.b16 %v5977
    %v7615 = vunpack.c.l.b16 %v5978
    %v7616 = vunpack.c.h.b16 %v5978
    %v7617 = vunpack.c.l.b16 %v5979
    %v7618 = vunpack.c.h.b16 %v5979
    %v7619 = vunpack.c.l.b16 %v5980
    %v7620 = vunpack.c.h.b16 %v5980
    %v7621 = vunpack.c.l.b16 %v5981
    %v7622 = vunpack.c.l.b16 %v5982
    %v7623 = vunpack.c.h.b16 %v5982
    %v7624 = vunpack.c.l.b16 %v5983
    %v7625 = vunpack.c.h.b16 %v5983
    %v7626 = vunpack.c.l.b16 %v5984
    %v7627 = vunpack.c.h.b16 %v5984
    %v7628 = vunpack.c.l.b16 %v5985
    %v7629 = vunpack.c.h.b16 %v5985
    %v7630 = vunpack.c.l.b16 %v5986
    %v7631 = vunpack.c.l.b16 %v5987
    %v7632 = vunpack.c.h.b16 %v5987
    %v7633 = vunpack.c.l.b16 %v5988
    %v7634 = vunpack.c.h.b16 %v5988
    %v7635 = vunpack.c.l.b16 %v5989
    %v7636 = vunpack.c.h.b16 %v5989
    %v7637 = vunpack.c.l.b16 %v5990
    %v7638 = vunpack.c.h.b16 %v5990
    %v7639 = vunpack.c.l.b16 %v5991
    %v7640 = vunpack.c.l.b16 %v5992
    %v7641 = vunpack.c.h.b16 %v5992
    %v7642 = vunpack.c.l.b16 %v5993
    %v7643 = vunpack.c.h.b16 %v5993
    %v7644 = vunpack.c.l.b16 %v5994
    %v7645 = vunpack.c.h.b16 %v5994
    %v7646 = vunpack.c.l.b16 %v5995
    %v7647 = vunpack.c.h.b16 %v5995
    %v7648 = vunpack.c.l.b16 %v5996
    %v7649 = vunpack.c.l.b16 %v5997
    %v7650 = vunpack.c.h.b16 %v5997
    %v7651 = vunpack.c.l.b16 %v5998
    %v7652 = vunpack.c.h.b16 %v5998
    %v7653 = vunpack.c.l.b16 %v5999
    %v7654 = vunpack.c.h.b16 %v5999
    %v7655 = vunpack.c.l.b16 %v6000
    %v7656 = vunpack.c.h.b16 %v6000
    %v7657 = vunpack.c.l.b16 %v6001
    %v7658 = vunpack.c.l.b16 %v6002
    %v7659 = vunpack.c.h.b16 %v6002
    %v7660 = vunpack.c.l.b16 %v6003
    %v7661 = vunpack.c.h.b16 %v6003
    %v7662 = vunpack.c.l.b16 %v6004
    %v7663 = vunpack.c.h.b16 %v6004
    %v7664 = vunpack.c.l.b16 %v6005
    %v7665 = vunpack.c.h.b16 %v6005
    %v7666 = vunpack.c.l.b16 %v6006
    %v7667 = vunpack.c.l.b16 %v6007
    %v7668 = vunpack.c.h.b16 %v6007
    %v7669 = vunpack.c.l.b16 %v6008
    %v7670 = vunpack.c.h.b16 %v6008
    %v7671 = vunpack.c.l.b16 %v6009
    %v7672 = vunpack.c.h.b16 %v6009
    %v7673 = vunpack.c.l.b16 %v6010
    %v7674 = vunpack.c.h.b16 %v6010
    %v7675 = vunpack.c.l.b16 %v6011
    %v7676 = vunpack.c.l.b16 %v6012
    %v7677 = vunpack.c.h.b16 %v6012
    %v7678 = vunpack.c.l.b16 %v6013
    %v7679 = vunpack.c.h.b16 %v6013
    %v7680 = vunpack.c.l.b16 %v6014
    %v7681 = vunpack.c.h.b16 %v6014
    %v7682 = vunpack.c.l.b16 %v6015
    %v7683 = vunpack.c.h.b16 %v6015
    %v7684 = vunpack.c.l.b16 %v6016
    %v7685 = vunpack.c.l.b16 %v6017
    %v7686 = vunpack.c.h.b16 %v6017
    %v7687 = vunpack.c.l.b16 %v6018
    %v7688 = vunpack.c.h.b16 %v6018
    %v7689 = vunpack.c.l.b16 %v6019
    %v7690 = vunpack.c.h.b16 %v6019
    %v7691 = vunpack.c.l.b16 %v6020
    %v7692 = vunpack.c.h.b16 %v6020
    %v7693 = vunpack.c.l.b16 %v6021
    %v7694 = vunpack.c.l.b16 %v6022
    %v7695 = vunpack.c.h.b16 %v6022
    %v7696 = vunpack.c.l.b16 %v6023
    %v7697 = vunpack.c.h.b16 %v6023
    %v7698 = vunpack.c.l.b16 %v6024
    %v7699 = vunpack.c.h.b16 %v6024
    %v7700 = vunpack.c.l.b16 %v6025
    %v7701 = vunpack.c.h.b16 %v6025
    %v7702 = vunpack.c.l.b16 %v6026
    %v7703 = vunpack.c.l.b16 %v6027
    %v7704 = vunpack.c.h.b16 %v6027
    %v7705 = vunpack.c.l.b16 %v6028
    %v7706 = vunpack.c.h.b16 %v6028
    %v7707 = vunpack.c.l.b16 %v6029
    %v7708 = vunpack.c.h.b16 %v6029
    %v7709 = vunpack.c.l.b16 %v6030
    %v7710 = vunpack.c.h.b16 %v6030
    %v7711 = vunpack.c.l.b16 %v6031
    %v7712 = vunpack.c.l.b16 %v6032
    %v7713 = vunpack.c.h.b16 %v6032
    %v7714 = vunpack.c.l.b16 %v6033
    %v7715 = vunpack.c.h.b16 %v6033
    %v7716 = vunpack.c.l.b16 %v6034
    %v7717 = vunpack.c.h.b16 %v6034
    %v7718 = vunpack.c.l.b16 %v6035
    %v7719 = vunpack.c.h.b16 %v6035
    %v7720 = vunpack.c.l.b16 %v6036
    %v7721 = vunpack.c.l.b16 %v6037
    %v7722 = vunpack.c.h.b16 %v6037
    %v7723 = vunpack.c.l.b16 %v6038
    %v7724 = vunpack.c.h.b16 %v6038
    %v7725 = vunpack.c.l.b16 %v6039
    %v7726 = vunpack.c.h.b16 %v6039
    %v7727 = vunpack.c.l.b16 %v6040
    %v7728 = vunpack.c.h.b16 %v6040
    %v7729 = vunpack.c.l.b16 %v6041
    %v7730 = vunpack.c.l.b16 %v6042
    %v7731 = vunpack.c.h.b16 %v6042
    %v7732 = vunpack.c.l.b16 %v6043
    %v7733 = vunpack.c.h.b16 %v6043
    %v7734 = vunpack.c.l.b16 %v6044
    %v7735 = vunpack.c.h.b16 %v6044
    %v7736 = vunpack.c.l.b16 %v6045
    %v7737 = vunpack.c.h.b16 %v6045
    %v7738 = vunpack.c.l.b16 %v6046
    %v7739 = vunpack.c.l.b16 %v6047
    %v7740 = vunpack.c.h.b16 %v6047
    %v7741 = vunpack.c.l.b16 %v6048
    %v7742 = vunpack.c.h.b16 %v6048
    %v7743 = vunpack.c.l.b16 %v6049
    %v7744 = vunpack.c.h.b16 %v6049
    %v7745 = vunpack.c.l.b16 %v6050
    %v7746 = vunpack.c.h.b16 %v6050
    %v7747 = vunpack.c.l.b16 %v6051
    %v7748 = vunpack.c.l.b16 %v6052
    %v7749 = vunpack.c.h.b16 %v6052
    %v7750 = vunpack.c.l.b16 %v6053
    %v7751 = vunpack.c.h.b16 %v6053
    %v7752 = vunpack.c.l.b16 %v6054
    %v7753 = vunpack.c.h.b16 %v6054
    %v7754 = vunpack.c.l.b16 %v6055
    %v7755 = vunpack.c.h.b16 %v6055
    %v7756 = vunpack.c.l.b16 %v6056
    %v7757 = vunpack.c.l.b16 %v6057
    %v7758 = vunpack.c.h.b16 %v6057
    %v7759 = vunpack.c.l.b16 %v6058
    %v7760 = vunpack.c.h.b16 %v6058
    %v7761 = vunpack.c.l.b16 %v6059
    %v7762 = vunpack.c.h.b16 %v6059
    %v7763 = vunpack.c.l.b16 %v6060
    %v7764 = vunpack.c.h.b16 %v6060
    %v7765 = vunpack.c.l.b16 %v6061
    %v7766 = vunpack.c.l.b16 %v6062
    %v7767 = vunpack.c.h.b16 %v6062
    %v7768 = vunpack.c.l.b16 %v6063
    %v7769 = vunpack.c.h.b16 %v6063
    %v7770 = vunpack.c.l.b16 %v6064
    %v7771 = vunpack.c.h.b16 %v6064
    %v7772 = vunpack.c.l.b16 %v6065
    %v7773 = vunpack.c.h.b16 %v6065
    %v7774 = vunpack.c.l.b16 %v6066
    %v7775 = vunpack.c.l.b16 %v6067
    %v7776 = vunpack.c.h.b16 %v6067
    %v7777 = vunpack.c.l.b16 %v6068
    %v7778 = vunpack.c.h.b16 %v6068
    %v7779 = vunpack.c.l.b16 %v6069
    %v7780 = vunpack.c.h.b16 %v6069
    %v7781 = vunpack.c.l.b16 %v6070
    %v7782 = vunpack.c.h.b16 %v6070
    %v7783 = vunpack.c.l.b16 %v6071
    %v7784 = vunpack.c.l.b16 %v6072
    %v7785 = vunpack.c.h.b16 %v6072
    %v7786 = vunpack.c.l.b16 %v6073
    %v7787 = vunpack.c.h.b16 %v6073
    %v7788 = vunpack.c.l.b16 %v6074
    %v7789 = vunpack.c.h.b16 %v6074
    %v7790 = vunpack.c.l.b16 %v6075
    %v7791 = vunpack.c.h.b16 %v6075
    %v7792 = vunpack.c.l.b16 %v6076
    %v7793 = vunpack.c.l.b16 %v6077
    %v7794 = vunpack.c.h.b16 %v6077
    %v7795 = vunpack.c.l.b16 %v6078
    %v7796 = vunpack.c.h.b16 %v6078
    %v7797 = vunpack.c.l.b16 %v6079
    %v7798 = vunpack.c.h.b16 %v6079
    %v7799 = vunpack.c.l.b16 %v6080
    %v7800 = vunpack.c.h.b16 %v6080
    %v7801 = vunpack.c.l.b16 %v6081
    %v7802 = vunpack.c.l.b16 %v6082
    %v7803 = vunpack.c.h.b16 %v6082
    %v7804 = vunpack.c.l.b16 %v6083
    %v7805 = vunpack.c.h.b16 %v6083
    %v7806 = vunpack.c.l.b16 %v6084
    %v7807 = vunpack.c.h.b16 %v6084
    %v7808 = vunpack.c.l.b16 %v6085
    %v7809 = vunpack.c.h.b16 %v6085
    %v7810 = vunpack.c.l.b16 %v6086
    %v7811 = vunpack.c.l.b16 %v6087
    %v7812 = vunpack.c.h.b16 %v6087
    %v7813 = vunpack.c.l.b16 %v6088
    %v7814 = vunpack.c.h.b16 %v6088
    %v7815 = vunpack.c.l.b16 %v6089
    %v7816 = vunpack.c.h.b16 %v6089
    %v7817 = vunpack.c.l.b16 %v6090
    %v7818 = vunpack.c.h.b16 %v6090
    %v7819 = vunpack.c.l.b16 %v6091
    %v7820 = vunpack.c.l.b16 %v6092
    %v7821 = vunpack.c.h.b16 %v6092
    %v7822 = vunpack.c.l.b16 %v6093
    %v7823 = vunpack.c.h.b16 %v6093
    %v7824 = vunpack.c.l.b16 %v6094
    %v7825 = vunpack.c.h.b16 %v6094
    %v7826 = vunpack.c.l.b16 %v6095
    %v7827 = vunpack.c.h.b16 %v6095
    %v7828 = vunpack.c.l.b16 %v6096
    %v7829 = vunpack.c.l.b16 %v6097
    %v7830 = vunpack.c.h.b16 %v6097
    %v7831 = vunpack.c.l.b16 %v6098
    %v7832 = vunpack.c.h.b16 %v6098
    %v7833 = vunpack.c.l.b16 %v6099
    %v7834 = vunpack.c.h.b16 %v6099
    %v7835 = vunpack.c.l.b16 %v6100
    %v7836 = vunpack.c.h.b16 %v6100
    %v7837 = vunpack.c.l.b16 %v6101
    %v7838 = vunpack.c.l.b16 %v6102
    %v7839 = vunpack.c.h.b16 %v6102
    %v7840 = vunpack.c.l.b16 %v6103
    %v7841 = vunpack.c.h.b16 %v6103
    %v7842 = vunpack.c.l.b16 %v6104
    %v7843 = vunpack.c.h.b16 %v6104
    %v7844 = vunpack.c.l.b16 %v6105
    %v7845 = vunpack.c.h.b16 %v6105
    %v7846 = vunpack.c.l.b16 %v6106
    %v7847 = vunpack.c.l.b16 %v6107
    %v7848 = vunpack.c.h.b16 %v6107
    %v7849 = vunpack.c.l.b16 %v6108
    %v7850 = vunpack.c.h.b16 %v6108
    %v7851 = vunpack.c.l.b16 %v6109
    %v7852 = vunpack.c.h.b16 %v6109
    %v7853 = vunpack.c.l.b16 %v6110
    %v7854 = vunpack.c.h.b16 %v6110
    %v7855 = vunpack.c.l.b16 %v6111
    %v7856 = vunpack.c.l.b16 %v6112
    %v7857 = vunpack.c.h.b16 %v6112
    %v7858 = vunpack.c.l.b16 %v6113
    %v7859 = vunpack.c.h.b16 %v6113
    %v7860 = vunpack.c.l.b16 %v6114
    %v7861 = vunpack.c.h.b16 %v6114
    %v7862 = vunpack.c.l.b16 %v6115
    %v7863 = vunpack.c.h.b16 %v6115
    %v7864 = vunpack.c.l.b16 %v6116
    %v7865 = vunpack.c.l.b16 %v6117
    %v7866 = vunpack.c.h.b16 %v6117
    %v7867 = vunpack.c.l.b16 %v6118
    %v7868 = vunpack.c.h.b16 %v6118
    %v7869 = vunpack.c.l.b16 %v6119
    %v7870 = vunpack.c.h.b16 %v6119
    %v7871 = vunpack.c.l.b16 %v6120
    %v7872 = vunpack.c.h.b16 %v6120
    %v7873 = vunpack.c.l.b16 %v6121
    %v7874 = vunpack.c.l.b16 %v6122
    %v7875 = vunpack.c.h.b16 %v6122
    %v7876 = vunpack.c.l.b16 %v6123
    %v7877 = vunpack.c.h.b16 %v6123
    %v7878 = vunpack.c.l.b16 %v6124
    %v7879 = vunpack.c.h.b16 %v6124
    %v7880 = vunpack.c.l.b16 %v6125
    %v7881 = vunpack.c.h.b16 %v6125
    %v7882 = vunpack.c.l.b16 %v6126
    %v7883 = vunpack.c.l.b16 %v6127
    %v7884 = vunpack.c.h.b16 %v6127
    %v7885 = vunpack.c.l.b16 %v6128
    %v7886 = vunpack.c.h.b16 %v6128
    %v7887 = vunpack.c.l.b16 %v6129
    %v7888 = vunpack.c.h.b16 %v6129
    %v7889 = vunpack.c.l.b16 %v6130
    %v7890 = vunpack.c.h.b16 %v6130
    %v7891 = vunpack.c.l.b16 %v6131
    %v7892 = vunpack.c.l.b16 %v6132
    %v7893 = vunpack.c.h.b16 %v6132
    %v7894 = vunpack.c.l.b16 %v6133
    %v7895 = vunpack.c.h.b16 %v6133
    %v7896 = vunpack.c.l.b16 %v6134
    %v7897 = vunpack.c.h.b16 %v6134
    %v7898 = vunpack.c.l.b16 %v6135
    %v7899 = vunpack.c.h.b16 %v6135
    %v7900 = vunpack.c.l.b16 %v6136
    %v7901 = vunpack.c.l.b16 %v6137
    %v7902 = vunpack.c.h.b16 %v6137
    %v7903 = vunpack.c.l.b16 %v6138
    %v7904 = vunpack.c.h.b16 %v6138
    %v7905 = vunpack.c.l.b16 %v6139
    %v7906 = vunpack.c.h.b16 %v6139
    %v7907 = vunpack.c.l.b16 %v6140
    %v7908 = vunpack.c.h.b16 %v6140
    %v7909 = vunpack.c.l.b16 %v6141
    %v7910 = vunpack.c.l.b16 %v6142
    %v7911 = vunpack.c.h.b16 %v6142
    %v7912 = vunpack.c.l.b16 %v6143
    %v7913 = vunpack.c.h.b16 %v6143
    %v7914 = vunpack.c.l.b16 %v6144
    %v7915 = vunpack.c.h.b16 %v6144
    %v7916 = vunpack.c.l.b16 %v6145
    %v7917 = vunpack.c.h.b16 %v6145
    %v7918 = vunpack.c.l.b16 %v6146
    %v7919 = vunpack.c.l.b16 %v6147
    %v7920 = vunpack.c.h.b16 %v6147
    %v7921 = vunpack.c.l.b16 %v6148
    %v7922 = vunpack.c.h.b16 %v6148
    %v7923 = vunpack.c.l.b16 %v6149
    %v7924 = vunpack.c.h.b16 %v6149
    %v7925 = vunpack.c.l.b16 %v6150
    %v7926 = vunpack.c.h.b16 %v6150
    %v7927 = vunpack.c.l.b16 %v6151
    %v7928 = vunpack.c.l.b16 %v6152
    %v7929 = vunpack.c.h.b16 %v6152
    %v7930 = vunpack.c.l.b16 %v6153
    %v7931 = vunpack.c.h.b16 %v6153
    %v7932 = vunpack.c.l.b16 %v6154
    %v7933 = vunpack.c.h.b16 %v6154
    %v7934 = vunpack.c.l.b16 %v6155
    %v7935 = vunpack.c.h.b16 %v6155
    %v7936 = vunpack.c.l.b16 %v6156
    %v7937 = vunpack.c.l.b16 %v6157
    %v7938 = vunpack.c.h.b16 %v6157
    %v7939 = vunpack.c.l.b16 %v6158
    %v7940 = vunpack.c.h.b16 %v6158
    %v7941 = vunpack.c.l.b16 %v6159
    %v7942 = vunpack.c.h.b16 %v6159
    %v7943 = vunpack.c.l.b16 %v6160
    %v7944 = vunpack.c.h.b16 %v6160
    %v7945 = vunpack.c.l.b16 %v6161
    %v7946 = vunpack.c.l.b16 %v6162
    %v7947 = vunpack.c.h.b16 %v6162
    %v7948 = vunpack.c.l.b16 %v6163
    %v7949 = vunpack.c.h.b16 %v6163
    %v7950 = vunpack.c.l.b16 %v6164
    %v7951 = vunpack.c.h.b16 %v6164
    %v7952 = vunpack.c.l.b16 %v6165
    %v7953 = vunpack.c.h.b16 %v6165
    %v7954 = vunpack.c.l.b16 %v6166
    %v7955 = vunpack.c.l.b16 %v6167
    %v7956 = vunpack.c.h.b16 %v6167
    %v7957 = vunpack.c.l.b16 %v6168
    %v7958 = vunpack.c.h.b16 %v6168
    %v7959 = vunpack.c.l.b16 %v6169
    %v7960 = vunpack.c.h.b16 %v6169
    %v7961 = vunpack.c.l.b16 %v6170
    %v7962 = vunpack.c.h.b16 %v6170
    %v7963 = vunpack.c.l.b16 %v6171
    %v7964 = vunpack.c.l.b16 %v6172
    %v7965 = vunpack.c.h.b16 %v6172
    %v7966 = vunpack.c.l.b16 %v6173
    %v7967 = vunpack.c.h.b16 %v6173
    %v7968 = vunpack.c.l.b16 %v6174
    %v7969 = vunpack.c.h.b16 %v6174
    %v7970 = vunpack.c.l.b16 %v6175
    %v7971 = vunpack.c.h.b16 %v6175
    %v7972 = vunpack.c.l.b16 %v6176
    %v7973 = vunpack.c.l.b16 %v6177
    %v7974 = vunpack.c.h.b16 %v6177
    %v7975 = vunpack.c.l.b16 %v6178
    %v7976 = vunpack.c.h.b16 %v6178
    %v7977 = vunpack.c.l.b16 %v6179
    %v7978 = vunpack.c.h.b16 %v6179
    %v7979 = vunpack.c.l.b16 %v6180
    %v7980 = vunpack.c.h.b16 %v6180
    %v7981 = vunpack.c.l.b16 %v6181
    %v7982 = vunpack.c.l.b16 %v6182
    %v7983 = vunpack.c.h.b16 %v6182
    %v7984 = vunpack.c.l.b16 %v6183
    %v7985 = vunpack.c.h.b16 %v6183
    %v7986 = vunpack.c.l.b16 %v6184
    %v7987 = vunpack.c.h.b16 %v6184
    %v7988 = vunpack.c.l.b16 %v6185
    %v7989 = vunpack.c.h.b16 %v6185
    %v7990 = vunpack.c.l.b16 %v6186
    %v7991 = vunpack.c.l.b16 %v6187
    %v7992 = vunpack.c.h.b16 %v6187
    %v7993 = vunpack.c.l.b16 %v6188
    %v7994 = vunpack.c.h.b16 %v6188
    %v7995 = vunpack.c.l.b16 %v6189
    %v7996 = vunpack.c.h.b16 %v6189
    %v7997 = vunpack.c.l.b16 %v6190
    %v7998 = vunpack.c.h.b16 %v6190
    %v7999 = vunpack.c.l.b16 %v6191
    %v8000 = vunpack.c.l.b16 %v6192
    %v8001 = vunpack.c.h.b16 %v6192
    %v8002 = vunpack.c.l.b16 %v6193
    %v8003 = vunpack.c.h.b16 %v6193
    %v8004 = vunpack.c.l.b16 %v6194
    %v8005 = vunpack.c.h.b16 %v6194
    %v8006 = vunpack.c.l.b16 %v6195
    %v8007 = vunpack.c.h.b16 %v6195
    %v8008 = vunpack.c.l.b16 %v6196
    %v8009 = vunpack.c.l.b16 %v6197
    %v8010 = vunpack.c.h.b16 %v6197
    %v8011 = vunpack.c.l.b16 %v6198
    %v8012 = vunpack.c.h.b16 %v6198
    %v8013 = vunpack.c.l.b16 %v6199
    %v8014 = vunpack.c.h.b16 %v6199
    %v8015 = vunpack.c.l.b16 %v6200
    %v8016 = vunpack.c.h.b16 %v6200
    %v8017 = vunpack.c.l.b16 %v6201
    %v8018 = vunpack.c.l.b16 %v6202
    %v8019 = vunpack.c.h.b16 %v6202
    %v8020 = vunpack.c.l.b16 %v6203
    %v8021 = vunpack.c.h.b16 %v6203
    %v8022 = vunpack.c.l.b16 %v6204
    %v8023 = vunpack.c.h.b16 %v6204
    %v8024 = vunpack.c.l.b16 %v6205
    %v8025 = vunpack.c.h.b16 %v6205
    %v8026 = vunpack.c.l.b16 %v6206
    %v8027 = vunpack.c.l.b16 %v6207
    %v8028 = vunpack.c.h.b16 %v6207
    %v8029 = vunpack.c.l.b16 %v6208
    %v8030 = vunpack.c.h.b16 %v6208
    %v8031 = vunpack.c.l.b16 %v6209
    %v8032 = vunpack.c.h.b16 %v6209
    %v8033 = vunpack.c.l.b16 %v6210
    %v8034 = vunpack.c.h.b16 %v6210
    %v8035 = vunpack.c.l.b16 %v6211
    %v8036 = vunpack.c.l.b16 %v6212
    %v8037 = vunpack.c.h.b16 %v6212
    %v8038 = vunpack.c.l.b16 %v6213
    %v8039 = vunpack.c.h.b16 %v6213
    %v8040 = vunpack.c.l.b16 %v6214
    %v8041 = vunpack.c.h.b16 %v6214
    %v8042 = vunpack.c.l.b16 %v6215
    %v8043 = vunpack.c.h.b16 %v6215
    %v8044 = vunpack.c.l.b16 %v6216
    %v8045 = vunpack.c.l.b16 %v6217
    %v8046 = vunpack.c.h.b16 %v6217
    %v8047 = vunpack.c.l.b16 %v6218
    %v8048 = vunpack.c.h.b16 %v6218
    %v8049 = vunpack.c.l.b16 %v6219
    %v8050 = vunpack.c.h.b16 %v6219
    %v8051 = vunpack.c.l.b16 %v6220
    %v8052 = vunpack.c.h.b16 %v6220
    %v8053 = vunpack.c.l.b16 %v6221
    %v8054 = vunpack.c.l.b16 %v6222
    %v8055 = vunpack.c.h.b16 %v6222
    %v8056 = vunpack.c.l.b16 %v6223
    %v8057 = vunpack.c.h.b16 %v6223
    %v8058 = vunpack.c.l.b16 %v6224
    %v8059 = vunpack.c.h.b16 %v6224
    %v8060 = vunpack.c.l.b16 %v6225
    %v8061 = vunpack.c.h.b16 %v6225
    %v8062 = vunpack.c.l.b16 %v6226
    %v8063 = vunpack.c.l.b16 %v6227
    %v8064 = vunpack.c.h.b16 %v6227
    %v8065 = vunpack.c.l.b16 %v6228
    %v8066 = vunpack.c.h.b16 %v6228
    %v8067 = vunpack.c.l.b16 %v6229
    %v8068 = vunpack.c.h.b16 %v6229
    %v8069 = vunpack.c.l.b16 %v6230
    %v8070 = vunpack.c.h.b16 %v6230
    %v8071 = vunpack.c.l.b16 %v6231
    %v8072 = vunpack.c.l.b16 %v6232
    %v8073 = vunpack.c.h.b16 %v6232
    %v8074 = vunpack.c.l.b16 %v6233
    %v8075 = vunpack.c.h.b16 %v6233
    %v8076 = vunpack.c.l.b16 %v6234
    %v8077 = vunpack.c.h.b16 %v6234
    %v8078 = vunpack.c.l.b16 %v6235
    %v8079 = vunpack.c.h.b16 %v6235
    %v8080 = vunpack.c.l.b16 %v6236
    %v8081 = vunpack.c.l.b16 %v6237
    %v8082 = vunpack.c.h.b16 %v6237
    %v8083 = vunpack.c.l.b16 %v6238
    %v8084 = vunpack.c.h.b16 %v6238
    %v8085 = vunpack.c.l.b16 %v6239
    %v8086 = vunpack.c.h.b16 %v6239
    %v8087 = vunpack.c.l.b16 %v6240
    %v8088 = vunpack.c.h.b16 %v6240
    %v8089 = vunpack.c.l.b16 %v6241
    %v8090 = vunpack.c.l.b16 %v6242
    %v8091 = vunpack.c.h.b16 %v6242
    %v8092 = vunpack.c.l.b16 %v6243
    %v8093 = vunpack.c.h.b16 %v6243
    %v8094 = vunpack.c.l.b16 %v6244
    %v8095 = vunpack.c.h.b16 %v6244
    %v8096 = vunpack.c.l.b16 %v6245
    %v8097 = vunpack.c.h.b16 %v6245
    %v8098 = vunpack.c.l.b16 %v6246
    %v8099 = vunpack.c.l.b16 %v6247
    %v8100 = vunpack.c.h.b16 %v6247
    %v8101 = vunpack.c.l.b16 %v6248
    %v8102 = vunpack.c.h.b16 %v6248
    %v8103 = vunpack.c.l.b16 %v6249
    %v8104 = vunpack.c.h.b16 %v6249
    %v8105 = vunpack.c.l.b16 %v6250
    %v8106 = vunpack.c.h.b16 %v6250
    %v8107 = vunpack.c.l.b16 %v6251
    %v8108 = vunpack.c.l.b16 %v6252
    %v8109 = vunpack.c.h.b16 %v6252
    %v8110 = vunpack.c.l.b16 %v6253
    %v8111 = vunpack.c.h.b16 %v6253
    %v8112 = vunpack.c.l.b16 %v6254
    %v8113 = vunpack.c.h.b16 %v6254
    %v8114 = vunpack.c.l.b16 %v6255
    %v8115 = vunpack.c.h.b16 %v6255
    %v8116 = vunpack.c.l.b16 %v6256
    %v8117 = vunpack.c.l.b16 %v6257
    %v8118 = vunpack.c.h.b16 %v6257
    %v8119 = vunpack.c.l.b16 %v6258
    %v8120 = vunpack.c.h.b16 %v6258
    %v8121 = vunpack.c.l.b16 %v6259
    %v8122 = vunpack.c.h.b16 %v6259
    %v8123 = vunpack.c.l.b16 %v6260
    %v8124 = vunpack.c.h.b16 %v6260
    %v8125 = vunpack.c.l.b16 %v6261
    %v8126 = vunpack.c.l.b16 %v6262
    %v8127 = vunpack.c.h.b16 %v6262
    %v8128 = vunpack.c.l.b16 %v6263
    %v8129 = vunpack.c.h.b16 %v6263
    %v8130 = vunpack.c.l.b16 %v6264
    %v8131 = vunpack.c.h.b16 %v6264
    %v8132 = vunpack.c.l.b16 %v6265
    %v8133 = vunpack.c.h.b16 %v6265
    %v8134 = vunpack.c.l.b16 %v6266
    %v8135 = vunpack.c.l.b16 %v6267
    %v8136 = vunpack.c.h.b16 %v6267
    %v8137 = vunpack.c.l.b16 %v6268
    %v8138 = vunpack.c.h.b16 %v6268
    %v8139 = vunpack.c.l.b16 %v6269
    %v8140 = vunpack.c.h.b16 %v6269
    %v8141 = vunpack.c.l.b16 %v6270
    %v8142 = vunpack.c.h.b16 %v6270
    %v8143 = vunpack.c.l.b16 %v6271
    %v8144 = vunpack.c.l.b16 %v6272
    %v8145 = vunpack.c.h.b16 %v6272
    %v8146 = vunpack.c.l.b16 %v6273
    %v8147 = vunpack.c.h.b16 %v6273
    %v8148 = vunpack.c.l.b16 %v6274
    %v8149 = vunpack.c.h.b16 %v6274
    %v8150 = vunpack.c.l.b16 %v6275
    %v8151 = vunpack.c.h.b16 %v6275
    %v8152 = vunpack.c.l.b16 %v6276
    %v8153 = vunpack.c.l.b16 %v6277
    %v8154 = vunpack.c.h.b16 %v6277
    %v8155 = vunpack.c.l.b16 %v6278
    %v8156 = vunpack.c.h.b16 %v6278
    %v8157 = vunpack.c.l.b16 %v6279
    %v8158 = vunpack.c.h.b16 %v6279
    %v8159 = vunpack.c.l.b16 %v6280
    %v8160 = vunpack.c.h.b16 %v6280
    %v8161 = vunpack.c.l.b16 %v6281
    %v8162 = vunpack.c.l.b16 %v6282
    %v8163 = vunpack.c.h.b16 %v6282
    %v8164 = vunpack.c.l.b16 %v6283
    %v8165 = vunpack.c.h.b16 %v6283
    %v8166 = vunpack.c.l.b16 %v6284
    %v8167 = vunpack.c.h.b16 %v6284
    %v8168 = vunpack.c.l.b16 %v6285
    %v8169 = vunpack.c.h.b16 %v6285
    %v8170 = vunpack.c.l.b16 %v6286
    %v8171 = vunpack.c.l.b16 %v6287
    %v8172 = vunpack.c.h.b16 %v6287
    %v8173 = vunpack.c.l.b16 %v6288
    %v8174 = vunpack.c.h.b16 %v6288
    %v8175 = vunpack.c.l.b16 %v6289
    %v8176 = vunpack.c.h.b16 %v6289
    %v8177 = vunpack.c.l.b16 %v6290
    %v8178 = vunpack.c.h.b16 %v6290
    %v8179 = vunpack.c.l.b16 %v6291
    %v8180 = vunpack.c.l.b16 %v6292
    %v8181 = vunpack.c.h.b16 %v6292
    %v8182 = vunpack.c.l.b16 %v6293
    %v8183 = vunpack.c.h.b16 %v6293
    %v8184 = vunpack.c.l.b16 %v6294
    %v8185 = vunpack.c.h.b16 %v6294
    %v8186 = vunpack.c.l.b16 %v6295
    %v8187 = vunpack.c.h.b16 %v6295
    %v8188 = vunpack.c.l.b16 %v6296
    %v8189 = vunpack.c.l.b16 %v6297
    %v8190 = vunpack.c.h.b16 %v6297
    %v8191 = vunpack.c.l.b16 %v6298
    %v8192 = vunpack.c.h.b16 %v6298
    %v8193 = vunpack.c.l.b16 %v6299
    %v8194 = vunpack.c.h.b16 %v6299
    %v8195 = vunpack.c.l.b16 %v6300
    %v8196 = vunpack.c.h.b16 %v6300
    %v8197 = vunpack.c.l.b16 %v6301
    %v8198 = vunpack.c.l.b16 %v6302
    %v8199 = vunpack.c.h.b16 %v6302
    %v8200 = vunpack.c.l.b16 %v6303
    %v8201 = vunpack.c.h.b16 %v6303
    %v8202 = vunpack.c.l.b16 %v6304
    %v8203 = vunpack.c.h.b16 %v6304
    %v8204 = vunpack.c.l.b16 %v6305
    %v8205 = vunpack.c.h.b16 %v6305
    %v8206 = vunpack.c.l.b16 %v6306
    %v8207 = vunpack.c.l.b16 %v6307
    %v8208 = vunpack.c.h.b16 %v6307
    %v8209 = vunpack.c.l.b16 %v6308
    %v8210 = vunpack.c.h.b16 %v6308
    %v8211 = vunpack.c.l.b16 %v6309
    %v8212 = vunpack.c.h.b16 %v6309
    %v8213 = vunpack.c.l.b16 %v6310
    %v8214 = vunpack.c.h.b16 %v6310
    %v8215 = vunpack.c.l.b16 %v6311
    %v8216 = vunpack.c.l.b16 %v6312
    %v8217 = vunpack.c.h.b16 %v6312
    %v8218 = vunpack.c.l.b16 %v6313
    %v8219 = vunpack.c.h.b16 %v6313
    %v8220 = vunpack.c.l.b16 %v6314
    %v8221 = vunpack.c.h.b16 %v6314
    %v8222 = vunpack.c.l.b16 %v6315
    %v8223 = vunpack.c.h.b16 %v6315
    %v8224 = vunpack.c.l.b16 %v6316
    %v8225 = vunpack.c.l.b16 %v6317
    %v8226 = vunpack.c.h.b16 %v6317
    %v8227 = vunpack.c.l.b16 %v6318
    %v8228 = vunpack.c.h.b16 %v6318
    %v8229 = vunpack.c.l.b16 %v6319
    %v8230 = vunpack.c.h.b16 %v6319
    %v8231 = vunpack.c.l.b16 %v6320
    %v8232 = vunpack.c.h.b16 %v6320
    %v8233 = vunpack.c.l.b16 %v6321
    %v8234 = vunpack.c.l.b16 %v6322
    %v8235 = vunpack.c.h.b16 %v6322
    %v8236 = vunpack.c.l.b16 %v6323
    %v8237 = vunpack.c.h.b16 %v6323
    %v8238 = vunpack.c.l.b16 %v6324
    %v8239 = vunpack.c.h.b16 %v6324
    %v8240 = vunpack.c.l.b16 %v6325
    %v8241 = vunpack.c.h.b16 %v6325
    %v8242 = vunpack.c.l.b16 %v6326
    %v8243 = vunpack.c.l.b16 %v6327
    %v8244 = vunpack.c.h.b16 %v6327
    %v8245 = vunpack.c.l.b16 %v6328
    %v8246 = vunpack.c.h.b16 %v6328
    %v8247 = vunpack.c.l.b16 %v6329
    %v8248 = vunpack.c.h.b16 %v6329
    %v8249 = vunpack.c.l.b16 %v6330
    %v8250 = vunpack.c.h.b16 %v6330
    %v8251 = vunpack.c.l.b16 %v6331
    %v8252 = vunpack.c.l.b16 %v6332
    %v8253 = vunpack.c.h.b16 %v6332
    %v8254 = vunpack.c.l.b16 %v6333
    %v8255 = vunpack.c.h.b16 %v6333
    %v8256 = vunpack.c.l.b16 %v6334
    %v8257 = vunpack.c.h.b16 %v6334
    %v8258 = vunpack.c.l.b16 %v6335
    %v8259 = vunpack.c.h.b16 %v6335
    %v8260 = vunpack.c.l.b16 %v6336
    %v8261 = vunpack.c.l.b16 %v6337
    %v8262 = vunpack.c.h.b16 %v6337
    %v8263 = vunpack.c.l.b16 %v6338
    %v8264 = vunpack.c.h.b16 %v6338
    %v8265 = vunpack.c.l.b16 %v6339
    %v8266 = vunpack.c.h.b16 %v6339
    %v8267 = vunpack.c.l.b16 %v6340
    %v8268 = vunpack.c.h.b16 %v6340
    %v8269 = vunpack.c.l.b16 %v6341
    %v8270 = vunpack.c.l.b16 %v6342
    %v8271 = vunpack.c.h.b16 %v6342
    %v8272 = vunpack.c.l.b16 %v6343
    %v8273 = vunpack.c.h.b16 %v6343
    %v8274 = vunpack.c.l.b16 %v6344
    %v8275 = vunpack.c.h.b16 %v6344
    %v8276 = vunpack.c.l.b16 %v6345
    %v8277 = vunpack.c.h.b16 %v6345
    %v8278 = vunpack.c.l.b16 %v6346
    %v8279 = vunpack.c.l.b16 %v6347
    %v8280 = vunpack.c.h.b16 %v6347
    %v8281 = vunpack.c.l.b16 %v6348
    %v8282 = vunpack.c.h.b16 %v6348
    %v8283 = vunpack.c.l.b16 %v6349
    %v8284 = vunpack.c.h.b16 %v6349
    %v8285 = vunpack.c.l.b16 %v6350
    %v8286 = vunpack.c.h.b16 %v6350
    %v8287 = vunpack.c.l.b16 %v6351
    %v8288 = vunpack.c.l.b16 %v6352
    %v8289 = vunpack.c.h.b16 %v6352
    %v8290 = vunpack.c.l.b16 %v6353
    %v8291 = vunpack.c.h.b16 %v6353
    %v8292 = vunpack.c.l.b16 %v6354
    %v8293 = vunpack.c.h.b16 %v6354
    %v8294 = vunpack.c.l.b16 %v6355
    %v8295 = vunpack.c.h.b16 %v6355
    %v8296 = vunpack.c.l.b16 %v6356
    %v8297 = vunpack.c.l.b16 %v6357
    %v8298 = vunpack.c.h.b16 %v6357
    %v8299 = vunpack.c.l.b16 %v6358
    %v8300 = vunpack.c.h.b16 %v6358
    %v8301 = vunpack.c.l.b16 %v6359
    %v8302 = vunpack.c.h.b16 %v6359
    %v8303 = vunpack.c.l.b16 %v6360
    %v8304 = vunpack.c.h.b16 %v6360
    %v8305 = vunpack.c.l.b16 %v6361
    %v8306 = vunpack.c.l.b16 %v6362
    %v8307 = vunpack.c.h.b16 %v6362
    %v8308 = vunpack.c.l.b16 %v6363
    %v8309 = vunpack.c.h.b16 %v6363
    %v8310 = vunpack.c.l.b16 %v6364
    %v8311 = vunpack.c.h.b16 %v6364
    %v8312 = vunpack.c.l.b16 %v6365
    %v8313 = vunpack.c.h.b16 %v6365
    %v8314 = vunpack.c.l.b16 %v6366
    %v8315 = vunpack.c.l.b16 %v6367
    %v8316 = vunpack.c.h.b16 %v6367
    %v8317 = vunpack.c.l.b16 %v6368
    %v8318 = vunpack.c.h.b16 %v6368
    %v8319 = vunpack.c.l.b16 %v6369
    %v8320 = vunpack.c.h.b16 %v6369
    %v8321 = vunpack.c.l.b16 %v6370
    %v8322 = vunpack.c.h.b16 %v6370
    %v8323 = vunpack.c.l.b16 %v6371
    %v8324 = vunpack.c.l.b16 %v6372
    %v8325 = vunpack.c.h.b16 %v6372
    %v8326 = vunpack.c.l.b16 %v6373
    %v8327 = vunpack.c.h.b16 %v6373
    %v8328 = vunpack.c.l.b16 %v6374
    %v8329 = vunpack.c.h.b16 %v6374
    %v8330 = vunpack.c.l.b16 %v6375
    %v8331 = vunpack.c.h.b16 %v6375
    %v8332 = vunpack.c.l.b16 %v6376
    %v8333 = vunpack.c.l.b16 %v6377
    %v8334 = vunpack.c.h.b16 %v6377
    %v8335 = vunpack.c.l.b16 %v6378
    %v8336 = vunpack.c.h.b16 %v6378
    %v8337 = vunpack.c.l.b16 %v6379
    %v8338 = vunpack.c.h.b16 %v6379
    %v8339 = vunpack.c.l.b16 %v6380
    %v8340 = vunpack.c.h.b16 %v6380
    %v8341 = vunpack.c.l.b16 %v6381
    %v8342 = vunpack.c.l.b16 %v6382
    %v8343 = vunpack.c.h.b16 %v6382
    %v8344 = vunpack.c.l.b16 %v6383
    %v8345 = vunpack.c.h.b16 %v6383
    %v8346 = vunpack.c.l.b16 %v6384
    %v8347 = vunpack.c.h.b16 %v6384
    %v8348 = vunpack.c.l.b16 %v6385
    %v8349 = vunpack.c.h.b16 %v6385
    %v8350 = vunpack.c.l.b16 %v6386
    %v8351 = vunpack.c.l.b16 %v6387
    %v8352 = vunpack.c.h.b16 %v6387
    %v8353 = vunpack.c.l.b16 %v6388
    %v8354 = vunpack.c.h.b16 %v6388
    %v8355 = vunpack.c.l.b16 %v6389
    %v8356 = vunpack.c.h.b16 %v6389
    %v8357 = vunpack.c.l.b16 %v6390
    %v8358 = vunpack.c.h.b16 %v6390
    %v8359 = vunpack.c.l.b16 %v6391
    %v8360 = vunpack.c.l.b16 %v6392
    %v8361 = vunpack.c.h.b16 %v6392
    %v8362 = vunpack.c.l.b16 %v6393
    %v8363 = vunpack.c.h.b16 %v6393
    %v8364 = vunpack.c.l.b16 %v6394
    %v8365 = vunpack.c.h.b16 %v6394
    %v8366 = vunpack.c.l.b16 %v6395
    %v8367 = vunpack.c.h.b16 %v6395
    %v8368 = vunpack.c.l.b16 %v6396
    %v8369 = vunpack.c.l.b16 %v6397
    %v8370 = vunpack.c.h.b16 %v6397
    %v8371 = vunpack.c.l.b16 %v6398
    %v8372 = vunpack.c.h.b16 %v6398
    %v8373 = vunpack.c.l.b16 %v6399
    %v8374 = vunpack.c.h.b16 %v6399
    %v8375 = vunpack.c.l.b16 %v6400
    %v8376 = vunpack.c.h.b16 %v6400
    %v8377 = vunpack.c.l.b16 %v6401
    %v8378 = vunpack.c.l.b16 %v6402
    %v8379 = vunpack.c.h.b16 %v6402
    %v8380 = vunpack.c.l.b16 %v6403
    %v8381 = vunpack.c.h.b16 %v6403
    %v8382 = vunpack.c.l.b16 %v6404
    %v8383 = vunpack.c.h.b16 %v6404
    %v8384 = vunpack.c.l.b16 %v6405
    %v8385 = vunpack.c.h.b16 %v6405
    %v8386 = vunpack.c.l.b16 %v6406
    %v8387 = vunpack.c.l.b16 %v6407
    %v8388 = vunpack.c.h.b16 %v6407
    %v8389 = vunpack.c.l.b16 %v6408
    %v8390 = vunpack.c.h.b16 %v6408
    %v8391 = vunpack.c.l.b16 %v6409
    %v8392 = vunpack.c.h.b16 %v6409
    %v8393 = vunpack.c.l.b16 %v6410
    %v8394 = vunpack.c.h.b16 %v6410
    %v8395 = vunpack.c.l.b16 %v6411
    %v8396 = vunpack.c.l.b16 %v6412
    %v8397 = vunpack.c.h.b16 %v6412
    %v8398 = vunpack.c.l.b16 %v6413
    %v8399 = vunpack.c.h.b16 %v6413
    %v8400 = vunpack.c.l.b16 %v6414
    %v8401 = vunpack.c.h.b16 %v6414
    %v8402 = vunpack.c.l.b16 %v6415
    %v8403 = vunpack.c.h.b16 %v6415
    %v8404 = vunpack.c.l.b16 %v6416
    %v8405 = vunpack.c.l.b16 %v6417
    %v8406 = vunpack.c.h.b16 %v6417
    %v8407 = vunpack.c.l.b16 %v6418
    %v8408 = vunpack.c.h.b16 %v6418
    %v8409 = vunpack.c.l.b16 %v6419
    %v8410 = vunpack.c.h.b16 %v6419
    %v8411 = vunpack.c.l.b16 %v6420
    %v8412 = vunpack.c.h.b16 %v6420
    %v8413 = vunpack.c.l.b16 %v6421
    %v8414 = vunpack.c.l.b16 %v6422
    %v8415 = vunpack.c.h.b16 %v6422
    %v8416 = vunpack.c.l.b16 %v6423
    %v8417 = vunpack.c.h.b16 %v6423
    %v8418 = vunpack.c.l.b16 %v6424
    %v8419 = vunpack.c.h.b16 %v6424
    %v8420 = vunpack.c.l.b16 %v6425
    %v8421 = vunpack.c.h.b16 %v6425
    %v8422 = vunpack.c.l.b16 %v6426
    %v8423 = vunpack.c.l.b16 %v6427
    %v8424 = vunpack.c.h.b16 %v6427
    %v8425 = vunpack.c.l.b16 %v6428
    %v8426 = vunpack.c.h.b16 %v6428
    %v8427 = vunpack.c.l.b16 %v6429
    %v8428 = vunpack.c.h.b16 %v6429
    %v8429 = vunpack.c.l.b16 %v6430
    %v8430 = vunpack.c.h.b16 %v6430
    %v8431 = vunpack.c.l.b16 %v6431
    %v8432 = vunpack.c.l.b16 %v6432
    %v8433 = vunpack.c.h.b16 %v6432
    %v8434 = vunpack.c.l.b16 %v6433
    %v8435 = vunpack.c.h.b16 %v6433
    %v8436 = vunpack.c.l.b16 %v6434
    %v8437 = vunpack.c.h.b16 %v6434
    %v8438 = vunpack.c.l.b16 %v6435
    %v8439 = vunpack.c.h.b16 %v6435
    %v8440 = vunpack.c.l.b16 %v6436
    %v8441 = vunpack.c.l.b16 %v6437
    %v8442 = vunpack.c.h.b16 %v6437
    %v8443 = vunpack.c.l.b16 %v6438
    %v8444 = vunpack.c.h.b16 %v6438
    %v8445 = vunpack.c.l.b16 %v6439
    %v8446 = vunpack.c.h.b16 %v6439
    %v8447 = vunpack.c.l.b16 %v6440
    %v8448 = vunpack.c.h.b16 %v6440
    %v8449 = vunpack.c.l.b16 %v6441
    %v8450 = vunpack.c.l.b16 %v6442
    %v8451 = vunpack.c.h.b16 %v6442
    %v8452 = vunpack.c.l.b16 %v6443
    %v8453 = vunpack.c.h.b16 %v6443
    %v8454 = vunpack.c.l.b16 %v6444
    %v8455 = vunpack.c.h.b16 %v6444
    %v8456 = vunpack.c.l.b16 %v6445
    %v8457 = vunpack.c.h.b16 %v6445
    %v8458 = vunpack.c.l.b16 %v6446
    %v8459 = vunpack.c.l.b16 %v6447
    %v8460 = vunpack.c.h.b16 %v6447
    %v8461 = vunpack.c.l.b16 %v6448
    %v8462 = vunpack.c.h.b16 %v6448
    %v8463 = vunpack.c.l.b16 %v6449
    %v8464 = vunpack.c.h.b16 %v6449
    %v8465 = vunpack.c.l.b16 %v6450
    %v8466 = vunpack.c.h.b16 %v6450
    %v8467 = vunpack.c.l.b16 %v6451
    %v8468 = vpack.c.b16 %v7181, %v7172
    %v8469 = vpack.c.b16 %v7182, %v7173
    %v8470 = vpack.c.b16 %v7183, %v7174
    %v8471 = vpack.c.b16 %v7184, %v7175
    %v8472 = vpack.c.b16 %v7185, %v7176
    %v8473 = vpack.c.b16 %v7186, %v7177
    %v8474 = vpack.c.b16 %v7187, %v7178
    %v8475 = vpack.c.b16 %v7188, %v7179
    %v8476 = vpack.c.b16 %v7189, %v7180
    %v8477 = vpack.c.b16 %v7199, %v7190
    %v8478 = vpack.c.b16 %v7200, %v7191
    %v8479 = vpack.c.b16 %v7201, %v7192
    %v8480 = vpack.c.b16 %v7202, %v7193
    %v8481 = vpack.c.b16 %v7203, %v7194
    %v8482 = vpack.c.b16 %v7204, %v7195
    %v8483 = vpack.c.b16 %v7205, %v7196
    %v8484 = vpack.c.b16 %v7206, %v7197
    %v8485 = vpack.c.b16 %v7207, %v7198
    %v8486 = vpack.c.b16 %v7217, %v7208
    %v8487 = vpack.c.b16 %v7218, %v7209
    %v8488 = vpack.c.b16 %v7219, %v7210
    %v8489 = vpack.c.b16 %v7220, %v7211
    %v8490 = vpack.c.b16 %v7221, %v7212
    %v8491 = vpack.c.b16 %v7222, %v7213
    %v8492 = vpack.c.b16 %v7223, %v7214
    %v8493 = vpack.c.b16 %v7224, %v7215
    %v8494 = vpack.c.b16 %v7225, %v7216
    %v8495 = vpack.c.b16 %v7235, %v7226
    %v8496 = vpack.c.b16 %v7236, %v7227
    %v8497 = vpack.c.b16 %v7237, %v7228
    %v8498 = vpack.c.b16 %v7238, %v7229
    %v8499 = vpack.c.b16 %v7239, %v7230
    %v8500 = vpack.c.b16 %v7240, %v7231
    %v8501 = vpack.c.b16 %v7241, %v7232
    %v8502 = vpack.c.b16 %v7242, %v7233
    %v8503 = vpack.c.b16 %v7243, %v7234
    %v8504 = vpack.c.b16 %v7253, %v7244
    %v8505 = vpack.c.b16 %v7254, %v7245
    %v8506 = vpack.c.b16 %v7255, %v7246
    %v8507 = vpack.c.b16 %v7256, %v7247
    %v8508 = vpack.c.b16 %v7257, %v7248
    %v8509 = vpack.c.b16 %v7258, %v7249
    %v8510 = vpack.c.b16 %v7259, %v7250
    %v8511 = vpack.c.b16 %v7260, %v7251
    %v8512 = vpack.c.b16 %v7261, %v7252
    %v8513 = vpack.c.b16 %v7271, %v7262
    %v8514 = vpack.c.b16 %v7272, %v7263
    %v8515 = vpack.c.b16 %v7273, %v7264
    %v8516 = vpack.c.b16 %v7274, %v7265
    %v8517 = vpack.c.b16 %v7275, %v7266
    %v8518 = vpack.c.b16 %v7276, %v7267
    %v8519 = vpack.c.b16 %v7277, %v7268
    %v8520 = vpack.c.b16 %v7278, %v7269
    %v8521 = vpack.c.b16 %v7279, %v7270
    %v8522 = vpack.c.b16 %v7289, %v7280
    %v8523 = vpack.c.b16 %v7290, %v7281
    %v8524 = vpack.c.b16 %v7291, %v7282
    %v8525 = vpack.c.b16 %v7292, %v7283
    %v8526 = vpack.c.b16 %v7293, %v7284
    %v8527 = vpack.c.b16 %v7294, %v7285
    %v8528 = vpack.c.b16 %v7295, %v7286
    %v8529 = vpack.c.b16 %v7296, %v7287
    %v8530 = vpack.c.b16 %v7297, %v7288
    %v8531 = vpack.c.b16 %v7307, %v7298
    %v8532 = vpack.c.b16 %v7308, %v7299
    %v8533 = vpack.c.b16 %v7309, %v7300
    %v8534 = vpack.c.b16 %v7310, %v7301
    %v8535 = vpack.c.b16 %v7311, %v7302
    %v8536 = vpack.c.b16 %v7312, %v7303
    %v8537 = vpack.c.b16 %v7313, %v7304
    %v8538 = vpack.c.b16 %v7314, %v7305
    %v8539 = vpack.c.b16 %v7315, %v7306
    %v8540 = vpack.c.b16 %v7325, %v7316
    %v8541 = vpack.c.b16 %v7326, %v7317
    %v8542 = vpack.c.b16 %v7327, %v7318
    %v8543 = vpack.c.b16 %v7328, %v7319
    %v8544 = vpack.c.b16 %v7329, %v7320
    %v8545 = vpack.c.b16 %v7330, %v7321
    %v8546 = vpack.c.b16 %v7331, %v7322
    %v8547 = vpack.c.b16 %v7332, %v7323
    %v8548 = vpack.c.b16 %v7333, %v7324
    %v8549 = vpack.c.b16 %v7343, %v7334
    %v8550 = vpack.c.b16 %v7344, %v7335
    %v8551 = vpack.c.b16 %v7345, %v7336
    %v8552 = vpack.c.b16 %v7346, %v7337
    %v8553 = vpack.c.b16 %v7347, %v7338
    %v8554 = vpack.c.b16 %v7348, %v7339
    %v8555 = vpack.c.b16 %v7349, %v7340
    %v8556 = vpack.c.b16 %v7350, %v7341
    %v8557 = vpack.c.b16 %v7351, %v7342
    %v8558 = vpack.c.b16 %v7361, %v7352
    %v8559 = vpack.c.b16 %v7362, %v7353
    %v8560 = vpack.c.b16 %v7363, %v7354
    %v8561 = vpack.c.b16 %v7364, %v7355
    %v8562 = vpack.c.b16 %v7365, %v7356
    %v8563 = vpack.c.b16 %v7366, %v7357
    %v8564 = vpack.c.b16 %v7367, %v7358
    %v8565 = vpack.c.b16 %v7368, %v7359
    %v8566 = vpack.c.b16 %v7369, %v7360
    %v8567 = vpack.c.b16 %v7379, %v7370
    %v8568 = vpack.c.b16 %v7380, %v7371
    %v8569 = vpack.c.b16 %v7381, %v7372
    %v8570 = vpack.c.b16 %v7382, %v7373
    %v8571 = vpack.c.b16 %v7383, %v7374
    %v8572 = vpack.c.b16 %v7384, %v7375
    %v8573 = vpack.c.b16 %v7385, %v7376
    %v8574 = vpack.c.b16 %v7386, %v7377
    %v8575 = vpack.c.b16 %v7387, %v7378
    %v8576 = vpack.c.b16 %v7397, %v7388
    %v8577 = vpack.c.b16 %v7398, %v7389
    %v8578 = vpack.c.b16 %v7399, %v7390
    %v8579 = vpack.c.b16 %v7400, %v7391
    %v8580 = vpack.c.b16 %v7401, %v7392
    %v8581 = vpack.c.b16 %v7402, %v7393
    %v8582 = vpack.c.b16 %v7403, %v7394
    %v8583 = vpack.c.b16 %v7404, %v7395
    %v8584 = vpack.c.b16 %v7405, %v7396
    %v8585 = vpack.c.b16 %v7415, %v7406
    %v8586 = vpack.c.b16 %v7416, %v7407
    %v8587 = vpack.c.b16 %v7417, %v7408
    %v8588 = vpack.c.b16 %v7418, %v7409
    %v8589 = vpack.c.b16 %v7419, %v7410
    %v8590 = vpack.c.b16 %v7420, %v7411
    %v8591 = vpack.c.b16 %v7421, %v7412
    %v8592 = vpack.c.b16 %v7422, %v7413
    %v8593 = vpack.c.b16 %v7423, %v7414
    %v8594 = vpack.c.b16 %v7433, %v7424
    %v8595 = vpack.c.b16 %v7434, %v7425
    %v8596 = vpack.c.b16 %v7435, %v7426
    %v8597 = vpack.c.b16 %v7436, %v7427
    %v8598 = vpack.c.b16 %v7437, %v7428
    %v8599 = vpack.c.b16 %v7438, %v7429
    %v8600 = vpack.c.b16 %v7439, %v7430
    %v8601 = vpack.c.b16 %v7440, %v7431
    %v8602 = vpack.c.b16 %v7441, %v7432
    %v8603 = vpack.c.b16 %v7451, %v7442
    %v8604 = vpack.c.b16 %v7452, %v7443
    %v8605 = vpack.c.b16 %v7453, %v7444
    %v8606 = vpack.c.b16 %v7454, %v7445
    %v8607 = vpack.c.b16 %v7455, %v7446
    %v8608 = vpack.c.b16 %v7456, %v7447
    %v8609 = vpack.c.b16 %v7457, %v7448
    %v8610 = vpack.c.b16 %v7458, %v7449
    %v8611 = vpack.c.b16 %v7459, %v7450
    %v8612 = vpack.c.b16 %v7469, %v7460
    %v8613 = vpack.c.b16 %v7470, %v7461
    %v8614 = vpack.c.b16 %v7471, %v7462
    %v8615 = vpack.c.b16 %v7472, %v7463
    %v8616 = vpack.c.b16 %v7473, %v7464
    %v8617 = vpack.c.b16 %v7474, %v7465
    %v8618 = vpack.c.b16 %v7475, %v7466
    %v8619 = vpack.c.b16 %v7476, %v7467
    %v8620 = vpack.c.b16 %v7477, %v7468
    %v8621 = vpack.c.b16 %v7487, %v7478
    %v8622 = vpack.c.b16 %v7488, %v7479
    %v8623 = vpack.c.b16 %v7489, %v7480
    %v8624 = vpack.c.b16 %v7490, %v7481
    %v8625 = vpack.c.b16 %v7491, %v7482
    %v8626 = vpack.c.b16 %v7492, %v7483
    %v8627 = vpack.c.b16 %v7493, %v7484
    %v8628 = vpack.c.b16 %v7494, %v7485
    %v8629 = vpack.c.b16 %v7495, %v7486
    %v8630 = vpack.c.b16 %v7505, %v7496
    %v8631 = vpack.c.b16 %v7506, %v7497
    %v8632 = vpack.c.b16 %v7507, %v7498
    %v8633 = vpack.c.b16 %v7508, %v7499
    %v8634 = vpack.c.b16 %v7509, %v7500
    %v8635 = vpack.c.b16 %v7510, %v7501
    %v8636 = vpack.c.b16 %v7511, %v7502
    %v8637 = vpack.c.b16 %v7512, %v7503
    %v8638 = vpack.c.b16 %v7513, %v7504
    %v8639 = vpack.c.b16 %v7523, %v7514
    %v8640 = vpack.c.b16 %v7524, %v7515
    %v8641 = vpack.c.b16 %v7525, %v7516
    %v8642 = vpack.c.b16 %v7526, %v7517
    %v8643 = vpack.c.b16 %v7527, %v7518
    %v8644 = vpack.c.b16 %v7528, %v7519
    %v8645 = vpack.c.b16 %v7529, %v7520
    %v8646 = vpack.c.b16 %v7530, %v7521
    %v8647 = vpack.c.b16 %v7531, %v7522
    %v8648 = vpack.c.b16 %v7541, %v7532
    %v8649 = vpack.c.b16 %v7542, %v7533
    %v8650 = vpack.c.b16 %v7543, %v7534
    %v8651 = vpack.c.b16 %v7544, %v7535
    %v8652 = vpack.c.b16 %v7545, %v7536
    %v8653 = vpack.c.b16 %v7546, %v7537
    %v8654 = vpack.c.b16 %v7547, %v7538
    %v8655 = vpack.c.b16 %v7548, %v7539
    %v8656 = vpack.c.b16 %v7549, %v7540
    %v8657 = vpack.c.b16 %v7559, %v7550
    %v8658 = vpack.c.b16 %v7560, %v7551
    %v8659 = vpack.c.b16 %v7561, %v7552
    %v8660 = vpack.c.b16 %v7562, %v7553
    %v8661 = vpack.c.b16 %v7563, %v7554
    %v8662 = vpack.c.b16 %v7564, %v7555
    %v8663 = vpack.c.b16 %v7565, %v7556
    %v8664 = vpack.c.b16 %v7566, %v7557
    %v8665 = vpack.c.b16 %v7567, %v7558
    %v8666 = vpack.c.b16 %v7577, %v7568
    %v8667 = vpack.c.b16 %v7578, %v7569
    %v8668 = vpack.c.b16 %v7579, %v7570
    %v8669 = vpack.c.b16 %v7580, %v7571
    %v8670 = vpack.c.b16 %v7581, %v7572
    %v8671 = vpack.c.b16 %v7582, %v7573
    %v8672 = vpack.c.b16 %v7583, %v7574
    %v8673 = vpack.c.b16 %v7584, %v7575
    %v8674 = vpack.c.b16 %v7585, %v7576
    %v8675 = vpack.c.b16 %v7595, %v7586
    %v8676 = vpack.c.b16 %v7596, %v7587
    %v8677 = vpack.c.b16 %v7597, %v7588
    %v8678 = vpack.c.b16 %v7598, %v7589
    %v8679 = vpack.c.b16 %v7599, %v7590
    %v8680 = vpack.c.b16 %v7600, %v7591
    %v8681 = vpack.c.b16 %v7601, %v7592
    %v8682 = vpack.c.b16 %v7602, %v7593
    %v8683 = vpack.c.b16 %v7603, %v7594
    %v8684 = vpack.c.b16 %v7613, %v7604
    %v8685 = vpack.c.b16 %v7614, %v7605
    %v8686 = vpack.c.b16 %v7615, %v7606
    %v8687 = vpack.c.b16 %v7616, %v7607
    %v8688 = vpack.c.b16 %v7617, %v7608
    %v8689 = vpack.c.b16 %v7618, %v7609
    %v8690 = vpack.c.b16 %v7619, %v7610
    %v8691 = vpack.c.b16 %v7620, %v7611
    %v8692 = vpack.c.b16 %v7621, %v7612
    %v8693 = vpack.c.b16 %v7631, %v7622
    %v8694 = vpack.c.b16 %v7632, %v7623
    %v8695 = vpack.c.b16 %v7633, %v7624
    %v8696 = vpack.c.b16 %v7634, %v7625
    %v8697 = vpack.c.b16 %v7635, %v7626
    %v8698 = vpack.c.b16 %v7636, %v7627
    %v8699 = vpack.c.b16 %v7637, %v7628
    %v8700 = vpack.c.b16 %v7638, %v7629
    %v8701 = vpack.c.b16 %v7639, %v7630
    %v8702 = vpack.c.b16 %v7649, %v7640
    %v8703 = vpack.c.b16 %v7650, %v7641
    %v8704 = vpack.c.b16 %v7651, %v7642
    %v8705 = vpack.c.b16 %v7652, %v7643
    %v8706 = vpack.c.b16 %v7653, %v7644
    %v8707 = vpack.c.b16 %v7654, %v7645
    %v8708 = vpack.c.b16 %v7655, %v7646
    %v8709 = vpack.c.b16 %v7656, %v7647
    %v8710 = vpack.c.b16 %v7657, %v7648
    %v8711 = vpack.c.b16 %v7667, %v7658
    %v8712 = vpack.c.b16 %v7668, %v7659
    %v8713 = vpack.c.b16 %v7669, %v7660
    %v8714 = vpack.c.b16 %v7670, %v7661
    %v8715 = vpack.c.b16 %v7671, %v7662
    %v8716 = vpack.c.b16 %v7672, %v7663
    %v8717 = vpack.c.b16 %v7673, %v7664
    %v8718 = vpack.c.b16 %v7674, %v7665
    %v8719 = vpack.c.b16 %v7675, %v7666
    %v8720 = vpack.c.b16 %v7685, %v7676
    %v8721 = vpack.c.b16 %v7686, %v7677
    %v8722 = vpack.c.b16 %v7687, %v7678
    %v8723 = vpack.c.b16 %v7688, %v7679
    %v8724 = vpack.c.b16 %v7689, %v7680
    %v8725 = vpack.c.b16 %v7690, %v7681
    %v8726 = vpack.c.b16 %v7691, %v7682
    %v8727 = vpack.c.b16 %v7692, %v7683
    %v8728 = vpack.c.b16 %v7693, %v7684
    %v8729 = vpack.c.b16 %v7703, %v7694
    %v8730 = vpack.c.b16 %v7704, %v7695
    %v8731 = vpack.c.b16 %v7705, %v7696
    %v8732 = vpack.c.b16 %v7706, %v7697
    %v8733 = vpack.c.b16 %v7707, %v7698
    %v8734 = vpack.c.b16 %v7708, %v7699
    %v8735 = vpack.c.b16 %v7709, %v7700
    %v8736 = vpack.c.b16 %v7710, %v7701
    %v8737 = vpack.c.b16 %v7711, %v7702
    %v8738 = vpack.c.b16 %v7721, %v7712
    %v8739 = vpack.c.b16 %v7722, %v7713
    %v8740 = vpack.c.b16 %v7723, %v7714
    %v8741 = vpack.c.b16 %v7724, %v7715
    %v8742 = vpack.c.b16 %v7725, %v7716
    %v8743 = vpack.c.b16 %v7726, %v7717
    %v8744 = vpack.c.b16 %v7727, %v7718
    %v8745 = vpack.c.b16 %v7728, %v7719
    %v8746 = vpack.c.b16 %v7729, %v7720
    %v8747 = vpack.c.b16 %v7739, %v7730
    %v8748 = vpack.c.b16 %v7740, %v7731
    %v8749 = vpack.c.b16 %v7741, %v7732
    %v8750 = vpack.c.b16 %v7742, %v7733
    %v8751 = vpack.c.b16 %v7743, %v7734
    %v8752 = vpack.c.b16 %v7744, %v7735
    %v8753 = vpack.c.b16 %v7745, %v7736
    %v8754 = vpack.c.b16 %v7746, %v7737
    %v8755 = vpack.c.b16 %v7747, %v7738
    %v8756 = vpack.c.b16 %v7757, %v7748
    %v8757 = vpack.c.b16 %v7758, %v7749
    %v8758 = vpack.c.b16 %v7759, %v7750
    %v8759 = vpack.c.b16 %v7760, %v7751
    %v8760 = vpack.c.b16 %v7761, %v7752
    %v8761 = vpack.c.b16 %v7762, %v7753
    %v8762 = vpack.c.b16 %v7763, %v7754
    %v8763 = vpack.c.b16 %v7764, %v7755
    %v8764 = vpack.c.b16 %v7765, %v7756
    %v8765 = vpack.c.b16 %v7775, %v7766
    %v8766 = vpack.c.b16 %v7776, %v7767
    %v8767 = vpack.c.b16 %v7777, %v7768
    %v8768 = vpack.c.b16 %v7778, %v7769
    %v8769 = vpack.c.b16 %v7779, %v7770
    %v8770 = vpack.c.b16 %v7780, %v7771
    %v8771 = vpack.c.b16 %v7781, %v7772
    %v8772 = vpack.c.b16 %v7782, %v7773
    %v8773 = vpack.c.b16 %v7783, %v7774
    %v8774 = vpack.c.b16 %v7793, %v7784
    %v8775 = vpack.c.b16 %v7794, %v7785
    %v8776 = vpack.c.b16 %v7795, %v7786
    %v8777 = vpack.c.b16 %v7796, %v7787
    %v8778 = vpack.c.b16 %v7797, %v7788
    %v8779 = vpack.c.b16 %v7798, %v7789
    %v8780 = vpack.c.b16 %v7799, %v7790
    %v8781 = vpack.c.b16 %v7800, %v7791
    %v8782 = vpack.c.b16 %v7801, %v7792
    %v8783 = vpack.c.b16 %v7811, %v7802
    %v8784 = vpack.c.b16 %v7812, %v7803
    %v8785 = vpack.c.b16 %v7813, %v7804
    %v8786 = vpack.c.b16 %v7814, %v7805
    %v8787 = vpack.c.b16 %v7815, %v7806
    %v8788 = vpack.c.b16 %v7816, %v7807
    %v8789 = vpack.c.b16 %v7817, %v7808
    %v8790 = vpack.c.b16 %v7818, %v7809
    %v8791 = vpack.c.b16 %v7819, %v7810
    %v8792 = vpack.c.b16 %v7829, %v7820
    %v8793 = vpack.c.b16 %v7830, %v7821
    %v8794 = vpack.c.b16 %v7831, %v7822
    %v8795 = vpack.c.b16 %v7832, %v7823
    %v8796 = vpack.c.b16 %v7833, %v7824
    %v8797 = vpack.c.b16 %v7834, %v7825
    %v8798 = vpack.c.b16 %v7835, %v7826
    %v8799 = vpack.c.b16 %v7836, %v7827
    %v8800 = vpack.c.b16 %v7837, %v7828
    %v8801 = vpack.c.b16 %v7847, %v7838
    %v8802 = vpack.c.b16 %v7848, %v7839
    %v8803 = vpack.c.b16 %v7849, %v7840
    %v8804 = vpack.c.b16 %v7850, %v7841
    %v8805 = vpack.c.b16 %v7851, %v7842
    %v8806 = vpack.c.b16 %v7852, %v7843
    %v8807 = vpack.c.b16 %v7853, %v7844
    %v8808 = vpack.c.b16 %v7854, %v7845
    %v8809 = vpack.c.b16 %v7855, %v7846
    %v8810 = vpack.c.b16 %v7865, %v7856
    %v8811 = vpack.c.b16 %v7866, %v7857
    %v8812 = vpack.c.b16 %v7867, %v7858
    %v8813 = vpack.c.b16 %v7868, %v7859
    %v8814 = vpack.c.b16 %v7869, %v7860
    %v8815 = vpack.c.b16 %v7870, %v7861
    %v8816 = vpack.c.b16 %v7871, %v7862
    %v8817 = vpack.c.b16 %v7872, %v7863
    %v8818 = vpack.c.b16 %v7873, %v7864
    %v8819 = vpack.c.b16 %v7883, %v7874
    %v8820 = vpack.c.b16 %v7884, %v7875
    %v8821 = vpack.c.b16 %v7885, %v7876
    %v8822 = vpack.c.b16 %v7886, %v7877
    %v8823 = vpack.c.b16 %v7887, %v7878
    %v8824 = vpack.c.b16 %v7888, %v7879
    %v8825 = vpack.c.b16 %v7889, %v7880
    %v8826 = vpack.c.b16 %v7890, %v7881
    %v8827 = vpack.c.b16 %v7891, %v7882
    %v8828 = vpack.c.b16 %v7901, %v7892
    %v8829 = vpack.c.b16 %v7902, %v7893
    %v8830 = vpack.c.b16 %v7903, %v7894
    %v8831 = vpack.c.b16 %v7904, %v7895
    %v8832 = vpack.c.b16 %v7905, %v7896
    %v8833 = vpack.c.b16 %v7906, %v7897
    %v8834 = vpack.c.b16 %v7907, %v7898
    %v8835 = vpack.c.b16 %v7908, %v7899
    %v8836 = vpack.c.b16 %v7909, %v7900
    %v8837 = vpack.c.b16 %v7919, %v7910
    %v8838 = vpack.c.b16 %v7920, %v7911
    %v8839 = vpack.c.b16 %v7921, %v7912
    %v8840 = vpack.c.b16 %v7922, %v7913
    %v8841 = vpack.c.b16 %v7923, %v7914
    %v8842 = vpack.c.b16 %v7924, %v7915
    %v8843 = vpack.c.b16 %v7925, %v7916
    %v8844 = vpack.c.b16 %v7926, %v7917
    %v8845 = vpack.c.b16 %v7927, %v7918
    %v8846 = vpack.c.b16 %v7937, %v7928
    %v8847 = vpack.c.b16 %v7938, %v7929
    %v8848 = vpack.c.b16 %v7939, %v7930
    %v8849 = vpack.c.b16 %v7940, %v7931
    %v8850 = vpack.c.b16 %v7941, %v7932
    %v8851 = vpack.c.b16 %v7942, %v7933
    %v8852 = vpack.c.b16 %v7943, %v7934
    %v8853 = vpack.c.b16 %v7944, %v7935
    %v8854 = vpack.c.b16 %v7945, %v7936
    %v8855 = vpack.c.b16 %v7955, %v7946
    %v8856 = vpack.c.b16 %v7956, %v7947
    %v8857 = vpack.c.b16 %v7957, %v7948
    %v8858 = vpack.c.b16 %v7958, %v7949
    %v8859 = vpack.c.b16 %v7959, %v7950
    %v8860 = vpack.c.b16 %v7960, %v7951
    %v8861 = vpack.c.b16 %v7961, %v7952
    %v8862 = vpack.c.b16 %v7962, %v7953
    %v8863 = vpack.c.b16 %v7963, %v7954
    %v8864 = vpack.c.b16 %v7973, %v7964
    %v8865 = vpack.c.b16 %v7974, %v7965
    %v8866 = vpack.c.b16 %v7975, %v7966
    %v8867 = vpack.c.b16 %v7976, %v7967
    %v8868 = vpack.c.b16 %v7977, %v7968
    %v8869 = vpack.c.b16 %v7978, %v7969
    %v8870 = vpack.c.b16 %v7979, %v7970
    %v8871 = vpack.c.b16 %v7980, %v7971
    %v8872 = vpack.c.b16 %v7981, %v7972
    %v8873 = vpack.c.b16 %v7991, %v7982
    %v8874 = vpack.c.b16 %v7992, %v7983
    %v8875 = vpack.c.b16 %v7993, %v7984
    %v8876 = vpack.c.b16 %v7994, %v7985
    %v8877 = vpack.c.b16 %v7995, %v7986
    %v8878 = vpack.c.b16 %v7996, %v7987
    %v8879 = vpack.c.b16 %v7997, %v7988
    %v8880 = vpack.c.b16 %v7998, %v7989
    %v8881 = vpack.c.b16 %v7999, %v7990
    %v8882 = vpack.c.b16 %v8009, %v8000
    %v8883 = vpack.c.b16 %v8010, %v8001
    %v8884 = vpack.c.b16 %v8011, %v8002
    %v8885 = vpack.c.b16 %v8012, %v8003
    %v8886 = vpack.c.b16 %v8013, %v8004
    %v8887 = vpack.c.b16 %v8014, %v8005
    %v8888 = vpack.c.b16 %v8015, %v8006
    %v8889 = vpack.c.b16 %v8016, %v8007
    %v8890 = vpack.c.b16 %v8017, %v8008
    %v8891 = vpack.c.b16 %v8027, %v8018
    %v8892 = vpack.c.b16 %v8028, %v8019
    %v8893 = vpack.c.b16 %v8029, %v8020
    %v8894 = vpack.c.b16 %v8030, %v8021
    %v8895 = vpack.c.b16 %v8031, %v8022
    %v8896 = vpack.c.b16 %v8032, %v8023
    %v8897 = vpack.c.b16 %v8033, %v8024
    %v8898 = vpack.c.b16 %v8034, %v8025
    %v8899 = vpack.c.b16 %v8035, %v8026
    %v8900 = vpack.c.b16 %v8045, %v8036
    %v8901 = vpack.c.b16 %v8046, %v8037
    %v8902 = vpack.c.b16 %v8047, %v8038
    %v8903 = vpack.c.b16 %v8048, %v8039
    %v8904 = vpack.c.b16 %v8049, %v8040
    %v8905 = vpack.c.b16 %v8050, %v8041
    %v8906 = vpack.c.b16 %v8051, %v8042
    %v8907 = vpack.c.b16 %v8052, %v8043
    %v8908 = vpack.c.b16 %v8053, %v8044
    %v8909 = vpack.c.b16 %v8063, %v8054
    %v8910 = vpack.c.b16 %v8064, %v8055
    %v8911 = vpack.c.b16 %v8065, %v8056
    %v8912 = vpack.c.b16 %v8066, %v8057
    %v8913 = vpack.c.b16 %v8067, %v8058
    %v8914 = vpack.c.b16 %v8068, %v8059
    %v8915 = vpack.c.b16 %v8069, %v8060
    %v8916 = vpack.c.b16 %v8070, %v8061
    %v8917 = vpack.c.b16 %v8071, %v8062
    %v8918 = vpack.c.b16 %v8081, %v8072
    %v8919 = vpack.c.b16 %v8082, %v8073
    %v8920 = vpack.c.b16 %v8083, %v8074
    %v8921 = vpack.c.b16 %v8084, %v8075
    %v8922 = vpack.c.b16 %v8085, %v8076
    %v8923 = vpack.c.b16 %v8086, %v8077
    %v8924 = vpack.c.b16 %v8087, %v8078
    %v8925 = vpack.c.b16 %v8088, %v8079
    %v8926 = vpack.c.b16 %v8089, %v8080
    %v8927 = vpack.c.b16 %v8099, %v8090
    %v8928 = vpack.c.b16 %v8100, %v8091
    %v8929 = vpack.c.b16 %v8101, %v8092
    %v8930 = vpack.c.b16 %v8102, %v8093
    %v8931 = vpack.c.b16 %v8103, %v8094
    %v8932 = vpack.c.b16 %v8104, %v8095
    %v8933 = vpack.c.b16 %v8105, %v8096
    %v8934 = vpack.c.b16 %v8106, %v8097
    %v8935 = vpack.c.b16 %v8107, %v8098
    %v8936 = vpack.c.b16 %v8117, %v8108
    %v8937 = vpack.c.b16 %v8118, %v8109
    %v8938 = vpack.c.b16 %v8119, %v8110
    %v8939 = vpack.c.b16 %v8120, %v8111
    %v8940 = vpack.c.b16 %v8121, %v8112
    %v8941 = vpack.c.b16 %v8122, %v8113
    %v8942 = vpack.c.b16 %v8123, %v8114
    %v8943 = vpack.c.b16 %v8124, %v8115
    %v8944 = vpack.c.b16 %v8125, %v8116
    %v8945 = vpack.c.b16 %v8135, %v8126
    %v8946 = vpack.c.b16 %v8136, %v8127
    %v8947 = vpack.c.b16 %v8137, %v8128
    %v8948 = vpack.c.b16 %v8138, %v8129
    %v8949 = vpack.c.b16 %v8139, %v8130
    %v8950 = vpack.c.b16 %v8140, %v8131
    %v8951 = vpack.c.b16 %v8141, %v8132
    %v8952 = vpack.c.b16 %v8142, %v8133
    %v8953 = vpack.c.b16 %v8143, %v8134
    %v8954 = vpack.c.b16 %v8153, %v8144
    %v8955 = vpack.c.b16 %v8154, %v8145
    %v8956 = vpack.c.b16 %v8155, %v8146
    %v8957 = vpack.c.b16 %v8156, %v8147
    %v8958 = vpack.c.b16 %v8157, %v8148
    %v8959 = vpack.c.b16 %v8158, %v8149
    %v8960 = vpack.c.b16 %v8159, %v8150
    %v8961 = vpack.c.b16 %v8160, %v8151
    %v8962 = vpack.c.b16 %v8161, %v8152
    %v8963 = vpack.c.b16 %v8171, %v8162
    %v8964 = vpack.c.b16 %v8172, %v8163
    %v8965 = vpack.c.b16 %v8173, %v8164
    %v8966 = vpack.c.b16 %v8174, %v8165
    %v8967 = vpack.c.b16 %v8175, %v8166
    %v8968 = vpack.c.b16 %v8176, %v8167
    %v8969 = vpack.c.b16 %v8177, %v8168
    %v8970 = vpack.c.b16 %v8178, %v8169
    %v8971 = vpack.c.b16 %v8179, %v8170
    %v8972 = vpack.c.b16 %v8189, %v8180
    %v8973 = vpack.c.b16 %v8190, %v8181
    %v8974 = vpack.c.b16 %v8191, %v8182
    %v8975 = vpack.c.b16 %v8192, %v8183
    %v8976 = vpack.c.b16 %v8193, %v8184
    %v8977 = vpack.c.b16 %v8194, %v8185
    %v8978 = vpack.c.b16 %v8195, %v8186
    %v8979 = vpack.c.b16 %v8196, %v8187
    %v8980 = vpack.c.b16 %v8197, %v8188
    %v8981 = vpack.c.b16 %v8207, %v8198
    %v8982 = vpack.c.b16 %v8208, %v8199
    %v8983 = vpack.c.b16 %v8209, %v8200
    %v8984 = vpack.c.b16 %v8210, %v8201
    %v8985 = vpack.c.b16 %v8211, %v8202
    %v8986 = vpack.c.b16 %v8212, %v8203
    %v8987 = vpack.c.b16 %v8213, %v8204
    %v8988 = vpack.c.b16 %v8214, %v8205
    %v8989 = vpack.c.b16 %v8215, %v8206
    %v8990 = vpack.c.b16 %v8225, %v8216
    %v8991 = vpack.c.b16 %v8226, %v8217
    %v8992 = vpack.c.b16 %v8227, %v8218
    %v8993 = vpack.c.b16 %v8228, %v8219
    %v8994 = vpack.c.b16 %v8229, %v8220
    %v8995 = vpack.c.b16 %v8230, %v8221
    %v8996 = vpack.c.b16 %v8231, %v8222
    %v8997 = vpack.c.b16 %v8232, %v8223
    %v8998 = vpack.c.b16 %v8233, %v8224
    %v8999 = vpack.c.b16 %v8243, %v8234
    %v9000 = vpack.c.b16 %v8244, %v8235
    %v9001 = vpack.c.b16 %v8245, %v8236
    %v9002 = vpack.c.b16 %v8246, %v8237
    %v9003 = vpack.c.b16 %v8247, %v8238
    %v9004 = vpack.c.b16 %v8248, %v8239
    %v9005 = vpack.c.b16 %v8249, %v8240
    %v9006 = vpack.c.b16 %v8250, %v8241
    %v9007 = vpack.c.b16 %v8251, %v8242
    %v9008 = vpack.c.b16 %v8261, %v8252
    %v9009 = vpack.c.b16 %v8262, %v8253
    %v9010 = vpack.c.b16 %v8263, %v8254
    %v9011 = vpack.c.b16 %v8264, %v8255
    %v9012 = vpack.c.b16 %v8265, %v8256
    %v9013 = vpack.c.b16 %v8266, %v8257
    %v9014 = vpack.c.b16 %v8267, %v8258
    %v9015 = vpack.c.b16 %v8268, %v8259
    %v9016 = vpack.c.b16 %v8269, %v8260
    %v9017 = vpack.c.b16 %v8279, %v8270
    %v9018 = vpack.c.b16 %v8280, %v8271
    %v9019 = vpack.c.b16 %v8281, %v8272
    %v9020 = vpack.c.b16 %v8282, %v8273
    %v9021 = vpack.c.b16 %v8283, %v8274
    %v9022 = vpack.c.b16 %v8284, %v8275
    %v9023 = vpack.c.b16 %v8285, %v8276
    %v9024 = vpack.c.b16 %v8286, %v8277
    %v9025 = vpack.c.b16 %v8287, %v8278
    %v9026 = vpack.c.b16 %v8297, %v8288
    %v9027 = vpack.c.b16 %v8298, %v8289
    %v9028 = vpack.c.b16 %v8299, %v8290
    %v9029 = vpack.c.b16 %v8300, %v8291
    %v9030 = vpack.c.b16 %v8301, %v8292
    %v9031 = vpack.c.b16 %v8302, %v8293
    %v9032 = vpack.c.b16 %v8303, %v8294
    %v9033 = vpack.c.b16 %v8304, %v8295
    %v9034 = vpack.c.b16 %v8305, %v8296
    %v9035 = vpack.c.b16 %v8315, %v8306
    %v9036 = vpack.c.b16 %v8316, %v8307
    %v9037 = vpack.c.b16 %v8317, %v8308
    %v9038 = vpack.c.b16 %v8318, %v8309
    %v9039 = vpack.c.b16 %v8319, %v8310
    %v9040 = vpack.c.b16 %v8320, %v8311
    %v9041 = vpack.c.b16 %v8321, %v8312
    %v9042 = vpack.c.b16 %v8322, %v8313
    %v9043 = vpack.c.b16 %v8323, %v8314
    %v9044 = vpack.c.b16 %v8333, %v8324
    %v9045 = vpack.c.b16 %v8334, %v8325
    %v9046 = vpack.c.b16 %v8335, %v8326
    %v9047 = vpack.c.b16 %v8336, %v8327
    %v9048 = vpack.c.b16 %v8337, %v8328
    %v9049 = vpack.c.b16 %v8338, %v8329
    %v9050 = vpack.c.b16 %v8339, %v8330
    %v9051 = vpack.c.b16 %v8340, %v8331
    %v9052 = vpack.c.b16 %v8341, %v8332
    %v9053 = vpack.c.b16 %v8351, %v8342
    %v9054 = vpack.c.b16 %v8352, %v8343
    %v9055 = vpack.c.b16 %v8353, %v8344
    %v9056 = vpack.c.b16 %v8354, %v8345
    %v9057 = vpack.c.b16 %v8355, %v8346
    %v9058 = vpack.c.b16 %v8356, %v8347
    %v9059 = vpack.c.b16 %v8357, %v8348
    %v9060 = vpack.c.b16 %v8358, %v8349
    %v9061 = vpack.c.b16 %v8359, %v8350
    %v9062 = vpack.c.b16 %v8369, %v8360
    %v9063 = vpack.c.b16 %v8370, %v8361
    %v9064 = vpack.c.b16 %v8371, %v8362
    %v9065 = vpack.c.b16 %v8372, %v8363
    %v9066 = vpack.c.b16 %v8373, %v8364
    %v9067 = vpack.c.b16 %v8374, %v8365
    %v9068 = vpack.c.b16 %v8375, %v8366
    %v9069 = vpack.c.b16 %v8376, %v8367
    %v9070 = vpack.c.b16 %v8377, %v8368
    %v9071 = vpack.c.b16 %v8387, %v8378
    %v9072 = vpack.c.b16 %v8388, %v8379
    %v9073 = vpack.c.b16 %v8389, %v8380
    %v9074 = vpack.c.b16 %v8390, %v8381
    %v9075 = vpack.c.b16 %v8391, %v8382
    %v9076 = vpack.c.b16 %v8392, %v8383
    %v9077 = vpack.c.b16 %v8393, %v8384
    %v9078 = vpack.c.b16 %v8394, %v8385
    %v9079 = vpack.c.b16 %v8395, %v8386
    %v9080 = vpack.c.b16 %v8405, %v8396
    %v9081 = vpack.c.b16 %v8406, %v8397
    %v9082 = vpack.c.b16 %v8407, %v8398
    %v9083 = vpack.c.b16 %v8408, %v8399
    %v9084 = vpack.c.b16 %v8409, %v8400
    %v9085 = vpack.c.b16 %v8410, %v8401
    %v9086 = vpack.c.b16 %v8411, %v8402
    %v9087 = vpack.c.b16 %v8412, %v8403
    %v9088 = vpack.c.b16 %v8413, %v8404
    %v9089 = vpack.c.b16 %v8423, %v8414
    %v9090 = vpack.c.b16 %v8424, %v8415
    %v9091 = vpack.c.b16 %v8425, %v8416
    %v9092 = vpack.c.b16 %v8426, %v8417
    %v9093 = vpack.c.b16 %v8427, %v8418
    %v9094 = vpack.c.b16 %v8428, %v8419
    %v9095 = vpack.c.b16 %v8429, %v8420
    %v9096 = vpack.c.b16 %v8430, %v8421
    %v9097 = vpack.c.b16 %v8431, %v8422
    %v9098 = vpack.c.b16 %v8441, %v8432
    %v9099 = vpack.c.b16 %v8442, %v8433
    %v9100 = vpack.c.b16 %v8443, %v8434
    %v9101 = vpack.c.b16 %v8444, %v8435
    %v9102 = vpack.c.b16 %v8445, %v8436
    %v9103 = vpack.c.b16 %v8446, %v8437
    %v9104 = vpack.c.b16 %v8447, %v8438
    %v9105 = vpack.c.b16 %v8448, %v8439
    %v9106 = vpack.c.b16 %v8449, %v8440
    %v9107 = vpack.c.b16 %v8459, %v8450
    %v9108 = vpack.c.b16 %v8460, %v8451
    %v9109 = vpack.c.b16 %v8461, %v8452
    %v9110 = vpack.c.b16 %v8462, %v8453
    %v9111 = vpack.c.b16 %v8463, %v8454
    %v9112 = vpack.c.b16 %v8464, %v8455
    %v9113 = vpack.c.b16 %v8465, %v8456
    %v9114 = vpack.c.b16 %v8466, %v8457
    %v9115 = vpack.c.b16 %v8467, %v8458
    %9764 = vmatprep.subr.bf16.mxu0 %v8469
    %9765 = vmatpush1.bf16.msra.mxu0 %v8468
    %9766 = vmatprep.subr.bf16.mxu0 %v8478
    %9767 = vmatpush1.bf16.msra.mxu0 %v8477
    %9768 = vmatprep.subr.bf16.mxu0 %v8487
    %9769 = vmatpush1.bf16.msra.mxu0 %v8486
    %9770 = vmatprep.subr.bf16.mxu0 %v8496
    %9771 = vmatpush1.bf16.msra.mxu0 %v8495
    %9772 = vmatprep.subr.bf16.mxu0 %v8505
    %9773 = vmatpush1.bf16.msra.mxu0 %v8504
    %9774 = vmatprep.subr.bf16.mxu0 %v8514
    %9775 = vmatpush1.bf16.msra.mxu0 %v8513
    %9776 = vmatprep.subr.bf16.mxu0 %v8523
    %9777 = vmatpush1.bf16.msra.mxu0 %v8522
    %9778 = vmatprep.subr.bf16.mxu0 %v8532
    %9779 = vmatpush1.bf16.msra.mxu0 %v8531
    %9780 = vmatprep.subr.bf16.mxu0 %v8541
    %9781 = vmatpush1.bf16.msra.mxu0 %v8540
    %9782 = vmatprep.subr.bf16.mxu0 %v8550
    %9783 = vmatpush1.bf16.msra.mxu0 %v8549
    %9784 = vmatprep.subr.bf16.mxu0 %v8559
    %9785 = vmatpush1.bf16.msra.mxu0 %v8558
    %9786 = vmatprep.subr.bf16.mxu0 %v8568
    %9787 = vmatpush1.bf16.msra.mxu0 %v8567
    %9788 = vmatprep.subr.bf16.mxu0 %v8577
    %9789 = vmatpush1.bf16.msra.mxu0 %v8576
    %9790 = vmatprep.subr.bf16.mxu0 %v8586
    %9791 = vmatpush1.bf16.msra.mxu0 %v8585
    %9792 = vmatprep.subr.bf16.mxu0 %v8595
    %9793 = vmatpush1.bf16.msra.mxu0 %v8594
    %9794 = vmatprep.subr.bf16.mxu0 %v8604
    %9795 = vmatpush1.bf16.msra.mxu0 %v8603
    %9796 = vmatprep.mubr.bf16.mxu0 %v5601
    %9797 = vmatmul.mubr.bf16.gmra.mrb[0].mxu0 %v5600
    %v9798 = vpop.f32.mrb[0].mxu0
    %v9799 = vadd.f32 0.0, %v9798
    %v9800 = vpop.f32.mrb[0].mxu0
    %v9801 = vadd.f32 0.0, %v9800
    %v9802 = vpop.f32.mrb[0].mxu0
    %v9803 = vadd.f32 0.0, %v9802
    %v9804 = vpop.f32.mrb[0].mxu0
    %v9805 = vadd.f32 0.0, %v9804
    %9806 = vmatprep.mubr.bf16.mxu0 %v5610
    %9807 = vmatmul.mubr.bf16.gmra.mrb[0].mxu0 %v5609
    %v9808 = vpop.f32.mrb[0].mxu0
    %v9809 = vadd.f32 0.0, %v9808
    %v9810 = vpop.f32.mrb[0].mxu0
    %v9811 = vadd.f32 0.0, %v9810
    %v9812 = vpop.f32.mrb[0].mxu0
    %v9813 = vadd.f32 0.0, %v9812
    %v9814 = vpop.f32.mrb[0].mxu0
    %v9815 = vadd.f32 0.0, %v9814
    %9816 = vdwg.mxu0
    %9817 = vmatprep.subr.bf16.mxu0 %v8613
    %9818 = vmatpush1.bf16.msra.mxu0 %v8612
    %9819 = vmatprep.subr.bf16.mxu0 %v8622
    %9820 = vmatpush1.bf16.msra.mxu0 %v8621
    %9821 = vmatprep.subr.bf16.mxu0 %v8631
    %9822 = vmatpush1.bf16.msra.mxu0 %v8630
    %9823 = vmatprep.subr.bf16.mxu0 %v8640
    %9824 = vmatpush1.bf16.msra.mxu0 %v8639
    %9825 = vmatprep.subr.bf16.mxu0 %v8649
    %9826 = vmatpush1.bf16.msra.mxu0 %v8648
    %9827 = vmatprep.subr.bf16.mxu0 %v8658
    %9828 = vmatpush1.bf16.msra.mxu0 %v8657
    %9829 = vmatprep.subr.bf16.mxu0 %v8667
    %9830 = vmatpush1.bf16.msra.mxu0 %v8666
    %9831 = vmatprep.subr.bf16.mxu0 %v8676
    %9832 = vmatpush1.bf16.msra.mxu0 %v8675
    %9833 = vmatprep.subr.bf16.mxu0 %v8685
    %9834 = vmatpush1.bf16.msra.mxu0 %v8684
    %9835 = vmatprep.subr.bf16.mxu0 %v8694
    %9836 = vmatpush1.bf16.msra.mxu0 %v8693
    %9837 = vmatprep.subr.bf16.mxu0 %v8703
    %9838 = vmatpush1.bf16.msra.mxu0 %v8702
    %9839 = vmatprep.subr.bf16.mxu0 %v8712
    %9840 = vmatpush1.bf16.msra.mxu0 %v8711
    %9841 = vmatprep.subr.bf16.mxu0 %v8721
    %9842 = vmatpush1.bf16.msra.mxu0 %v8720
    %9843 = vmatprep.subr.bf16.mxu0 %v8730
    %9844 = vmatpush1.bf16.msra.mxu0 %v8729
    %9845 = vmatprep.subr.bf16.mxu0 %v8739
    %9846 = vmatpush1.bf16.msra.mxu0 %v8738
    %9847 = vmatprep.subr.bf16.mxu0 %v8748
    %9848 = vmatpush1.bf16.msra.mxu0 %v8747
    %9849 = vmatprep.mubr.bf16.mxu0 %v5603
    %9850 = vmatmul.mubr.bf16.gmra.mrb[0].mxu0 %v5602
    %v9851 = vpop.f32.mrb[0].mxu0
    %v9852 = vadd.f32 %v9799, %v9851
    %v9853 = vpop.f32.mrb[0].mxu0
    %v9854 = vadd.f32 %v9801, %v9853
    %v9855 = vpop.f32.mrb[0].mxu0
    %v9856 = vadd.f32 %v9803, %v9855
    %v9857 = vpop.f32.mrb[0].mxu0
    %v9858 = vadd.f32 %v9805, %v9857
    %9859 = vmatprep.mubr.bf16.mxu0 %v5612
    %9860 = vmatmul.mubr.bf16.gmra.mrb[0].mxu0 %v5611
    %v9861 = vpop.f32.mrb[0].mxu0
    %v9862 = vadd.f32 %v9809, %v9861
    %v9863 = vpop.f32.mrb[0].mxu0
    %v9864 = vadd.f32 %v9811, %v9863
    %v9865 = vpop.f32.mrb[0].mxu0
    %v9866 = vadd.f32 %v9813, %v9865
    %v9867 = vpop.f32.mrb[0].mxu0
    %v9868 = vadd.f32 %v9815, %v9867
    %9869 = vdwg.mxu0
    %9870 = vmatprep.subr.bf16.mxu0 %v8757
    %9871 = vmatpush1.bf16.msra.mxu0 %v8756
    %9872 = vmatprep.subr.bf16.mxu0 %v8766
    %9873 = vmatpush1.bf16.msra.mxu0 %v8765
    %9874 = vmatprep.subr.bf16.mxu0 %v8775
    %9875 = vmatpush1.bf16.msra.mxu0 %v8774
    %9876 = vmatprep.subr.bf16.mxu0 %v8784
    %9877 = vmatpush1.bf16.msra.mxu0 %v8783
    %9878 = vmatprep.subr.bf16.mxu0 %v8793
    %9879 = vmatpush1.bf16.msra.mxu0 %v8792
    %9880 = vmatprep.subr.bf16.mxu0 %v8802
    %9881 = vmatpush1.bf16.msra.mxu0 %v8801
    %9882 = vmatprep.subr.bf16.mxu0 %v8811
    %9883 = vmatpush1.bf16.msra.mxu0 %v8810
    %9884 = vmatprep.subr.bf16.mxu0 %v8820
    %9885 = vmatpush1.bf16.msra.mxu0 %v8819
    %9886 = vmatprep.subr.bf16.mxu0 %v8829
    %9887 = vmatpush1.bf16.msra.mxu0 %v8828
    %9888 = vmatprep.subr.bf16.mxu0 %v8838
    %9889 = vmatpush1.bf16.msra.mxu0 %v8837
    %9890 = vmatprep.subr.bf16.mxu0 %v8847
    %9891 = vmatpush1.bf16.msra.mxu0 %v8846
    %9892 = vmatprep.subr.bf16.mxu0 %v8856
    %9893 = vmatpush1.bf16.msra.mxu0 %v8855
    %9894 = vmatprep.subr.bf16.mxu0 %v8865
    %9895 = vmatpush1.bf16.msra.mxu0 %v8864
    %9896 = vmatprep.subr.bf16.mxu0 %v8874
    %9897 = vmatpush1.bf16.msra.mxu0 %v8873
    %9898 = vmatprep.subr.bf16.mxu0 %v8883
    %9899 = vmatpush1.bf16.msra.mxu0 %v8882
    %9900 = vmatprep.subr.bf16.mxu0 %v8892
    %9901 = vmatpush1.bf16.msra.mxu0 %v8891
    %9902 = vmatprep.mubr.bf16.mxu0 %v5605
    %9903 = vmatmul.mubr.bf16.gmra.mrb[0].mxu0 %v5604
    %v9904 = vpop.f32.mrb[0].mxu0
    %v9905 = vadd.f32 %v9852, %v9904
    %v9906 = vpop.f32.mrb[0].mxu0
    %v9907 = vadd.f32 %v9854, %v9906
    %v9908 = vpop.f32.mrb[0].mxu0
    %v9909 = vadd.f32 %v9856, %v9908
    %v9910 = vpop.f32.mrb[0].mxu0
    %v9911 = vadd.f32 %v9858, %v9910
    %9912 = vmatprep.mubr.bf16.mxu0 %v5614
    %9913 = vmatmul.mubr.bf16.gmra.mrb[0].mxu0 %v5613
    %v9914 = vpop.f32.mrb[0].mxu0
    %v9915 = vadd.f32 %v9862, %v9914
    %v9916 = vpop.f32.mrb[0].mxu0
    %v9917 = vadd.f32 %v9864, %v9916
    %v9918 = vpop.f32.mrb[0].mxu0
    %v9919 = vadd.f32 %v9866, %v9918
    %v9920 = vpop.f32.mrb[0].mxu0
    %v9921 = vadd.f32 %v9868, %v9920
    %9922 = vdwg.mxu0
    %9923 = vmatprep.subr.bf16.mxu0 %v8901
    %9924 = vmatpush1.bf16.msra.mxu0 %v8900
    %9925 = vmatprep.subr.bf16.mxu0 %v8910
    %9926 = vmatpush1.bf16.msra.mxu0 %v8909
    %9927 = vmatprep.subr.bf16.mxu0 %v8919
    %9928 = vmatpush1.bf16.msra.mxu0 %v8918
    %9929 = vmatprep.subr.bf16.mxu0 %v8928
    %9930 = vmatpush1.bf16.msra.mxu0 %v8927
    %9931 = vmatprep.subr.bf16.mxu0 %v8937
    %9932 = vmatpush1.bf16.msra.mxu0 %v8936
    %9933 = vmatprep.subr.bf16.mxu0 %v8946
    %9934 = vmatpush1.bf16.msra.mxu0 %v8945
    %9935 = vmatprep.subr.bf16.mxu0 %v8955
    %9936 = vmatpush1.bf16.msra.mxu0 %v8954
    %9937 = vmatprep.subr.bf16.mxu0 %v8964
    %9938 = vmatpush1.bf16.msra.mxu0 %v8963
    %9939 = vmatprep.subr.bf16.mxu0 %v8973
    %9940 = vmatpush1.bf16.msra.mxu0 %v8972
    %9941 = vmatprep.subr.bf16.mxu0 %v8982
    %9942 = vmatpush1.bf16.msra.mxu0 %v8981
    %9943 = vmatprep.subr.bf16.mxu0 %v8991
    %9944 = vmatpush1.bf16.msra.mxu0 %v8990
    %9945 = vmatprep.subr.bf16.mxu0 %v9000
    %9946 = vmatpush1.bf16.msra.mxu0 %v8999
    %9947 = vmatprep.subr.bf16.mxu0 %v9009
    %9948 = vmatpush1.bf16.msra.mxu0 %v9008
    %9949 = vmatprep.subr.bf16.mxu0 %v9018
    %9950 = vmatpush1.bf16.msra.mxu0 %v9017
    %9951 = vmatprep.subr.bf16.mxu0 %v9027
    %9952 = vmatpush1.bf16.msra.mxu0 %v9026
    %9953 = vmatprep.subr.bf16.mxu0 %v9036
    %9954 = vmatpush1.bf16.msra.mxu0 %v9035
    %9955 = vmatprep.mubr.bf16.mxu0 %v5607
    %9956 = vmatmul.mubr.bf16.gmra.mrb[0].mxu0 %v5606
    %v9957 = vpop.f32.mrb[0].mxu0
    %v9958 = vadd.f32 %v9905, %v9957
    %v9959 = vpop.f32.mrb[0].mxu0
    %v9960 = vadd.f32 %v9907, %v9959
    %v9961 = vpop.f32.mrb[0].mxu0
    %v9962 = vadd.f32 %v9909, %v9961
    %v9963 = vpop.f32.mrb[0].mxu0
    %v9964 = vadd.f32 %v9911, %v9963
    %9965 = vmatprep.mubr.bf16.mxu0 %v5616
    %9966 = vmatmul.mubr.bf16.gmra.mrb[0].mxu0 %v5615
    %v9967 = vpop.f32.mrb[0].mxu0
    %v9968 = vadd.f32 %v9915, %v9967
    %v9969 = vpop.f32.mrb[0].mxu0
    %v9970 = vadd.f32 %v9917, %v9969
    %v9971 = vpop.f32.mrb[0].mxu0
    %v9972 = vadd.f32 %v9919, %v9971
    %v9973 = vpop.f32.mrb[0].mxu0
    %v9974 = vadd.f32 %v9921, %v9973
    %9975 = vdwg.mxu0
    %9976 = vmatprep.subr.bf16.mxu0 %v9045
    %9977 = vmatpush1.bf16.msra.mxu0 %v9044
    %9978 = vmatprep.subr.bf16.mxu0 %v9054
    %9979 = vmatpush1.bf16.msra.mxu0 %v9053
    %9980 = vmatprep.subr.bf16.mxu0 %v9063
    %9981 = vmatpush1.bf16.msra.mxu0 %v9062
    %9982 = vmatprep.subr.bf16.mxu0 %v9072
    %9983 = vmatpush1.bf16.msra.mxu0 %v9071
    %9984 = vmatprep.subr.bf16.mxu0 %v9081
    %9985 = vmatpush1.bf16.msra.mxu0 %v9080
    %9986 = vmatprep.subr.bf16.mxu0 %v9090
    %9987 = vmatpush1.bf16.msra.mxu0 %v9089
    %9988 = vmatprep.subr.bf16.mxu0 %v9099
    %9989 = vmatpush1.bf16.msra.mxu0 %v9098
    %9990 = vmatprep.subr.bf16.mxu0 %v9108
    %9991 = vmatpush1.bf16.msra.mxu0 %v9107
    %9992 = vmatprep.subr.bf16.mxu0 0
    %9993 = vmatpush1.bf16.msra.mxu0 0
    %9994 = vmatprep.subr.bf16.mxu0 0
    %9995 = vmatpush1.bf16.msra.mxu0 0
    %9996 = vmatprep.subr.bf16.mxu0 0
    %9997 = vmatpush1.bf16.msra.mxu0 0
    %9998 = vmatprep.subr.bf16.mxu0 0
    %9999 = vmatpush1.bf16.msra.mxu0 0
    %10000 = vmatprep.subr.bf16.mxu0 0
    %10001 = vmatpush1.bf16.msra.mxu0 0
    %10002 = vmatprep.subr.bf16.mxu0 0
    %10003 = vmatpush1.bf16.msra.mxu0 0
    %10004 = vmatprep.subr.bf16.mxu0 0
    %10005 = vmatpush1.bf16.msra.mxu0 0
    %10006 = vmatprep.subr.bf16.mxu0 0
    %10007 = vmatpush1.bf16.msra.mxu0 0
    %10008 = vmatprep.mubr.bf16.mxu0 0
    %10009 = vmatmul.mubr.bf16.gmra.mrb[0].mxu0 %v5608
    %v10010 = vpop.f32.mrb[0].mxu0
    %v10011 = vadd.f32 %v9958, %v10010
    %v10012 = vpop.f32.mrb[0].mxu0
    %v10013 = vadd.f32 %v9960, %v10012
    %v10014 = vpop.f32.mrb[0].mxu0
    %v10015 = vadd.f32 %v9962, %v10014
    %v10016 = vpop.f32.mrb[0].mxu0
    %v10017 = vadd.f32 %v9964, %v10016
    %10018 = vmatprep.mubr.bf16.mxu0 0
    %10019 = vmatmul.mubr.bf16.gmra.mrb[0].mxu0 %v5617
    %v10020 = vpop.f32.mrb[0].mxu0
    %v10021 = vadd.f32 %v9968, %v10020
    %v10022 = vpop.f32.mrb[0].mxu0
    %v10023 = vadd.f32 %v9970, %v10022
    %v10024 = vpop.f32.mrb[0].mxu0
    %v10025 = vadd.f32 %v9972, %v10024
    %v10026 = vpop.f32.mrb[0].mxu0
    %v10027 = vadd.f32 %v9974, %v10026
    %10028 = vdwg.mxu0
    %10029 = vmatprep.subr.bf16.mxu0 %v8471
    %10030 = vmatpush1.bf16.msra.mxu0 %v8470
    %10031 = vmatprep.subr.bf16.mxu0 %v8480
    %10032 = vmatpush1.bf16.msra.mxu0 %v8479
    %10033 = vmatprep.subr.bf16.mxu0 %v8489
    %10034 = vmatpush1.bf16.msra.mxu0 %v8488
    %10035 = vmatprep.subr.bf16.mxu0 %v8498
    %10036 = vmatpush1.bf16.msra.mxu0 %v8497
    %10037 = vmatprep.subr.bf16.mxu0 %v8507
    %10038 = vmatpush1.bf16.msra.mxu0 %v8506
    %10039 = vmatprep.subr.bf16.mxu0 %v8516
    %10040 = vmatpush1.bf16.msra.mxu0 %v8515
    %10041 = vmatprep.subr.bf16.mxu0 %v8525
    %10042 = vmatpush1.bf16.msra.mxu0 %v8524
    %10043 = vmatprep.subr.bf16.mxu0 %v8534
    %10044 = vmatpush1.bf16.msra.mxu0 %v8533
    %10045 = vmatprep.subr.bf16.mxu0 %v8543
    %10046 = vmatpush1.bf16.msra.mxu0 %v8542
    %10047 = vmatprep.subr.bf16.mxu0 %v8552
    %10048 = vmatpush1.bf16.msra.mxu0 %v8551
    %10049 = vmatprep.subr.bf16.mxu0 %v8561
    %10050 = vmatpush1.bf16.msra.mxu0 %v8560
    %10051 = vmatprep.subr.bf16.mxu0 %v8570
    %10052 = vmatpush1.bf16.msra.mxu0 %v8569
    %10053 = vmatprep.subr.bf16.mxu0 %v8579
    %10054 = vmatpush1.bf16.msra.mxu0 %v8578
    %10055 = vmatprep.subr.bf16.mxu0 %v8588
    %10056 = vmatpush1.bf16.msra.mxu0 %v8587
    %10057 = vmatprep.subr.bf16.mxu0 %v8597
    %10058 = vmatpush1.bf16.msra.mxu0 %v8596
    %10059 = vmatprep.subr.bf16.mxu0 %v8606
    %10060 = vmatpush1.bf16.msra.mxu0 %v8605
    %10061 = vmatprep.mubr.bf16.mxu0 %v5601
    %10062 = vmatmul.mubr.bf16.gmra.mrb[0].mxu0 %v5600
    %v10063 = vpop.f32.mrb[0].mxu0
    %v10064 = vadd.f32 0.0, %v10063
    %v10065 = vpop.f32.mrb[0].mxu0
    %v10066 = vadd.f32 0.0, %v10065
    %v10067 = vpop.f32.mrb[0].mxu0
    %v10068 = vadd.f32 0.0, %v10067
    %v10069 = vpop.f32.mrb[0].mxu0
    %v10070 = vadd.f32 0.0, %v10069
    %10071 = vmatprep.mubr.bf16.mxu0 %v5610
    %10072 = vmatmul.mubr.bf16.gmra.mrb[0].mxu0 %v5609
    %v10073 = vpop.f32.mrb[0].mxu0
    %v10074 = vadd.f32 0.0, %v10073
    %v10075 = vpop.f32.mrb[0].mxu0
    %v10076 = vadd.f32 0.0, %v10075
    %v10077 = vpop.f32.mrb[0].mxu0
    %v10078 = vadd.f32 0.0, %v10077
    %v10079 = vpop.f32.mrb[0].mxu0
    %v10080 = vadd.f32 0.0, %v10079
    %10081 = vdwg.mxu0
    %10082 = vmatprep.subr.bf16.mxu0 %v8615
    %10083 = vmatpush1.bf16.msra.mxu0 %v8614
    %10084 = vmatprep.subr.bf16.mxu0 %v8624
    %10085 = vmatpush1.bf16.msra.mxu0 %v8623
    %10086 = vmatprep.subr.bf16.mxu0 %v8633
    %10087 = vmatpush1.bf16.msra.mxu0 %v8632
    %10088 = vmatprep.subr.bf16.mxu0 %v8642
    %10089 = vmatpush1.bf16.msra.mxu0 %v8641
    %10090 = vmatprep.subr.bf16.mxu0 %v8651
    %10091 = vmatpush1.bf16.msra.mxu0 %v8650
    %10092 = vmatprep.subr.bf16.mxu0 %v8660
    %10093 = vmatpush1.bf16.msra.mxu0 %v8659
    %10094 = vmatprep.subr.bf16.mxu0 %v8669
    %10095 = vmatpush1.bf16.msra.mxu0 %v8668
    %10096 = vmatprep.subr.bf16.mxu0 %v8678
    %10097 = vmatpush1.bf16.msra.mxu0 %v8677
    %10098 = vmatprep.subr.bf16.mxu0 %v8687
    %10099 = vmatpush1.bf16.msra.mxu0 %v8686
    %10100 = vmatprep.subr.bf16.mxu0 %v8696
    %10101 = vmatpush1.bf16.msra.mxu0 %v8695
    %10102 = vmatprep.subr.bf16.mxu0 %v8705
    %10103 = vmatpush1.bf16.msra.mxu0 %v8704
    %10104 = vmatprep.subr.bf16.mxu0 %v8714
    %10105 = vmatpush1.bf16.msra.mxu0 %v8713
    %10106 = vmatprep.subr.bf16.mxu0 %v8723
    %10107 = vmatpush1.bf16.msra.mxu0 %v8722
    %10108 = vmatprep.subr.bf16.mxu0 %v8732
    %10109 = vmatpush1.bf16.msra.mxu0 %v8731
    %10110 = vmatprep.subr.bf16.mxu0 %v8741
    %10111 = vmatpush1.bf16.msra.mxu0 %v8740
    %10112 = vmatprep.subr.bf16.mxu0 %v8750
    %10113 = vmatpush1.bf16.msra.mxu0 %v8749
    %10114 = vmatprep.mubr.bf16.mxu0 %v5603
    %10115 = vmatmul.mubr.bf16.gmra.mrb[0].mxu0 %v5602
    %v10116 = vpop.f32.mrb[0].mxu0
    %v10117 = vadd.f32 %v10064, %v10116
    %v10118 = vpop.f32.mrb[0].mxu0
    %v10119 = vadd.f32 %v10066, %v10118
    %v10120 = vpop.f32.mrb[0].mxu0
    %v10121 = vadd.f32 %v10068, %v10120
    %v10122 = vpop.f32.mrb[0].mxu0
    %v10123 = vadd.f32 %v10070, %v10122
    %10124 = vmatprep.mubr.bf16.mxu0 %v5612
    %10125 = vmatmul.mubr.bf16.gmra.mrb[0].mxu0 %v5611
    %v10126 = vpop.f32.mrb[0].mxu0
    %v10127 = vadd.f32 %v10074, %v10126
    %v10128 = vpop.f32.mrb[0].mxu0
    %v10129 = vadd.f32 %v10076, %v10128
    %v10130 = vpop.f32.mrb[0].mxu0
    %v10131 = vadd.f32 %v10078, %v10130
    %v10132 = vpop.f32.mrb[0].mxu0
    %v10133 = vadd.f32 %v10080, %v10132
    %10134 = vdwg.mxu0
    %10135 = vmatprep.subr.bf16.mxu0 %v8759
    %10136 = vmatpush1.bf16.msra.mxu0 %v8758
    %10137 = vmatprep.subr.bf16.mxu0 %v8768
    %10138 = vmatpush1.bf16.msra.mxu0 %v8767
    %10139 = vmatprep.subr.bf16.mxu0 %v8777
    %10140 = vmatpush1.bf16.msra.mxu0 %v8776
    %10141 = vmatprep.subr.bf16.mxu0 %v8786
    %10142 = vmatpush1.bf16.msra.mxu0 %v8785
    %10143 = vmatprep.subr.bf16.mxu0 %v8795
    %10144 = vmatpush1.bf16.msra.mxu0 %v8794
    %10145 = vmatprep.subr.bf16.mxu0 %v8804
    %10146 = vmatpush1.bf16.msra.mxu0 %v8803
    %10147 = vmatprep.subr.bf16.mxu0 %v8813
    %10148 = vmatpush1.bf16.msra.mxu0 %v8812
    %10149 = vmatprep.subr.bf16.mxu0 %v8822
    %10150 = vmatpush1.bf16.msra.mxu0 %v8821
    %10151 = vmatprep.subr.bf16.mxu0 %v8831
    %10152 = vmatpush1.bf16.msra.mxu0 %v8830
    %10153 = vmatprep.subr.bf16.mxu0 %v8840
    %10154 = vmatpush1.bf16.msra.mxu0 %v8839
    %10155 = vmatprep.subr.bf16.mxu0 %v8849
    %10156 = vmatpush1.bf16.msra.mxu0 %v8848
    %10157 = vmatprep.subr.bf16.mxu0 %v8858
    %10158 = vmatpush1.bf16.msra.mxu0 %v8857
    %10159 = vmatprep.subr.bf16.mxu0 %v8867
    %10160 = vmatpush1.bf16.msra.mxu0 %v8866
    %10161 = vmatprep.subr.bf16.mxu0 %v8876
    %10162 = vmatpush1.bf16.msra.mxu0 %v8875
    %10163 = vmatprep.subr.bf16.mxu0 %v8885
    %10164 = vmatpush1.bf16.msra.mxu0 %v8884
    %10165 = vmatprep.subr.bf16.mxu0 %v8894
    %10166 = vmatpush1.bf16.msra.mxu0 %v8893
    %10167 = vmatprep.mubr.bf16.mxu0 %v5605
    %10168 = vmatmul.mubr.bf16.gmra.mrb[0].mxu0 %v5604
    %v10169 = vpop.f32.mrb[0].mxu0
    %v10170 = vadd.f32 %v10117, %v10169
    %v10171 = vpop.f32.mrb[0].mxu0
    %v10172 = vadd.f32 %v10119, %v10171
    %v10173 = vpop.f32.mrb[0].mxu0
    %v10174 = vadd.f32 %v10121, %v10173
    %v10175 = vpop.f32.mrb[0].mxu0
    %v10176 = vadd.f32 %v10123, %v10175
    %10177 = vmatprep.mubr.bf16.mxu0 %v5614
    %10178 = vmatmul.mubr.bf16.gmra.mrb[0].mxu0 %v5613
    %v10179 = vpop.f32.mrb[0].mxu0
    %v10180 = vadd.f32 %v10127, %v10179
    %v10181 = vpop.f32.mrb[0].mxu0
    %v10182 = vadd.f32 %v10129, %v10181
    %v10183 = vpop.f32.mrb[0].mxu0
    %v10184 = vadd.f32 %v10131, %v10183
    %v10185 = vpop.f32.mrb[0].mxu0
    %v10186 = vadd.f32 %v10133, %v10185
    %10187 = vdwg.mxu0
    %10188 = vmatprep.subr.bf16.mxu0 %v8903
    %10189 = vmatpush1.bf16.msra.mxu0 %v8902
    %10190 = vmatprep.subr.bf16.mxu0 %v8912
    %10191 = vmatpush1.bf16.msra.mxu0 %v8911
    %10192 = vmatprep.subr.bf16.mxu0 %v8921
    %10193 = vmatpush1.bf16.msra.mxu0 %v8920
    %10194 = vmatprep.subr.bf16.mxu0 %v8930
    %10195 = vmatpush1.bf16.msra.mxu0 %v8929
    %10196 = vmatprep.subr.bf16.mxu0 %v8939
    %10197 = vmatpush1.bf16.msra.mxu0 %v8938
    %10198 = vmatprep.subr.bf16.mxu0 %v8948
    %10199 = vmatpush1.bf16.msra.mxu0 %v8947
    %10200 = vmatprep.subr.bf16.mxu0 %v8957
    %10201 = vmatpush1.bf16.msra.mxu0 %v8956
    %10202 = vmatprep.subr.bf16.mxu0 %v8966
    %10203 = vmatpush1.bf16.msra.mxu0 %v8965
    %10204 = vmatprep.subr.bf16.mxu0 %v8975
    %10205 = vmatpush1.bf16.msra.mxu0 %v8974
    %10206 = vmatprep.subr.bf16.mxu0 %v8984
    %10207 = vmatpush1.bf16.msra.mxu0 %v8983
    %10208 = vmatprep.subr.bf16.mxu0 %v8993
    %10209 = vmatpush1.bf16.msra.mxu0 %v8992
    %10210 = vmatprep.subr.bf16.mxu0 %v9002
    %10211 = vmatpush1.bf16.msra.mxu0 %v9001
    %10212 = vmatprep.subr.bf16.mxu0 %v9011
    %10213 = vmatpush1.bf16.msra.mxu0 %v9010
    %10214 = vmatprep.subr.bf16.mxu0 %v9020
    %10215 = vmatpush1.bf16.msra.mxu0 %v9019
    %10216 = vmatprep.subr.bf16.mxu0 %v9029
    %10217 = vmatpush1.bf16.msra.mxu0 %v9028
    %10218 = vmatprep.subr.bf16.mxu0 %v9038
    %10219 = vmatpush1.bf16.msra.mxu0 %v9037
    %10220 = vmatprep.mubr.bf16.mxu0 %v5607
    %10221 = vmatmul.mubr.bf16.gmra.mrb[0].mxu0 %v5606
    %v10222 = vpop.f32.mrb[0].mxu0
    %v10223 = vadd.f32 %v10170, %v10222
    %v10224 = vpop.f32.mrb[0].mxu0
    %v10225 = vadd.f32 %v10172, %v10224
    %v10226 = vpop.f32.mrb[0].mxu0
    %v10227 = vadd.f32 %v10174, %v10226
    %v10228 = vpop.f32.mrb[0].mxu0
    %v10229 = vadd.f32 %v10176, %v10228
    %10230 = vmatprep.mubr.bf16.mxu0 %v5616
    %10231 = vmatmul.mubr.bf16.gmra.mrb[0].mxu0 %v5615
    %v10232 = vpop.f32.mrb[0].mxu0
    %v10233 = vadd.f32 %v10180, %v10232
    %v10234 = vpop.f32.mrb[0].mxu0
    %v10235 = vadd.f32 %v10182, %v10234
    %v10236 = vpop.f32.mrb[0].mxu0
    %v10237 = vadd.f32 %v10184, %v10236
    %v10238 = vpop.f32.mrb[0].mxu0
    %v10239 = vadd.f32 %v10186, %v10238
    %10240 = vdwg.mxu0
    %10241 = vmatprep.subr.bf16.mxu0 %v9047
    %10242 = vmatpush1.bf16.msra.mxu0 %v9046
    %10243 = vmatprep.subr.bf16.mxu0 %v9056
    %10244 = vmatpush1.bf16.msra.mxu0 %v9055
    %10245 = vmatprep.subr.bf16.mxu0 %v9065
    %10246 = vmatpush1.bf16.msra.mxu0 %v9064
    %10247 = vmatprep.subr.bf16.mxu0 %v9074
    %10248 = vmatpush1.bf16.msra.mxu0 %v9073
    %10249 = vmatprep.subr.bf16.mxu0 %v9083
    %10250 = vmatpush1.bf16.msra.mxu0 %v9082
    %10251 = vmatprep.subr.bf16.mxu0 %v9092
    %10252 = vmatpush1.bf16.msra.mxu0 %v9091
    %10253 = vmatprep.subr.bf16.mxu0 %v9101
    %10254 = vmatpush1.bf16.msra.mxu0 %v9100
    %10255 = vmatprep.subr.bf16.mxu0 %v9110
    %10256 = vmatpush1.bf16.msra.mxu0 %v9109
    %10257 = vmatprep.subr.bf16.mxu0 0
    %10258 = vmatpush1.bf16.msra.mxu0 0
    %10259 = vmatprep.subr.bf16.mxu0 0
    %10260 = vmatpush1.bf16.msra.mxu0 0
    %10261 = vmatprep.subr.bf16.mxu0 0
    %10262 = vmatpush1.bf16.msra.mxu0 0
    %10263 = vmatprep.subr.bf16.mxu0 0
    %10264 = vmatpush1.bf16.msra.mxu0 0
    %10265 = vmatprep.subr.bf16.mxu0 0
    %10266 = vmatpush1.bf16.msra.mxu0 0
    %10267 = vmatprep.subr.bf16.mxu0 0
    %10268 = vmatpush1.bf16.msra.mxu0 0
    %10269 = vmatprep.subr.bf16.mxu0 0
    %10270 = vmatpush1.bf16.msra.mxu0 0
    %10271 = vmatprep.subr.bf16.mxu0 0
    %10272 = vmatpush1.bf16.msra.mxu0 0
    %10273 = vmatprep.mubr.bf16.mxu0 0
    %10274 = vmatmul.mubr.bf16.gmra.mrb[0].mxu0 %v5608
    %v10275 = vpop.f32.mrb[0].mxu0
    %v10276 = vadd.f32 %v10223, %v10275
    %v10277 = vpop.f32.mrb[0].mxu0
    %v10278 = vadd.f32 %v10225, %v10277
    %v10279 = vpop.f32.mrb[0].mxu0
    %v10280 = vadd.f32 %v10227, %v10279
    %v10281 = vpop.f32.mrb[0].mxu0
    %v10282 = vadd.f32 %v10229, %v10281
    %10283 = vmatprep.mubr.bf16.mxu0 0
    %10284 = vmatmul.mubr.bf16.gmra.mrb[0].mxu0 %v5617
    %v10285 = vpop.f32.mrb[0].mxu0
    %v10286 = vadd.f32 %v10233, %v10285
    %v10287 = vpop.f32.mrb[0].mxu0
    %v10288 = vadd.f32 %v10235, %v10287
    %v10289 = vpop.f32.mrb[0].mxu0
    %v10290 = vadd.f32 %v10237, %v10289
    %v10291 = vpop.f32.mrb[0].mxu0
    %v10292 = vadd.f32 %v10239, %v10291
    %10293 = vdwg.mxu0
    %10294 = vmatprep.subr.bf16.mxu0 %v8473
    %10295 = vmatpush1.bf16.msra.mxu0 %v8472
    %10296 = vmatprep.subr.bf16.mxu0 %v8482
    %10297 = vmatpush1.bf16.msra.mxu0 %v8481
    %10298 = vmatprep.subr.bf16.mxu0 %v8491
    %10299 = vmatpush1.bf16.msra.mxu0 %v8490
    %10300 = vmatprep.subr.bf16.mxu0 %v8500
    %10301 = vmatpush1.bf16.msra.mxu0 %v8499
    %10302 = vmatprep.subr.bf16.mxu0 %v8509
    %10303 = vmatpush1.bf16.msra.mxu0 %v8508
    %10304 = vmatprep.subr.bf16.mxu0 %v8518
    %10305 = vmatpush1.bf16.msra.mxu0 %v8517
    %10306 = vmatprep.subr.bf16.mxu0 %v8527
    %10307 = vmatpush1.bf16.msra.mxu0 %v8526
    %10308 = vmatprep.subr.bf16.mxu0 %v8536
    %10309 = vmatpush1.bf16.msra.mxu0 %v8535
    %10310 = vmatprep.subr.bf16.mxu0 %v8545
    %10311 = vmatpush1.bf16.msra.mxu0 %v8544
    %10312 = vmatprep.subr.bf16.mxu0 %v8554
    %10313 = vmatpush1.bf16.msra.mxu0 %v8553
    %10314 = vmatprep.subr.bf16.mxu0 %v8563
    %10315 = vmatpush1.bf16.msra.mxu0 %v8562
    %10316 = vmatprep.subr.bf16.mxu0 %v8572
    %10317 = vmatpush1.bf16.msra.mxu0 %v8571
    %10318 = vmatprep.subr.bf16.mxu0 %v8581
    %10319 = vmatpush1.bf16.msra.mxu0 %v8580
    %10320 = vmatprep.subr.bf16.mxu0 %v8590
    %10321 = vmatpush1.bf16.msra.mxu0 %v8589
    %10322 = vmatprep.subr.bf16.mxu0 %v8599
    %10323 = vmatpush1.bf16.msra.mxu0 %v8598
    %10324 = vmatprep.subr.bf16.mxu0 %v8608
    %10325 = vmatpush1.bf16.msra.mxu0 %v8607
    %10326 = vmatprep.mubr.bf16.mxu0 %v5601
    %10327 = vmatmul.mubr.bf16.gmra.mrb[0].mxu0 %v5600
    %v10328 = vpop.f32.mrb[0].mxu0
    %v10329 = vadd.f32 0.0, %v10328
    %v10330 = vpop.f32.mrb[0].mxu0
    %v10331 = vadd.f32 0.0, %v10330
    %v10332 = vpop.f32.mrb[0].mxu0
    %v10333 = vadd.f32 0.0, %v10332
    %v10334 = vpop.f32.mrb[0].mxu0
    %v10335 = vadd.f32 0.0, %v10334
    %10336 = vmatprep.mubr.bf16.mxu0 %v5610
    %10337 = vmatmul.mubr.bf16.gmra.mrb[0].mxu0 %v5609
    %v10338 = vpop.f32.mrb[0].mxu0
    %v10339 = vadd.f32 0.0, %v10338
    %v10340 = vpop.f32.mrb[0].mxu0
    %v10341 = vadd.f32 0.0, %v10340
    %v10342 = vpop.f32.mrb[0].mxu0
    %v10343 = vadd.f32 0.0, %v10342
    %v10344 = vpop.f32.mrb[0].mxu0
    %v10345 = vadd.f32 0.0, %v10344
    %10346 = vdwg.mxu0
    %10347 = vmatprep.subr.bf16.mxu0 %v8617
    %10348 = vmatpush1.bf16.msra.mxu0 %v8616
    %10349 = vmatprep.subr.bf16.mxu0 %v8626
    %10350 = vmatpush1.bf16.msra.mxu0 %v8625
    %10351 = vmatprep.subr.bf16.mxu0 %v8635
    %10352 = vmatpush1.bf16.msra.mxu0 %v8634
    %10353 = vmatprep.subr.bf16.mxu0 %v8644
    %10354 = vmatpush1.bf16.msra.mxu0 %v8643
    %10355 = vmatprep.subr.bf16.mxu0 %v8653
    %10356 = vmatpush1.bf16.msra.mxu0 %v8652
    %10357 = vmatprep.subr.bf16.mxu0 %v8662
    %10358 = vmatpush1.bf16.msra.mxu0 %v8661
    %10359 = vmatprep.subr.bf16.mxu0 %v8671
    %10360 = vmatpush1.bf16.msra.mxu0 %v8670
    %10361 = vmatprep.subr.bf16.mxu0 %v8680
    %10362 = vmatpush1.bf16.msra.mxu0 %v8679
    %10363 = vmatprep.subr.bf16.mxu0 %v8689
    %10364 = vmatpush1.bf16.msra.mxu0 %v8688
    %10365 = vmatprep.subr.bf16.mxu0 %v8698
    %10366 = vmatpush1.bf16.msra.mxu0 %v8697
    %10367 = vmatprep.subr.bf16.mxu0 %v8707
    %10368 = vmatpush1.bf16.msra.mxu0 %v8706
    %10369 = vmatprep.subr.bf16.mxu0 %v8716
    %10370 = vmatpush1.bf16.msra.mxu0 %v8715
    %10371 = vmatprep.subr.bf16.mxu0 %v8725
    %10372 = vmatpush1.bf16.msra.mxu0 %v8724
    %10373 = vmatprep.subr.bf16.mxu0 %v8734
    %10374 = vmatpush1.bf16.msra.mxu0 %v8733
    %10375 = vmatprep.subr.bf16.mxu0 %v8743
    %10376 = vmatpush1.bf16.msra.mxu0 %v8742
    %10377 = vmatprep.subr.bf16.mxu0 %v8752
    %10378 = vmatpush1.bf16.msra.mxu0 %v8751
    %10379 = vmatprep.mubr.bf16.mxu0 %v5603
    %10380 = vmatmul.mubr.bf16.gmra.mrb[0].mxu0 %v5602
    %v10381 = vpop.f32.mrb[0].mxu0
    %v10382 = vadd.f32 %v10329, %v10381
    %v10383 = vpop.f32.mrb[0].mxu0
    %v10384 = vadd.f32 %v10331, %v10383
    %v10385 = vpop.f32.mrb[0].mxu0
    %v10386 = vadd.f32 %v10333, %v10385
    %v10387 = vpop.f32.mrb[0].mxu0
    %v10388 = vadd.f32 %v10335, %v10387
    %10389 = vmatprep.mubr.bf16.mxu0 %v5612
    %10390 = vmatmul.mubr.bf16.gmra.mrb[0].mxu0 %v5611
    %v10391 = vpop.f32.mrb[0].mxu0
    %v10392 = vadd.f32 %v10339, %v10391
    %v10393 = vpop.f32.mrb[0].mxu0
    %v10394 = vadd.f32 %v10341, %v10393
    %v10395 = vpop.f32.mrb[0].mxu0
    %v10396 = vadd.f32 %v10343, %v10395
    %v10397 = vpop.f32.mrb[0].mxu0
    %v10398 = vadd.f32 %v10345, %v10397
    %10399 = vdwg.mxu0
    %10400 = vmatprep.subr.bf16.mxu0 %v8761
    %10401 = vmatpush1.bf16.msra.mxu0 %v8760
    %10402 = vmatprep.subr.bf16.mxu0 %v8770
    %10403 = vmatpush1.bf16.msra.mxu0 %v8769
    %10404 = vmatprep.subr.bf16.mxu0 %v8779
    %10405 = vmatpush1.bf16.msra.mxu0 %v8778
    %10406 = vmatprep.subr.bf16.mxu0 %v8788
    %10407 = vmatpush1.bf16.msra.mxu0 %v8787
    %10408 = vmatprep.subr.bf16.mxu0 %v8797
    %10409 = vmatpush1.bf16.msra.mxu0 %v8796
    %10410 = vmatprep.subr.bf16.mxu0 %v8806
    %10411 = vmatpush1.bf16.msra.mxu0 %v8805
    %10412 = vmatprep.subr.bf16.mxu0 %v8815
    %10413 = vmatpush1.bf16.msra.mxu0 %v8814
    %10414 = vmatprep.subr.bf16.mxu0 %v8824
    %10415 = vmatpush1.bf16.msra.mxu0 %v8823
    %10416 = vmatprep.subr.bf16.mxu0 %v8833
    %10417 = vmatpush1.bf16.msra.mxu0 %v8832
    %10418 = vmatprep.subr.bf16.mxu0 %v8842
    %10419 = vmatpush1.bf16.msra.mxu0 %v8841
    %10420 = vmatprep.subr.bf16.mxu0 %v8851
    %10421 = vmatpush1.bf16.msra.mxu0 %v8850
    %10422 = vmatprep.subr.bf16.mxu0 %v8860
    %10423 = vmatpush1.bf16.msra.mxu0 %v8859
    %10424 = vmatprep.subr.bf16.mxu0 %v8869
    %10425 = vmatpush1.bf16.msra.mxu0 %v8868
    %10426 = vmatprep.subr.bf16.mxu0 %v8878
    %10427 = vmatpush1.bf16.msra.mxu0 %v8877
    %10428 = vmatprep.subr.bf16.mxu0 %v8887
    %10429 = vmatpush1.bf16.msra.mxu0 %v8886
    %10430 = vmatprep.subr.bf16.mxu0 %v8896
    %10431 = vmatpush1.bf16.msra.mxu0 %v8895
    %10432 = vmatprep.mubr.bf16.mxu0 %v5605
    %10433 = vmatmul.mubr.bf16.gmra.mrb[0].mxu0 %v5604
    %v10434 = vpop.f32.mrb[0].mxu0
    %v10435 = vadd.f32 %v10382, %v10434
    %v10436 = vpop.f32.mrb[0].mxu0
    %v10437 = vadd.f32 %v10384, %v10436
    %v10438 = vpop.f32.mrb[0].mxu0
    %v10439 = vadd.f32 %v10386, %v10438
    %v10440 = vpop.f32.mrb[0].mxu0
    %v10441 = vadd.f32 %v10388, %v10440
    %10442 = vmatprep.mubr.bf16.mxu0 %v5614
    %10443 = vmatmul.mubr.bf16.gmra.mrb[0].mxu0 %v5613
    %v10444 = vpop.f32.mrb[0].mxu0
    %v10445 = vadd.f32 %v10392, %v10444
    %v10446 = vpop.f32.mrb[0].mxu0
    %v10447 = vadd.f32 %v10394, %v10446
    %v10448 = vpop.f32.mrb[0].mxu0
    %v10449 = vadd.f32 %v10396, %v10448
    %v10450 = vpop.f32.mrb[0].mxu0
    %v10451 = vadd.f32 %v10398, %v10450
    %10452 = vdwg.mxu0
    %10453 = vmatprep.subr.bf16.mxu0 %v8905
    %10454 = vmatpush1.bf16.msra.mxu0 %v8904
    %10455 = vmatprep.subr.bf16.mxu0 %v8914
    %10456 = vmatpush1.bf16.msra.mxu0 %v8913
    %10457 = vmatprep.subr.bf16.mxu0 %v8923
    %10458 = vmatpush1.bf16.msra.mxu0 %v8922
    %10459 = vmatprep.subr.bf16.mxu0 %v8932
    %10460 = vmatpush1.bf16.msra.mxu0 %v8931
    %10461 = vmatprep.subr.bf16.mxu0 %v8941
    %10462 = vmatpush1.bf16.msra.mxu0 %v8940
    %10463 = vmatprep.subr.bf16.mxu0 %v8950
    %10464 = vmatpush1.bf16.msra.mxu0 %v8949
    %10465 = vmatprep.subr.bf16.mxu0 %v8959
    %10466 = vmatpush1.bf16.msra.mxu0 %v8958
    %10467 = vmatprep.subr.bf16.mxu0 %v8968
    %10468 = vmatpush1.bf16.msra.mxu0 %v8967
    %10469 = vmatprep.subr.bf16.mxu0 %v8977
    %10470 = vmatpush1.bf16.msra.mxu0 %v8976
    %10471 = vmatprep.subr.bf16.mxu0 %v8986
    %10472 = vmatpush1.bf16.msra.mxu0 %v8985
    %10473 = vmatprep.subr.bf16.mxu0 %v8995
    %10474 = vmatpush1.bf16.msra.mxu0 %v8994
    %10475 = vmatprep.subr.bf16.mxu0 %v9004
    %10476 = vmatpush1.bf16.msra.mxu0 %v9003
    %10477 = vmatprep.subr.bf16.mxu0 %v9013
    %10478 = vmatpush1.bf16.msra.mxu0 %v9012
    %10479 = vmatprep.subr.bf16.mxu0 %v9022
    %10480 = vmatpush1.bf16.msra.mxu0 %v9021
    %10481 = vmatprep.subr.bf16.mxu0 %v9031
    %10482 = vmatpush1.bf16.msra.mxu0 %v9030
    %10483 = vmatprep.subr.bf16.mxu0 %v9040
    %10484 = vmatpush1.bf16.msra.mxu0 %v9039
    %10485 = vmatprep.mubr.bf16.mxu0 %v5607
    %10486 = vmatmul.mubr.bf16.gmra.mrb[0].mxu0 %v5606
    %v10487 = vpop.f32.mrb[0].mxu0
    %v10488 = vadd.f32 %v10435, %v10487
    %v10489 = vpop.f32.mrb[0].mxu0
    %v10490 = vadd.f32 %v10437, %v10489
    %v10491 = vpop.f32.mrb[0].mxu0
    %v10492 = vadd.f32 %v10439, %v10491
    %v10493 = vpop.f32.mrb[0].mxu0
    %v10494 = vadd.f32 %v10441, %v10493
    %10495 = vmatprep.mubr.bf16.mxu0 %v5616
    %10496 = vmatmul.mubr.bf16.gmra.mrb[0].mxu0 %v5615
    %v10497 = vpop.f32.mrb[0].mxu0
    %v10498 = vadd.f32 %v10445, %v10497
    %v10499 = vpop.f32.mrb[0].mxu0
    %v10500 = vadd.f32 %v10447, %v10499
    %v10501 = vpop.f32.mrb[0].mxu0
    %v10502 = vadd.f32 %v10449, %v10501
    %v10503 = vpop.f32.mrb[0].mxu0
    %v10504 = vadd.f32 %v10451, %v10503
    %10505 = vdwg.mxu0
    %10506 = vmatprep.subr.bf16.mxu0 %v9049
    %10507 = vmatpush1.bf16.msra.mxu0 %v9048
    %10508 = vmatprep.subr.bf16.mxu0 %v9058
    %10509 = vmatpush1.bf16.msra.mxu0 %v9057
    %10510 = vmatprep.subr.bf16.mxu0 %v9067
    %10511 = vmatpush1.bf16.msra.mxu0 %v9066
    %10512 = vmatprep.subr.bf16.mxu0 %v9076
    %10513 = vmatpush1.bf16.msra.mxu0 %v9075
    %10514 = vmatprep.subr.bf16.mxu0 %v9085
    %10515 = vmatpush1.bf16.msra.mxu0 %v9084
    %10516 = vmatprep.subr.bf16.mxu0 %v9094
    %10517 = vmatpush1.bf16.msra.mxu0 %v9093
    %10518 = vmatprep.subr.bf16.mxu0 %v9103
    %10519 = vmatpush1.bf16.msra.mxu0 %v9102
    %10520 = vmatprep.subr.bf16.mxu0 %v9112
    %10521 = vmatpush1.bf16.msra.mxu0 %v9111
    %10522 = vmatprep.subr.bf16.mxu0 0
    %10523 = vmatpush1.bf16.msra.mxu0 0
    %10524 = vmatprep.subr.bf16.mxu0 0
    %10525 = vmatpush1.bf16.msra.mxu0 0
    %10526 = vmatprep.subr.bf16.mxu0 0
    %10527 = vmatpush1.bf16.msra.mxu0 0
    %10528 = vmatprep.subr.bf16.mxu0 0
    %10529 = vmatpush1.bf16.msra.mxu0 0
    %10530 = vmatprep.subr.bf16.mxu0 0
    %10531 = vmatpush1.bf16.msra.mxu0 0
    %10532 = vmatprep.subr.bf16.mxu0 0
    %10533 = vmatpush1.bf16.msra.mxu0 0
    %10534 = vmatprep.subr.bf16.mxu0 0
    %10535 = vmatpush1.bf16.msra.mxu0 0
    %10536 = vmatprep.subr.bf16.mxu0 0
    %10537 = vmatpush1.bf16.msra.mxu0 0
    %10538 = vmatprep.mubr.bf16.mxu0 0
    %10539 = vmatmul.mubr.bf16.gmra.mrb[0].mxu0 %v5608
    %v10540 = vpop.f32.mrb[0].mxu0
    %v10541 = vadd.f32 %v10488, %v10540
    %v10542 = vpop.f32.mrb[0].mxu0
    %v10543 = vadd.f32 %v10490, %v10542
    %v10544 = vpop.f32.mrb[0].mxu0
    %v10545 = vadd.f32 %v10492, %v10544
    %v10546 = vpop.f32.mrb[0].mxu0
    %v10547 = vadd.f32 %v10494, %v10546
    %10548 = vmatprep.mubr.bf16.mxu0 0
    %10549 = vmatmul.mubr.bf16.gmra.mrb[0].mxu0 %v5617
    %v10550 = vpop.f32.mrb[0].mxu0
    %v10551 = vadd.f32 %v10498, %v10550
    %v10552 = vpop.f32.mrb[0].mxu0
    %v10553 = vadd.f32 %v10500, %v10552
    %v10554 = vpop.f32.mrb[0].mxu0
    %v10555 = vadd.f32 %v10502, %v10554
    %v10556 = vpop.f32.mrb[0].mxu0
    %v10557 = vadd.f32 %v10504, %v10556
    %10558 = vdwg.mxu0
    %10559 = vmatprep.subr.bf16.mxu0 %v8475
    %10560 = vmatpush1.bf16.msra.mxu0 %v8474
    %10561 = vmatprep.subr.bf16.mxu0 %v8484
    %10562 = vmatpush1.bf16.msra.mxu0 %v8483
    %10563 = vmatprep.subr.bf16.mxu0 %v8493
    %10564 = vmatpush1.bf16.msra.mxu0 %v8492
    %10565 = vmatprep.subr.bf16.mxu0 %v8502
    %10566 = vmatpush1.bf16.msra.mxu0 %v8501
    %10567 = vmatprep.subr.bf16.mxu0 %v8511
    %10568 = vmatpush1.bf16.msra.mxu0 %v8510
    %10569 = vmatprep.subr.bf16.mxu0 %v8520
    %10570 = vmatpush1.bf16.msra.mxu0 %v8519
    %10571 = vmatprep.subr.bf16.mxu0 %v8529
    %10572 = vmatpush1.bf16.msra.mxu0 %v8528
    %10573 = vmatprep.subr.bf16.mxu0 %v8538
    %10574 = vmatpush1.bf16.msra.mxu0 %v8537
    %10575 = vmatprep.subr.bf16.mxu0 %v8547
    %10576 = vmatpush1.bf16.msra.mxu0 %v8546
    %10577 = vmatprep.subr.bf16.mxu0 %v8556
    %10578 = vmatpush1.bf16.msra.mxu0 %v8555
    %10579 = vmatprep.subr.bf16.mxu0 %v8565
    %10580 = vmatpush1.bf16.msra.mxu0 %v8564
    %10581 = vmatprep.subr.bf16.mxu0 %v8574
    %10582 = vmatpush1.bf16.msra.mxu0 %v8573
    %10583 = vmatprep.subr.bf16.mxu0 %v8583
    %10584 = vmatpush1.bf16.msra.mxu0 %v8582
    %10585 = vmatprep.subr.bf16.mxu0 %v8592
    %10586 = vmatpush1.bf16.msra.mxu0 %v8591
    %10587 = vmatprep.subr.bf16.mxu0 %v8601
    %10588 = vmatpush1.bf16.msra.mxu0 %v8600
    %10589 = vmatprep.subr.bf16.mxu0 %v8610
    %10590 = vmatpush1.bf16.msra.mxu0 %v8609
    %10591 = vmatprep.mubr.bf16.mxu0 %v5601
    %10592 = vmatmul.mubr.bf16.gmra.mrb[0].mxu0 %v5600
    %v10593 = vpop.f32.mrb[0].mxu0
    %v10594 = vadd.f32 0.0, %v10593
    %v10595 = vpop.f32.mrb[0].mxu0
    %v10596 = vadd.f32 0.0, %v10595
    %v10597 = vpop.f32.mrb[0].mxu0
    %v10598 = vadd.f32 0.0, %v10597
    %v10599 = vpop.f32.mrb[0].mxu0
    %v10600 = vadd.f32 0.0, %v10599
    %10601 = vmatprep.mubr.bf16.mxu0 %v5610
    %10602 = vmatmul.mubr.bf16.gmra.mrb[0].mxu0 %v5609
    %v10603 = vpop.f32.mrb[0].mxu0
    %v10604 = vadd.f32 0.0, %v10603
    %v10605 = vpop.f32.mrb[0].mxu0
    %v10606 = vadd.f32 0.0, %v10605
    %v10607 = vpop.f32.mrb[0].mxu0
    %v10608 = vadd.f32 0.0, %v10607
    %v10609 = vpop.f32.mrb[0].mxu0
    %v10610 = vadd.f32 0.0, %v10609
    %10611 = vdwg.mxu0
    %10612 = vmatprep.subr.bf16.mxu0 %v8619
    %10613 = vmatpush1.bf16.msra.mxu0 %v8618
    %10614 = vmatprep.subr.bf16.mxu0 %v8628
    %10615 = vmatpush1.bf16.msra.mxu0 %v8627
    %10616 = vmatprep.subr.bf16.mxu0 %v8637
    %10617 = vmatpush1.bf16.msra.mxu0 %v8636
    %10618 = vmatprep.subr.bf16.mxu0 %v8646
    %10619 = vmatpush1.bf16.msra.mxu0 %v8645
    %10620 = vmatprep.subr.bf16.mxu0 %v8655
    %10621 = vmatpush1.bf16.msra.mxu0 %v8654
    %10622 = vmatprep.subr.bf16.mxu0 %v8664
    %10623 = vmatpush1.bf16.msra.mxu0 %v8663
    %10624 = vmatprep.subr.bf16.mxu0 %v8673
    %10625 = vmatpush1.bf16.msra.mxu0 %v8672
    %10626 = vmatprep.subr.bf16.mxu0 %v8682
    %10627 = vmatpush1.bf16.msra.mxu0 %v8681
    %10628 = vmatprep.subr.bf16.mxu0 %v8691
    %10629 = vmatpush1.bf16.msra.mxu0 %v8690
    %10630 = vmatprep.subr.bf16.mxu0 %v8700
    %10631 = vmatpush1.bf16.msra.mxu0 %v8699
    %10632 = vmatprep.subr.bf16.mxu0 %v8709
    %10633 = vmatpush1.bf16.msra.mxu0 %v8708
    %10634 = vmatprep.subr.bf16.mxu0 %v8718
    %10635 = vmatpush1.bf16.msra.mxu0 %v8717
    %10636 = vmatprep.subr.bf16.mxu0 %v8727
    %10637 = vmatpush1.bf16.msra.mxu0 %v8726
    %10638 = vmatprep.subr.bf16.mxu0 %v8736
    %10639 = vmatpush1.bf16.msra.mxu0 %v8735
    %10640 = vmatprep.subr.bf16.mxu0 %v8745
    %10641 = vmatpush1.bf16.msra.mxu0 %v8744
    %10642 = vmatprep.subr.bf16.mxu0 %v8754
    %10643 = vmatpush1.bf16.msra.mxu0 %v8753
    %10644 = vmatprep.mubr.bf16.mxu0 %v5603
    %10645 = vmatmul.mubr.bf16.gmra.mrb[0].mxu0 %v5602
    %v10646 = vpop.f32.mrb[0].mxu0
    %v10647 = vadd.f32 %v10594, %v10646
    %v10648 = vpop.f32.mrb[0].mxu0
    %v10649 = vadd.f32 %v10596, %v10648
    %v10650 = vpop.f32.mrb[0].mxu0
    %v10651 = vadd.f32 %v10598, %v10650
    %v10652 = vpop.f32.mrb[0].mxu0
    %v10653 = vadd.f32 %v10600, %v10652
    %10654 = vmatprep.mubr.bf16.mxu0 %v5612
    %10655 = vmatmul.mubr.bf16.gmra.mrb[0].mxu0 %v5611
    %v10656 = vpop.f32.mrb[0].mxu0
    %v10657 = vadd.f32 %v10604, %v10656
    %v10658 = vpop.f32.mrb[0].mxu0
    %v10659 = vadd.f32 %v10606, %v10658
    %v10660 = vpop.f32.mrb[0].mxu0
    %v10661 = vadd.f32 %v10608, %v10660
    %v10662 = vpop.f32.mrb[0].mxu0
    %v10663 = vadd.f32 %v10610, %v10662
    %10664 = vdwg.mxu0
    %10665 = vmatprep.subr.bf16.mxu0 %v8763
    %10666 = vmatpush1.bf16.msra.mxu0 %v8762
    %10667 = vmatprep.subr.bf16.mxu0 %v8772
    %10668 = vmatpush1.bf16.msra.mxu0 %v8771
    %10669 = vmatprep.subr.bf16.mxu0 %v8781
    %10670 = vmatpush1.bf16.msra.mxu0 %v8780
    %10671 = vmatprep.subr.bf16.mxu0 %v8790
    %10672 = vmatpush1.bf16.msra.mxu0 %v8789
    %10673 = vmatprep.subr.bf16.mxu0 %v8799
    %10674 = vmatpush1.bf16.msra.mxu0 %v8798
    %10675 = vmatprep.subr.bf16.mxu0 %v8808
    %10676 = vmatpush1.bf16.msra.mxu0 %v8807
    %10677 = vmatprep.subr.bf16.mxu0 %v8817
    %10678 = vmatpush1.bf16.msra.mxu0 %v8816
    %10679 = vmatprep.subr.bf16.mxu0 %v8826
    %10680 = vmatpush1.bf16.msra.mxu0 %v8825
    %10681 = vmatprep.subr.bf16.mxu0 %v8835
    %10682 = vmatpush1.bf16.msra.mxu0 %v8834
    %10683 = vmatprep.subr.bf16.mxu0 %v8844
    %10684 = vmatpush1.bf16.msra.mxu0 %v8843
    %10685 = vmatprep.subr.bf16.mxu0 %v8853
    %10686 = vmatpush1.bf16.msra.mxu0 %v8852
    %10687 = vmatprep.subr.bf16.mxu0 %v8862
    %10688 = vmatpush1.bf16.msra.mxu0 %v8861
    %10689 = vmatprep.subr.bf16.mxu0 %v8871
    %10690 = vmatpush1.bf16.msra.mxu0 %v8870
    %10691 = vmatprep.subr.bf16.mxu0 %v8880
    %10692 = vmatpush1.bf16.msra.mxu0 %v8879
    %10693 = vmatprep.subr.bf16.mxu0 %v8889
    %10694 = vmatpush1.bf16.msra.mxu0 %v8888
    %10695 = vmatprep.subr.bf16.mxu0 %v8898
    %10696 = vmatpush1.bf16.msra.mxu0 %v8897
    %10697 = vmatprep.mubr.bf16.mxu0 %v5605
    %10698 = vmatmul.mubr.bf16.gmra.mrb[0].mxu0 %v5604
    %v10699 = vpop.f32.mrb[0].mxu0
    %v10700 = vadd.f32 %v10647, %v10699
    %v10701 = vpop.f32.mrb[0].mxu0
    %v10702 = vadd.f32 %v10649, %v10701
    %v10703 = vpop.f32.mrb[0].mxu0
    %v10704 = vadd.f32 %v10651, %v10703
    %v10705 = vpop.f32.mrb[0].mxu0
    %v10706 = vadd.f32 %v10653, %v10705
    %10707 = vmatprep.mubr.bf16.mxu0 %v5614
    %10708 = vmatmul.mubr.bf16.gmra.mrb[0].mxu0 %v5613
    %v10709 = vpop.f32.mrb[0].mxu0
    %v10710 = vadd.f32 %v10657, %v10709
    %v10711 = vpop.f32.mrb[0].mxu0
    %v10712 = vadd.f32 %v10659, %v10711
    %v10713 = vpop.f32.mrb[0].mxu0
    %v10714 = vadd.f32 %v10661, %v10713
    %v10715 = vpop.f32.mrb[0].mxu0
    %v10716 = vadd.f32 %v10663, %v10715
    %10717 = vdwg.mxu0
    %10718 = vmatprep.subr.bf16.mxu0 %v8907
    %10719 = vmatpush1.bf16.msra.mxu0 %v8906
    %10720 = vmatprep.subr.bf16.mxu0 %v8916
    %10721 = vmatpush1.bf16.msra.mxu0 %v8915
    %10722 = vmatprep.subr.bf16.mxu0 %v8925
    %10723 = vmatpush1.bf16.msra.mxu0 %v8924
    %10724 = vmatprep.subr.bf16.mxu0 %v8934
    %10725 = vmatpush1.bf16.msra.mxu0 %v8933
    %10726 = vmatprep.subr.bf16.mxu0 %v8943
    %10727 = vmatpush1.bf16.msra.mxu0 %v8942
    %10728 = vmatprep.subr.bf16.mxu0 %v8952
    %10729 = vmatpush1.bf16.msra.mxu0 %v8951
    %10730 = vmatprep.subr.bf16.mxu0 %v8961
    %10731 = vmatpush1.bf16.msra.mxu0 %v8960
    %10732 = vmatprep.subr.bf16.mxu0 %v8970
    %10733 = vmatpush1.bf16.msra.mxu0 %v8969
    %10734 = vmatprep.subr.bf16.mxu0 %v8979
    %10735 = vmatpush1.bf16.msra.mxu0 %v8978
    %10736 = vmatprep.subr.bf16.mxu0 %v8988
    %10737 = vmatpush1.bf16.msra.mxu0 %v8987
    %10738 = vmatprep.subr.bf16.mxu0 %v8997
    %10739 = vmatpush1.bf16.msra.mxu0 %v8996
    %10740 = vmatprep.subr.bf16.mxu0 %v9006
    %10741 = vmatpush1.bf16.msra.mxu0 %v9005
    %10742 = vmatprep.subr.bf16.mxu0 %v9015
    %10743 = vmatpush1.bf16.msra.mxu0 %v9014
    %10744 = vmatprep.subr.bf16.mxu0 %v9024
    %10745 = vmatpush1.bf16.msra.mxu0 %v9023
    %10746 = vmatprep.subr.bf16.mxu0 %v9033
    %10747 = vmatpush1.bf16.msra.mxu0 %v9032
    %10748 = vmatprep.subr.bf16.mxu0 %v9042
    %10749 = vmatpush1.bf16.msra.mxu0 %v9041
    %10750 = vmatprep.mubr.bf16.mxu0 %v5607
    %10751 = vmatmul.mubr.bf16.gmra.mrb[0].mxu0 %v5606
    %v10752 = vpop.f32.mrb[0].mxu0
    %v10753 = vadd.f32 %v10700, %v10752
    %v10754 = vpop.f32.mrb[0].mxu0
    %v10755 = vadd.f32 %v10702, %v10754
    %v10756 = vpop.f32.mrb[0].mxu0
    %v10757 = vadd.f32 %v10704, %v10756
    %v10758 = vpop.f32.mrb[0].mxu0
    %v10759 = vadd.f32 %v10706, %v10758
    %10760 = vmatprep.mubr.bf16.mxu0 %v5616
    %10761 = vmatmul.mubr.bf16.gmra.mrb[0].mxu0 %v5615
    %v10762 = vpop.f32.mrb[0].mxu0
    %v10763 = vadd.f32 %v10710, %v10762
    %v10764 = vpop.f32.mrb[0].mxu0
    %v10765 = vadd.f32 %v10712, %v10764
    %v10766 = vpop.f32.mrb[0].mxu0
    %v10767 = vadd.f32 %v10714, %v10766
    %v10768 = vpop.f32.mrb[0].mxu0
    %v10769 = vadd.f32 %v10716, %v10768
    %10770 = vdwg.mxu0
    %10771 = vmatprep.subr.bf16.mxu0 %v9051
    %10772 = vmatpush1.bf16.msra.mxu0 %v9050
    %10773 = vmatprep.subr.bf16.mxu0 %v9060
    %10774 = vmatpush1.bf16.msra.mxu0 %v9059
    %10775 = vmatprep.subr.bf16.mxu0 %v9069
    %10776 = vmatpush1.bf16.msra.mxu0 %v9068
    %10777 = vmatprep.subr.bf16.mxu0 %v9078
    %10778 = vmatpush1.bf16.msra.mxu0 %v9077
    %10779 = vmatprep.subr.bf16.mxu0 %v9087
    %10780 = vmatpush1.bf16.msra.mxu0 %v9086
    %10781 = vmatprep.subr.bf16.mxu0 %v9096
    %10782 = vmatpush1.bf16.msra.mxu0 %v9095
    %10783 = vmatprep.subr.bf16.mxu0 %v9105
    %10784 = vmatpush1.bf16.msra.mxu0 %v9104
    %10785 = vmatprep.subr.bf16.mxu0 %v9114
    %10786 = vmatpush1.bf16.msra.mxu0 %v9113
    %10787 = vmatprep.subr.bf16.mxu0 0
    %10788 = vmatpush1.bf16.msra.mxu0 0
    %10789 = vmatprep.subr.bf16.mxu0 0
    %10790 = vmatpush1.bf16.msra.mxu0 0
    %10791 = vmatprep.subr.bf16.mxu0 0
    %10792 = vmatpush1.bf16.msra.mxu0 0
    %10793 = vmatprep.subr.bf16.mxu0 0
    %10794 = vmatpush1.bf16.msra.mxu0 0
    %10795 = vmatprep.subr.bf16.mxu0 0
    %10796 = vmatpush1.bf16.msra.mxu0 0
    %10797 = vmatprep.subr.bf16.mxu0 0
    %10798 = vmatpush1.bf16.msra.mxu0 0
    %10799 = vmatprep.subr.bf16.mxu0 0
    %10800 = vmatpush1.bf16.msra.mxu0 0
    %10801 = vmatprep.subr.bf16.mxu0 0
    %10802 = vmatpush1.bf16.msra.mxu0 0
    %10803 = vmatprep.mubr.bf16.mxu0 0
    %10804 = vmatmul.mubr.bf16.gmra.mrb[0].mxu0 %v5608
    %v10805 = vpop.f32.mrb[0].mxu0
    %v10806 = vadd.f32 %v10753, %v10805
    %v10807 = vpop.f32.mrb[0].mxu0
    %v10808 = vadd.f32 %v10755, %v10807
    %v10809 = vpop.f32.mrb[0].mxu0
    %v10810 = vadd.f32 %v10757, %v10809
    %v10811 = vpop.f32.mrb[0].mxu0
    %v10812 = vadd.f32 %v10759, %v10811
    %10813 = vmatprep.mubr.bf16.mxu0 0
    %10814 = vmatmul.mubr.bf16.gmra.mrb[0].mxu0 %v5617
    %v10815 = vpop.f32.mrb[0].mxu0
    %v10816 = vadd.f32 %v10763, %v10815
    %v10817 = vpop.f32.mrb[0].mxu0
    %v10818 = vadd.f32 %v10765, %v10817
    %v10819 = vpop.f32.mrb[0].mxu0
    %v10820 = vadd.f32 %v10767, %v10819
    %v10821 = vpop.f32.mrb[0].mxu0
    %v10822 = vadd.f32 %v10769, %v10821
    %10823 = vdwg.mxu0
    %10824 = vmatprep.subr.bf16.mxu0 0
    %10825 = vmatpush1.bf16.msra.mxu0 %v8476
    %10826 = vmatprep.subr.bf16.mxu0 0
    %10827 = vmatpush1.bf16.msra.mxu0 %v8485
    %10828 = vmatprep.subr.bf16.mxu0 0
    %10829 = vmatpush1.bf16.msra.mxu0 %v8494
    %10830 = vmatprep.subr.bf16.mxu0 0
    %10831 = vmatpush1.bf16.msra.mxu0 %v8503
    %10832 = vmatprep.subr.bf16.mxu0 0
    %10833 = vmatpush1.bf16.msra.mxu0 %v8512
    %10834 = vmatprep.subr.bf16.mxu0 0
    %10835 = vmatpush1.bf16.msra.mxu0 %v8521
    %10836 = vmatprep.subr.bf16.mxu0 0
    %10837 = vmatpush1.bf16.msra.mxu0 %v8530
    %10838 = vmatprep.subr.bf16.mxu0 0
    %10839 = vmatpush1.bf16.msra.mxu0 %v8539
    %10840 = vmatprep.subr.bf16.mxu0 0
    %10841 = vmatpush1.bf16.msra.mxu0 %v8548
    %10842 = vmatprep.subr.bf16.mxu0 0
    %10843 = vmatpush1.bf16.msra.mxu0 %v8557
    %10844 = vmatprep.subr.bf16.mxu0 0
    %10845 = vmatpush1.bf16.msra.mxu0 %v8566
    %10846 = vmatprep.subr.bf16.mxu0 0
    %10847 = vmatpush1.bf16.msra.mxu0 %v8575
    %10848 = vmatprep.subr.bf16.mxu0 0
    %10849 = vmatpush1.bf16.msra.mxu0 %v8584
    %10850 = vmatprep.subr.bf16.mxu0 0
    %10851 = vmatpush1.bf16.msra.mxu0 %v8593
    %10852 = vmatprep.subr.bf16.mxu0 0
    %10853 = vmatpush1.bf16.msra.mxu0 %v8602
    %10854 = vmatprep.subr.bf16.mxu0 0
    %10855 = vmatpush1.bf16.msra.mxu0 %v8611
    %10856 = vmatprep.mubr.bf16.mxu0 %v5601
    %10857 = vmatmul.mubr.bf16.gmra.mrb[0].mxu0 %v5600
    %v10858 = vpop.f32.mrb[0].mxu0
    %v10859 = vadd.f32 0.0, %v10858
    %v10860 = vpop.f32.mrb[0].mxu0
    %v10861 = vpop.f32.mrb[0].mxu0
    %v10862 = vadd.f32 0.0, %v10861
    %v10863 = vpop.f32.mrb[0].mxu0
    %10864 = vmatprep.mubr.bf16.mxu0 %v5610
    %10865 = vmatmul.mubr.bf16.gmra.mrb[0].mxu0 %v5609
    %v10866 = vpop.f32.mrb[0].mxu0
    %v10867 = vadd.f32 0.0, %v10866
    %v10868 = vpop.f32.mrb[0].mxu0
    %v10869 = vpop.f32.mrb[0].mxu0
    %v10870 = vadd.f32 0.0, %v10869
    %v10871 = vpop.f32.mrb[0].mxu0
    %10872 = vdwg.mxu0
    %10873 = vmatprep.subr.bf16.mxu0 0
    %10874 = vmatpush1.bf16.msra.mxu0 %v8620
    %10875 = vmatprep.subr.bf16.mxu0 0
    %10876 = vmatpush1.bf16.msra.mxu0 %v8629
    %10877 = vmatprep.subr.bf16.mxu0 0
    %10878 = vmatpush1.bf16.msra.mxu0 %v8638
    %10879 = vmatprep.subr.bf16.mxu0 0
    %10880 = vmatpush1.bf16.msra.mxu0 %v8647
    %10881 = vmatprep.subr.bf16.mxu0 0
    %10882 = vmatpush1.bf16.msra.mxu0 %v8656
    %10883 = vmatprep.subr.bf16.mxu0 0
    %10884 = vmatpush1.bf16.msra.mxu0 %v8665
    %10885 = vmatprep.subr.bf16.mxu0 0
    %10886 = vmatpush1.bf16.msra.mxu0 %v8674
    %10887 = vmatprep.subr.bf16.mxu0 0
    %10888 = vmatpush1.bf16.msra.mxu0 %v8683
    %10889 = vmatprep.subr.bf16.mxu0 0
    %10890 = vmatpush1.bf16.msra.mxu0 %v8692
    %10891 = vmatprep.subr.bf16.mxu0 0
    %10892 = vmatpush1.bf16.msra.mxu0 %v8701
    %10893 = vmatprep.subr.bf16.mxu0 0
    %10894 = vmatpush1.bf16.msra.mxu0 %v8710
    %10895 = vmatprep.subr.bf16.mxu0 0
    %10896 = vmatpush1.bf16.msra.mxu0 %v8719
    %10897 = vmatprep.subr.bf16.mxu0 0
    %10898 = vmatpush1.bf16.msra.mxu0 %v8728
    %10899 = vmatprep.subr.bf16.mxu0 0
    %10900 = vmatpush1.bf16.msra.mxu0 %v8737
    %10901 = vmatprep.subr.bf16.mxu0 0
    %10902 = vmatpush1.bf16.msra.mxu0 %v8746
    %10903 = vmatprep.subr.bf16.mxu0 0
    %10904 = vmatpush1.bf16.msra.mxu0 %v8755
    %10905 = vmatprep.mubr.bf16.mxu0 %v5603
    %10906 = vmatmul.mubr.bf16.gmra.mrb[0].mxu0 %v5602
    %v10907 = vpop.f32.mrb[0].mxu0
    %v10908 = vadd.f32 %v10859, %v10907
    %v10909 = vpop.f32.mrb[0].mxu0
    %v10910 = vpop.f32.mrb[0].mxu0
    %v10911 = vadd.f32 %v10862, %v10910
    %v10912 = vpop.f32.mrb[0].mxu0
    %10913 = vmatprep.mubr.bf16.mxu0 %v5612
    %10914 = vmatmul.mubr.bf16.gmra.mrb[0].mxu0 %v5611
    %v10915 = vpop.f32.mrb[0].mxu0
    %v10916 = vadd.f32 %v10867, %v10915
    %v10917 = vpop.f32.mrb[0].mxu0
    %v10918 = vpop.f32.mrb[0].mxu0
    %v10919 = vadd.f32 %v10870, %v10918
    %v10920 = vpop.f32.mrb[0].mxu0
    %10921 = vdwg.mxu0
    %10922 = vmatprep.subr.bf16.mxu0 0
    %10923 = vmatpush1.bf16.msra.mxu0 %v8764
    %10924 = vmatprep.subr.bf16.mxu0 0
    %10925 = vmatpush1.bf16.msra.mxu0 %v8773
    %10926 = vmatprep.subr.bf16.mxu0 0
    %10927 = vmatpush1.bf16.msra.mxu0 %v8782
    %10928 = vmatprep.subr.bf16.mxu0 0
    %10929 = vmatpush1.bf16.msra.mxu0 %v8791
    %10930 = vmatprep.subr.bf16.mxu0 0
    %10931 = vmatpush1.bf16.msra.mxu0 %v8800
    %10932 = vmatprep.subr.bf16.mxu0 0
    %10933 = vmatpush1.bf16.msra.mxu0 %v8809
    %10934 = vmatprep.subr.bf16.mxu0 0
    %10935 = vmatpush1.bf16.msra.mxu0 %v8818
    %10936 = vmatprep.subr.bf16.mxu0 0
    %10937 = vmatpush1.bf16.msra.mxu0 %v8827
    %10938 = vmatprep.subr.bf16.mxu0 0
    %10939 = vmatpush1.bf16.msra.mxu0 %v8836
    %10940 = vmatprep.subr.bf16.mxu0 0
    %10941 = vmatpush1.bf16.msra.mxu0 %v8845
    %10942 = vmatprep.subr.bf16.mxu0 0
    %10943 = vmatpush1.bf16.msra.mxu0 %v8854
    %10944 = vmatprep.subr.bf16.mxu0 0
    %10945 = vmatpush1.bf16.msra.mxu0 %v8863
    %10946 = vmatprep.subr.bf16.mxu0 0
    %10947 = vmatpush1.bf16.msra.mxu0 %v8872
    %10948 = vmatprep.subr.bf16.mxu0 0
    %10949 = vmatpush1.bf16.msra.mxu0 %v8881
    %10950 = vmatprep.subr.bf16.mxu0 0
    %10951 = vmatpush1.bf16.msra.mxu0 %v8890
    %10952 = vmatprep.subr.bf16.mxu0 0
    %10953 = vmatpush1.bf16.msra.mxu0 %v8899
    %10954 = vmatprep.mubr.bf16.mxu0 %v5605
    %10955 = vmatmul.mubr.bf16.gmra.mrb[0].mxu0 %v5604
    %v10956 = vpop.f32.mrb[0].mxu0
    %v10957 = vadd.f32 %v10908, %v10956
    %v10958 = vpop.f32.mrb[0].mxu0
    %v10959 = vpop.f32.mrb[0].mxu0
    %v10960 = vadd.f32 %v10911, %v10959
    %v10961 = vpop.f32.mrb[0].mxu0
    %10962 = vmatprep.mubr.bf16.mxu0 %v5614
    %10963 = vmatmul.mubr.bf16.gmra.mrb[0].mxu0 %v5613
    %v10964 = vpop.f32.mrb[0].mxu0
    %v10965 = vadd.f32 %v10916, %v10964
    %v10966 = vpop.f32.mrb[0].mxu0
    %v10967 = vpop.f32.mrb[0].mxu0
    %v10968 = vadd.f32 %v10919, %v10967
    %v10969 = vpop.f32.mrb[0].mxu0
    %10970 = vdwg.mxu0
    %10971 = vmatprep.subr.bf16.mxu0 0
    %10972 = vmatpush1.bf16.msra.mxu0 %v8908
    %10973 = vmatprep.subr.bf16.mxu0 0
    %10974 = vmatpush1.bf16.msra.mxu0 %v8917
    %10975 = vmatprep.subr.bf16.mxu0 0
    %10976 = vmatpush1.bf16.msra.mxu0 %v8926
    %10977 = vmatprep.subr.bf16.mxu0 0
    %10978 = vmatpush1.bf16.msra.mxu0 %v8935
    %10979 = vmatprep.subr.bf16.mxu0 0
    %10980 = vmatpush1.bf16.msra.mxu0 %v8944
    %10981 = vmatprep.subr.bf16.mxu0 0
    %10982 = vmatpush1.bf16.msra.mxu0 %v8953
    %10983 = vmatprep.subr.bf16.mxu0 0
    %10984 = vmatpush1.bf16.msra.mxu0 %v8962
    %10985 = vmatprep.subr.bf16.mxu0 0
    %10986 = vmatpush1.bf16.msra.mxu0 %v8971
    %10987 = vmatprep.subr.bf16.mxu0 0
    %10988 = vmatpush1.bf16.msra.mxu0 %v8980
    %10989 = vmatprep.subr.bf16.mxu0 0
    %10990 = vmatpush1.bf16.msra.mxu0 %v8989
    %10991 = vmatprep.subr.bf16.mxu0 0
    %10992 = vmatpush1.bf16.msra.mxu0 %v8998
    %10993 = vmatprep.subr.bf16.mxu0 0
    %10994 = vmatpush1.bf16.msra.mxu0 %v9007
    %10995 = vmatprep.subr.bf16.mxu0 0
    %10996 = vmatpush1.bf16.msra.mxu0 %v9016
    %10997 = vmatprep.subr.bf16.mxu0 0
    %10998 = vmatpush1.bf16.msra.mxu0 %v9025
    %10999 = vmatprep.subr.bf16.mxu0 0
    %11000 = vmatpush1.bf16.msra.mxu0 %v9034
    %11001 = vmatprep.subr.bf16.mxu0 0
    %11002 = vmatpush1.bf16.msra.mxu0 %v9043
    %11003 = vmatprep.mubr.bf16.mxu0 %v5607
    %11004 = vmatmul.mubr.bf16.gmra.mrb[0].mxu0 %v5606
    %v11005 = vpop.f32.mrb[0].mxu0
    %v11006 = vadd.f32 %v10957, %v11005
    %v11007 = vpop.f32.mrb[0].mxu0
    %v11008 = vpop.f32.mrb[0].mxu0
    %v11009 = vadd.f32 %v10960, %v11008
    %v11010 = vpop.f32.mrb[0].mxu0
    %11011 = vmatprep.mubr.bf16.mxu0 %v5616
    %11012 = vmatmul.mubr.bf16.gmra.mrb[0].mxu0 %v5615
    %v11013 = vpop.f32.mrb[0].mxu0
    %v11014 = vadd.f32 %v10965, %v11013
    %v11015 = vpop.f32.mrb[0].mxu0
    %v11016 = vpop.f32.mrb[0].mxu0
    %v11017 = vadd.f32 %v10968, %v11016
    %v11018 = vpop.f32.mrb[0].mxu0
    %11019 = vdwg.mxu0
    %11020 = vmatprep.subr.bf16.mxu0 0
    %11021 = vmatpush1.bf16.msra.mxu0 %v9052
    %11022 = vmatprep.subr.bf16.mxu0 0
    %11023 = vmatpush1.bf16.msra.mxu0 %v9061
    %11024 = vmatprep.subr.bf16.mxu0 0
    %11025 = vmatpush1.bf16.msra.mxu0 %v9070
    %11026 = vmatprep.subr.bf16.mxu0 0
    %11027 = vmatpush1.bf16.msra.mxu0 %v9079
    %11028 = vmatprep.subr.bf16.mxu0 0
    %11029 = vmatpush1.bf16.msra.mxu0 %v9088
    %11030 = vmatprep.subr.bf16.mxu0 0
    %11031 = vmatpush1.bf16.msra.mxu0 %v9097
    %11032 = vmatprep.subr.bf16.mxu0 0
    %11033 = vmatpush1.bf16.msra.mxu0 %v9106
    %11034 = vmatprep.subr.bf16.mxu0 0
    %11035 = vmatpush1.bf16.msra.mxu0 %v9115
    %11036 = vmatprep.subr.bf16.mxu0 0
    %11037 = vmatpush1.bf16.msra.mxu0 0
    %11038 = vmatprep.subr.bf16.mxu0 0
    %11039 = vmatpush1.bf16.msra.mxu0 0
    %11040 = vmatprep.subr.bf16.mxu0 0
    %11041 = vmatpush1.bf16.msra.mxu0 0
    %11042 = vmatprep.subr.bf16.mxu0 0
    %11043 = vmatpush1.bf16.msra.mxu0 0
    %11044 = vmatprep.subr.bf16.mxu0 0
    %11045 = vmatpush1.bf16.msra.mxu0 0
    %11046 = vmatprep.subr.bf16.mxu0 0
    %11047 = vmatpush1.bf16.msra.mxu0 0
    %11048 = vmatprep.subr.bf16.mxu0 0
    %11049 = vmatpush1.bf16.msra.mxu0 0
    %11050 = vmatprep.subr.bf16.mxu0 0
    %11051 = vmatpush1.bf16.msra.mxu0 0
    %11052 = vmatprep.mubr.bf16.mxu0 0
    %11053 = vmatmul.mubr.bf16.gmra.mrb[0].mxu0 %v5608
    %v11054 = vpop.f32.mrb[0].mxu0
    %v11055 = vadd.f32 %v11006, %v11054
    %v11056 = vpop.f32.mrb[0].mxu0
    %v11057 = vpop.f32.mrb[0].mxu0
    %v11058 = vadd.f32 %v11009, %v11057
    %v11059 = vpop.f32.mrb[0].mxu0
    %11060 = vmatprep.mubr.bf16.mxu0 0
    %11061 = vmatmul.mubr.bf16.gmra.mrb[0].mxu0 %v5617
    %v11062 = vpop.f32.mrb[0].mxu0
    %v11063 = vadd.f32 %v11014, %v11062
    %v11064 = vpop.f32.mrb[0].mxu0
    %v11065 = vpop.f32.mrb[0].mxu0
    %v11066 = vadd.f32 %v11017, %v11065
    %v11067 = vpop.f32.mrb[0].mxu0
    %11068 = vdwg.mxu0
    %v11069 = vpack.c.bf16 %v10015, %v10011
    %v11070 = vpack.c.bf16 %v10017, %v10013
    %v11071 = vpack.c.bf16 %v10280, %v10276
    %v11072 = vpack.c.bf16 %v10282, %v10278
    %v11073 = vpack.c.bf16 %v10545, %v10541
    %v11074 = vpack.c.bf16 %v10547, %v10543
    %v11075 = vpack.c.bf16 %v10810, %v10806
    %v11076 = vpack.c.bf16 %v10812, %v10808
    %v11077 = vpack.c.bf16 %v11058, %v11055
    %v11078 = vpack.c.bf16 %v10025, %v10021
    %v11079 = vpack.c.bf16 %v10027, %v10023
    %v11080 = vpack.c.bf16 %v10290, %v10286
    %v11081 = vpack.c.bf16 %v10292, %v10288
    %v11082 = vpack.c.bf16 %v10555, %v10551
    %v11083 = vpack.c.bf16 %v10557, %v10553
    %v11084 = vpack.c.bf16 %v10820, %v10816
    %v11085 = vpack.c.bf16 %v10822, %v10818
    %v11086 = vpack.c.bf16 %v11066, %v11063
    %v11105 = vunpack.c.l.b16 %v11069
    %v11106 = vunpack.c.l.b16 %v11070
    %v11107 = vunpack.c.l.b16 %v11071
    %v11108 = vunpack.c.l.b16 %v11072
    %v11109 = vunpack.c.l.b16 %v11073
    %v11110 = vunpack.c.l.b16 %v11074
    %v11111 = vunpack.c.l.b16 %v11075
    %v11112 = vunpack.c.l.b16 %v11076
    %v11113 = vunpack.c.l.b16 %v11077
    %v11114 = vunpack.c.h.b16 %v11069
    %v11115 = vunpack.c.h.b16 %v11070
    %v11116 = vunpack.c.h.b16 %v11071
    %v11117 = vunpack.c.h.b16 %v11072
    %v11118 = vunpack.c.h.b16 %v11073
    %v11119 = vunpack.c.h.b16 %v11074
    %v11120 = vunpack.c.h.b16 %v11075
    %v11121 = vunpack.c.h.b16 %v11076
    %v11122 = vunpack.c.h.b16 %v11077
    %v11123 = vunpack.c.l.b16 %v11078
    %v11124 = vunpack.c.l.b16 %v11079
    %v11125 = vunpack.c.l.b16 %v11080
    %v11126 = vunpack.c.l.b16 %v11081
    %v11127 = vunpack.c.l.b16 %v11082
    %v11128 = vunpack.c.l.b16 %v11083
    %v11129 = vunpack.c.l.b16 %v11084
    %v11130 = vunpack.c.l.b16 %v11085
    %v11131 = vunpack.c.l.b16 %v11086
    %v11132 = vunpack.c.h.b16 %v11078
    %v11133 = vunpack.c.h.b16 %v11079
    %v11134 = vunpack.c.h.b16 %v11080
    %v11135 = vunpack.c.h.b16 %v11081
    %v11136 = vunpack.c.h.b16 %v11082
    %v11137 = vunpack.c.h.b16 %v11083
    %v11138 = vunpack.c.h.b16 %v11084
    %v11139 = vunpack.c.h.b16 %v11085
    %v11140 = vunpack.c.h.b16 %v11086
    %v11141 = vpack.c.b16 %v11106, %v11105
    %v11142 = vpack.c.b16 %v11108, %v11107
    %v11143 = vpack.c.b16 %v11110, %v11109
    %v11144 = vpack.c.b16 %v11112, %v11111
    %v11145 = vpack.c.b16 %v11113, %v11113
    %v11146 = vpack.c.b16 %v11115, %v11114
    %v11147 = vpack.c.b16 %v11117, %v11116
    %v11148 = vpack.c.b16 %v11119, %v11118
    %v11149 = vpack.c.b16 %v11121, %v11120
    %v11150 = vpack.c.b16 %v11122, %v11122
    %v11151 = vpack.c.b16 %v11124, %v11123
    %v11152 = vpack.c.b16 %v11126, %v11125
    %v11153 = vpack.c.b16 %v11128, %v11127
    %v11154 = vpack.c.b16 %v11130, %v11129
    %v11155 = vpack.c.b16 %v11131, %v11131
    %v11156 = vpack.c.b16 %v11133, %v11132
    %v11157 = vpack.c.b16 %v11135, %v11134
    %v11158 = vpack.c.b16 %v11137, %v11136
    %v11159 = vpack.c.b16 %v11139, %v11138
    %v11160 = vpack.c.b16 %v11140, %v11140
    %11181 = vst [vmem:[#allocation17] sm:$0xff] %v11141
    %11182 = vst [vmem:[#allocation17 + $0x8] sm:$0xff] %v11142
    %11183 = vst [vmem:[#allocation17 + $0x10] sm:$0xff] %v11143
    %11184 = vst [vmem:[#allocation17 + $0x18] sm:$0xff] %v11144
    %11185 = vst [vmem:[#allocation17 + $0x20] sm:$0xf] %v11145
    %11186 = vst [vmem:[#allocation17 + $0x24] sm:$0xff] %v11146
    %11187 = vst [vmem:[#allocation17 + $0x2c] sm:$0xff] %v11147
    %11188 = vst [vmem:[#allocation17 + $0x34] sm:$0xff] %v11148
    %11189 = vst [vmem:[#allocation17 + $0x3c] sm:$0xff] %v11149
    %11190 = vst [vmem:[#allocation17 + $0x44] sm:$0xf] %v11150
    %11191 = vst [vmem:[#allocation17 + $0x48] sm:$0xff] %v11151
    %11192 = vst [vmem:[#allocation17 + $0x50] sm:$0xff] %v11152
    %11193 = vst [vmem:[#allocation17 + $0x58] sm:$0xff] %v11153
    %11194 = vst [vmem:[#allocation17 + $0x60] sm:$0xff] %v11154
    %11195 = vst [vmem:[#allocation17 + $0x68] sm:$0xf] %v11155
    %11196 = vst [vmem:[#allocation17 + $0x6c] sm:$0x77] %v11156
    %11197 = vst [vmem:[#allocation17 + $0x74] sm:$0x77] %v11157
    %11198 = vst [vmem:[#allocation17 + $0x7c] sm:$0x77] %v11158
    %11199 = vst [vmem:[#allocation17 + $0x84] sm:$0x77] %v11159
    %11200 = vst [vmem:[#allocation17 + $0x8c] sm:$0x7] %v11160
    // Predicated region
    $region66: #{tag_encoder_forward.1} parent=1 // pred_check
      _
    $region67: #{tag_encoder_forward.1} parent=1 // pred_check_branch
      %11202 = sbr.rel (0) target = $region69
    $region68: #{tag_encoder_forward.1} parent=1 // pred_region
      %s11204 = ssub.s32 2304, 2304
      %11205 = vsyncadd [#allocation4], %s11204
      %s11206 = sshll.u32 [#allocation16], 4
      %s11207 = int_to_ptr.vmem [resolvable:$true] %s11206
      %11212 = dma.vmem_to_hbm [thread:$0]  %s11207, 2304, %s8, [#allocation4], 576, 576, 36
    $region69: #{tag_encoder_forward.1} parent=1 // pred_fallthru
      _
    // Predicated region
    $region70: #{tag_encoder_forward.1} parent=1 // pred_check
      _
    $region71: #{tag_encoder_forward.1} parent=1 // pred_check_branch
      %11214 = sbr.rel (0) target = $region73
    $region72: #{tag_encoder_forward.1} parent=1 // pred_region
      %s11216 = ssub.s32 2304, 2304
      %11217 = vsyncadd [#allocation18], %s11216
      %s11218 = sshll.u32 [#allocation17], 4
      %s11219 = int_to_ptr.vmem [resolvable:$true] %s11218
      %11224 = dma.vmem_to_hbm [thread:$0]  %s11219, 2304, %s9, [#allocation18], 576, 576, 36
    $region73: #{tag_encoder_forward.1} parent=1 // pred_fallthru
      _
    // Predicated region
    $region74: #{tag_encoder_forward.1} parent=1 // pred_check
      _
    $region75: #{tag_encoder_forward.1} parent=1 // pred_check_branch
      %11226 = sbr.rel (0) target = $region77
    $region76: #{tag_encoder_forward.1} parent=1 // pred_region
      %11227 = dma.done [#allocation4], 2304
    $region77: #{tag_encoder_forward.1} parent=1 // pred_fallthru
      _
    // Predicated region
    $region78: #{tag_encoder_forward.1} parent=1 // pred_check
      _
    $region79: #{tag_encoder_forward.1} parent=1 // pred_check_branch
      %11229 = sbr.rel (0) target = $region81
    $region80: #{tag_encoder_forward.1} parent=1 // pred_region
      %11230 = dma.done [#allocation18], 2304
    $region81: #{tag_encoder_forward.1} parent=1 // pred_fallthru
      _
    %11231 = vsyncpa [#allocation3], 1
    %11232 = vsyncpa [#allocation6], 1
    %11233 = vsyncpa [#allocation9], 1
    %11234 = vsyncpa [#allocation12], 1
    %11235 = vsyncpa [#allocation15], 1
    %11236 = vsyncpa [#allocation4], 1
    %11237 = vsyncpa [#allocation18], 1

</llo_original>
